<compile_context>
chip_gen: v5e
topology: v5e:2x2
jax: 0.10.0
libtpu: 0.0.40
codegen_flags: <defaults>
</compile_context>

<pallas_src>
import math
import numpy as np

import jax
import jax.numpy as jnp
from jax.experimental import pallas as pl
from jax.experimental.pallas import tpu as pltpu


# -----------------------------------------------------------------------------
# Deterministic parameter setup (mirrors HarmonicFilter.__init__ / get_Fcs)
# -----------------------------------------------------------------------------
def f_midi2hz(midi, tuning_hz=440.0):
    return tuning_hz * 2.0 ** ((midi - 69.0) / 12.0)


def get_fcs(n_harmonic, semitone_scale=2, low_midi=24, high_midi=94):
    level = int((high_midi - low_midi) * semitone_scale)
    midi = np.linspace(low_midi, high_midi, level + 1)
    hz = f_midi2hz(midi[:-1])
    harmonic_hz = np.concatenate([hz * (i + 1) for i in range(n_harmonic)]).astype(np.float32)
    return harmonic_hz, level


def _round_up(x, m):
    return ((x + m - 1) // m) * m


# -----------------------------------------------------------------------------
# AmplitudeToDB constants (multiplier=10, amin=1e-6, ref=1.0)
# -----------------------------------------------------------------------------
_MULTIPLIER = 10.0
_AMIN = 1e-6
_REF_VALUE = 1.0
_DB_OFFSET = _MULTIPLIER * math.log10(max(_AMIN, _REF_VALUE))   # == 0.0
_INV_LN10 = 1.0 / math.log(10.0)


# -----------------------------------------------------------------------------
# Constant matrices: windowed real-DFT (cos/sin) and harmonic filterbank
# -----------------------------------------------------------------------------
def _build_dft_filterbank(sample_rate, n_fft, n_harmonic, semitone_scale,
                          bw_alpha, bw_beta, bw_q, f_pad):
    n_freq = 1 + n_fft // 2

    # periodic hann window folded into the DFT matrices (librosa window='hann')
    n = np.arange(n_fft, dtype=np.float64)
    win = 0.5 - 0.5 * np.cos(2.0 * np.pi * n / n_fft)
    k = np.arange(n_freq, dtype=np.float64)
    ang = 2.0 * np.pi * np.outer(k, n) / n_fft                       # (F, n_fft)
    cos_m = np.zeros((f_pad, n_fft), np.float32)
    sin_m = np.zeros((f_pad, n_fft), np.float32)
    cos_m[:n_freq] = (np.cos(ang) * win[None, :]).astype(np.float32)
    sin_m[:n_freq] = (-np.sin(ang) * win[None, :]).astype(np.float32)

    # harmonic triangular filterbank, stored transposed: (M, F_pad)
    f0, level = get_fcs(n_harmonic, semitone_scale)                  # (M,)
    f0 = f0.astype(np.float64)
    fft_bins = np.linspace(0.0, float(sample_rate // 2), n_freq, dtype=np.float64)
    bw = (bw_alpha * f0 + bw_beta) / bw_q                            # (M,)
    left = fft_bins[None, :] * (2.0 / bw)[:, None] + 1.0 - (2.0 * f0 / bw)[:, None]
    right = fft_bins[None, :] * (-2.0 / bw)[:, None] + 1.0 + (2.0 * f0 / bw)[:, None]
    fb_t = np.maximum(0.0, np.minimum(left, right)).astype(np.float32)   # (M, F)
    fb_t_pad = np.zeros((f0.shape[0], f_pad), np.float32)
    fb_t_pad[:, :n_freq] = fb_t
    return cos_m, sin_m, fb_t_pad, level


# -----------------------------------------------------------------------------
# Fused Pallas kernel: windowed DFT + |.| + harmonic filterbank + AmplitudeToDB
# -----------------------------------------------------------------------------
def frontend_kernel(frames_ref, cos_ref, sin_ref, fb_ref, out_ref):
    # frames_ref: (1, n_fft, tT)   bf16   raw sample frames (frame-minor)
    # cos_ref   : (F_pad, n_fft)   bf16   hann * cos
    # sin_ref   : (F_pad, n_fft)   bf16   hann * (-sin)
    # fb_ref    : (M, F_pad)       bf16   harmonic filterbank (transposed)
    # out_ref   : (1, M, tT)       f32    dB output in (B, M, T) layout
    fr = frames_ref[0]                                                     # (n_fft, tT)
    re = jnp.dot(cos_ref[...], fr, preferred_element_type=jnp.float32)     # (F_pad, tT) MXU
    im = jnp.dot(sin_ref[...], fr, preferred_element_type=jnp.float32)     # (F_pad, tT) MXU
    mag = jnp.sqrt(re * re + im * im)                                      # f32 VPU/EUP
    hs = jnp.dot(fb_ref[...], mag.astype(jnp.bfloat16),
                 preferred_element_type=jnp.float32)                       # (M, tT) MXU
    # AmplitudeToDB: 10*log10(clamp(x, amin)) - 10*log10(max(amin, ref))
    db = _MULTIPLIER * (jnp.log(jnp.maximum(hs, _AMIN)) * _INV_LN10) - _DB_OFFSET
    out_ref[0] = db.astype(out_ref.dtype)


# -----------------------------------------------------------------------------
# Frontend forward
# -----------------------------------------------------------------------------
def frontend_forward(waveform,
                     sample_rate=22050, n_fft=512, n_harmonic=6, semitone_scale=2,
                     bw_alpha=0.1079, bw_beta=24.7, bw_q=1.0,
                     frame_tile=256):
    B, _ = waveform.shape
    hop = n_fft // 4
    pad = n_fft // 2
    n_freq = 1 + n_fft // 2
    f_pad = _round_up(n_freq, 128)

    # --- framing glue (librosa-style center reflect pad), frame-minor layout.
    # TODO(synk): the overlapping-window gather has no clean BlockSpec
    # expression (stride=hop overlap); kept as XLA glue feeding the kernel.
    xp = jnp.pad(waveform.astype(jnp.float32), ((0, 0), (pad, pad)), mode="reflect")
    n_frames = 1 + (xp.shape[1] - n_fft) // hop
    t_pad = _round_up(n_frames, frame_tile)
    idx = jnp.arange(n_fft)[:, None] + jnp.arange(n_frames)[None, :] * hop   # (n_fft, T)
    frames_t = xp[:, idx]                                                    # (B, n_fft, T)
    frames_t = jnp.pad(frames_t, ((0, 0), (0, 0), (0, t_pad - n_frames)))
    frames_t = frames_t.astype(jnp.bfloat16)

    # --- constant bf16 MXU operands
    cos_m, sin_m, fb_t, level = _build_dft_filterbank(
        sample_rate, n_fft, n_harmonic, semitone_scale, bw_alpha, bw_beta, bw_q, f_pad)
    cos_m = jnp.asarray(cos_m, jnp.bfloat16)
    sin_m = jnp.asarray(sin_m, jnp.bfloat16)
    fb_t = jnp.asarray(fb_t, jnp.bfloat16)
    n_bands = fb_t.shape[0]                                                  # M = 840

    grid = (B, t_pad // frame_tile)
    out = pl.pallas_call(
        frontend_kernel,
        out_shape=jax.ShapeDtypeStruct((B, n_bands, t_pad), jnp.float32),
        grid_spec=pltpu.PrefetchScalarGridSpec(
            num_scalar_prefetch=0,
            grid=grid,
            in_specs=[
                pl.BlockSpec((1, n_fft, frame_tile), lambda b, t: (b, 0, t)),
                pl.BlockSpec((f_pad, n_fft), lambda b, t: (0, 0)),
                pl.BlockSpec((f_pad, n_fft), lambda b, t: (0, 0)),
                pl.BlockSpec((n_bands, f_pad), lambda b, t: (0, 0)),
            ],
            out_specs=pl.BlockSpec((1, n_bands, frame_tile), lambda b, t: (b, 0, t)),
        ),
        compiler_params=pltpu.CompilerParams(
            dimension_semantics=("parallel", "parallel"),
            vmem_limit_bytes=32 * 1024 * 1024,
        ),
    )(frames_t, cos_m, sin_m, fb_t)

    out = out[:, :, :n_frames]                       # drop padded frames
    # matches PyTorch: (B, M, T) viewed as (B, n_harmonic, level, T)
    return out.reshape(B, n_harmonic, level, n_frames)


# -----------------------------------------------------------------------------
# Plain-JAX reference with identical numerics (bf16 operands, f32 accumulate)
# -----------------------------------------------------------------------------
def frontend_reference(waveform,
                       sample_rate=22050, n_fft=512, n_harmonic=6, semitone_scale=2,
                       bw_alpha=0.1079, bw_beta=24.7, bw_q=1.0):
    B, _ = waveform.shape
    hop = n_fft // 4
    pad = n_fft // 2
    n_freq = 1 + n_fft // 2
    f_pad = _round_up(n_freq, 128)
    xp = jnp.pad(waveform.astype(jnp.float32), ((0, 0), (pad, pad)), mode="reflect")
    n_frames = 1 + (xp.shape[1] - n_fft) // hop
    idx = jnp.arange(n_fft)[:, None] + jnp.arange(n_frames)[None, :] * hop
    frames_t = xp[:, idx].astype(jnp.bfloat16)                               # (B, n_fft, T)
    cos_m, sin_m, fb_t, level = _build_dft_filterbank(
        sample_rate, n_fft, n_harmonic, semitone_scale, bw_alpha, bw_beta, bw_q, f_pad)
    cos_m = jnp.asarray(cos_m, jnp.bfloat16)
    sin_m = jnp.asarray(sin_m, jnp.bfloat16)
    fb_t = jnp.asarray(fb_t, jnp.bfloat16)
    re = jnp.einsum("fn,bnt->bft", cos_m, frames_t, preferred_element_type=jnp.float32)
    im = jnp.einsum("fn,bnt->bft", sin_m, frames_t, preferred_element_type=jnp.float32)
    mag = jnp.sqrt(re * re + im * im)
    hs = jnp.einsum("mf,bft->bmt", fb_t, mag.astype(jnp.bfloat16),
                    preferred_element_type=jnp.float32)
    db = _MULTIPLIER * (jnp.log(jnp.maximum(hs, _AMIN)) * _INV_LN10) - _DB_OFFSET
    return db.reshape(B, n_harmonic, level, n_frames)


if __name__ == "__main__":
    key = jax.random.PRNGKey(0)
    batch, n_samples = 2, 1024                                  # small waveform
    waveform = jax.random.normal(key, (batch, n_samples), dtype=jnp.float32)

    out = frontend_forward(waveform)
    out = jax.block_until_ready(out)

    # n_fft=512 -> 257 freq bins; hop=128 -> 9 frames; 6 harmonics x 140 levels
    assert out.shape == (2, 6, 140, 9), out.shape
    assert out.dtype == jnp.float32
    assert bool(jnp.all(jnp.isfinite(out)))

    ref = jax.block_until_ready(frontend_reference(waveform))
    max_diff = float(jnp.max(jnp.abs(out - ref)))
    assert max_diff < 0.5, f"max |kernel - reference| dB diff too large: {max_diff}"

    print("KERNEL_OK")
</pallas_src>

<mosaic_0001>
module attributes {stable_mosaic.version = 11 : i64} {
  func.func @frontend_kernel(%arg0: i32, %arg1: i32, %arg2: memref<1x512x256xbf16, #tpu.memory_space<vmem>>, %arg3: memref<384x512xbf16, #tpu.memory_space<vmem>>, %arg4: memref<384x512xbf16, #tpu.memory_space<vmem>>, %arg5: memref<840x384xbf16, #tpu.memory_space<vmem>>, %arg6: memref<1x840x256xf32, #tpu.memory_space<vmem>>) attributes {dimension_semantics = [#tpu.dimension_semantics<parallel>, #tpu.dimension_semantics<parallel>], iteration_bounds = array<i64: 2, 1>, scalar_prefetch = 0 : i64, scratch_operands = 0 : i64, tpu.core_type = #tpu.core_type<tc>, window_params = [{transform_indices = @transform_0, window_bounds = array<i64: 1, 512, 256>}, {pipeline_mode = #tpu.pipeline_mode<synchronous>, transform_indices = @transform_1, window_bounds = array<i64: 384, 512>}, {pipeline_mode = #tpu.pipeline_mode<synchronous>, transform_indices = @transform_2, window_bounds = array<i64: 384, 512>}, {pipeline_mode = #tpu.pipeline_mode<synchronous>, transform_indices = @transform_3, window_bounds = array<i64: 840, 384>}, {transform_indices = @transform_4, window_bounds = array<i64: 1, 840, 256>}]} {
    %c0 = arith.constant 0 : index
    %c0_0 = arith.constant 0 : index
    %c0_1 = arith.constant 0 : index
    %0 = vector.load %arg2[%c0, %c0_0, %c0_1] : memref<1x512x256xbf16, #tpu.memory_space<vmem>>, vector<1x512x256xbf16>
    %1 = vector.shape_cast %0 : vector<1x512x256xbf16> to vector<512x256xbf16>
    %c0_2 = arith.constant 0 : index
    %c0_3 = arith.constant 0 : index
    %2 = vector.load %arg3[%c0_2, %c0_3] : memref<384x512xbf16, #tpu.memory_space<vmem>>, vector<384x512xbf16>
    %cst = arith.constant dense<0.000000e+00> : vector<384x256xf32>
    %3 = tpu.matmul %2, %1, %cst {dimension_numbers = #tpu.dot_dimension_numbers<[1], [0], [0], [1], [0, 0, 1, 1], [], []>} : vector<384x512xbf16>, vector<512x256xbf16>, vector<384x256xf32> -> vector<384x256xf32>
    %c0_4 = arith.constant 0 : index
    %c0_5 = arith.constant 0 : index
    %4 = vector.load %arg4[%c0_4, %c0_5] : memref<384x512xbf16, #tpu.memory_space<vmem>>, vector<384x512xbf16>
    %cst_6 = arith.constant dense<0.000000e+00> : vector<384x256xf32>
    %5 = tpu.matmul %4, %1, %cst_6 {dimension_numbers = #tpu.dot_dimension_numbers<[1], [0], [0], [1], [0, 0, 1, 1], [], []>} : vector<384x512xbf16>, vector<512x256xbf16>, vector<384x256xf32> -> vector<384x256xf32>
    %6 = arith.mulf %3, %3 : vector<384x256xf32>
    %7 = arith.mulf %5, %5 : vector<384x256xf32>
    %8 = arith.addf %6, %7 : vector<384x256xf32>
    %9 = math.sqrt %8 : vector<384x256xf32>
    %c0_7 = arith.constant 0 : index
    %c0_8 = arith.constant 0 : index
    %10 = vector.load %arg5[%c0_7, %c0_8] : memref<840x384xbf16, #tpu.memory_space<vmem>>, vector<840x384xbf16>
    %11 = arith.truncf %9 : vector<384x256xf32> to vector<384x256xbf16>
    %cst_9 = arith.constant dense<0.000000e+00> : vector<840x256xf32>
    %12 = tpu.matmul %10, %11, %cst_9 {dimension_numbers = #tpu.dot_dimension_numbers<[1], [0], [0], [1], [0, 0, 1, 1], [], []>} : vector<840x384xbf16>, vector<384x256xbf16>, vector<840x256xf32> -> vector<840x256xf32>
    %cst_10 = arith.constant 9.99999997E-7 : f32
    %13 = vector.broadcast %cst_10 : f32 to vector<840x256xf32>
    %14 = arith.maximumf %12, %13 : vector<840x256xf32>
    %15 = math.log %14 : vector<840x256xf32>
    %cst_11 = arith.constant 0.434294492 : f32
    %16 = vector.broadcast %cst_11 : f32 to vector<840x256xf32>
    %17 = arith.mulf %15, %16 : vector<840x256xf32>
    %cst_12 = arith.constant 1.000000e+01 : f32
    %18 = vector.broadcast %cst_12 : f32 to vector<840x256xf32>
    %19 = arith.mulf %18, %17 : vector<840x256xf32>
    %cst_13 = arith.constant 0.000000e+00 : f32
    %20 = vector.broadcast %cst_13 : f32 to vector<840x256xf32>
    %21 = arith.subf %19, %20 : vector<840x256xf32>
    %c0_14 = arith.constant 0 : index
    %c0_15 = arith.constant 0 : index
    %c0_16 = arith.constant 0 : index
    %22 = vector.load %arg6[%c0_14, %c0_15, %c0_16] : memref<1x840x256xf32, #tpu.memory_space<vmem>>, vector<1x840x256xf32>
    %23 = vector.shape_cast %22 : vector<1x840x256xf32> to vector<840x256xf32>
    %24 = vector.shape_cast %21 : vector<840x256xf32> to vector<1x840x256xf32>
    tpu.vector_store %arg6[%c0_14, %c0_15, %c0_16], %24 {strides = array<i32>} : memref<1x840x256xf32, #tpu.memory_space<vmem>>, vector<1x840x256xf32>,
    return
  }
  func.func @transform_0(%arg0: i32, %arg1: i32) -> (i32, i32, i32) {
    %c0_i32 = arith.constant 0 : i32
    %c0_i32_0 = arith.constant 0 : i32
    return %arg0, %c0_i32, %arg1 : i32, i32, i32
  }
  func.func @transform_1(%arg0: i32, %arg1: i32) -> (i32, i32) {
    %c0_i32 = arith.constant 0 : i32
    %c0_i32_0 = arith.constant 0 : i32
    %c0_i32_1 = arith.constant 0 : i32
    return %c0_i32, %c0_i32_0 : i32, i32
  }
  func.func @transform_2(%arg0: i32, %arg1: i32) -> (i32, i32) {
    %c0_i32 = arith.constant 0 : i32
    %c0_i32_0 = arith.constant 0 : i32
    %c0_i32_1 = arith.constant 0 : i32
    return %c0_i32, %c0_i32_0 : i32, i32
  }
  func.func @transform_3(%arg0: i32, %arg1: i32) -> (i32, i32) {
    %c0_i32 = arith.constant 0 : i32
    %c0_i32_0 = arith.constant 0 : i32
    %c0_i32_1 = arith.constant 0 : i32
    return %c0_i32, %c0_i32_0 : i32, i32
  }
  func.func @transform_4(%arg0: i32, %arg1: i32) -> (i32, i32, i32) {
    %c0_i32 = arith.constant 0 : i32
    %c0_i32_0 = arith.constant 0 : i32
    return %arg0, %c0_i32, %arg1 : i32, i32, i32
  }
}

</mosaic_0001>

<llo_original>
// kernel: tpu_custom_call.1
$region0: #{tpu_custom_call.1}
  #allocation0 [shape = 'u32[]', space=smem, size = 0x4, offset = 0x4, fixed_abs, tag = 'smem constant byte address 0x4 - core index']
  #allocation1 [shape = 'u32[72,128]{1,0:T(1,128)}', space=vmem, size = 0x9000, scoped, tag = 'internal scratch']
  %s0 = inlined_call_operand.hbm [shape: bf16[2,512,256], index: 0, kind: input, shape index: {}]
  %s1 = inlined_call_operand.hbm [shape: bf16[384,512], index: 1, kind: input, shape index: {}]
  %s2 = inlined_call_operand.hbm [shape: bf16[384,512], index: 2, kind: input, shape index: {}]
  %s3 = inlined_call_operand.hbm [shape: bf16[840,384], index: 3, kind: input, shape index: {}]
  %s4 = inlined_call_operand.hbm [shape: f32[2,840,256], index: 4, kind: output, shape index: {}]
  %s5 = sld [smem:[#allocation0]]
  $region65: #{tpu_custom_call.1} parent=0
    _
  %s7 = ssub.s32 1, %s5
  %s8 = scalar_select 0, %s7, %s5
  $region1: #{tpu_custom_call.1} parent=0
    #allocation2 [shape = 'u8[524288]{0}', space=vmem, size = 0x80000, scoped, tag = 'input window, operand 0']
    #allocation3 [shape = 's32[2]{0}', space=sflag, size = 0x8, scoped, tag = 'scoped memory for tpu_custom_call.1']
    #allocation4 [shape = 's32[2]{0}', space=sflag, size = 0x8, scoped, tag = 'scoped memory for tpu_custom_call.1']
    #allocation5 [shape = 'u8[393216]{0}', space=vmem, size = 0x60000, scoped, tag = 'input window, operand 1, single buffered']
    #allocation6 [shape = 's32[1]{0}', space=sflag, size = 0x4, scoped, tag = 'scoped memory for tpu_custom_call.1']
    #allocation7 [shape = 'u8[393216]{0}', space=vmem, size = 0x60000, scoped, tag = 'input window, operand 2, single buffered']
    #allocation8 [shape = 'u8[645120]{0}', space=vmem, size = 0x9d800, scoped, tag = 'input window, operand 3, single buffered']
    #allocation9 [shape = 's32[1]{0}', space=sflag, size = 0x4, scoped, tag = 'scoped memory for tpu_custom_call.1']
    #allocation10 [shape = 'u8[1720320]{0}', space=vmem, size = 0x1a4000, scoped, tag = 'output window, operand 0']
    %9 = vsyncpa [#allocation3], 0
    %s10 = scalar_lea.sflag [#allocation3], 1
    %11 = vsyncpa %s10, 0
    %12 = vsyncpa [#allocation6], 0
    %13 = vsyncpa [#allocation9], 0
    %14 = vsyncpa [#allocation4], 0
    %s15 = scalar_lea.sflag [#allocation4], 1
    %16 = vsyncpa %s15, 0
    loop: start=0, step=1, limit=4
    $region2: #{tpu_custom_call.1} parent=1 // loop_pre_header
      _
    $region3: #{tpu_custom_call.1} parent=1 // loop_header
      %s18 = sphi 0, %s22
      %p19 = scmp.ge.s32.totalorder %s18, 4
      %s25 = sphi 0, %s37
      %s26 = sphi 0, %s33
      %s27 = sphi 0, %s25
      %s28 = sphi 0, %s26
      %s29 = sphi 0, %s27
      %s30 = sphi 0, %s28
      %s42 = sphi 0, %s44
      %s45 = sphi 0, %s42
      %s46 = sphi 0, %s45
      %s62 = sphi 0, %s46
      %s66 = sphi 0, %s66
      %s68 = sphi 0, %s66
      %s69 = sphi 0, %s68
      %s83 = sphi 0, %s69
      %s87 = sphi 0, %s87
      %s89 = sphi 0, %s87
      %s90 = sphi 0, %s89
      %s104 = sphi 0, %s90
      %s108 = sphi 0, %s108
      %s110 = sphi 0, %s108
      %s111 = sphi 0, %s110
      %s125 = sphi 0, %s111
      %s133 = sphi 0, %s135
      %s136 = sphi 0, %s133
      %s137 = sphi 0, %s136
      %s153 = sphi 0, %s137
    $region4: #{tpu_custom_call.1} parent=1 // loop_header_branch
      %21 = sbr.rel (%p19) target = $region8
    $region5: #{tpu_custom_call.1} parent=1 // loop_body
      %s23 = ssub.s32 %s18, 1
      %s24 = ssub.s32 %s18, 2
      %s31 = sadd.s32 1, %s26
      %p32 = scmp.ge.s32.totalorder %s31, 1
      %s33 = scalar_select %p32, 0, %s31
      %s34 = sadd.s32 1, %s25
      %s35 = scalar_select %p32, %s34, %s25
      %p36 = scmp.ge.s32.totalorder %s35, 2
      %s37 = scalar_select %p36, 0, %s35
      %s38 = ssub.s32 %s25, %s37
      %s39 = ssub.s32 %s26, %s33
      %s40 = sor.u32 %s38, %s39
      %p41 = scmp.eq.s32.totalorder %s40, 0
      %s43 = sadd.s32 %s42, 1
      %s44 = scalar_select %p41, %s42, %s43
      %p47 = pneg %p41
      %p48 = scmp.eq.s32.totalorder %s18, 1
      %p49 = por %p47, %p48
      %p50 = scmp.ne.s32.totalorder %s42, %s45
      %p51 = scmp.eq.s32.totalorder %s18, 0
      %p52 = por %p50, %p51
      %p53 = scmp.ne.s32.totalorder %s42, %s45
      %p54 = scmp.eq.s32.totalorder %s23, 1
      %p55 = por %p53, %p54
      %p56 = scmp.ne.s32.totalorder %s45, %s46
      %p57 = scmp.eq.s32.totalorder %s23, 0
      %p58 = por %p56, %p57
      %p59 = scmp.ne.s32.totalorder %s45, %s46
      %p60 = scmp.eq.s32.totalorder %s24, 1
      %p61 = por %p59, %p60
      %p63 = scmp.ne.s32.totalorder %s46, %s62
      %p64 = scmp.eq.s32.totalorder %s24, 0
      %p65 = por %p63, %p64
      %s67 = sadd.s32 %s66, 1
      %p70 = scmp.eq.s32.totalorder %s18, 1
      %p71 = scmp.ne.s32.totalorder %s66, %s68
      %p72 = scmp.eq.s32.totalorder %s18, 0
      %p73 = por %p71, %p72
      %p74 = scmp.ne.s32.totalorder %s66, %s68
      %p75 = scmp.eq.s32.totalorder %s23, 1
      %p76 = por %p74, %p75
      %p77 = scmp.ne.s32.totalorder %s68, %s69
      %p78 = scmp.eq.s32.totalorder %s23, 0
      %p79 = por %p77, %p78
      %p80 = scmp.ne.s32.totalorder %s68, %s69
      %p81 = scmp.eq.s32.totalorder %s24, 1
      %p82 = por %p80, %p81
      %p84 = scmp.ne.s32.totalorder %s69, %s83
      %p85 = scmp.eq.s32.totalorder %s24, 0
      %p86 = por %p84, %p85
      %s88 = sadd.s32 %s87, 1
      %p91 = scmp.eq.s32.totalorder %s18, 1
      %p92 = scmp.ne.s32.totalorder %s87, %s89
      %p93 = scmp.eq.s32.totalorder %s18, 0
      %p94 = por %p92, %p93
      %p95 = scmp.ne.s32.totalorder %s87, %s89
      %p96 = scmp.eq.s32.totalorder %s23, 1
      %p97 = por %p95, %p96
      %p98 = scmp.ne.s32.totalorder %s89, %s90
      %p99 = scmp.eq.s32.totalorder %s23, 0
      %p100 = por %p98, %p99
      %p101 = scmp.ne.s32.totalorder %s89, %s90
      %p102 = scmp.eq.s32.totalorder %s24, 1
      %p103 = por %p101, %p102
      %p105 = scmp.ne.s32.totalorder %s90, %s104
      %p106 = scmp.eq.s32.totalorder %s24, 0
      %p107 = por %p105, %p106
      %s109 = sadd.s32 %s108, 1
      %p112 = scmp.eq.s32.totalorder %s18, 1
      %p113 = scmp.ne.s32.totalorder %s108, %s110
      %p114 = scmp.eq.s32.totalorder %s18, 0
      %p115 = por %p113, %p114
      %p116 = scmp.ne.s32.totalorder %s108, %s110
      %p117 = scmp.eq.s32.totalorder %s23, 1
      %p118 = por %p116, %p117
      %p119 = scmp.ne.s32.totalorder %s110, %s111
      %p120 = scmp.eq.s32.totalorder %s23, 0
      %p121 = por %p119, %p120
      %p122 = scmp.ne.s32.totalorder %s110, %s111
      %p123 = scmp.eq.s32.totalorder %s24, 1
      %p124 = por %p122, %p123
      %p126 = scmp.ne.s32.totalorder %s111, %s125
      %p127 = scmp.eq.s32.totalorder %s24, 0
      %p128 = por %p126, %p127
      %s129 = ssub.s32 %s25, %s37
      %s130 = ssub.s32 %s26, %s33
      %s131 = sor.u32 %s129, %s130
      %p132 = scmp.eq.s32.totalorder %s131, 0
      %s134 = sadd.s32 %s133, 1
      %s135 = scalar_select %p132, %s133, %s134
      %p138 = pneg %p132
      %p139 = scmp.eq.s32.totalorder %s18, 1
      %p140 = por %p138, %p139
      %p141 = scmp.ne.s32.totalorder %s133, %s136
      %p142 = scmp.eq.s32.totalorder %s18, 0
      %p143 = por %p141, %p142
      %p144 = scmp.ne.s32.totalorder %s133, %s136
      %p145 = scmp.eq.s32.totalorder %s23, 1
      %p146 = por %p144, %p145
      %p147 = scmp.ne.s32.totalorder %s136, %s137
      %p148 = scmp.eq.s32.totalorder %s23, 0
      %p149 = por %p147, %p148
      %p150 = scmp.ne.s32.totalorder %s136, %s137
      %p151 = scmp.eq.s32.totalorder %s24, 1
      %p152 = por %p150, %p151
      %p154 = scmp.ne.s32.totalorder %s137, %s153
      %p155 = scmp.eq.s32.totalorder %s24, 0
      %p156 = por %p154, %p155
      %p157 = scmp.le.s32.totalorder 1, %s18
      %p158 = scmp.lt.s32.totalorder %s18, 3
      %p159 = pnand %p157, %p158
      %p160 = pneg %p159
      // Predicated region
      $region9: #{tpu_custom_call.1} parent=5 // pred_check
        _
      $region10: #{tpu_custom_call.1} parent=5 // pred_check_branch
        %162 = sbr.rel (%p159) target = $region12
      $region11: #{tpu_custom_call.1} parent=5 // pred_region
        %s163 = ssub.s32 %s18, 1
        // Predicated region
        $region13: #{tpu_custom_call.1} parent=11 // pred_check
          %p164 = pneg %p79
        $region14: #{tpu_custom_call.1} parent=11 // pred_check_branch
          %166 = sbr.rel (%p164) target = $region16
        $region15: #{tpu_custom_call.1} parent=11 // pred_region
          %168 = vsyncadd [#allocation6], 0
          %s169 = sshll.u32 %s1, 4
          %s170 = int_to_ptr.hbm [resolvable:$true] %s169
          %s171 = sshll.u32 [#allocation5], 4
          %s172 = int_to_ptr.vmem [resolvable:$true] %s171
          %177 = dma.hbm_to_vmem [thread:$0]  %s170, 12288, %s172, [#allocation6], 256, 256, 16
        $region16: #{tpu_custom_call.1} parent=11 // pred_fallthru
          _
        // Predicated region
        $region17: #{tpu_custom_call.1} parent=11 // pred_check
          %p178 = pneg %p100
        $region18: #{tpu_custom_call.1} parent=11 // pred_check_branch
          %180 = sbr.rel (%p178) target = $region20
        $region19: #{tpu_custom_call.1} parent=11 // pred_region
          %182 = vsyncadd [#allocation6], 0
          %s183 = sshll.u32 %s2, 4
          %s184 = int_to_ptr.hbm [resolvable:$true] %s183
          %s185 = sshll.u32 [#allocation7], 4
          %s186 = int_to_ptr.vmem [resolvable:$true] %s185
          %191 = dma.hbm_to_vmem [thread:$0]  %s184, 12288, %s186, [#allocation6], 256, 256, 16
        $region20: #{tpu_custom_call.1} parent=11 // pred_fallthru
          _
        // Predicated region
        $region21: #{tpu_custom_call.1} parent=11 // pred_check
          %p192 = pneg %p121
        $region22: #{tpu_custom_call.1} parent=11 // pred_check_branch
          %194 = sbr.rel (%p192) target = $region24
        $region23: #{tpu_custom_call.1} parent=11 // pred_region
          %196 = vsyncadd [#allocation9], 0
          %s197 = sshll.u32 %s3, 4
          %s198 = int_to_ptr.hbm [resolvable:$true] %s197
          %s199 = sshll.u32 [#allocation8], 4
          %s200 = int_to_ptr.vmem [resolvable:$true] %s199
          %205 = dma.hbm_to_vmem [thread:$0]  %s198, 20160, %s200, [#allocation9], 192, 192, 12
        $region24: #{tpu_custom_call.1} parent=11 // pred_fallthru
          _
      $region12: #{tpu_custom_call.1} parent=5 // pred_fallthru
        _
      %p206 = scmp.lt.s32.totalorder %s18, 2
      // Predicated region
      $region25: #{tpu_custom_call.1} parent=5 // pred_check
        %p207 = pneg %p206
      $region26: #{tpu_custom_call.1} parent=5 // pred_check_branch
        %209 = sbr.rel (%p207) target = $region28
      $region27: #{tpu_custom_call.1} parent=5 // pred_region
        // Predicated region
        $region29: #{tpu_custom_call.1} parent=27 // pred_check
          %p210 = pneg %p52
        $region30: #{tpu_custom_call.1} parent=27 // pred_check_branch
          %212 = sbr.rel (%p210) target = $region32
        $region31: #{tpu_custom_call.1} parent=27 // pred_region
          %s213 = sand.u32 %s42, 1
          %s214 = scalar_lea.sflag [#allocation3], %s213
          %s215 = sand.u32 %s42, 1
          %s216 = smul.addr %s215, 512
          %s217 = scalar_lea.vmem [#allocation2], %s216
          %s218 = smul.u32 2, %s26
          %220 = vsyncadd %s214, 0
          %s221 = smul.addr %s25, 128
          %s222 = sadd.s32 %s218, %s221
          %s223 = smul.addr %s222, 4
          %s224 = scalar_lea.hbm %s0, %s223
          %s225 = sshll.u32 %s224, 4
          %s226 = int_to_ptr.hbm [resolvable:$true] %s225
          %s227 = sshll.u32 %s217, 4
          %s228 = int_to_ptr.vmem [resolvable:$true] %s227
          %233 = dma.hbm_to_vmem [thread:$0]  %s226, 8192, %s228, %s214, 128, 128, 8
        $region32: #{tpu_custom_call.1} parent=27 // pred_fallthru
          _
      $region28: #{tpu_custom_call.1} parent=5 // pred_fallthru
        _
      %p234 = scmp.le.s32.totalorder 1, %s18
      %p235 = scmp.lt.s32.totalorder %s18, 3
      %p236 = pnand %p234, %p235
      %p237 = pneg %p236
      // Predicated region
      $region33: #{tpu_custom_call.1} parent=5 // pred_check
        _
      $region34: #{tpu_custom_call.1} parent=5 // pred_check_branch
        %239 = sbr.rel (%p236) target = $region36
      $region35: #{tpu_custom_call.1} parent=5 // pred_region
        %s240 = ssub.s32 %s18, 1
        %s241 = sand.u32 %s45, 1
        %s242 = scalar_lea.sflag [#allocation3], %s241
        %s243 = sand.u32 %s45, 1
        %s244 = smul.addr %s243, 512
        %s245 = scalar_lea.vmem [#allocation2], %s244
        // Predicated region
        $region37: #{tpu_custom_call.1} parent=35 // pred_check
          %p246 = pneg %p58
        $region38: #{tpu_custom_call.1} parent=35 // pred_check_branch
          %248 = sbr.rel (%p246) target = $region40
        $region39: #{tpu_custom_call.1} parent=35 // pred_region
          %250 = dma.done %s242, 8192
        $region40: #{tpu_custom_call.1} parent=35 // pred_fallthru
          _
        // Predicated region
        $region41: #{tpu_custom_call.1} parent=35 // pred_check
          %p251 = pneg %p79
        $region42: #{tpu_custom_call.1} parent=35 // pred_check_branch
          %253 = sbr.rel (%p251) target = $region44
        $region43: #{tpu_custom_call.1} parent=35 // pred_region
          %255 = dma.done [#allocation6], 12288
        $region44: #{tpu_custom_call.1} parent=35 // pred_fallthru
          _
        // Predicated region
        $region45: #{tpu_custom_call.1} parent=35 // pred_check
          %p256 = pneg %p100
        $region46: #{tpu_custom_call.1} parent=35 // pred_check_branch
          %258 = sbr.rel (%p256) target = $region48
        $region47: #{tpu_custom_call.1} parent=35 // pred_region
          %260 = dma.done [#allocation6], 12288
        $region48: #{tpu_custom_call.1} parent=35 // pred_fallthru
          _
        // Predicated region
        $region49: #{tpu_custom_call.1} parent=35 // pred_check
          %p261 = pneg %p121
        $region50: #{tpu_custom_call.1} parent=35 // pred_check_branch
          %263 = sbr.rel (%p261) target = $region52
        $region51: #{tpu_custom_call.1} parent=35 // pred_region
          %265 = dma.done [#allocation9], 20160
        $region52: #{tpu_custom_call.1} parent=35 // pred_fallthru
          _
        %s266 = sand.u32 %s45, 1
        %s267 = scalar_lea.sflag [#allocation3], %s266
        %s268 = sand.u32 %s45, 1
        %s269 = smul.addr %s268, 512
        %s270 = scalar_lea.vmem [#allocation2], %s269
        %p271 = pneg %p58
        %p272 = pneg %p55
        %p273 = pneg %p79
        %p274 = pneg %p76
        %p275 = pneg %p100
        %p276 = pneg %p97
        %p277 = pneg %p121
        %p278 = pneg %p118
        %p279 = pneg %p149
        %p280 = pneg %p146
        %s281 = sand.u32 %s136, 1
        %s282 = scalar_lea.sflag [#allocation4], %s281
        %s283 = sand.u32 %s136, 1
        %s284 = smul.addr %s283, 1680
        %s285 = scalar_lea.vmem [#allocation10], %s284
        %s286 = smul.u32 2, %s28
        %s287 = smul.u32 2, %s28
        %v288 = vld [vmem:[%s245] sm:$0xff]
        %v289 = vld [vmem:[%s245 + $0x8] sm:$0xff]
        %v290 = vld [vmem:[%s245 + $0x10] sm:$0xff]
        %v291 = vld [vmem:[%s245 + $0x18] sm:$0xff]
        %v292 = vld [vmem:[%s245 + $0x20] sm:$0xff]
        %v293 = vld [vmem:[%s245 + $0x28] sm:$0xff]
        %v294 = vld [vmem:[%s245 + $0x30] sm:$0xff]
        %v295 = vld [vmem:[%s245 + $0x38] sm:$0xff]
        %v296 = vld [vmem:[%s245 + $0x40] sm:$0xff]
        %v297 = vld [vmem:[%s245 + $0x48] sm:$0xff]
        %v298 = vld [vmem:[%s245 + $0x50] sm:$0xff]
        %v299 = vld [vmem:[%s245 + $0x58] sm:$0xff]
        %v300 = vld [vmem:[%s245 + $0x60] sm:$0xff]
        %v301 = vld [vmem:[%s245 + $0x68] sm:$0xff]
        %v302 = vld [vmem:[%s245 + $0x70] sm:$0xff]
        %v303 = vld [vmem:[%s245 + $0x78] sm:$0xff]
        %v304 = vld [vmem:[%s245 + $0x80] sm:$0xff]
        %v305 = vld [vmem:[%s245 + $0x88] sm:$0xff]
        %v306 = vld [vmem:[%s245 + $0x90] sm:$0xff]
        %v307 = vld [vmem:[%s245 + $0x98] sm:$0xff]
        %v308 = vld [vmem:[%s245 + $0xa0] sm:$0xff]
        %v309 = vld [vmem:[%s245 + $0xa8] sm:$0xff]
        %v310 = vld [vmem:[%s245 + $0xb0] sm:$0xff]
        %v311 = vld [vmem:[%s245 + $0xb8] sm:$0xff]
        %v312 = vld [vmem:[%s245 + $0xc0] sm:$0xff]
        %v313 = vld [vmem:[%s245 + $0xc8] sm:$0xff]
        %v314 = vld [vmem:[%s245 + $0xd0] sm:$0xff]
        %v315 = vld [vmem:[%s245 + $0xd8] sm:$0xff]
        %v316 = vld [vmem:[%s245 + $0xe0] sm:$0xff]
        %v317 = vld [vmem:[%s245 + $0xe8] sm:$0xff]
        %v318 = vld [vmem:[%s245 + $0xf0] sm:$0xff]
        %v319 = vld [vmem:[%s245 + $0xf8] sm:$0xff]
        %v320 = vld [vmem:[%s245 + $0x100] sm:$0xff]
        %v321 = vld [vmem:[%s245 + $0x108] sm:$0xff]
        %v322 = vld [vmem:[%s245 + $0x110] sm:$0xff]
        %v323 = vld [vmem:[%s245 + $0x118] sm:$0xff]
        %v324 = vld [vmem:[%s245 + $0x120] sm:$0xff]
        %v325 = vld [vmem:[%s245 + $0x128] sm:$0xff]
        %v326 = vld [vmem:[%s245 + $0x130] sm:$0xff]
        %v327 = vld [vmem:[%s245 + $0x138] sm:$0xff]
        %v328 = vld [vmem:[%s245 + $0x140] sm:$0xff]
        %v329 = vld [vmem:[%s245 + $0x148] sm:$0xff]
        %v330 = vld [vmem:[%s245 + $0x150] sm:$0xff]
        %v331 = vld [vmem:[%s245 + $0x158] sm:$0xff]
        %v332 = vld [vmem:[%s245 + $0x160] sm:$0xff]
        %v333 = vld [vmem:[%s245 + $0x168] sm:$0xff]
        %v334 = vld [vmem:[%s245 + $0x170] sm:$0xff]
        %v335 = vld [vmem:[%s245 + $0x178] sm:$0xff]
        %v336 = vld [vmem:[%s245 + $0x180] sm:$0xff]
        %v337 = vld [vmem:[%s245 + $0x188] sm:$0xff]
        %v338 = vld [vmem:[%s245 + $0x190] sm:$0xff]
        %v339 = vld [vmem:[%s245 + $0x198] sm:$0xff]
        %v340 = vld [vmem:[%s245 + $0x1a0] sm:$0xff]
        %v341 = vld [vmem:[%s245 + $0x1a8] sm:$0xff]
        %v342 = vld [vmem:[%s245 + $0x1b0] sm:$0xff]
        %v343 = vld [vmem:[%s245 + $0x1b8] sm:$0xff]
        %v344 = vld [vmem:[%s245 + $0x1c0] sm:$0xff]
        %v345 = vld [vmem:[%s245 + $0x1c8] sm:$0xff]
        %v346 = vld [vmem:[%s245 + $0x1d0] sm:$0xff]
        %v347 = vld [vmem:[%s245 + $0x1d8] sm:$0xff]
        %v348 = vld [vmem:[%s245 + $0x1e0] sm:$0xff]
        %v349 = vld [vmem:[%s245 + $0x1e8] sm:$0xff]
        %v350 = vld [vmem:[%s245 + $0x1f0] sm:$0xff]
        %v351 = vld [vmem:[%s245 + $0x1f8] sm:$0xff]
        %v352 = vld [vmem:[#allocation5] sm:$0xff]
        %v353 = vld [vmem:[#allocation5 + $0x8] sm:$0xff]
        %v354 = vld [vmem:[#allocation5 + $0x10] sm:$0xff]
        %v355 = vld [vmem:[#allocation5 + $0x18] sm:$0xff]
        %v356 = vld [vmem:[#allocation5 + $0x20] sm:$0xff]
        %v357 = vld [vmem:[#allocation5 + $0x28] sm:$0xff]
        %v358 = vld [vmem:[#allocation5 + $0x30] sm:$0xff]
        %v359 = vld [vmem:[#allocation5 + $0x38] sm:$0xff]
        %v360 = vld [vmem:[#allocation5 + $0x40] sm:$0xff]
        %v361 = vld [vmem:[#allocation5 + $0x48] sm:$0xff]
        %v362 = vld [vmem:[#allocation5 + $0x50] sm:$0xff]
        %v363 = vld [vmem:[#allocation5 + $0x58] sm:$0xff]
        %v364 = vld [vmem:[#allocation5 + $0x60] sm:$0xff]
        %v365 = vld [vmem:[#allocation5 + $0x68] sm:$0xff]
        %v366 = vld [vmem:[#allocation5 + $0x70] sm:$0xff]
        %v367 = vld [vmem:[#allocation5 + $0x78] sm:$0xff]
        %v368 = vld [vmem:[#allocation5 + $0x80] sm:$0xff]
        %v369 = vld [vmem:[#allocation5 + $0x88] sm:$0xff]
        %v370 = vld [vmem:[#allocation5 + $0x90] sm:$0xff]
        %v371 = vld [vmem:[#allocation5 + $0x98] sm:$0xff]
        %v372 = vld [vmem:[#allocation5 + $0xa0] sm:$0xff]
        %v373 = vld [vmem:[#allocation5 + $0xa8] sm:$0xff]
        %v374 = vld [vmem:[#allocation5 + $0xb0] sm:$0xff]
        %v375 = vld [vmem:[#allocation5 + $0xb8] sm:$0xff]
        %v376 = vld [vmem:[#allocation5 + $0xc0] sm:$0xff]
        %v377 = vld [vmem:[#allocation5 + $0xc8] sm:$0xff]
        %v378 = vld [vmem:[#allocation5 + $0xd0] sm:$0xff]
        %v379 = vld [vmem:[#allocation5 + $0xd8] sm:$0xff]
        %v380 = vld [vmem:[#allocation5 + $0xe0] sm:$0xff]
        %v381 = vld [vmem:[#allocation5 + $0xe8] sm:$0xff]
        %v382 = vld [vmem:[#allocation5 + $0xf0] sm:$0xff]
        %v383 = vld [vmem:[#allocation5 + $0xf8] sm:$0xff]
        %v384 = vld [vmem:[#allocation5 + $0x100] sm:$0xff]
        %v385 = vld [vmem:[#allocation5 + $0x108] sm:$0xff]
        %v386 = vld [vmem:[#allocation5 + $0x110] sm:$0xff]
        %v387 = vld [vmem:[#allocation5 + $0x118] sm:$0xff]
        %v388 = vld [vmem:[#allocation5 + $0x120] sm:$0xff]
        %v389 = vld [vmem:[#allocation5 + $0x128] sm:$0xff]
        %v390 = vld [vmem:[#allocation5 + $0x130] sm:$0xff]
        %v391 = vld [vmem:[#allocation5 + $0x138] sm:$0xff]
        %v392 = vld [vmem:[#allocation5 + $0x140] sm:$0xff]
        %v393 = vld [vmem:[#allocation5 + $0x148] sm:$0xff]
        %v394 = vld [vmem:[#allocation5 + $0x150] sm:$0xff]
        %v395 = vld [vmem:[#allocation5 + $0x158] sm:$0xff]
        %v396 = vld [vmem:[#allocation5 + $0x160] sm:$0xff]
        %v397 = vld [vmem:[#allocation5 + $0x168] sm:$0xff]
        %v398 = vld [vmem:[#allocation5 + $0x170] sm:$0xff]
        %v399 = vld [vmem:[#allocation5 + $0x178] sm:$0xff]
        %v400 = vld [vmem:[#allocation5 + $0x180] sm:$0xff]
        %v401 = vld [vmem:[#allocation5 + $0x188] sm:$0xff]
        %v402 = vld [vmem:[#allocation5 + $0x190] sm:$0xff]
        %v403 = vld [vmem:[#allocation5 + $0x198] sm:$0xff]
        %v404 = vld [vmem:[#allocation5 + $0x1a0] sm:$0xff]
        %v405 = vld [vmem:[#allocation5 + $0x1a8] sm:$0xff]
        %v406 = vld [vmem:[#allocation5 + $0x1b0] sm:$0xff]
        %v407 = vld [vmem:[#allocation5 + $0x1b8] sm:$0xff]
        %v408 = vld [vmem:[#allocation5 + $0x1c0] sm:$0xff]
        %v409 = vld [vmem:[#allocation5 + $0x1c8] sm:$0xff]
        %v410 = vld [vmem:[#allocation5 + $0x1d0] sm:$0xff]
        %v411 = vld [vmem:[#allocation5 + $0x1d8] sm:$0xff]
        %v412 = vld [vmem:[#allocation5 + $0x1e0] sm:$0xff]
        %v413 = vld [vmem:[#allocation5 + $0x1e8] sm:$0xff]
        %v414 = vld [vmem:[#allocation5 + $0x1f0] sm:$0xff]
        %v415 = vld [vmem:[#allocation5 + $0x1f8] sm:$0xff]
        %v416 = vld [vmem:[#allocation5 + $0x200] sm:$0xff]
        %v417 = vld [vmem:[#allocation5 + $0x208] sm:$0xff]
        %v418 = vld [vmem:[#allocation5 + $0x210] sm:$0xff]
        %v419 = vld [vmem:[#allocation5 + $0x218] sm:$0xff]
        %v420 = vld [vmem:[#allocation5 + $0x220] sm:$0xff]
        %v421 = vld [vmem:[#allocation5 + $0x228] sm:$0xff]
        %v422 = vld [vmem:[#allocation5 + $0x230] sm:$0xff]
        %v423 = vld [vmem:[#allocation5 + $0x238] sm:$0xff]
        %v424 = vld [vmem:[#allocation5 + $0x240] sm:$0xff]
        %v425 = vld [vmem:[#allocation5 + $0x248] sm:$0xff]
        %v426 = vld [vmem:[#allocation5 + $0x250] sm:$0xff]
        %v427 = vld [vmem:[#allocation5 + $0x258] sm:$0xff]
        %v428 = vld [vmem:[#allocation5 + $0x260] sm:$0xff]
        %v429 = vld [vmem:[#allocation5 + $0x268] sm:$0xff]
        %v430 = vld [vmem:[#allocation5 + $0x270] sm:$0xff]
        %v431 = vld [vmem:[#allocation5 + $0x278] sm:$0xff]
        %v432 = vld [vmem:[#allocation5 + $0x280] sm:$0xff]
        %v433 = vld [vmem:[#allocation5 + $0x288] sm:$0xff]
        %v434 = vld [vmem:[#allocation5 + $0x290] sm:$0xff]
        %v435 = vld [vmem:[#allocation5 + $0x298] sm:$0xff]
        %v436 = vld [vmem:[#allocation5 + $0x2a0] sm:$0xff]
        %v437 = vld [vmem:[#allocation5 + $0x2a8] sm:$0xff]
        %v438 = vld [vmem:[#allocation5 + $0x2b0] sm:$0xff]
        %v439 = vld [vmem:[#allocation5 + $0x2b8] sm:$0xff]
        %v440 = vld [vmem:[#allocation5 + $0x2c0] sm:$0xff]
        %v441 = vld [vmem:[#allocation5 + $0x2c8] sm:$0xff]
        %v442 = vld [vmem:[#allocation5 + $0x2d0] sm:$0xff]
        %v443 = vld [vmem:[#allocation5 + $0x2d8] sm:$0xff]
        %v444 = vld [vmem:[#allocation5 + $0x2e0] sm:$0xff]
        %v445 = vld [vmem:[#allocation5 + $0x2e8] sm:$0xff]
        %v446 = vld [vmem:[#allocation5 + $0x2f0] sm:$0xff]
        %v447 = vld [vmem:[#allocation5 + $0x2f8] sm:$0xff]
        %v544 = vunpack.c.l.b16 %v352
        %v545 = vunpack.c.h.b16 %v352
        %v546 = vunpack.c.l.b16 %v353
        %v547 = vunpack.c.h.b16 %v353
        %v548 = vunpack.c.l.b16 %v354
        %v549 = vunpack.c.h.b16 %v354
        %v550 = vunpack.c.l.b16 %v355
        %v551 = vunpack.c.h.b16 %v355
        %v552 = vunpack.c.l.b16 %v356
        %v553 = vunpack.c.h.b16 %v356
        %v554 = vunpack.c.l.b16 %v357
        %v555 = vunpack.c.h.b16 %v357
        %v556 = vunpack.c.l.b16 %v358
        %v557 = vunpack.c.h.b16 %v358
        %v558 = vunpack.c.l.b16 %v359
        %v559 = vunpack.c.h.b16 %v359
        %v560 = vunpack.c.l.b16 %v360
        %v561 = vunpack.c.h.b16 %v360
        %v562 = vunpack.c.l.b16 %v361
        %v563 = vunpack.c.h.b16 %v361
        %v564 = vunpack.c.l.b16 %v362
        %v565 = vunpack.c.h.b16 %v362
        %v566 = vunpack.c.l.b16 %v363
        %v567 = vunpack.c.h.b16 %v363
        %v568 = vunpack.c.l.b16 %v364
        %v569 = vunpack.c.h.b16 %v364
        %v570 = vunpack.c.l.b16 %v365
        %v571 = vunpack.c.h.b16 %v365
        %v572 = vunpack.c.l.b16 %v366
        %v573 = vunpack.c.h.b16 %v366
        %v574 = vunpack.c.l.b16 %v367
        %v575 = vunpack.c.h.b16 %v367
        %v576 = vunpack.c.l.b16 %v368
        %v577 = vunpack.c.h.b16 %v368
        %v578 = vunpack.c.l.b16 %v369
        %v579 = vunpack.c.h.b16 %v369
        %v580 = vunpack.c.l.b16 %v370
        %v581 = vunpack.c.h.b16 %v370
        %v582 = vunpack.c.l.b16 %v371
        %v583 = vunpack.c.h.b16 %v371
        %v584 = vunpack.c.l.b16 %v372
        %v585 = vunpack.c.h.b16 %v372
        %v586 = vunpack.c.l.b16 %v373
        %v587 = vunpack.c.h.b16 %v373
        %v588 = vunpack.c.l.b16 %v374
        %v589 = vunpack.c.h.b16 %v374
        %v590 = vunpack.c.l.b16 %v375
        %v591 = vunpack.c.h.b16 %v375
        %v592 = vunpack.c.l.b16 %v376
        %v593 = vunpack.c.h.b16 %v376
        %v594 = vunpack.c.l.b16 %v377
        %v595 = vunpack.c.h.b16 %v377
        %v596 = vunpack.c.l.b16 %v378
        %v597 = vunpack.c.h.b16 %v378
        %v598 = vunpack.c.l.b16 %v379
        %v599 = vunpack.c.h.b16 %v379
        %v600 = vunpack.c.l.b16 %v380
        %v601 = vunpack.c.h.b16 %v380
        %v602 = vunpack.c.l.b16 %v381
        %v603 = vunpack.c.h.b16 %v381
        %v604 = vunpack.c.l.b16 %v382
        %v605 = vunpack.c.h.b16 %v382
        %v606 = vunpack.c.l.b16 %v383
        %v607 = vunpack.c.h.b16 %v383
        %v608 = vunpack.c.l.b16 %v384
        %v609 = vunpack.c.h.b16 %v384
        %v610 = vunpack.c.l.b16 %v385
        %v611 = vunpack.c.h.b16 %v385
        %v612 = vunpack.c.l.b16 %v386
        %v613 = vunpack.c.h.b16 %v386
        %v614 = vunpack.c.l.b16 %v387
        %v615 = vunpack.c.h.b16 %v387
        %v616 = vunpack.c.l.b16 %v388
        %v617 = vunpack.c.h.b16 %v388
        %v618 = vunpack.c.l.b16 %v389
        %v619 = vunpack.c.h.b16 %v389
        %v620 = vunpack.c.l.b16 %v390
        %v621 = vunpack.c.h.b16 %v390
        %v622 = vunpack.c.l.b16 %v391
        %v623 = vunpack.c.h.b16 %v391
        %v624 = vunpack.c.l.b16 %v392
        %v625 = vunpack.c.h.b16 %v392
        %v626 = vunpack.c.l.b16 %v393
        %v627 = vunpack.c.h.b16 %v393
        %v628 = vunpack.c.l.b16 %v394
        %v629 = vunpack.c.h.b16 %v394
        %v630 = vunpack.c.l.b16 %v395
        %v631 = vunpack.c.h.b16 %v395
        %v632 = vunpack.c.l.b16 %v396
        %v633 = vunpack.c.h.b16 %v396
        %v634 = vunpack.c.l.b16 %v397
        %v635 = vunpack.c.h.b16 %v397
        %v636 = vunpack.c.l.b16 %v398
        %v637 = vunpack.c.h.b16 %v398
        %v638 = vunpack.c.l.b16 %v399
        %v639 = vunpack.c.h.b16 %v399
        %v640 = vunpack.c.l.b16 %v400
        %v641 = vunpack.c.h.b16 %v400
        %v642 = vunpack.c.l.b16 %v401
        %v643 = vunpack.c.h.b16 %v401
        %v644 = vunpack.c.l.b16 %v402
        %v645 = vunpack.c.h.b16 %v402
        %v646 = vunpack.c.l.b16 %v403
        %v647 = vunpack.c.h.b16 %v403
        %v648 = vunpack.c.l.b16 %v404
        %v649 = vunpack.c.h.b16 %v404
        %v650 = vunpack.c.l.b16 %v405
        %v651 = vunpack.c.h.b16 %v405
        %v652 = vunpack.c.l.b16 %v406
        %v653 = vunpack.c.h.b16 %v406
        %v654 = vunpack.c.l.b16 %v407
        %v655 = vunpack.c.h.b16 %v407
        %v656 = vunpack.c.l.b16 %v408
        %v657 = vunpack.c.h.b16 %v408
        %v658 = vunpack.c.l.b16 %v409
        %v659 = vunpack.c.h.b16 %v409
        %v660 = vunpack.c.l.b16 %v410
        %v661 = vunpack.c.h.b16 %v410
        %v662 = vunpack.c.l.b16 %v411
        %v663 = vunpack.c.h.b16 %v411
        %v664 = vunpack.c.l.b16 %v412
        %v665 = vunpack.c.h.b16 %v412
        %v666 = vunpack.c.l.b16 %v413
        %v667 = vunpack.c.h.b16 %v413
        %v668 = vunpack.c.l.b16 %v414
        %v669 = vunpack.c.h.b16 %v414
        %v670 = vunpack.c.l.b16 %v415
        %v671 = vunpack.c.h.b16 %v415
        %v672 = vunpack.c.l.b16 %v416
        %v673 = vunpack.c.h.b16 %v416
        %v674 = vunpack.c.l.b16 %v417
        %v675 = vunpack.c.h.b16 %v417
        %v676 = vunpack.c.l.b16 %v418
        %v677 = vunpack.c.h.b16 %v418
        %v678 = vunpack.c.l.b16 %v419
        %v679 = vunpack.c.h.b16 %v419
        %v680 = vunpack.c.l.b16 %v420
        %v681 = vunpack.c.h.b16 %v420
        %v682 = vunpack.c.l.b16 %v421
        %v683 = vunpack.c.h.b16 %v421
        %v684 = vunpack.c.l.b16 %v422
        %v685 = vunpack.c.h.b16 %v422
        %v686 = vunpack.c.l.b16 %v423
        %v687 = vunpack.c.h.b16 %v423
        %v688 = vunpack.c.l.b16 %v424
        %v689 = vunpack.c.h.b16 %v424
        %v690 = vunpack.c.l.b16 %v425
        %v691 = vunpack.c.h.b16 %v425
        %v692 = vunpack.c.l.b16 %v426
        %v693 = vunpack.c.h.b16 %v426
        %v694 = vunpack.c.l.b16 %v427
        %v695 = vunpack.c.h.b16 %v427
        %v696 = vunpack.c.l.b16 %v428
        %v697 = vunpack.c.h.b16 %v428
        %v698 = vunpack.c.l.b16 %v429
        %v699 = vunpack.c.h.b16 %v429
        %v700 = vunpack.c.l.b16 %v430
        %v701 = vunpack.c.h.b16 %v430
        %v702 = vunpack.c.l.b16 %v431
        %v703 = vunpack.c.h.b16 %v431
        %v704 = vunpack.c.l.b16 %v432
        %v705 = vunpack.c.h.b16 %v432
        %v706 = vunpack.c.l.b16 %v433
        %v707 = vunpack.c.h.b16 %v433
        %v708 = vunpack.c.l.b16 %v434
        %v709 = vunpack.c.h.b16 %v434
        %v710 = vunpack.c.l.b16 %v435
        %v711 = vunpack.c.h.b16 %v435
        %v712 = vunpack.c.l.b16 %v436
        %v713 = vunpack.c.h.b16 %v436
        %v714 = vunpack.c.l.b16 %v437
        %v715 = vunpack.c.h.b16 %v437
        %v716 = vunpack.c.l.b16 %v438
        %v717 = vunpack.c.h.b16 %v438
        %v718 = vunpack.c.l.b16 %v439
        %v719 = vunpack.c.h.b16 %v439
        %v720 = vunpack.c.l.b16 %v440
        %v721 = vunpack.c.h.b16 %v440
        %v722 = vunpack.c.l.b16 %v441
        %v723 = vunpack.c.h.b16 %v441
        %v724 = vunpack.c.l.b16 %v442
        %v725 = vunpack.c.h.b16 %v442
        %v726 = vunpack.c.l.b16 %v443
        %v727 = vunpack.c.h.b16 %v443
        %v728 = vunpack.c.l.b16 %v444
        %v729 = vunpack.c.h.b16 %v444
        %v730 = vunpack.c.l.b16 %v445
        %v731 = vunpack.c.h.b16 %v445
        %v732 = vunpack.c.l.b16 %v446
        %v733 = vunpack.c.h.b16 %v446
        %v734 = vunpack.c.l.b16 %v447
        %v735 = vunpack.c.h.b16 %v447
        %v736 = vpack.c.b16 %v548, %v544
        %v737 = vpack.c.b16 %v549, %v545
        %v738 = vpack.c.b16 %v550, %v546
        %v739 = vpack.c.b16 %v551, %v547
        %v740 = vpack.c.b16 %v556, %v552
        %v741 = vpack.c.b16 %v557, %v553
        %v742 = vpack.c.b16 %v558, %v554
        %v743 = vpack.c.b16 %v559, %v555
        %v744 = vpack.c.b16 %v564, %v560
        %v745 = vpack.c.b16 %v565, %v561
        %v746 = vpack.c.b16 %v566, %v562
        %v747 = vpack.c.b16 %v567, %v563
        %v748 = vpack.c.b16 %v572, %v568
        %v749 = vpack.c.b16 %v573, %v569
        %v750 = vpack.c.b16 %v574, %v570
        %v751 = vpack.c.b16 %v575, %v571
        %v752 = vpack.c.b16 %v580, %v576
        %v753 = vpack.c.b16 %v581, %v577
        %v754 = vpack.c.b16 %v582, %v578
        %v755 = vpack.c.b16 %v583, %v579
        %v756 = vpack.c.b16 %v588, %v584
        %v757 = vpack.c.b16 %v589, %v585
        %v758 = vpack.c.b16 %v590, %v586
        %v759 = vpack.c.b16 %v591, %v587
        %v760 = vpack.c.b16 %v596, %v592
        %v761 = vpack.c.b16 %v597, %v593
        %v762 = vpack.c.b16 %v598, %v594
        %v763 = vpack.c.b16 %v599, %v595
        %v764 = vpack.c.b16 %v604, %v600
        %v765 = vpack.c.b16 %v605, %v601
        %v766 = vpack.c.b16 %v606, %v602
        %v767 = vpack.c.b16 %v607, %v603
        %v768 = vpack.c.b16 %v612, %v608
        %v769 = vpack.c.b16 %v613, %v609
        %v770 = vpack.c.b16 %v614, %v610
        %v771 = vpack.c.b16 %v615, %v611
        %v772 = vpack.c.b16 %v620, %v616
        %v773 = vpack.c.b16 %v621, %v617
        %v774 = vpack.c.b16 %v622, %v618
        %v775 = vpack.c.b16 %v623, %v619
        %v776 = vpack.c.b16 %v628, %v624
        %v777 = vpack.c.b16 %v629, %v625
        %v778 = vpack.c.b16 %v630, %v626
        %v779 = vpack.c.b16 %v631, %v627
        %v780 = vpack.c.b16 %v636, %v632
        %v781 = vpack.c.b16 %v637, %v633
        %v782 = vpack.c.b16 %v638, %v634
        %v783 = vpack.c.b16 %v639, %v635
        %v784 = vpack.c.b16 %v644, %v640
        %v785 = vpack.c.b16 %v645, %v641
        %v786 = vpack.c.b16 %v646, %v642
        %v787 = vpack.c.b16 %v647, %v643
        %v788 = vpack.c.b16 %v652, %v648
        %v789 = vpack.c.b16 %v653, %v649
        %v790 = vpack.c.b16 %v654, %v650
        %v791 = vpack.c.b16 %v655, %v651
        %v792 = vpack.c.b16 %v660, %v656
        %v793 = vpack.c.b16 %v661, %v657
        %v794 = vpack.c.b16 %v662, %v658
        %v795 = vpack.c.b16 %v663, %v659
        %v796 = vpack.c.b16 %v668, %v664
        %v797 = vpack.c.b16 %v669, %v665
        %v798 = vpack.c.b16 %v670, %v666
        %v799 = vpack.c.b16 %v671, %v667
        %v800 = vpack.c.b16 %v676, %v672
        %v801 = vpack.c.b16 %v677, %v673
        %v802 = vpack.c.b16 %v678, %v674
        %v803 = vpack.c.b16 %v679, %v675
        %v804 = vpack.c.b16 %v684, %v680
        %v805 = vpack.c.b16 %v685, %v681
        %v806 = vpack.c.b16 %v686, %v682
        %v807 = vpack.c.b16 %v687, %v683
        %v808 = vpack.c.b16 %v692, %v688
        %v809 = vpack.c.b16 %v693, %v689
        %v810 = vpack.c.b16 %v694, %v690
        %v811 = vpack.c.b16 %v695, %v691
        %v812 = vpack.c.b16 %v700, %v696
        %v813 = vpack.c.b16 %v701, %v697
        %v814 = vpack.c.b16 %v702, %v698
        %v815 = vpack.c.b16 %v703, %v699
        %v816 = vpack.c.b16 %v708, %v704
        %v817 = vpack.c.b16 %v709, %v705
        %v818 = vpack.c.b16 %v710, %v706
        %v819 = vpack.c.b16 %v711, %v707
        %v820 = vpack.c.b16 %v716, %v712
        %v821 = vpack.c.b16 %v717, %v713
        %v822 = vpack.c.b16 %v718, %v714
        %v823 = vpack.c.b16 %v719, %v715
        %v824 = vpack.c.b16 %v724, %v720
        %v825 = vpack.c.b16 %v725, %v721
        %v826 = vpack.c.b16 %v726, %v722
        %v827 = vpack.c.b16 %v727, %v723
        %v828 = vpack.c.b16 %v732, %v728
        %v829 = vpack.c.b16 %v733, %v729
        %v830 = vpack.c.b16 %v734, %v730
        %v831 = vpack.c.b16 %v735, %v731
        %v992 = vunpack.c.l.b16 %v288
        %v993 = vunpack.c.h.b16 %v288
        %v994 = vunpack.c.l.b16 %v289
        %v995 = vunpack.c.h.b16 %v289
        %v996 = vunpack.c.l.b16 %v290
        %v997 = vunpack.c.h.b16 %v290
        %v998 = vunpack.c.l.b16 %v291
        %v999 = vunpack.c.h.b16 %v291
        %v1000 = vunpack.c.l.b16 %v292
        %v1001 = vunpack.c.h.b16 %v292
        %v1002 = vunpack.c.l.b16 %v293
        %v1003 = vunpack.c.h.b16 %v293
        %v1004 = vunpack.c.l.b16 %v294
        %v1005 = vunpack.c.h.b16 %v294
        %v1006 = vunpack.c.l.b16 %v295
        %v1007 = vunpack.c.h.b16 %v295
        %v1008 = vunpack.c.l.b16 %v296
        %v1009 = vunpack.c.h.b16 %v296
        %v1010 = vunpack.c.l.b16 %v297
        %v1011 = vunpack.c.h.b16 %v297
        %v1012 = vunpack.c.l.b16 %v298
        %v1013 = vunpack.c.h.b16 %v298
        %v1014 = vunpack.c.l.b16 %v299
        %v1015 = vunpack.c.h.b16 %v299
        %v1016 = vunpack.c.l.b16 %v300
        %v1017 = vunpack.c.h.b16 %v300
        %v1018 = vunpack.c.l.b16 %v301
        %v1019 = vunpack.c.h.b16 %v301
        %v1020 = vunpack.c.l.b16 %v302
        %v1021 = vunpack.c.h.b16 %v302
        %v1022 = vunpack.c.l.b16 %v303
        %v1023 = vunpack.c.h.b16 %v303
        %v1024 = vunpack.c.l.b16 %v304
        %v1025 = vunpack.c.h.b16 %v304
        %v1026 = vunpack.c.l.b16 %v305
        %v1027 = vunpack.c.h.b16 %v305
        %v1028 = vunpack.c.l.b16 %v306
        %v1029 = vunpack.c.h.b16 %v306
        %v1030 = vunpack.c.l.b16 %v307
        %v1031 = vunpack.c.h.b16 %v307
        %v1032 = vunpack.c.l.b16 %v308
        %v1033 = vunpack.c.h.b16 %v308
        %v1034 = vunpack.c.l.b16 %v309
        %v1035 = vunpack.c.h.b16 %v309
        %v1036 = vunpack.c.l.b16 %v310
        %v1037 = vunpack.c.h.b16 %v310
        %v1038 = vunpack.c.l.b16 %v311
        %v1039 = vunpack.c.h.b16 %v311
        %v1040 = vunpack.c.l.b16 %v312
        %v1041 = vunpack.c.h.b16 %v312
        %v1042 = vunpack.c.l.b16 %v313
        %v1043 = vunpack.c.h.b16 %v313
        %v1044 = vunpack.c.l.b16 %v314
        %v1045 = vunpack.c.h.b16 %v314
        %v1046 = vunpack.c.l.b16 %v315
        %v1047 = vunpack.c.h.b16 %v315
        %v1048 = vunpack.c.l.b16 %v316
        %v1049 = vunpack.c.h.b16 %v316
        %v1050 = vunpack.c.l.b16 %v317
        %v1051 = vunpack.c.h.b16 %v317
        %v1052 = vunpack.c.l.b16 %v318
        %v1053 = vunpack.c.h.b16 %v318
        %v1054 = vunpack.c.l.b16 %v319
        %v1055 = vunpack.c.h.b16 %v319
        %v1056 = vunpack.c.l.b16 %v320
        %v1057 = vunpack.c.h.b16 %v320
        %v1058 = vunpack.c.l.b16 %v321
        %v1059 = vunpack.c.h.b16 %v321
        %v1060 = vunpack.c.l.b16 %v322
        %v1061 = vunpack.c.h.b16 %v322
        %v1062 = vunpack.c.l.b16 %v323
        %v1063 = vunpack.c.h.b16 %v323
        %v1064 = vunpack.c.l.b16 %v324
        %v1065 = vunpack.c.h.b16 %v324
        %v1066 = vunpack.c.l.b16 %v325
        %v1067 = vunpack.c.h.b16 %v325
        %v1068 = vunpack.c.l.b16 %v326
        %v1069 = vunpack.c.h.b16 %v326
        %v1070 = vunpack.c.l.b16 %v327
        %v1071 = vunpack.c.h.b16 %v327
        %v1072 = vunpack.c.l.b16 %v328
        %v1073 = vunpack.c.h.b16 %v328
        %v1074 = vunpack.c.l.b16 %v329
        %v1075 = vunpack.c.h.b16 %v329
        %v1076 = vunpack.c.l.b16 %v330
        %v1077 = vunpack.c.h.b16 %v330
        %v1078 = vunpack.c.l.b16 %v331
        %v1079 = vunpack.c.h.b16 %v331
        %v1080 = vunpack.c.l.b16 %v332
        %v1081 = vunpack.c.h.b16 %v332
        %v1082 = vunpack.c.l.b16 %v333
        %v1083 = vunpack.c.h.b16 %v333
        %v1084 = vunpack.c.l.b16 %v334
        %v1085 = vunpack.c.h.b16 %v334
        %v1086 = vunpack.c.l.b16 %v335
        %v1087 = vunpack.c.h.b16 %v335
        %v1088 = vunpack.c.l.b16 %v336
        %v1089 = vunpack.c.h.b16 %v336
        %v1090 = vunpack.c.l.b16 %v337
        %v1091 = vunpack.c.h.b16 %v337
        %v1092 = vunpack.c.l.b16 %v338
        %v1093 = vunpack.c.h.b16 %v338
        %v1094 = vunpack.c.l.b16 %v339
        %v1095 = vunpack.c.h.b16 %v339
        %v1096 = vunpack.c.l.b16 %v340
        %v1097 = vunpack.c.h.b16 %v340
        %v1098 = vunpack.c.l.b16 %v341
        %v1099 = vunpack.c.h.b16 %v341
        %v1100 = vunpack.c.l.b16 %v342
        %v1101 = vunpack.c.h.b16 %v342
        %v1102 = vunpack.c.l.b16 %v343
        %v1103 = vunpack.c.h.b16 %v343
        %v1104 = vunpack.c.l.b16 %v344
        %v1105 = vunpack.c.h.b16 %v344
        %v1106 = vunpack.c.l.b16 %v345
        %v1107 = vunpack.c.h.b16 %v345
        %v1108 = vunpack.c.l.b16 %v346
        %v1109 = vunpack.c.h.b16 %v346
        %v1110 = vunpack.c.l.b16 %v347
        %v1111 = vunpack.c.h.b16 %v347
        %v1112 = vunpack.c.l.b16 %v348
        %v1113 = vunpack.c.h.b16 %v348
        %v1114 = vunpack.c.l.b16 %v349
        %v1115 = vunpack.c.h.b16 %v349
        %v1116 = vunpack.c.l.b16 %v350
        %v1117 = vunpack.c.h.b16 %v350
        %v1118 = vunpack.c.l.b16 %v351
        %v1119 = vunpack.c.h.b16 %v351
        %v1120 = vpack.c.b16 %v994, %v992
        %v1121 = vpack.c.b16 %v995, %v993
        %v1122 = vpack.c.b16 %v998, %v996
        %v1123 = vpack.c.b16 %v999, %v997
        %v1124 = vpack.c.b16 %v1002, %v1000
        %v1125 = vpack.c.b16 %v1003, %v1001
        %v1126 = vpack.c.b16 %v1006, %v1004
        %v1127 = vpack.c.b16 %v1007, %v1005
        %v1128 = vpack.c.b16 %v1010, %v1008
        %v1129 = vpack.c.b16 %v1011, %v1009
        %v1130 = vpack.c.b16 %v1014, %v1012
        %v1131 = vpack.c.b16 %v1015, %v1013
        %v1132 = vpack.c.b16 %v1018, %v1016
        %v1133 = vpack.c.b16 %v1019, %v1017
        %v1134 = vpack.c.b16 %v1022, %v1020
        %v1135 = vpack.c.b16 %v1023, %v1021
        %v1136 = vpack.c.b16 %v1026, %v1024
        %v1137 = vpack.c.b16 %v1027, %v1025
        %v1138 = vpack.c.b16 %v1030, %v1028
        %v1139 = vpack.c.b16 %v1031, %v1029
        %v1140 = vpack.c.b16 %v1034, %v1032
        %v1141 = vpack.c.b16 %v1035, %v1033
        %v1142 = vpack.c.b16 %v1038, %v1036
        %v1143 = vpack.c.b16 %v1039, %v1037
        %v1144 = vpack.c.b16 %v1042, %v1040
        %v1145 = vpack.c.b16 %v1043, %v1041
        %v1146 = vpack.c.b16 %v1046, %v1044
        %v1147 = vpack.c.b16 %v1047, %v1045
        %v1148 = vpack.c.b16 %v1050, %v1048
        %v1149 = vpack.c.b16 %v1051, %v1049
        %v1150 = vpack.c.b16 %v1054, %v1052
        %v1151 = vpack.c.b16 %v1055, %v1053
        %v1152 = vpack.c.b16 %v1058, %v1056
        %v1153 = vpack.c.b16 %v1059, %v1057
        %v1154 = vpack.c.b16 %v1062, %v1060
        %v1155 = vpack.c.b16 %v1063, %v1061
        %v1156 = vpack.c.b16 %v1066, %v1064
        %v1157 = vpack.c.b16 %v1067, %v1065
        %v1158 = vpack.c.b16 %v1070, %v1068
        %v1159 = vpack.c.b16 %v1071, %v1069
        %v1160 = vpack.c.b16 %v1074, %v1072
        %v1161 = vpack.c.b16 %v1075, %v1073
        %v1162 = vpack.c.b16 %v1078, %v1076
        %v1163 = vpack.c.b16 %v1079, %v1077
        %v1164 = vpack.c.b16 %v1082, %v1080
        %v1165 = vpack.c.b16 %v1083, %v1081
        %v1166 = vpack.c.b16 %v1086, %v1084
        %v1167 = vpack.c.b16 %v1087, %v1085
        %v1168 = vpack.c.b16 %v1090, %v1088
        %v1169 = vpack.c.b16 %v1091, %v1089
        %v1170 = vpack.c.b16 %v1094, %v1092
        %v1171 = vpack.c.b16 %v1095, %v1093
        %v1172 = vpack.c.b16 %v1098, %v1096
        %v1173 = vpack.c.b16 %v1099, %v1097
        %v1174 = vpack.c.b16 %v1102, %v1100
        %v1175 = vpack.c.b16 %v1103, %v1101
        %v1176 = vpack.c.b16 %v1106, %v1104
        %v1177 = vpack.c.b16 %v1107, %v1105
        %v1178 = vpack.c.b16 %v1110, %v1108
        %v1179 = vpack.c.b16 %v1111, %v1109
        %v1180 = vpack.c.b16 %v1114, %v1112
        %v1181 = vpack.c.b16 %v1115, %v1113
        %v1182 = vpack.c.b16 %v1118, %v1116
        %v1183 = vpack.c.b16 %v1119, %v1117
        %1248 = vmatpush.bf16.msra.mxu0 %v1134
        %1249 = vmatpush.bf16.msra.mxu0 %v1132
        %1250 = vmatpush.bf16.msra.mxu0 %v1130
        %1251 = vmatpush.bf16.msra.mxu0 %v1128
        %1252 = vmatpush.bf16.msra.mxu0 %v1126
        %1253 = vmatpush.bf16.msra.mxu0 %v1124
        %1254 = vmatpush.bf16.msra.mxu0 %v1122
        %1255 = vmatpush.bf16.msra.mxu0 %v1120
        %1256 = vmatmul.bf16.gmra.mxu0 %v736
        %v1257 = vpop.f32.mrf.mxu0
        %v1258 = vadd.f32 0.0, %v1257
        %v1259 = vpop.f32.mrf.mxu0
        %v1260 = vadd.f32 0.0, %v1259
        %1261 = vmatmul.bf16.gmra.mxu0 %v740
        %v1262 = vpop.f32.mrf.mxu0
        %v1263 = vadd.f32 0.0, %v1262
        %v1264 = vpop.f32.mrf.mxu0
        %v1265 = vadd.f32 0.0, %v1264
        %1266 = vmatmul.bf16.gmra.mxu0 %v744
        %v1267 = vpop.f32.mrf.mxu0
        %v1268 = vadd.f32 0.0, %v1267
        %v1269 = vpop.f32.mrf.mxu0
        %v1270 = vadd.f32 0.0, %v1269
        %1271 = vmatmul.bf16.gmra.mxu0 %v748
        %v1272 = vpop.f32.mrf.mxu0
        %v1273 = vadd.f32 0.0, %v1272
        %v1274 = vpop.f32.mrf.mxu0
        %v1275 = vadd.f32 0.0, %v1274
        %1276 = vmatmul.bf16.gmra.mxu0 %v752
        %v1277 = vpop.f32.mrf.mxu0
        %v1278 = vadd.f32 0.0, %v1277
        %v1279 = vpop.f32.mrf.mxu0
        %v1280 = vadd.f32 0.0, %v1279
        %1281 = vmatmul.bf16.gmra.mxu0 %v756
        %v1282 = vpop.f32.mrf.mxu0
        %v1283 = vadd.f32 0.0, %v1282
        %v1284 = vpop.f32.mrf.mxu0
        %v1285 = vadd.f32 0.0, %v1284
        %1286 = vmatmul.bf16.gmra.mxu0 %v760
        %v1287 = vpop.f32.mrf.mxu0
        %v1288 = vadd.f32 0.0, %v1287
        %v1289 = vpop.f32.mrf.mxu0
        %v1290 = vadd.f32 0.0, %v1289
        %1291 = vmatmul.bf16.gmra.mxu0 %v764
        %v1292 = vpop.f32.mrf.mxu0
        %v1293 = vadd.f32 0.0, %v1292
        %v1294 = vpop.f32.mrf.mxu0
        %v1295 = vadd.f32 0.0, %v1294
        %1296 = vmatmul.bf16.gmra.mxu0 %v768
        %v1297 = vpop.f32.mrf.mxu0
        %v1298 = vadd.f32 0.0, %v1297
        %v1299 = vpop.f32.mrf.mxu0
        %v1300 = vadd.f32 0.0, %v1299
        %1301 = vmatmul.bf16.gmra.mxu0 %v772
        %v1302 = vpop.f32.mrf.mxu0
        %v1303 = vadd.f32 0.0, %v1302
        %v1304 = vpop.f32.mrf.mxu0
        %v1305 = vadd.f32 0.0, %v1304
        %1306 = vmatmul.bf16.gmra.mxu0 %v776
        %v1307 = vpop.f32.mrf.mxu0
        %v1308 = vadd.f32 0.0, %v1307
        %v1309 = vpop.f32.mrf.mxu0
        %v1310 = vadd.f32 0.0, %v1309
        %1311 = vmatmul.bf16.gmra.mxu0 %v780
        %v1312 = vpop.f32.mrf.mxu0
        %v1313 = vadd.f32 0.0, %v1312
        %v1314 = vpop.f32.mrf.mxu0
        %v1315 = vadd.f32 0.0, %v1314
        %1316 = vmatmul.bf16.gmra.mxu0 %v784
        %v1317 = vpop.f32.mrf.mxu0
        %v1318 = vadd.f32 0.0, %v1317
        %v1319 = vpop.f32.mrf.mxu0
        %v1320 = vadd.f32 0.0, %v1319
        %1321 = vmatmul.bf16.gmra.mxu0 %v788
        %v1322 = vpop.f32.mrf.mxu0
        %v1323 = vadd.f32 0.0, %v1322
        %v1324 = vpop.f32.mrf.mxu0
        %v1325 = vadd.f32 0.0, %v1324
        %1326 = vmatmul.bf16.gmra.mxu0 %v792
        %v1327 = vpop.f32.mrf.mxu0
        %v1328 = vadd.f32 0.0, %v1327
        %v1329 = vpop.f32.mrf.mxu0
        %v1330 = vadd.f32 0.0, %v1329
        %1331 = vmatmul.bf16.gmra.mxu0 %v796
        %v1332 = vpop.f32.mrf.mxu0
        %v1333 = vadd.f32 0.0, %v1332
        %v1334 = vpop.f32.mrf.mxu0
        %v1335 = vadd.f32 0.0, %v1334
        %1336 = vmatmul.bf16.gmra.mxu0 %v800
        %v1337 = vpop.f32.mrf.mxu0
        %v1338 = vadd.f32 0.0, %v1337
        %v1339 = vpop.f32.mrf.mxu0
        %v1340 = vadd.f32 0.0, %v1339
        %1341 = vmatmul.bf16.gmra.mxu0 %v804
        %v1342 = vpop.f32.mrf.mxu0
        %v1343 = vadd.f32 0.0, %v1342
        %v1344 = vpop.f32.mrf.mxu0
        %v1345 = vadd.f32 0.0, %v1344
        %1346 = vmatmul.bf16.gmra.mxu0 %v808
        %v1347 = vpop.f32.mrf.mxu0
        %v1348 = vadd.f32 0.0, %v1347
        %v1349 = vpop.f32.mrf.mxu0
        %v1350 = vadd.f32 0.0, %v1349
        %1351 = vmatmul.bf16.gmra.mxu0 %v812
        %v1352 = vpop.f32.mrf.mxu0
        %v1353 = vadd.f32 0.0, %v1352
        %v1354 = vpop.f32.mrf.mxu0
        %v1355 = vadd.f32 0.0, %v1354
        %1356 = vmatmul.bf16.gmra.mxu0 %v816
        %v1357 = vpop.f32.mrf.mxu0
        %v1358 = vadd.f32 0.0, %v1357
        %v1359 = vpop.f32.mrf.mxu0
        %v1360 = vadd.f32 0.0, %v1359
        %1361 = vmatmul.bf16.gmra.mxu0 %v820
        %v1362 = vpop.f32.mrf.mxu0
        %v1363 = vadd.f32 0.0, %v1362
        %v1364 = vpop.f32.mrf.mxu0
        %v1365 = vadd.f32 0.0, %v1364
        %1366 = vmatmul.bf16.gmra.mxu0 %v824
        %v1367 = vpop.f32.mrf.mxu0
        %v1368 = vadd.f32 0.0, %v1367
        %v1369 = vpop.f32.mrf.mxu0
        %v1370 = vadd.f32 0.0, %v1369
        %1371 = vmatmul.bf16.gmra.mxu0 %v828
        %v1372 = vpop.f32.mrf.mxu0
        %v1373 = vadd.f32 0.0, %v1372
        %v1374 = vpop.f32.mrf.mxu0
        %v1375 = vadd.f32 0.0, %v1374
        %1376 = vdwg.mxu0
        %1377 = vmatpush.bf16.msra.mxu0 %v1150
        %1378 = vmatpush.bf16.msra.mxu0 %v1148
        %1379 = vmatpush.bf16.msra.mxu0 %v1146
        %1380 = vmatpush.bf16.msra.mxu0 %v1144
        %1381 = vmatpush.bf16.msra.mxu0 %v1142
        %1382 = vmatpush.bf16.msra.mxu0 %v1140
        %1383 = vmatpush.bf16.msra.mxu0 %v1138
        %1384 = vmatpush.bf16.msra.mxu0 %v1136
        %1385 = vmatmul.bf16.gmra.mxu0 %v737
        %v1386 = vpop.f32.mrf.mxu0
        %v1387 = vadd.f32 %v1258, %v1386
        %v1388 = vpop.f32.mrf.mxu0
        %v1389 = vadd.f32 %v1260, %v1388
        %1390 = vmatmul.bf16.gmra.mxu0 %v741
        %v1391 = vpop.f32.mrf.mxu0
        %v1392 = vadd.f32 %v1263, %v1391
        %v1393 = vpop.f32.mrf.mxu0
        %v1394 = vadd.f32 %v1265, %v1393
        %1395 = vmatmul.bf16.gmra.mxu0 %v745
        %v1396 = vpop.f32.mrf.mxu0
        %v1397 = vadd.f32 %v1268, %v1396
        %v1398 = vpop.f32.mrf.mxu0
        %v1399 = vadd.f32 %v1270, %v1398
        %1400 = vmatmul.bf16.gmra.mxu0 %v749
        %v1401 = vpop.f32.mrf.mxu0
        %v1402 = vadd.f32 %v1273, %v1401
        %v1403 = vpop.f32.mrf.mxu0
        %v1404 = vadd.f32 %v1275, %v1403
        %1405 = vmatmul.bf16.gmra.mxu0 %v753
        %v1406 = vpop.f32.mrf.mxu0
        %v1407 = vadd.f32 %v1278, %v1406
        %v1408 = vpop.f32.mrf.mxu0
        %v1409 = vadd.f32 %v1280, %v1408
        %1410 = vmatmul.bf16.gmra.mxu0 %v757
        %v1411 = vpop.f32.mrf.mxu0
        %v1412 = vadd.f32 %v1283, %v1411
        %v1413 = vpop.f32.mrf.mxu0
        %v1414 = vadd.f32 %v1285, %v1413
        %1415 = vmatmul.bf16.gmra.mxu0 %v761
        %v1416 = vpop.f32.mrf.mxu0
        %v1417 = vadd.f32 %v1288, %v1416
        %v1418 = vpop.f32.mrf.mxu0
        %v1419 = vadd.f32 %v1290, %v1418
        %1420 = vmatmul.bf16.gmra.mxu0 %v765
        %v1421 = vpop.f32.mrf.mxu0
        %v1422 = vadd.f32 %v1293, %v1421
        %v1423 = vpop.f32.mrf.mxu0
        %v1424 = vadd.f32 %v1295, %v1423
        %1425 = vmatmul.bf16.gmra.mxu0 %v769
        %v1426 = vpop.f32.mrf.mxu0
        %v1427 = vadd.f32 %v1298, %v1426
        %v1428 = vpop.f32.mrf.mxu0
        %v1429 = vadd.f32 %v1300, %v1428
        %1430 = vmatmul.bf16.gmra.mxu0 %v773
        %v1431 = vpop.f32.mrf.mxu0
        %v1432 = vadd.f32 %v1303, %v1431
        %v1433 = vpop.f32.mrf.mxu0
        %v1434 = vadd.f32 %v1305, %v1433
        %1435 = vmatmul.bf16.gmra.mxu0 %v777
        %v1436 = vpop.f32.mrf.mxu0
        %v1437 = vadd.f32 %v1308, %v1436
        %v1438 = vpop.f32.mrf.mxu0
        %v1439 = vadd.f32 %v1310, %v1438
        %1440 = vmatmul.bf16.gmra.mxu0 %v781
        %v1441 = vpop.f32.mrf.mxu0
        %v1442 = vadd.f32 %v1313, %v1441
        %v1443 = vpop.f32.mrf.mxu0
        %v1444 = vadd.f32 %v1315, %v1443
        %1445 = vmatmul.bf16.gmra.mxu0 %v785
        %v1446 = vpop.f32.mrf.mxu0
        %v1447 = vadd.f32 %v1318, %v1446
        %v1448 = vpop.f32.mrf.mxu0
        %v1449 = vadd.f32 %v1320, %v1448
        %1450 = vmatmul.bf16.gmra.mxu0 %v789
        %v1451 = vpop.f32.mrf.mxu0
        %v1452 = vadd.f32 %v1323, %v1451
        %v1453 = vpop.f32.mrf.mxu0
        %v1454 = vadd.f32 %v1325, %v1453
        %1455 = vmatmul.bf16.gmra.mxu0 %v793
        %v1456 = vpop.f32.mrf.mxu0
        %v1457 = vadd.f32 %v1328, %v1456
        %v1458 = vpop.f32.mrf.mxu0
        %v1459 = vadd.f32 %v1330, %v1458
        %1460 = vmatmul.bf16.gmra.mxu0 %v797
        %v1461 = vpop.f32.mrf.mxu0
        %v1462 = vadd.f32 %v1333, %v1461
        %v1463 = vpop.f32.mrf.mxu0
        %v1464 = vadd.f32 %v1335, %v1463
        %1465 = vmatmul.bf16.gmra.mxu0 %v801
        %v1466 = vpop.f32.mrf.mxu0
        %v1467 = vadd.f32 %v1338, %v1466
        %v1468 = vpop.f32.mrf.mxu0
        %v1469 = vadd.f32 %v1340, %v1468
        %1470 = vmatmul.bf16.gmra.mxu0 %v805
        %v1471 = vpop.f32.mrf.mxu0
        %v1472 = vadd.f32 %v1343, %v1471
        %v1473 = vpop.f32.mrf.mxu0
        %v1474 = vadd.f32 %v1345, %v1473
        %1475 = vmatmul.bf16.gmra.mxu0 %v809
        %v1476 = vpop.f32.mrf.mxu0
        %v1477 = vadd.f32 %v1348, %v1476
        %v1478 = vpop.f32.mrf.mxu0
        %v1479 = vadd.f32 %v1350, %v1478
        %1480 = vmatmul.bf16.gmra.mxu0 %v813
        %v1481 = vpop.f32.mrf.mxu0
        %v1482 = vadd.f32 %v1353, %v1481
        %v1483 = vpop.f32.mrf.mxu0
        %v1484 = vadd.f32 %v1355, %v1483
        %1485 = vmatmul.bf16.gmra.mxu0 %v817
        %v1486 = vpop.f32.mrf.mxu0
        %v1487 = vadd.f32 %v1358, %v1486
        %v1488 = vpop.f32.mrf.mxu0
        %v1489 = vadd.f32 %v1360, %v1488
        %1490 = vmatmul.bf16.gmra.mxu0 %v821
        %v1491 = vpop.f32.mrf.mxu0
        %v1492 = vadd.f32 %v1363, %v1491
        %v1493 = vpop.f32.mrf.mxu0
        %v1494 = vadd.f32 %v1365, %v1493
        %1495 = vmatmul.bf16.gmra.mxu0 %v825
        %v1496 = vpop.f32.mrf.mxu0
        %v1497 = vadd.f32 %v1368, %v1496
        %v1498 = vpop.f32.mrf.mxu0
        %v1499 = vadd.f32 %v1370, %v1498
        %1500 = vmatmul.bf16.gmra.mxu0 %v829
        %v1501 = vpop.f32.mrf.mxu0
        %v1502 = vadd.f32 %v1373, %v1501
        %v1503 = vpop.f32.mrf.mxu0
        %v1504 = vadd.f32 %v1375, %v1503
        %1505 = vdwg.mxu0
        %1506 = vmatpush.bf16.msra.mxu0 %v1166
        %1507 = vmatpush.bf16.msra.mxu0 %v1164
        %1508 = vmatpush.bf16.msra.mxu0 %v1162
        %1509 = vmatpush.bf16.msra.mxu0 %v1160
        %1510 = vmatpush.bf16.msra.mxu0 %v1158
        %1511 = vmatpush.bf16.msra.mxu0 %v1156
        %1512 = vmatpush.bf16.msra.mxu0 %v1154
        %1513 = vmatpush.bf16.msra.mxu0 %v1152
        %1514 = vmatmul.bf16.gmra.mxu0 %v738
        %v1515 = vpop.f32.mrf.mxu0
        %v1516 = vadd.f32 %v1387, %v1515
        %v1517 = vpop.f32.mrf.mxu0
        %v1518 = vadd.f32 %v1389, %v1517
        %1519 = vmatmul.bf16.gmra.mxu0 %v742
        %v1520 = vpop.f32.mrf.mxu0
        %v1521 = vadd.f32 %v1392, %v1520
        %v1522 = vpop.f32.mrf.mxu0
        %v1523 = vadd.f32 %v1394, %v1522
        %1524 = vmatmul.bf16.gmra.mxu0 %v746
        %v1525 = vpop.f32.mrf.mxu0
        %v1526 = vadd.f32 %v1397, %v1525
        %v1527 = vpop.f32.mrf.mxu0
        %v1528 = vadd.f32 %v1399, %v1527
        %1529 = vmatmul.bf16.gmra.mxu0 %v750
        %v1530 = vpop.f32.mrf.mxu0
        %v1531 = vadd.f32 %v1402, %v1530
        %v1532 = vpop.f32.mrf.mxu0
        %v1533 = vadd.f32 %v1404, %v1532
        %1534 = vmatmul.bf16.gmra.mxu0 %v754
        %v1535 = vpop.f32.mrf.mxu0
        %v1536 = vadd.f32 %v1407, %v1535
        %v1537 = vpop.f32.mrf.mxu0
        %v1538 = vadd.f32 %v1409, %v1537
        %1539 = vmatmul.bf16.gmra.mxu0 %v758
        %v1540 = vpop.f32.mrf.mxu0
        %v1541 = vadd.f32 %v1412, %v1540
        %v1542 = vpop.f32.mrf.mxu0
        %v1543 = vadd.f32 %v1414, %v1542
        %1544 = vmatmul.bf16.gmra.mxu0 %v762
        %v1545 = vpop.f32.mrf.mxu0
        %v1546 = vadd.f32 %v1417, %v1545
        %v1547 = vpop.f32.mrf.mxu0
        %v1548 = vadd.f32 %v1419, %v1547
        %1549 = vmatmul.bf16.gmra.mxu0 %v766
        %v1550 = vpop.f32.mrf.mxu0
        %v1551 = vadd.f32 %v1422, %v1550
        %v1552 = vpop.f32.mrf.mxu0
        %v1553 = vadd.f32 %v1424, %v1552
        %1554 = vmatmul.bf16.gmra.mxu0 %v770
        %v1555 = vpop.f32.mrf.mxu0
        %v1556 = vadd.f32 %v1427, %v1555
        %v1557 = vpop.f32.mrf.mxu0
        %v1558 = vadd.f32 %v1429, %v1557
        %1559 = vmatmul.bf16.gmra.mxu0 %v774
        %v1560 = vpop.f32.mrf.mxu0
        %v1561 = vadd.f32 %v1432, %v1560
        %v1562 = vpop.f32.mrf.mxu0
        %v1563 = vadd.f32 %v1434, %v1562
        %1564 = vmatmul.bf16.gmra.mxu0 %v778
        %v1565 = vpop.f32.mrf.mxu0
        %v1566 = vadd.f32 %v1437, %v1565
        %v1567 = vpop.f32.mrf.mxu0
        %v1568 = vadd.f32 %v1439, %v1567
        %1569 = vmatmul.bf16.gmra.mxu0 %v782
        %v1570 = vpop.f32.mrf.mxu0
        %v1571 = vadd.f32 %v1442, %v1570
        %v1572 = vpop.f32.mrf.mxu0
        %v1573 = vadd.f32 %v1444, %v1572
        %1574 = vmatmul.bf16.gmra.mxu0 %v786
        %v1575 = vpop.f32.mrf.mxu0
        %v1576 = vadd.f32 %v1447, %v1575
        %v1577 = vpop.f32.mrf.mxu0
        %v1578 = vadd.f32 %v1449, %v1577
        %1579 = vmatmul.bf16.gmra.mxu0 %v790
        %v1580 = vpop.f32.mrf.mxu0
        %v1581 = vadd.f32 %v1452, %v1580
        %v1582 = vpop.f32.mrf.mxu0
        %v1583 = vadd.f32 %v1454, %v1582
        %1584 = vmatmul.bf16.gmra.mxu0 %v794
        %v1585 = vpop.f32.mrf.mxu0
        %v1586 = vadd.f32 %v1457, %v1585
        %v1587 = vpop.f32.mrf.mxu0
        %v1588 = vadd.f32 %v1459, %v1587
        %1589 = vmatmul.bf16.gmra.mxu0 %v798
        %v1590 = vpop.f32.mrf.mxu0
        %v1591 = vadd.f32 %v1462, %v1590
        %v1592 = vpop.f32.mrf.mxu0
        %v1593 = vadd.f32 %v1464, %v1592
        %1594 = vmatmul.bf16.gmra.mxu0 %v802
        %v1595 = vpop.f32.mrf.mxu0
        %v1596 = vadd.f32 %v1467, %v1595
        %v1597 = vpop.f32.mrf.mxu0
        %v1598 = vadd.f32 %v1469, %v1597
        %1599 = vmatmul.bf16.gmra.mxu0 %v806
        %v1600 = vpop.f32.mrf.mxu0
        %v1601 = vadd.f32 %v1472, %v1600
        %v1602 = vpop.f32.mrf.mxu0
        %v1603 = vadd.f32 %v1474, %v1602
        %1604 = vmatmul.bf16.gmra.mxu0 %v810
        %v1605 = vpop.f32.mrf.mxu0
        %v1606 = vadd.f32 %v1477, %v1605
        %v1607 = vpop.f32.mrf.mxu0
        %v1608 = vadd.f32 %v1479, %v1607
        %1609 = vmatmul.bf16.gmra.mxu0 %v814
        %v1610 = vpop.f32.mrf.mxu0
        %v1611 = vadd.f32 %v1482, %v1610
        %v1612 = vpop.f32.mrf.mxu0
        %v1613 = vadd.f32 %v1484, %v1612
        %1614 = vmatmul.bf16.gmra.mxu0 %v818
        %v1615 = vpop.f32.mrf.mxu0
        %v1616 = vadd.f32 %v1487, %v1615
        %v1617 = vpop.f32.mrf.mxu0
        %v1618 = vadd.f32 %v1489, %v1617
        %1619 = vmatmul.bf16.gmra.mxu0 %v822
        %v1620 = vpop.f32.mrf.mxu0
        %v1621 = vadd.f32 %v1492, %v1620
        %v1622 = vpop.f32.mrf.mxu0
        %v1623 = vadd.f32 %v1494, %v1622
        %1624 = vmatmul.bf16.gmra.mxu0 %v826
        %v1625 = vpop.f32.mrf.mxu0
        %v1626 = vadd.f32 %v1497, %v1625
        %v1627 = vpop.f32.mrf.mxu0
        %v1628 = vadd.f32 %v1499, %v1627
        %1629 = vmatmul.bf16.gmra.mxu0 %v830
        %v1630 = vpop.f32.mrf.mxu0
        %v1631 = vadd.f32 %v1502, %v1630
        %v1632 = vpop.f32.mrf.mxu0
        %v1633 = vadd.f32 %v1504, %v1632
        %1634 = vdwg.mxu0
        %1635 = vmatpush.bf16.msra.mxu0 %v1182
        %1636 = vmatpush.bf16.msra.mxu0 %v1180
        %1637 = vmatpush.bf16.msra.mxu0 %v1178
        %1638 = vmatpush.bf16.msra.mxu0 %v1176
        %1639 = vmatpush.bf16.msra.mxu0 %v1174
        %1640 = vmatpush.bf16.msra.mxu0 %v1172
        %1641 = vmatpush.bf16.msra.mxu0 %v1170
        %1642 = vmatpush.bf16.msra.mxu0 %v1168
        %1643 = vmatmul.bf16.gmra.mxu0 %v739
        %v1644 = vpop.f32.mrf.mxu0
        %v1645 = vadd.f32 %v1516, %v1644
        %v1646 = vpop.f32.mrf.mxu0
        %v1647 = vadd.f32 %v1518, %v1646
        %1648 = vmatmul.bf16.gmra.mxu0 %v743
        %v1649 = vpop.f32.mrf.mxu0
        %v1650 = vadd.f32 %v1521, %v1649
        %v1651 = vpop.f32.mrf.mxu0
        %v1652 = vadd.f32 %v1523, %v1651
        %1653 = vmatmul.bf16.gmra.mxu0 %v747
        %v1654 = vpop.f32.mrf.mxu0
        %v1655 = vadd.f32 %v1526, %v1654
        %v1656 = vpop.f32.mrf.mxu0
        %v1657 = vadd.f32 %v1528, %v1656
        %1658 = vmatmul.bf16.gmra.mxu0 %v751
        %v1659 = vpop.f32.mrf.mxu0
        %v1660 = vadd.f32 %v1531, %v1659
        %v1661 = vpop.f32.mrf.mxu0
        %v1662 = vadd.f32 %v1533, %v1661
        %1663 = vmatmul.bf16.gmra.mxu0 %v755
        %v1664 = vpop.f32.mrf.mxu0
        %v1665 = vadd.f32 %v1536, %v1664
        %v1666 = vpop.f32.mrf.mxu0
        %v1667 = vadd.f32 %v1538, %v1666
        %1668 = vmatmul.bf16.gmra.mxu0 %v759
        %v1669 = vpop.f32.mrf.mxu0
        %v1670 = vadd.f32 %v1541, %v1669
        %v1671 = vpop.f32.mrf.mxu0
        %v1672 = vadd.f32 %v1543, %v1671
        %1673 = vmatmul.bf16.gmra.mxu0 %v763
        %v1674 = vpop.f32.mrf.mxu0
        %v1675 = vadd.f32 %v1546, %v1674
        %v1676 = vpop.f32.mrf.mxu0
        %v1677 = vadd.f32 %v1548, %v1676
        %1678 = vmatmul.bf16.gmra.mxu0 %v767
        %v1679 = vpop.f32.mrf.mxu0
        %v1680 = vadd.f32 %v1551, %v1679
        %v1681 = vpop.f32.mrf.mxu0
        %v1682 = vadd.f32 %v1553, %v1681
        %1683 = vmatmul.bf16.gmra.mxu0 %v771
        %v1684 = vpop.f32.mrf.mxu0
        %v1685 = vadd.f32 %v1556, %v1684
        %v1686 = vpop.f32.mrf.mxu0
        %v1687 = vadd.f32 %v1558, %v1686
        %1688 = vmatmul.bf16.gmra.mxu0 %v775
        %v1689 = vpop.f32.mrf.mxu0
        %v1690 = vadd.f32 %v1561, %v1689
        %v1691 = vpop.f32.mrf.mxu0
        %v1692 = vadd.f32 %v1563, %v1691
        %1693 = vmatmul.bf16.gmra.mxu0 %v779
        %v1694 = vpop.f32.mrf.mxu0
        %v1695 = vadd.f32 %v1566, %v1694
        %v1696 = vpop.f32.mrf.mxu0
        %v1697 = vadd.f32 %v1568, %v1696
        %1698 = vmatmul.bf16.gmra.mxu0 %v783
        %v1699 = vpop.f32.mrf.mxu0
        %v1700 = vadd.f32 %v1571, %v1699
        %v1701 = vpop.f32.mrf.mxu0
        %v1702 = vadd.f32 %v1573, %v1701
        %1703 = vmatmul.bf16.gmra.mxu0 %v787
        %v1704 = vpop.f32.mrf.mxu0
        %v1705 = vadd.f32 %v1576, %v1704
        %v1706 = vpop.f32.mrf.mxu0
        %v1707 = vadd.f32 %v1578, %v1706
        %1708 = vmatmul.bf16.gmra.mxu0 %v791
        %v1709 = vpop.f32.mrf.mxu0
        %v1710 = vadd.f32 %v1581, %v1709
        %v1711 = vpop.f32.mrf.mxu0
        %v1712 = vadd.f32 %v1583, %v1711
        %1713 = vmatmul.bf16.gmra.mxu0 %v795
        %v1714 = vpop.f32.mrf.mxu0
        %v1715 = vadd.f32 %v1586, %v1714
        %v1716 = vpop.f32.mrf.mxu0
        %v1717 = vadd.f32 %v1588, %v1716
        %1718 = vmatmul.bf16.gmra.mxu0 %v799
        %v1719 = vpop.f32.mrf.mxu0
        %v1720 = vadd.f32 %v1591, %v1719
        %v1721 = vpop.f32.mrf.mxu0
        %v1722 = vadd.f32 %v1593, %v1721
        %1723 = vmatmul.bf16.gmra.mxu0 %v803
        %v1724 = vpop.f32.mrf.mxu0
        %v1725 = vadd.f32 %v1596, %v1724
        %v1726 = vpop.f32.mrf.mxu0
        %v1727 = vadd.f32 %v1598, %v1726
        %1728 = vmatmul.bf16.gmra.mxu0 %v807
        %v1729 = vpop.f32.mrf.mxu0
        %v1730 = vadd.f32 %v1601, %v1729
        %v1731 = vpop.f32.mrf.mxu0
        %v1732 = vadd.f32 %v1603, %v1731
        %1733 = vmatmul.bf16.gmra.mxu0 %v811
        %v1734 = vpop.f32.mrf.mxu0
        %v1735 = vadd.f32 %v1606, %v1734
        %v1736 = vpop.f32.mrf.mxu0
        %v1737 = vadd.f32 %v1608, %v1736
        %1738 = vmatmul.bf16.gmra.mxu0 %v815
        %v1739 = vpop.f32.mrf.mxu0
        %v1740 = vadd.f32 %v1611, %v1739
        %v1741 = vpop.f32.mrf.mxu0
        %v1742 = vadd.f32 %v1613, %v1741
        %1743 = vmatmul.bf16.gmra.mxu0 %v819
        %v1744 = vpop.f32.mrf.mxu0
        %v1745 = vadd.f32 %v1616, %v1744
        %v1746 = vpop.f32.mrf.mxu0
        %v1747 = vadd.f32 %v1618, %v1746
        %1748 = vmatmul.bf16.gmra.mxu0 %v823
        %v1749 = vpop.f32.mrf.mxu0
        %v1750 = vadd.f32 %v1621, %v1749
        %v1751 = vpop.f32.mrf.mxu0
        %v1752 = vadd.f32 %v1623, %v1751
        %1753 = vmatmul.bf16.gmra.mxu0 %v827
        %v1754 = vpop.f32.mrf.mxu0
        %v1755 = vadd.f32 %v1626, %v1754
        %v1756 = vpop.f32.mrf.mxu0
        %v1757 = vadd.f32 %v1628, %v1756
        %1758 = vmatmul.bf16.gmra.mxu0 %v831
        %v1759 = vpop.f32.mrf.mxu0
        %v1760 = vadd.f32 %v1631, %v1759
        %v1761 = vpop.f32.mrf.mxu0
        %v1762 = vadd.f32 %v1633, %v1761
        %1763 = vdwg.mxu0
        %1764 = vmatpush.bf16.msra.mxu0 %v1135
        %1765 = vmatpush.bf16.msra.mxu0 %v1133
        %1766 = vmatpush.bf16.msra.mxu0 %v1131
        %1767 = vmatpush.bf16.msra.mxu0 %v1129
        %1768 = vmatpush.bf16.msra.mxu0 %v1127
        %1769 = vmatpush.bf16.msra.mxu0 %v1125
        %1770 = vmatpush.bf16.msra.mxu0 %v1123
        %1771 = vmatpush.bf16.msra.mxu0 %v1121
        %1772 = vmatmul.bf16.gmra.mxu0 %v736
        %v1773 = vpop.f32.mrf.mxu0
        %v1774 = vadd.f32 0.0, %v1773
        %v1775 = vpop.f32.mrf.mxu0
        %v1776 = vadd.f32 0.0, %v1775
        %1777 = vmatmul.bf16.gmra.mxu0 %v740
        %v1778 = vpop.f32.mrf.mxu0
        %v1779 = vadd.f32 0.0, %v1778
        %v1780 = vpop.f32.mrf.mxu0
        %v1781 = vadd.f32 0.0, %v1780
        %1782 = vmatmul.bf16.gmra.mxu0 %v744
        %v1783 = vpop.f32.mrf.mxu0
        %v1784 = vadd.f32 0.0, %v1783
        %v1785 = vpop.f32.mrf.mxu0
        %v1786 = vadd.f32 0.0, %v1785
        %1787 = vmatmul.bf16.gmra.mxu0 %v748
        %v1788 = vpop.f32.mrf.mxu0
        %v1789 = vadd.f32 0.0, %v1788
        %v1790 = vpop.f32.mrf.mxu0
        %v1791 = vadd.f32 0.0, %v1790
        %1792 = vmatmul.bf16.gmra.mxu0 %v752
        %v1793 = vpop.f32.mrf.mxu0
        %v1794 = vadd.f32 0.0, %v1793
        %v1795 = vpop.f32.mrf.mxu0
        %v1796 = vadd.f32 0.0, %v1795
        %1797 = vmatmul.bf16.gmra.mxu0 %v756
        %v1798 = vpop.f32.mrf.mxu0
        %v1799 = vadd.f32 0.0, %v1798
        %v1800 = vpop.f32.mrf.mxu0
        %v1801 = vadd.f32 0.0, %v1800
        %1802 = vmatmul.bf16.gmra.mxu0 %v760
        %v1803 = vpop.f32.mrf.mxu0
        %v1804 = vadd.f32 0.0, %v1803
        %v1805 = vpop.f32.mrf.mxu0
        %v1806 = vadd.f32 0.0, %v1805
        %1807 = vmatmul.bf16.gmra.mxu0 %v764
        %v1808 = vpop.f32.mrf.mxu0
        %v1809 = vadd.f32 0.0, %v1808
        %v1810 = vpop.f32.mrf.mxu0
        %v1811 = vadd.f32 0.0, %v1810
        %1812 = vmatmul.bf16.gmra.mxu0 %v768
        %v1813 = vpop.f32.mrf.mxu0
        %v1814 = vadd.f32 0.0, %v1813
        %v1815 = vpop.f32.mrf.mxu0
        %v1816 = vadd.f32 0.0, %v1815
        %1817 = vmatmul.bf16.gmra.mxu0 %v772
        %v1818 = vpop.f32.mrf.mxu0
        %v1819 = vadd.f32 0.0, %v1818
        %v1820 = vpop.f32.mrf.mxu0
        %v1821 = vadd.f32 0.0, %v1820
        %1822 = vmatmul.bf16.gmra.mxu0 %v776
        %v1823 = vpop.f32.mrf.mxu0
        %v1824 = vadd.f32 0.0, %v1823
        %v1825 = vpop.f32.mrf.mxu0
        %v1826 = vadd.f32 0.0, %v1825
        %1827 = vmatmul.bf16.gmra.mxu0 %v780
        %v1828 = vpop.f32.mrf.mxu0
        %v1829 = vadd.f32 0.0, %v1828
        %v1830 = vpop.f32.mrf.mxu0
        %v1831 = vadd.f32 0.0, %v1830
        %1832 = vmatmul.bf16.gmra.mxu0 %v784
        %v1833 = vpop.f32.mrf.mxu0
        %v1834 = vadd.f32 0.0, %v1833
        %v1835 = vpop.f32.mrf.mxu0
        %v1836 = vadd.f32 0.0, %v1835
        %1837 = vmatmul.bf16.gmra.mxu0 %v788
        %v1838 = vpop.f32.mrf.mxu0
        %v1839 = vadd.f32 0.0, %v1838
        %v1840 = vpop.f32.mrf.mxu0
        %v1841 = vadd.f32 0.0, %v1840
        %1842 = vmatmul.bf16.gmra.mxu0 %v792
        %v1843 = vpop.f32.mrf.mxu0
        %v1844 = vadd.f32 0.0, %v1843
        %v1845 = vpop.f32.mrf.mxu0
        %v1846 = vadd.f32 0.0, %v1845
        %1847 = vmatmul.bf16.gmra.mxu0 %v796
        %v1848 = vpop.f32.mrf.mxu0
        %v1849 = vadd.f32 0.0, %v1848
        %v1850 = vpop.f32.mrf.mxu0
        %v1851 = vadd.f32 0.0, %v1850
        %1852 = vmatmul.bf16.gmra.mxu0 %v800
        %v1853 = vpop.f32.mrf.mxu0
        %v1854 = vadd.f32 0.0, %v1853
        %v1855 = vpop.f32.mrf.mxu0
        %v1856 = vadd.f32 0.0, %v1855
        %1857 = vmatmul.bf16.gmra.mxu0 %v804
        %v1858 = vpop.f32.mrf.mxu0
        %v1859 = vadd.f32 0.0, %v1858
        %v1860 = vpop.f32.mrf.mxu0
        %v1861 = vadd.f32 0.0, %v1860
        %1862 = vmatmul.bf16.gmra.mxu0 %v808
        %v1863 = vpop.f32.mrf.mxu0
        %v1864 = vadd.f32 0.0, %v1863
        %v1865 = vpop.f32.mrf.mxu0
        %v1866 = vadd.f32 0.0, %v1865
        %1867 = vmatmul.bf16.gmra.mxu0 %v812
        %v1868 = vpop.f32.mrf.mxu0
        %v1869 = vadd.f32 0.0, %v1868
        %v1870 = vpop.f32.mrf.mxu0
        %v1871 = vadd.f32 0.0, %v1870
        %1872 = vmatmul.bf16.gmra.mxu0 %v816
        %v1873 = vpop.f32.mrf.mxu0
        %v1874 = vadd.f32 0.0, %v1873
        %v1875 = vpop.f32.mrf.mxu0
        %v1876 = vadd.f32 0.0, %v1875
        %1877 = vmatmul.bf16.gmra.mxu0 %v820
        %v1878 = vpop.f32.mrf.mxu0
        %v1879 = vadd.f32 0.0, %v1878
        %v1880 = vpop.f32.mrf.mxu0
        %v1881 = vadd.f32 0.0, %v1880
        %1882 = vmatmul.bf16.gmra.mxu0 %v824
        %v1883 = vpop.f32.mrf.mxu0
        %v1884 = vadd.f32 0.0, %v1883
        %v1885 = vpop.f32.mrf.mxu0
        %v1886 = vadd.f32 0.0, %v1885
        %1887 = vmatmul.bf16.gmra.mxu0 %v828
        %v1888 = vpop.f32.mrf.mxu0
        %v1889 = vadd.f32 0.0, %v1888
        %v1890 = vpop.f32.mrf.mxu0
        %v1891 = vadd.f32 0.0, %v1890
        %1892 = vdwg.mxu0
        %1893 = vmatpush.bf16.msra.mxu0 %v1151
        %1894 = vmatpush.bf16.msra.mxu0 %v1149
        %1895 = vmatpush.bf16.msra.mxu0 %v1147
        %1896 = vmatpush.bf16.msra.mxu0 %v1145
        %1897 = vmatpush.bf16.msra.mxu0 %v1143
        %1898 = vmatpush.bf16.msra.mxu0 %v1141
        %1899 = vmatpush.bf16.msra.mxu0 %v1139
        %1900 = vmatpush.bf16.msra.mxu0 %v1137
        %1901 = vmatmul.bf16.gmra.mxu0 %v737
        %v1902 = vpop.f32.mrf.mxu0
        %v1903 = vadd.f32 %v1774, %v1902
        %v1904 = vpop.f32.mrf.mxu0
        %v1905 = vadd.f32 %v1776, %v1904
        %1906 = vmatmul.bf16.gmra.mxu0 %v741
        %v1907 = vpop.f32.mrf.mxu0
        %v1908 = vadd.f32 %v1779, %v1907
        %v1909 = vpop.f32.mrf.mxu0
        %v1910 = vadd.f32 %v1781, %v1909
        %1911 = vmatmul.bf16.gmra.mxu0 %v745
        %v1912 = vpop.f32.mrf.mxu0
        %v1913 = vadd.f32 %v1784, %v1912
        %v1914 = vpop.f32.mrf.mxu0
        %v1915 = vadd.f32 %v1786, %v1914
        %1916 = vmatmul.bf16.gmra.mxu0 %v749
        %v1917 = vpop.f32.mrf.mxu0
        %v1918 = vadd.f32 %v1789, %v1917
        %v1919 = vpop.f32.mrf.mxu0
        %v1920 = vadd.f32 %v1791, %v1919
        %1921 = vmatmul.bf16.gmra.mxu0 %v753
        %v1922 = vpop.f32.mrf.mxu0
        %v1923 = vadd.f32 %v1794, %v1922
        %v1924 = vpop.f32.mrf.mxu0
        %v1925 = vadd.f32 %v1796, %v1924
        %1926 = vmatmul.bf16.gmra.mxu0 %v757
        %v1927 = vpop.f32.mrf.mxu0
        %v1928 = vadd.f32 %v1799, %v1927
        %v1929 = vpop.f32.mrf.mxu0
        %v1930 = vadd.f32 %v1801, %v1929
        %1931 = vmatmul.bf16.gmra.mxu0 %v761
        %v1932 = vpop.f32.mrf.mxu0
        %v1933 = vadd.f32 %v1804, %v1932
        %v1934 = vpop.f32.mrf.mxu0
        %v1935 = vadd.f32 %v1806, %v1934
        %1936 = vmatmul.bf16.gmra.mxu0 %v765
        %v1937 = vpop.f32.mrf.mxu0
        %v1938 = vadd.f32 %v1809, %v1937
        %v1939 = vpop.f32.mrf.mxu0
        %v1940 = vadd.f32 %v1811, %v1939
        %1941 = vmatmul.bf16.gmra.mxu0 %v769
        %v1942 = vpop.f32.mrf.mxu0
        %v1943 = vadd.f32 %v1814, %v1942
        %v1944 = vpop.f32.mrf.mxu0
        %v1945 = vadd.f32 %v1816, %v1944
        %1946 = vmatmul.bf16.gmra.mxu0 %v773
        %v1947 = vpop.f32.mrf.mxu0
        %v1948 = vadd.f32 %v1819, %v1947
        %v1949 = vpop.f32.mrf.mxu0
        %v1950 = vadd.f32 %v1821, %v1949
        %1951 = vmatmul.bf16.gmra.mxu0 %v777
        %v1952 = vpop.f32.mrf.mxu0
        %v1953 = vadd.f32 %v1824, %v1952
        %v1954 = vpop.f32.mrf.mxu0
        %v1955 = vadd.f32 %v1826, %v1954
        %1956 = vmatmul.bf16.gmra.mxu0 %v781
        %v1957 = vpop.f32.mrf.mxu0
        %v1958 = vadd.f32 %v1829, %v1957
        %v1959 = vpop.f32.mrf.mxu0
        %v1960 = vadd.f32 %v1831, %v1959
        %1961 = vmatmul.bf16.gmra.mxu0 %v785
        %v1962 = vpop.f32.mrf.mxu0
        %v1963 = vadd.f32 %v1834, %v1962
        %v1964 = vpop.f32.mrf.mxu0
        %v1965 = vadd.f32 %v1836, %v1964
        %1966 = vmatmul.bf16.gmra.mxu0 %v789
        %v1967 = vpop.f32.mrf.mxu0
        %v1968 = vadd.f32 %v1839, %v1967
        %v1969 = vpop.f32.mrf.mxu0
        %v1970 = vadd.f32 %v1841, %v1969
        %1971 = vmatmul.bf16.gmra.mxu0 %v793
        %v1972 = vpop.f32.mrf.mxu0
        %v1973 = vadd.f32 %v1844, %v1972
        %v1974 = vpop.f32.mrf.mxu0
        %v1975 = vadd.f32 %v1846, %v1974
        %1976 = vmatmul.bf16.gmra.mxu0 %v797
        %v1977 = vpop.f32.mrf.mxu0
        %v1978 = vadd.f32 %v1849, %v1977
        %v1979 = vpop.f32.mrf.mxu0
        %v1980 = vadd.f32 %v1851, %v1979
        %1981 = vmatmul.bf16.gmra.mxu0 %v801
        %v1982 = vpop.f32.mrf.mxu0
        %v1983 = vadd.f32 %v1854, %v1982
        %v1984 = vpop.f32.mrf.mxu0
        %v1985 = vadd.f32 %v1856, %v1984
        %1986 = vmatmul.bf16.gmra.mxu0 %v805
        %v1987 = vpop.f32.mrf.mxu0
        %v1988 = vadd.f32 %v1859, %v1987
        %v1989 = vpop.f32.mrf.mxu0
        %v1990 = vadd.f32 %v1861, %v1989
        %1991 = vmatmul.bf16.gmra.mxu0 %v809
        %v1992 = vpop.f32.mrf.mxu0
        %v1993 = vadd.f32 %v1864, %v1992
        %v1994 = vpop.f32.mrf.mxu0
        %v1995 = vadd.f32 %v1866, %v1994
        %1996 = vmatmul.bf16.gmra.mxu0 %v813
        %v1997 = vpop.f32.mrf.mxu0
        %v1998 = vadd.f32 %v1869, %v1997
        %v1999 = vpop.f32.mrf.mxu0
        %v2000 = vadd.f32 %v1871, %v1999
        %2001 = vmatmul.bf16.gmra.mxu0 %v817
        %v2002 = vpop.f32.mrf.mxu0
        %v2003 = vadd.f32 %v1874, %v2002
        %v2004 = vpop.f32.mrf.mxu0
        %v2005 = vadd.f32 %v1876, %v2004
        %2006 = vmatmul.bf16.gmra.mxu0 %v821
        %v2007 = vpop.f32.mrf.mxu0
        %v2008 = vadd.f32 %v1879, %v2007
        %v2009 = vpop.f32.mrf.mxu0
        %v2010 = vadd.f32 %v1881, %v2009
        %2011 = vmatmul.bf16.gmra.mxu0 %v825
        %v2012 = vpop.f32.mrf.mxu0
        %v2013 = vadd.f32 %v1884, %v2012
        %v2014 = vpop.f32.mrf.mxu0
        %v2015 = vadd.f32 %v1886, %v2014
        %2016 = vmatmul.bf16.gmra.mxu0 %v829
        %v2017 = vpop.f32.mrf.mxu0
        %v2018 = vadd.f32 %v1889, %v2017
        %v2019 = vpop.f32.mrf.mxu0
        %v2020 = vadd.f32 %v1891, %v2019
        %2021 = vdwg.mxu0
        %2022 = vmatpush.bf16.msra.mxu0 %v1167
        %2023 = vmatpush.bf16.msra.mxu0 %v1165
        %2024 = vmatpush.bf16.msra.mxu0 %v1163
        %2025 = vmatpush.bf16.msra.mxu0 %v1161
        %2026 = vmatpush.bf16.msra.mxu0 %v1159
        %2027 = vmatpush.bf16.msra.mxu0 %v1157
        %2028 = vmatpush.bf16.msra.mxu0 %v1155
        %2029 = vmatpush.bf16.msra.mxu0 %v1153
        %2030 = vmatmul.bf16.gmra.mxu0 %v738
        %v2031 = vpop.f32.mrf.mxu0
        %v2032 = vadd.f32 %v1903, %v2031
        %v2033 = vpop.f32.mrf.mxu0
        %v2034 = vadd.f32 %v1905, %v2033
        %2035 = vmatmul.bf16.gmra.mxu0 %v742
        %v2036 = vpop.f32.mrf.mxu0
        %v2037 = vadd.f32 %v1908, %v2036
        %v2038 = vpop.f32.mrf.mxu0
        %v2039 = vadd.f32 %v1910, %v2038
        %2040 = vmatmul.bf16.gmra.mxu0 %v746
        %v2041 = vpop.f32.mrf.mxu0
        %v2042 = vadd.f32 %v1913, %v2041
        %v2043 = vpop.f32.mrf.mxu0
        %v2044 = vadd.f32 %v1915, %v2043
        %2045 = vmatmul.bf16.gmra.mxu0 %v750
        %v2046 = vpop.f32.mrf.mxu0
        %v2047 = vadd.f32 %v1918, %v2046
        %v2048 = vpop.f32.mrf.mxu0
        %v2049 = vadd.f32 %v1920, %v2048
        %2050 = vmatmul.bf16.gmra.mxu0 %v754
        %v2051 = vpop.f32.mrf.mxu0
        %v2052 = vadd.f32 %v1923, %v2051
        %v2053 = vpop.f32.mrf.mxu0
        %v2054 = vadd.f32 %v1925, %v2053
        %2055 = vmatmul.bf16.gmra.mxu0 %v758
        %v2056 = vpop.f32.mrf.mxu0
        %v2057 = vadd.f32 %v1928, %v2056
        %v2058 = vpop.f32.mrf.mxu0
        %v2059 = vadd.f32 %v1930, %v2058
        %2060 = vmatmul.bf16.gmra.mxu0 %v762
        %v2061 = vpop.f32.mrf.mxu0
        %v2062 = vadd.f32 %v1933, %v2061
        %v2063 = vpop.f32.mrf.mxu0
        %v2064 = vadd.f32 %v1935, %v2063
        %2065 = vmatmul.bf16.gmra.mxu0 %v766
        %v2066 = vpop.f32.mrf.mxu0
        %v2067 = vadd.f32 %v1938, %v2066
        %v2068 = vpop.f32.mrf.mxu0
        %v2069 = vadd.f32 %v1940, %v2068
        %2070 = vmatmul.bf16.gmra.mxu0 %v770
        %v2071 = vpop.f32.mrf.mxu0
        %v2072 = vadd.f32 %v1943, %v2071
        %v2073 = vpop.f32.mrf.mxu0
        %v2074 = vadd.f32 %v1945, %v2073
        %2075 = vmatmul.bf16.gmra.mxu0 %v774
        %v2076 = vpop.f32.mrf.mxu0
        %v2077 = vadd.f32 %v1948, %v2076
        %v2078 = vpop.f32.mrf.mxu0
        %v2079 = vadd.f32 %v1950, %v2078
        %2080 = vmatmul.bf16.gmra.mxu0 %v778
        %v2081 = vpop.f32.mrf.mxu0
        %v2082 = vadd.f32 %v1953, %v2081
        %v2083 = vpop.f32.mrf.mxu0
        %v2084 = vadd.f32 %v1955, %v2083
        %2085 = vmatmul.bf16.gmra.mxu0 %v782
        %v2086 = vpop.f32.mrf.mxu0
        %v2087 = vadd.f32 %v1958, %v2086
        %v2088 = vpop.f32.mrf.mxu0
        %v2089 = vadd.f32 %v1960, %v2088
        %2090 = vmatmul.bf16.gmra.mxu0 %v786
        %v2091 = vpop.f32.mrf.mxu0
        %v2092 = vadd.f32 %v1963, %v2091
        %v2093 = vpop.f32.mrf.mxu0
        %v2094 = vadd.f32 %v1965, %v2093
        %2095 = vmatmul.bf16.gmra.mxu0 %v790
        %v2096 = vpop.f32.mrf.mxu0
        %v2097 = vadd.f32 %v1968, %v2096
        %v2098 = vpop.f32.mrf.mxu0
        %v2099 = vadd.f32 %v1970, %v2098
        %2100 = vmatmul.bf16.gmra.mxu0 %v794
        %v2101 = vpop.f32.mrf.mxu0
        %v2102 = vadd.f32 %v1973, %v2101
        %v2103 = vpop.f32.mrf.mxu0
        %v2104 = vadd.f32 %v1975, %v2103
        %2105 = vmatmul.bf16.gmra.mxu0 %v798
        %v2106 = vpop.f32.mrf.mxu0
        %v2107 = vadd.f32 %v1978, %v2106
        %v2108 = vpop.f32.mrf.mxu0
        %v2109 = vadd.f32 %v1980, %v2108
        %2110 = vmatmul.bf16.gmra.mxu0 %v802
        %v2111 = vpop.f32.mrf.mxu0
        %v2112 = vadd.f32 %v1983, %v2111
        %v2113 = vpop.f32.mrf.mxu0
        %v2114 = vadd.f32 %v1985, %v2113
        %2115 = vmatmul.bf16.gmra.mxu0 %v806
        %v2116 = vpop.f32.mrf.mxu0
        %v2117 = vadd.f32 %v1988, %v2116
        %v2118 = vpop.f32.mrf.mxu0
        %v2119 = vadd.f32 %v1990, %v2118
        %2120 = vmatmul.bf16.gmra.mxu0 %v810
        %v2121 = vpop.f32.mrf.mxu0
        %v2122 = vadd.f32 %v1993, %v2121
        %v2123 = vpop.f32.mrf.mxu0
        %v2124 = vadd.f32 %v1995, %v2123
        %2125 = vmatmul.bf16.gmra.mxu0 %v814
        %v2126 = vpop.f32.mrf.mxu0
        %v2127 = vadd.f32 %v1998, %v2126
        %v2128 = vpop.f32.mrf.mxu0
        %v2129 = vadd.f32 %v2000, %v2128
        %2130 = vmatmul.bf16.gmra.mxu0 %v818
        %v2131 = vpop.f32.mrf.mxu0
        %v2132 = vadd.f32 %v2003, %v2131
        %v2133 = vpop.f32.mrf.mxu0
        %v2134 = vadd.f32 %v2005, %v2133
        %2135 = vmatmul.bf16.gmra.mxu0 %v822
        %v2136 = vpop.f32.mrf.mxu0
        %v2137 = vadd.f32 %v2008, %v2136
        %v2138 = vpop.f32.mrf.mxu0
        %v2139 = vadd.f32 %v2010, %v2138
        %2140 = vmatmul.bf16.gmra.mxu0 %v826
        %v2141 = vpop.f32.mrf.mxu0
        %v2142 = vadd.f32 %v2013, %v2141
        %v2143 = vpop.f32.mrf.mxu0
        %v2144 = vadd.f32 %v2015, %v2143
        %2145 = vmatmul.bf16.gmra.mxu0 %v830
        %v2146 = vpop.f32.mrf.mxu0
        %v2147 = vadd.f32 %v2018, %v2146
        %v2148 = vpop.f32.mrf.mxu0
        %v2149 = vadd.f32 %v2020, %v2148
        %2150 = vdwg.mxu0
        %2151 = vmatpush.bf16.msra.mxu0 %v1183
        %2152 = vmatpush.bf16.msra.mxu0 %v1181
        %2153 = vmatpush.bf16.msra.mxu0 %v1179
        %2154 = vmatpush.bf16.msra.mxu0 %v1177
        %2155 = vmatpush.bf16.msra.mxu0 %v1175
        %2156 = vmatpush.bf16.msra.mxu0 %v1173
        %2157 = vmatpush.bf16.msra.mxu0 %v1171
        %2158 = vmatpush.bf16.msra.mxu0 %v1169
        %2159 = vmatmul.bf16.gmra.mxu0 %v739
        %v2160 = vpop.f32.mrf.mxu0
        %v2161 = vadd.f32 %v2032, %v2160
        %v2162 = vpop.f32.mrf.mxu0
        %v2163 = vadd.f32 %v2034, %v2162
        %2164 = vmatmul.bf16.gmra.mxu0 %v743
        %v2165 = vpop.f32.mrf.mxu0
        %v2166 = vadd.f32 %v2037, %v2165
        %v2167 = vpop.f32.mrf.mxu0
        %v2168 = vadd.f32 %v2039, %v2167
        %2169 = vmatmul.bf16.gmra.mxu0 %v747
        %v2170 = vpop.f32.mrf.mxu0
        %v2171 = vadd.f32 %v2042, %v2170
        %v2172 = vpop.f32.mrf.mxu0
        %v2173 = vadd.f32 %v2044, %v2172
        %2174 = vmatmul.bf16.gmra.mxu0 %v751
        %v2175 = vpop.f32.mrf.mxu0
        %v2176 = vadd.f32 %v2047, %v2175
        %v2177 = vpop.f32.mrf.mxu0
        %v2178 = vadd.f32 %v2049, %v2177
        %2179 = vmatmul.bf16.gmra.mxu0 %v755
        %v2180 = vpop.f32.mrf.mxu0
        %v2181 = vadd.f32 %v2052, %v2180
        %v2182 = vpop.f32.mrf.mxu0
        %v2183 = vadd.f32 %v2054, %v2182
        %2184 = vmatmul.bf16.gmra.mxu0 %v759
        %v2185 = vpop.f32.mrf.mxu0
        %v2186 = vadd.f32 %v2057, %v2185
        %v2187 = vpop.f32.mrf.mxu0
        %v2188 = vadd.f32 %v2059, %v2187
        %2189 = vmatmul.bf16.gmra.mxu0 %v763
        %v2190 = vpop.f32.mrf.mxu0
        %v2191 = vadd.f32 %v2062, %v2190
        %v2192 = vpop.f32.mrf.mxu0
        %v2193 = vadd.f32 %v2064, %v2192
        %2194 = vmatmul.bf16.gmra.mxu0 %v767
        %v2195 = vpop.f32.mrf.mxu0
        %v2196 = vadd.f32 %v2067, %v2195
        %v2197 = vpop.f32.mrf.mxu0
        %v2198 = vadd.f32 %v2069, %v2197
        %2199 = vmatmul.bf16.gmra.mxu0 %v771
        %v2200 = vpop.f32.mrf.mxu0
        %v2201 = vadd.f32 %v2072, %v2200
        %v2202 = vpop.f32.mrf.mxu0
        %v2203 = vadd.f32 %v2074, %v2202
        %2204 = vmatmul.bf16.gmra.mxu0 %v775
        %v2205 = vpop.f32.mrf.mxu0
        %v2206 = vadd.f32 %v2077, %v2205
        %v2207 = vpop.f32.mrf.mxu0
        %v2208 = vadd.f32 %v2079, %v2207
        %2209 = vmatmul.bf16.gmra.mxu0 %v779
        %v2210 = vpop.f32.mrf.mxu0
        %v2211 = vadd.f32 %v2082, %v2210
        %v2212 = vpop.f32.mrf.mxu0
        %v2213 = vadd.f32 %v2084, %v2212
        %2214 = vmatmul.bf16.gmra.mxu0 %v783
        %v2215 = vpop.f32.mrf.mxu0
        %v2216 = vadd.f32 %v2087, %v2215
        %v2217 = vpop.f32.mrf.mxu0
        %v2218 = vadd.f32 %v2089, %v2217
        %2219 = vmatmul.bf16.gmra.mxu0 %v787
        %v2220 = vpop.f32.mrf.mxu0
        %v2221 = vadd.f32 %v2092, %v2220
        %v2222 = vpop.f32.mrf.mxu0
        %v2223 = vadd.f32 %v2094, %v2222
        %2224 = vmatmul.bf16.gmra.mxu0 %v791
        %v2225 = vpop.f32.mrf.mxu0
        %v2226 = vadd.f32 %v2097, %v2225
        %v2227 = vpop.f32.mrf.mxu0
        %v2228 = vadd.f32 %v2099, %v2227
        %2229 = vmatmul.bf16.gmra.mxu0 %v795
        %v2230 = vpop.f32.mrf.mxu0
        %v2231 = vadd.f32 %v2102, %v2230
        %v2232 = vpop.f32.mrf.mxu0
        %v2233 = vadd.f32 %v2104, %v2232
        %2234 = vmatmul.bf16.gmra.mxu0 %v799
        %v2235 = vpop.f32.mrf.mxu0
        %v2236 = vadd.f32 %v2107, %v2235
        %v2237 = vpop.f32.mrf.mxu0
        %v2238 = vadd.f32 %v2109, %v2237
        %2239 = vmatmul.bf16.gmra.mxu0 %v803
        %v2240 = vpop.f32.mrf.mxu0
        %v2241 = vadd.f32 %v2112, %v2240
        %v2242 = vpop.f32.mrf.mxu0
        %v2243 = vadd.f32 %v2114, %v2242
        %2244 = vmatmul.bf16.gmra.mxu0 %v807
        %v2245 = vpop.f32.mrf.mxu0
        %v2246 = vadd.f32 %v2117, %v2245
        %v2247 = vpop.f32.mrf.mxu0
        %v2248 = vadd.f32 %v2119, %v2247
        %2249 = vmatmul.bf16.gmra.mxu0 %v811
        %v2250 = vpop.f32.mrf.mxu0
        %v2251 = vadd.f32 %v2122, %v2250
        %v2252 = vpop.f32.mrf.mxu0
        %v2253 = vadd.f32 %v2124, %v2252
        %2254 = vmatmul.bf16.gmra.mxu0 %v815
        %v2255 = vpop.f32.mrf.mxu0
        %v2256 = vadd.f32 %v2127, %v2255
        %v2257 = vpop.f32.mrf.mxu0
        %v2258 = vadd.f32 %v2129, %v2257
        %2259 = vmatmul.bf16.gmra.mxu0 %v819
        %v2260 = vpop.f32.mrf.mxu0
        %v2261 = vadd.f32 %v2132, %v2260
        %v2262 = vpop.f32.mrf.mxu0
        %v2263 = vadd.f32 %v2134, %v2262
        %2264 = vmatmul.bf16.gmra.mxu0 %v823
        %v2265 = vpop.f32.mrf.mxu0
        %v2266 = vadd.f32 %v2137, %v2265
        %v2267 = vpop.f32.mrf.mxu0
        %v2268 = vadd.f32 %v2139, %v2267
        %2269 = vmatmul.bf16.gmra.mxu0 %v827
        %v2270 = vpop.f32.mrf.mxu0
        %v2271 = vadd.f32 %v2142, %v2270
        %v2272 = vpop.f32.mrf.mxu0
        %v2273 = vadd.f32 %v2144, %v2272
        %2274 = vmatmul.bf16.gmra.mxu0 %v831
        %v2275 = vpop.f32.mrf.mxu0
        %v2276 = vadd.f32 %v2147, %v2275
        %v2277 = vpop.f32.mrf.mxu0
        %v2278 = vadd.f32 %v2149, %v2277
        %2279 = vdwg.mxu0
        %v2280 = vld [vmem:[#allocation7] sm:$0xff]
        %v2281 = vld [vmem:[#allocation7 + $0x8] sm:$0xff]
        %v2282 = vld [vmem:[#allocation7 + $0x10] sm:$0xff]
        %v2283 = vld [vmem:[#allocation7 + $0x18] sm:$0xff]
        %v2284 = vld [vmem:[#allocation7 + $0x20] sm:$0xff]
        %v2285 = vld [vmem:[#allocation7 + $0x28] sm:$0xff]
        %v2286 = vld [vmem:[#allocation7 + $0x30] sm:$0xff]
        %v2287 = vld [vmem:[#allocation7 + $0x38] sm:$0xff]
        %v2288 = vld [vmem:[#allocation7 + $0x40] sm:$0xff]
        %v2289 = vld [vmem:[#allocation7 + $0x48] sm:$0xff]
        %v2290 = vld [vmem:[#allocation7 + $0x50] sm:$0xff]
        %v2291 = vld [vmem:[#allocation7 + $0x58] sm:$0xff]
        %v2292 = vld [vmem:[#allocation7 + $0x60] sm:$0xff]
        %v2293 = vld [vmem:[#allocation7 + $0x68] sm:$0xff]
        %v2294 = vld [vmem:[#allocation7 + $0x70] sm:$0xff]
        %v2295 = vld [vmem:[#allocation7 + $0x78] sm:$0xff]
        %v2296 = vld [vmem:[#allocation7 + $0x80] sm:$0xff]
        %v2297 = vld [vmem:[#allocation7 + $0x88] sm:$0xff]
        %v2298 = vld [vmem:[#allocation7 + $0x90] sm:$0xff]
        %v2299 = vld [vmem:[#allocation7 + $0x98] sm:$0xff]
        %v2300 = vld [vmem:[#allocation7 + $0xa0] sm:$0xff]
        %v2301 = vld [vmem:[#allocation7 + $0xa8] sm:$0xff]
        %v2302 = vld [vmem:[#allocation7 + $0xb0] sm:$0xff]
        %v2303 = vld [vmem:[#allocation7 + $0xb8] sm:$0xff]
        %v2304 = vld [vmem:[#allocation7 + $0xc0] sm:$0xff]
        %v2305 = vld [vmem:[#allocation7 + $0xc8] sm:$0xff]
        %v2306 = vld [vmem:[#allocation7 + $0xd0] sm:$0xff]
        %v2307 = vld [vmem:[#allocation7 + $0xd8] sm:$0xff]
        %v2308 = vld [vmem:[#allocation7 + $0xe0] sm:$0xff]
        %v2309 = vld [vmem:[#allocation7 + $0xe8] sm:$0xff]
        %v2310 = vld [vmem:[#allocation7 + $0xf0] sm:$0xff]
        %v2311 = vld [vmem:[#allocation7 + $0xf8] sm:$0xff]
        %v2312 = vld [vmem:[#allocation7 + $0x100] sm:$0xff]
        %v2313 = vld [vmem:[#allocation7 + $0x108] sm:$0xff]
        %v2314 = vld [vmem:[#allocation7 + $0x110] sm:$0xff]
        %v2315 = vld [vmem:[#allocation7 + $0x118] sm:$0xff]
        %v2316 = vld [vmem:[#allocation7 + $0x120] sm:$0xff]
        %v2317 = vld [vmem:[#allocation7 + $0x128] sm:$0xff]
        %v2318 = vld [vmem:[#allocation7 + $0x130] sm:$0xff]
        %v2319 = vld [vmem:[#allocation7 + $0x138] sm:$0xff]
        %v2320 = vld [vmem:[#allocation7 + $0x140] sm:$0xff]
        %v2321 = vld [vmem:[#allocation7 + $0x148] sm:$0xff]
        %v2322 = vld [vmem:[#allocation7 + $0x150] sm:$0xff]
        %v2323 = vld [vmem:[#allocation7 + $0x158] sm:$0xff]
        %v2324 = vld [vmem:[#allocation7 + $0x160] sm:$0xff]
        %v2325 = vld [vmem:[#allocation7 + $0x168] sm:$0xff]
        %v2326 = vld [vmem:[#allocation7 + $0x170] sm:$0xff]
        %v2327 = vld [vmem:[#allocation7 + $0x178] sm:$0xff]
        %v2328 = vld [vmem:[#allocation7 + $0x180] sm:$0xff]
        %v2329 = vld [vmem:[#allocation7 + $0x188] sm:$0xff]
        %v2330 = vld [vmem:[#allocation7 + $0x190] sm:$0xff]
        %v2331 = vld [vmem:[#allocation7 + $0x198] sm:$0xff]
        %v2332 = vld [vmem:[#allocation7 + $0x1a0] sm:$0xff]
        %v2333 = vld [vmem:[#allocation7 + $0x1a8] sm:$0xff]
        %v2334 = vld [vmem:[#allocation7 + $0x1b0] sm:$0xff]
        %v2335 = vld [vmem:[#allocation7 + $0x1b8] sm:$0xff]
        %v2336 = vld [vmem:[#allocation7 + $0x1c0] sm:$0xff]
        %v2337 = vld [vmem:[#allocation7 + $0x1c8] sm:$0xff]
        %v2338 = vld [vmem:[#allocation7 + $0x1d0] sm:$0xff]
        %v2339 = vld [vmem:[#allocation7 + $0x1d8] sm:$0xff]
        %v2340 = vld [vmem:[#allocation7 + $0x1e0] sm:$0xff]
        %v2341 = vld [vmem:[#allocation7 + $0x1e8] sm:$0xff]
        %v2342 = vld [vmem:[#allocation7 + $0x1f0] sm:$0xff]
        %v2343 = vld [vmem:[#allocation7 + $0x1f8] sm:$0xff]
        %v2344 = vld [vmem:[#allocation7 + $0x200] sm:$0xff]
        %v2345 = vld [vmem:[#allocation7 + $0x208] sm:$0xff]
        %v2346 = vld [vmem:[#allocation7 + $0x210] sm:$0xff]
        %v2347 = vld [vmem:[#allocation7 + $0x218] sm:$0xff]
        %v2348 = vld [vmem:[#allocation7 + $0x220] sm:$0xff]
        %v2349 = vld [vmem:[#allocation7 + $0x228] sm:$0xff]
        %v2350 = vld [vmem:[#allocation7 + $0x230] sm:$0xff]
        %v2351 = vld [vmem:[#allocation7 + $0x238] sm:$0xff]
        %v2352 = vld [vmem:[#allocation7 + $0x240] sm:$0xff]
        %v2353 = vld [vmem:[#allocation7 + $0x248] sm:$0xff]
        %v2354 = vld [vmem:[#allocation7 + $0x250] sm:$0xff]
        %v2355 = vld [vmem:[#allocation7 + $0x258] sm:$0xff]
        %v2356 = vld [vmem:[#allocation7 + $0x260] sm:$0xff]
        %v2357 = vld [vmem:[#allocation7 + $0x268] sm:$0xff]
        %v2358 = vld [vmem:[#allocation7 + $0x270] sm:$0xff]
        %v2359 = vld [vmem:[#allocation7 + $0x278] sm:$0xff]
        %v2360 = vld [vmem:[#allocation7 + $0x280] sm:$0xff]
        %v2361 = vld [vmem:[#allocation7 + $0x288] sm:$0xff]
        %v2362 = vld [vmem:[#allocation7 + $0x290] sm:$0xff]
        %v2363 = vld [vmem:[#allocation7 + $0x298] sm:$0xff]
        %v2364 = vld [vmem:[#allocation7 + $0x2a0] sm:$0xff]
        %v2365 = vld [vmem:[#allocation7 + $0x2a8] sm:$0xff]
        %v2366 = vld [vmem:[#allocation7 + $0x2b0] sm:$0xff]
        %v2367 = vld [vmem:[#allocation7 + $0x2b8] sm:$0xff]
        %v2368 = vld [vmem:[#allocation7 + $0x2c0] sm:$0xff]
        %v2369 = vld [vmem:[#allocation7 + $0x2c8] sm:$0xff]
        %v2370 = vld [vmem:[#allocation7 + $0x2d0] sm:$0xff]
        %v2371 = vld [vmem:[#allocation7 + $0x2d8] sm:$0xff]
        %v2372 = vld [vmem:[#allocation7 + $0x2e0] sm:$0xff]
        %v2373 = vld [vmem:[#allocation7 + $0x2e8] sm:$0xff]
        %v2374 = vld [vmem:[#allocation7 + $0x2f0] sm:$0xff]
        %v2375 = vld [vmem:[#allocation7 + $0x2f8] sm:$0xff]
        %v2472 = vunpack.c.l.b16 %v2280
        %v2473 = vunpack.c.h.b16 %v2280
        %v2474 = vunpack.c.l.b16 %v2281
        %v2475 = vunpack.c.h.b16 %v2281
        %v2476 = vunpack.c.l.b16 %v2282
        %v2477 = vunpack.c.h.b16 %v2282
        %v2478 = vunpack.c.l.b16 %v2283
        %v2479 = vunpack.c.h.b16 %v2283
        %v2480 = vunpack.c.l.b16 %v2284
        %v2481 = vunpack.c.h.b16 %v2284
        %v2482 = vunpack.c.l.b16 %v2285
        %v2483 = vunpack.c.h.b16 %v2285
        %v2484 = vunpack.c.l.b16 %v2286
        %v2485 = vunpack.c.h.b16 %v2286
        %v2486 = vunpack.c.l.b16 %v2287
        %v2487 = vunpack.c.h.b16 %v2287
        %v2488 = vunpack.c.l.b16 %v2288
        %v2489 = vunpack.c.h.b16 %v2288
        %v2490 = vunpack.c.l.b16 %v2289
        %v2491 = vunpack.c.h.b16 %v2289
        %v2492 = vunpack.c.l.b16 %v2290
        %v2493 = vunpack.c.h.b16 %v2290
        %v2494 = vunpack.c.l.b16 %v2291
        %v2495 = vunpack.c.h.b16 %v2291
        %v2496 = vunpack.c.l.b16 %v2292
        %v2497 = vunpack.c.h.b16 %v2292
        %v2498 = vunpack.c.l.b16 %v2293
        %v2499 = vunpack.c.h.b16 %v2293
        %v2500 = vunpack.c.l.b16 %v2294
        %v2501 = vunpack.c.h.b16 %v2294
        %v2502 = vunpack.c.l.b16 %v2295
        %v2503 = vunpack.c.h.b16 %v2295
        %v2504 = vunpack.c.l.b16 %v2296
        %v2505 = vunpack.c.h.b16 %v2296
        %v2506 = vunpack.c.l.b16 %v2297
        %v2507 = vunpack.c.h.b16 %v2297
        %v2508 = vunpack.c.l.b16 %v2298
        %v2509 = vunpack.c.h.b16 %v2298
        %v2510 = vunpack.c.l.b16 %v2299
        %v2511 = vunpack.c.h.b16 %v2299
        %v2512 = vunpack.c.l.b16 %v2300
        %v2513 = vunpack.c.h.b16 %v2300
        %v2514 = vunpack.c.l.b16 %v2301
        %v2515 = vunpack.c.h.b16 %v2301
        %v2516 = vunpack.c.l.b16 %v2302
        %v2517 = vunpack.c.h.b16 %v2302
        %v2518 = vunpack.c.l.b16 %v2303
        %v2519 = vunpack.c.h.b16 %v2303
        %v2520 = vunpack.c.l.b16 %v2304
        %v2521 = vunpack.c.h.b16 %v2304
        %v2522 = vunpack.c.l.b16 %v2305
        %v2523 = vunpack.c.h.b16 %v2305
        %v2524 = vunpack.c.l.b16 %v2306
        %v2525 = vunpack.c.h.b16 %v2306
        %v2526 = vunpack.c.l.b16 %v2307
        %v2527 = vunpack.c.h.b16 %v2307
        %v2528 = vunpack.c.l.b16 %v2308
        %v2529 = vunpack.c.h.b16 %v2308
        %v2530 = vunpack.c.l.b16 %v2309
        %v2531 = vunpack.c.h.b16 %v2309
        %v2532 = vunpack.c.l.b16 %v2310
        %v2533 = vunpack.c.h.b16 %v2310
        %v2534 = vunpack.c.l.b16 %v2311
        %v2535 = vunpack.c.h.b16 %v2311
        %v2536 = vunpack.c.l.b16 %v2312
        %v2537 = vunpack.c.h.b16 %v2312
        %v2538 = vunpack.c.l.b16 %v2313
        %v2539 = vunpack.c.h.b16 %v2313
        %v2540 = vunpack.c.l.b16 %v2314
        %v2541 = vunpack.c.h.b16 %v2314
        %v2542 = vunpack.c.l.b16 %v2315
        %v2543 = vunpack.c.h.b16 %v2315
        %v2544 = vunpack.c.l.b16 %v2316
        %v2545 = vunpack.c.h.b16 %v2316
        %v2546 = vunpack.c.l.b16 %v2317
        %v2547 = vunpack.c.h.b16 %v2317
        %v2548 = vunpack.c.l.b16 %v2318
        %v2549 = vunpack.c.h.b16 %v2318
        %v2550 = vunpack.c.l.b16 %v2319
        %v2551 = vunpack.c.h.b16 %v2319
        %v2552 = vunpack.c.l.b16 %v2320
        %v2553 = vunpack.c.h.b16 %v2320
        %v2554 = vunpack.c.l.b16 %v2321
        %v2555 = vunpack.c.h.b16 %v2321
        %v2556 = vunpack.c.l.b16 %v2322
        %v2557 = vunpack.c.h.b16 %v2322
        %v2558 = vunpack.c.l.b16 %v2323
        %v2559 = vunpack.c.h.b16 %v2323
        %v2560 = vunpack.c.l.b16 %v2324
        %v2561 = vunpack.c.h.b16 %v2324
        %v2562 = vunpack.c.l.b16 %v2325
        %v2563 = vunpack.c.h.b16 %v2325
        %v2564 = vunpack.c.l.b16 %v2326
        %v2565 = vunpack.c.h.b16 %v2326
        %v2566 = vunpack.c.l.b16 %v2327
        %v2567 = vunpack.c.h.b16 %v2327
        %v2568 = vunpack.c.l.b16 %v2328
        %v2569 = vunpack.c.h.b16 %v2328
        %v2570 = vunpack.c.l.b16 %v2329
        %v2571 = vunpack.c.h.b16 %v2329
        %v2572 = vunpack.c.l.b16 %v2330
        %v2573 = vunpack.c.h.b16 %v2330
        %v2574 = vunpack.c.l.b16 %v2331
        %v2575 = vunpack.c.h.b16 %v2331
        %v2576 = vunpack.c.l.b16 %v2332
        %v2577 = vunpack.c.h.b16 %v2332
        %v2578 = vunpack.c.l.b16 %v2333
        %v2579 = vunpack.c.h.b16 %v2333
        %v2580 = vunpack.c.l.b16 %v2334
        %v2581 = vunpack.c.h.b16 %v2334
        %v2582 = vunpack.c.l.b16 %v2335
        %v2583 = vunpack.c.h.b16 %v2335
        %v2584 = vunpack.c.l.b16 %v2336
        %v2585 = vunpack.c.h.b16 %v2336
        %v2586 = vunpack.c.l.b16 %v2337
        %v2587 = vunpack.c.h.b16 %v2337
        %v2588 = vunpack.c.l.b16 %v2338
        %v2589 = vunpack.c.h.b16 %v2338
        %v2590 = vunpack.c.l.b16 %v2339
        %v2591 = vunpack.c.h.b16 %v2339
        %v2592 = vunpack.c.l.b16 %v2340
        %v2593 = vunpack.c.h.b16 %v2340
        %v2594 = vunpack.c.l.b16 %v2341
        %v2595 = vunpack.c.h.b16 %v2341
        %v2596 = vunpack.c.l.b16 %v2342
        %v2597 = vunpack.c.h.b16 %v2342
        %v2598 = vunpack.c.l.b16 %v2343
        %v2599 = vunpack.c.h.b16 %v2343
        %v2600 = vunpack.c.l.b16 %v2344
        %v2601 = vunpack.c.h.b16 %v2344
        %v2602 = vunpack.c.l.b16 %v2345
        %v2603 = vunpack.c.h.b16 %v2345
        %v2604 = vunpack.c.l.b16 %v2346
        %v2605 = vunpack.c.h.b16 %v2346
        %v2606 = vunpack.c.l.b16 %v2347
        %v2607 = vunpack.c.h.b16 %v2347
        %v2608 = vunpack.c.l.b16 %v2348
        %v2609 = vunpack.c.h.b16 %v2348
        %v2610 = vunpack.c.l.b16 %v2349
        %v2611 = vunpack.c.h.b16 %v2349
        %v2612 = vunpack.c.l.b16 %v2350
        %v2613 = vunpack.c.h.b16 %v2350
        %v2614 = vunpack.c.l.b16 %v2351
        %v2615 = vunpack.c.h.b16 %v2351
        %v2616 = vunpack.c.l.b16 %v2352
        %v2617 = vunpack.c.h.b16 %v2352
        %v2618 = vunpack.c.l.b16 %v2353
        %v2619 = vunpack.c.h.b16 %v2353
        %v2620 = vunpack.c.l.b16 %v2354
        %v2621 = vunpack.c.h.b16 %v2354
        %v2622 = vunpack.c.l.b16 %v2355
        %v2623 = vunpack.c.h.b16 %v2355
        %v2624 = vunpack.c.l.b16 %v2356
        %v2625 = vunpack.c.h.b16 %v2356
        %v2626 = vunpack.c.l.b16 %v2357
        %v2627 = vunpack.c.h.b16 %v2357
        %v2628 = vunpack.c.l.b16 %v2358
        %v2629 = vunpack.c.h.b16 %v2358
        %v2630 = vunpack.c.l.b16 %v2359
        %v2631 = vunpack.c.h.b16 %v2359
        %v2632 = vunpack.c.l.b16 %v2360
        %v2633 = vunpack.c.h.b16 %v2360
        %v2634 = vunpack.c.l.b16 %v2361
        %v2635 = vunpack.c.h.b16 %v2361
        %v2636 = vunpack.c.l.b16 %v2362
        %v2637 = vunpack.c.h.b16 %v2362
        %v2638 = vunpack.c.l.b16 %v2363
        %v2639 = vunpack.c.h.b16 %v2363
        %v2640 = vunpack.c.l.b16 %v2364
        %v2641 = vunpack.c.h.b16 %v2364
        %v2642 = vunpack.c.l.b16 %v2365
        %v2643 = vunpack.c.h.b16 %v2365
        %v2644 = vunpack.c.l.b16 %v2366
        %v2645 = vunpack.c.h.b16 %v2366
        %v2646 = vunpack.c.l.b16 %v2367
        %v2647 = vunpack.c.h.b16 %v2367
        %v2648 = vunpack.c.l.b16 %v2368
        %v2649 = vunpack.c.h.b16 %v2368
        %v2650 = vunpack.c.l.b16 %v2369
        %v2651 = vunpack.c.h.b16 %v2369
        %v2652 = vunpack.c.l.b16 %v2370
        %v2653 = vunpack.c.h.b16 %v2370
        %v2654 = vunpack.c.l.b16 %v2371
        %v2655 = vunpack.c.h.b16 %v2371
        %v2656 = vunpack.c.l.b16 %v2372
        %v2657 = vunpack.c.h.b16 %v2372
        %v2658 = vunpack.c.l.b16 %v2373
        %v2659 = vunpack.c.h.b16 %v2373
        %v2660 = vunpack.c.l.b16 %v2374
        %v2661 = vunpack.c.h.b16 %v2374
        %v2662 = vunpack.c.l.b16 %v2375
        %v2663 = vunpack.c.h.b16 %v2375
        %v2664 = vpack.c.b16 %v2476, %v2472
        %v2665 = vpack.c.b16 %v2477, %v2473
        %v2666 = vpack.c.b16 %v2478, %v2474
        %v2667 = vpack.c.b16 %v2479, %v2475
        %v2668 = vpack.c.b16 %v2484, %v2480
        %v2669 = vpack.c.b16 %v2485, %v2481
        %v2670 = vpack.c.b16 %v2486, %v2482
        %v2671 = vpack.c.b16 %v2487, %v2483
        %v2672 = vpack.c.b16 %v2492, %v2488
        %v2673 = vpack.c.b16 %v2493, %v2489
        %v2674 = vpack.c.b16 %v2494, %v2490
        %v2675 = vpack.c.b16 %v2495, %v2491
        %v2676 = vpack.c.b16 %v2500, %v2496
        %v2677 = vpack.c.b16 %v2501, %v2497
        %v2678 = vpack.c.b16 %v2502, %v2498
        %v2679 = vpack.c.b16 %v2503, %v2499
        %v2680 = vpack.c.b16 %v2508, %v2504
        %v2681 = vpack.c.b16 %v2509, %v2505
        %v2682 = vpack.c.b16 %v2510, %v2506
        %v2683 = vpack.c.b16 %v2511, %v2507
        %v2684 = vpack.c.b16 %v2516, %v2512
        %v2685 = vpack.c.b16 %v2517, %v2513
        %v2686 = vpack.c.b16 %v2518, %v2514
        %v2687 = vpack.c.b16 %v2519, %v2515
        %v2688 = vpack.c.b16 %v2524, %v2520
        %v2689 = vpack.c.b16 %v2525, %v2521
        %v2690 = vpack.c.b16 %v2526, %v2522
        %v2691 = vpack.c.b16 %v2527, %v2523
        %v2692 = vpack.c.b16 %v2532, %v2528
        %v2693 = vpack.c.b16 %v2533, %v2529
        %v2694 = vpack.c.b16 %v2534, %v2530
        %v2695 = vpack.c.b16 %v2535, %v2531
        %v2696 = vpack.c.b16 %v2540, %v2536
        %v2697 = vpack.c.b16 %v2541, %v2537
        %v2698 = vpack.c.b16 %v2542, %v2538
        %v2699 = vpack.c.b16 %v2543, %v2539
        %v2700 = vpack.c.b16 %v2548, %v2544
        %v2701 = vpack.c.b16 %v2549, %v2545
        %v2702 = vpack.c.b16 %v2550, %v2546
        %v2703 = vpack.c.b16 %v2551, %v2547
        %v2704 = vpack.c.b16 %v2556, %v2552
        %v2705 = vpack.c.b16 %v2557, %v2553
        %v2706 = vpack.c.b16 %v2558, %v2554
        %v2707 = vpack.c.b16 %v2559, %v2555
        %v2708 = vpack.c.b16 %v2564, %v2560
        %v2709 = vpack.c.b16 %v2565, %v2561
        %v2710 = vpack.c.b16 %v2566, %v2562
        %v2711 = vpack.c.b16 %v2567, %v2563
        %v2712 = vpack.c.b16 %v2572, %v2568
        %v2713 = vpack.c.b16 %v2573, %v2569
        %v2714 = vpack.c.b16 %v2574, %v2570
        %v2715 = vpack.c.b16 %v2575, %v2571
        %v2716 = vpack.c.b16 %v2580, %v2576
        %v2717 = vpack.c.b16 %v2581, %v2577
        %v2718 = vpack.c.b16 %v2582, %v2578
        %v2719 = vpack.c.b16 %v2583, %v2579
        %v2720 = vpack.c.b16 %v2588, %v2584
        %v2721 = vpack.c.b16 %v2589, %v2585
        %v2722 = vpack.c.b16 %v2590, %v2586
        %v2723 = vpack.c.b16 %v2591, %v2587
        %v2724 = vpack.c.b16 %v2596, %v2592
        %v2725 = vpack.c.b16 %v2597, %v2593
        %v2726 = vpack.c.b16 %v2598, %v2594
        %v2727 = vpack.c.b16 %v2599, %v2595
        %v2728 = vpack.c.b16 %v2604, %v2600
        %v2729 = vpack.c.b16 %v2605, %v2601
        %v2730 = vpack.c.b16 %v2606, %v2602
        %v2731 = vpack.c.b16 %v2607, %v2603
        %v2732 = vpack.c.b16 %v2612, %v2608
        %v2733 = vpack.c.b16 %v2613, %v2609
        %v2734 = vpack.c.b16 %v2614, %v2610
        %v2735 = vpack.c.b16 %v2615, %v2611
        %v2736 = vpack.c.b16 %v2620, %v2616
        %v2737 = vpack.c.b16 %v2621, %v2617
        %v2738 = vpack.c.b16 %v2622, %v2618
        %v2739 = vpack.c.b16 %v2623, %v2619
        %v2740 = vpack.c.b16 %v2628, %v2624
        %v2741 = vpack.c.b16 %v2629, %v2625
        %v2742 = vpack.c.b16 %v2630, %v2626
        %v2743 = vpack.c.b16 %v2631, %v2627
        %v2744 = vpack.c.b16 %v2636, %v2632
        %v2745 = vpack.c.b16 %v2637, %v2633
        %v2746 = vpack.c.b16 %v2638, %v2634
        %v2747 = vpack.c.b16 %v2639, %v2635
        %v2748 = vpack.c.b16 %v2644, %v2640
        %v2749 = vpack.c.b16 %v2645, %v2641
        %v2750 = vpack.c.b16 %v2646, %v2642
        %v2751 = vpack.c.b16 %v2647, %v2643
        %v2752 = vpack.c.b16 %v2652, %v2648
        %v2753 = vpack.c.b16 %v2653, %v2649
        %v2754 = vpack.c.b16 %v2654, %v2650
        %v2755 = vpack.c.b16 %v2655, %v2651
        %v2756 = vpack.c.b16 %v2660, %v2656
        %v2757 = vpack.c.b16 %v2661, %v2657
        %v2758 = vpack.c.b16 %v2662, %v2658
        %v2759 = vpack.c.b16 %v2663, %v2659
        %2856 = vmatpush.bf16.msra.mxu0 %v1134
        %2857 = vmatpush.bf16.msra.mxu0 %v1132
        %2858 = vmatpush.bf16.msra.mxu0 %v1130
        %2859 = vmatpush.bf16.msra.mxu0 %v1128
        %2860 = vmatpush.bf16.msra.mxu0 %v1126
        %2861 = vmatpush.bf16.msra.mxu0 %v1124
        %2862 = vmatpush.bf16.msra.mxu0 %v1122
        %2863 = vmatpush.bf16.msra.mxu0 %v1120
        %2864 = vmatmul.bf16.gmra.mxu0 %v2664
        %v2865 = vpop.f32.mrf.mxu0
        %v2866 = vadd.f32 0.0, %v2865
        %v2867 = vpop.f32.mrf.mxu0
        %v2868 = vadd.f32 0.0, %v2867
        %2869 = vmatmul.bf16.gmra.mxu0 %v2668
        %v2870 = vpop.f32.mrf.mxu0
        %v2871 = vadd.f32 0.0, %v2870
        %v2872 = vpop.f32.mrf.mxu0
        %v2873 = vadd.f32 0.0, %v2872
        %2874 = vmatmul.bf16.gmra.mxu0 %v2672
        %v2875 = vpop.f32.mrf.mxu0
        %v2876 = vadd.f32 0.0, %v2875
        %v2877 = vpop.f32.mrf.mxu0
        %v2878 = vadd.f32 0.0, %v2877
        %2879 = vmatmul.bf16.gmra.mxu0 %v2676
        %v2880 = vpop.f32.mrf.mxu0
        %v2881 = vadd.f32 0.0, %v2880
        %v2882 = vpop.f32.mrf.mxu0
        %v2883 = vadd.f32 0.0, %v2882
        %2884 = vmatmul.bf16.gmra.mxu0 %v2680
        %v2885 = vpop.f32.mrf.mxu0
        %v2886 = vadd.f32 0.0, %v2885
        %v2887 = vpop.f32.mrf.mxu0
        %v2888 = vadd.f32 0.0, %v2887
        %2889 = vmatmul.bf16.gmra.mxu0 %v2684
        %v2890 = vpop.f32.mrf.mxu0
        %v2891 = vadd.f32 0.0, %v2890
        %v2892 = vpop.f32.mrf.mxu0
        %v2893 = vadd.f32 0.0, %v2892
        %2894 = vmatmul.bf16.gmra.mxu0 %v2688
        %v2895 = vpop.f32.mrf.mxu0
        %v2896 = vadd.f32 0.0, %v2895
        %v2897 = vpop.f32.mrf.mxu0
        %v2898 = vadd.f32 0.0, %v2897
        %2899 = vmatmul.bf16.gmra.mxu0 %v2692
        %v2900 = vpop.f32.mrf.mxu0
        %v2901 = vadd.f32 0.0, %v2900
        %v2902 = vpop.f32.mrf.mxu0
        %v2903 = vadd.f32 0.0, %v2902
        %2904 = vmatmul.bf16.gmra.mxu0 %v2696
        %v2905 = vpop.f32.mrf.mxu0
        %v2906 = vadd.f32 0.0, %v2905
        %v2907 = vpop.f32.mrf.mxu0
        %v2908 = vadd.f32 0.0, %v2907
        %2909 = vmatmul.bf16.gmra.mxu0 %v2700
        %v2910 = vpop.f32.mrf.mxu0
        %v2911 = vadd.f32 0.0, %v2910
        %v2912 = vpop.f32.mrf.mxu0
        %v2913 = vadd.f32 0.0, %v2912
        %2914 = vmatmul.bf16.gmra.mxu0 %v2704
        %v2915 = vpop.f32.mrf.mxu0
        %v2916 = vadd.f32 0.0, %v2915
        %v2917 = vpop.f32.mrf.mxu0
        %v2918 = vadd.f32 0.0, %v2917
        %2919 = vmatmul.bf16.gmra.mxu0 %v2708
        %v2920 = vpop.f32.mrf.mxu0
        %v2921 = vadd.f32 0.0, %v2920
        %v2922 = vpop.f32.mrf.mxu0
        %v2923 = vadd.f32 0.0, %v2922
        %2924 = vmatmul.bf16.gmra.mxu0 %v2712
        %v2925 = vpop.f32.mrf.mxu0
        %v2926 = vadd.f32 0.0, %v2925
        %v2927 = vpop.f32.mrf.mxu0
        %v2928 = vadd.f32 0.0, %v2927
        %2929 = vmatmul.bf16.gmra.mxu0 %v2716
        %v2930 = vpop.f32.mrf.mxu0
        %v2931 = vadd.f32 0.0, %v2930
        %v2932 = vpop.f32.mrf.mxu0
        %v2933 = vadd.f32 0.0, %v2932
        %2934 = vmatmul.bf16.gmra.mxu0 %v2720
        %v2935 = vpop.f32.mrf.mxu0
        %v2936 = vadd.f32 0.0, %v2935
        %v2937 = vpop.f32.mrf.mxu0
        %v2938 = vadd.f32 0.0, %v2937
        %2939 = vmatmul.bf16.gmra.mxu0 %v2724
        %v2940 = vpop.f32.mrf.mxu0
        %v2941 = vadd.f32 0.0, %v2940
        %v2942 = vpop.f32.mrf.mxu0
        %v2943 = vadd.f32 0.0, %v2942
        %2944 = vmatmul.bf16.gmra.mxu0 %v2728
        %v2945 = vpop.f32.mrf.mxu0
        %v2946 = vadd.f32 0.0, %v2945
        %v2947 = vpop.f32.mrf.mxu0
        %v2948 = vadd.f32 0.0, %v2947
        %2949 = vmatmul.bf16.gmra.mxu0 %v2732
        %v2950 = vpop.f32.mrf.mxu0
        %v2951 = vadd.f32 0.0, %v2950
        %v2952 = vpop.f32.mrf.mxu0
        %v2953 = vadd.f32 0.0, %v2952
        %2954 = vmatmul.bf16.gmra.mxu0 %v2736
        %v2955 = vpop.f32.mrf.mxu0
        %v2956 = vadd.f32 0.0, %v2955
        %v2957 = vpop.f32.mrf.mxu0
        %v2958 = vadd.f32 0.0, %v2957
        %2959 = vmatmul.bf16.gmra.mxu0 %v2740
        %v2960 = vpop.f32.mrf.mxu0
        %v2961 = vadd.f32 0.0, %v2960
        %v2962 = vpop.f32.mrf.mxu0
        %v2963 = vadd.f32 0.0, %v2962
        %2964 = vmatmul.bf16.gmra.mxu0 %v2744
        %v2965 = vpop.f32.mrf.mxu0
        %v2966 = vadd.f32 0.0, %v2965
        %v2967 = vpop.f32.mrf.mxu0
        %v2968 = vadd.f32 0.0, %v2967
        %2969 = vmatmul.bf16.gmra.mxu0 %v2748
        %v2970 = vpop.f32.mrf.mxu0
        %v2971 = vadd.f32 0.0, %v2970
        %v2972 = vpop.f32.mrf.mxu0
        %v2973 = vadd.f32 0.0, %v2972
        %2974 = vmatmul.bf16.gmra.mxu0 %v2752
        %v2975 = vpop.f32.mrf.mxu0
        %v2976 = vadd.f32 0.0, %v2975
        %v2977 = vpop.f32.mrf.mxu0
        %v2978 = vadd.f32 0.0, %v2977
        %2979 = vmatmul.bf16.gmra.mxu0 %v2756
        %v2980 = vpop.f32.mrf.mxu0
        %v2981 = vadd.f32 0.0, %v2980
        %v2982 = vpop.f32.mrf.mxu0
        %v2983 = vadd.f32 0.0, %v2982
        %2984 = vdwg.mxu0
        %2985 = vmatpush.bf16.msra.mxu0 %v1150
        %2986 = vmatpush.bf16.msra.mxu0 %v1148
        %2987 = vmatpush.bf16.msra.mxu0 %v1146
        %2988 = vmatpush.bf16.msra.mxu0 %v1144
        %2989 = vmatpush.bf16.msra.mxu0 %v1142
        %2990 = vmatpush.bf16.msra.mxu0 %v1140
        %2991 = vmatpush.bf16.msra.mxu0 %v1138
        %2992 = vmatpush.bf16.msra.mxu0 %v1136
        %2993 = vmatmul.bf16.gmra.mxu0 %v2665
        %v2994 = vpop.f32.mrf.mxu0
        %v2995 = vadd.f32 %v2866, %v2994
        %v2996 = vpop.f32.mrf.mxu0
        %v2997 = vadd.f32 %v2868, %v2996
        %2998 = vmatmul.bf16.gmra.mxu0 %v2669
        %v2999 = vpop.f32.mrf.mxu0
        %v3000 = vadd.f32 %v2871, %v2999
        %v3001 = vpop.f32.mrf.mxu0
        %v3002 = vadd.f32 %v2873, %v3001
        %3003 = vmatmul.bf16.gmra.mxu0 %v2673
        %v3004 = vpop.f32.mrf.mxu0
        %v3005 = vadd.f32 %v2876, %v3004
        %v3006 = vpop.f32.mrf.mxu0
        %v3007 = vadd.f32 %v2878, %v3006
        %3008 = vmatmul.bf16.gmra.mxu0 %v2677
        %v3009 = vpop.f32.mrf.mxu0
        %v3010 = vadd.f32 %v2881, %v3009
        %v3011 = vpop.f32.mrf.mxu0
        %v3012 = vadd.f32 %v2883, %v3011
        %3013 = vmatmul.bf16.gmra.mxu0 %v2681
        %v3014 = vpop.f32.mrf.mxu0
        %v3015 = vadd.f32 %v2886, %v3014
        %v3016 = vpop.f32.mrf.mxu0
        %v3017 = vadd.f32 %v2888, %v3016
        %3018 = vmatmul.bf16.gmra.mxu0 %v2685
        %v3019 = vpop.f32.mrf.mxu0
        %v3020 = vadd.f32 %v2891, %v3019
        %v3021 = vpop.f32.mrf.mxu0
        %v3022 = vadd.f32 %v2893, %v3021
        %3023 = vmatmul.bf16.gmra.mxu0 %v2689
        %v3024 = vpop.f32.mrf.mxu0
        %v3025 = vadd.f32 %v2896, %v3024
        %v3026 = vpop.f32.mrf.mxu0
        %v3027 = vadd.f32 %v2898, %v3026
        %3028 = vmatmul.bf16.gmra.mxu0 %v2693
        %v3029 = vpop.f32.mrf.mxu0
        %v3030 = vadd.f32 %v2901, %v3029
        %v3031 = vpop.f32.mrf.mxu0
        %v3032 = vadd.f32 %v2903, %v3031
        %3033 = vmatmul.bf16.gmra.mxu0 %v2697
        %v3034 = vpop.f32.mrf.mxu0
        %v3035 = vadd.f32 %v2906, %v3034
        %v3036 = vpop.f32.mrf.mxu0
        %v3037 = vadd.f32 %v2908, %v3036
        %3038 = vmatmul.bf16.gmra.mxu0 %v2701
        %v3039 = vpop.f32.mrf.mxu0
        %v3040 = vadd.f32 %v2911, %v3039
        %v3041 = vpop.f32.mrf.mxu0
        %v3042 = vadd.f32 %v2913, %v3041
        %3043 = vmatmul.bf16.gmra.mxu0 %v2705
        %v3044 = vpop.f32.mrf.mxu0
        %v3045 = vadd.f32 %v2916, %v3044
        %v3046 = vpop.f32.mrf.mxu0
        %v3047 = vadd.f32 %v2918, %v3046
        %3048 = vmatmul.bf16.gmra.mxu0 %v2709
        %v3049 = vpop.f32.mrf.mxu0
        %v3050 = vadd.f32 %v2921, %v3049
        %v3051 = vpop.f32.mrf.mxu0
        %v3052 = vadd.f32 %v2923, %v3051
        %3053 = vmatmul.bf16.gmra.mxu0 %v2713
        %v3054 = vpop.f32.mrf.mxu0
        %v3055 = vadd.f32 %v2926, %v3054
        %v3056 = vpop.f32.mrf.mxu0
        %v3057 = vadd.f32 %v2928, %v3056
        %3058 = vmatmul.bf16.gmra.mxu0 %v2717
        %v3059 = vpop.f32.mrf.mxu0
        %v3060 = vadd.f32 %v2931, %v3059
        %v3061 = vpop.f32.mrf.mxu0
        %v3062 = vadd.f32 %v2933, %v3061
        %3063 = vmatmul.bf16.gmra.mxu0 %v2721
        %v3064 = vpop.f32.mrf.mxu0
        %v3065 = vadd.f32 %v2936, %v3064
        %v3066 = vpop.f32.mrf.mxu0
        %v3067 = vadd.f32 %v2938, %v3066
        %3068 = vmatmul.bf16.gmra.mxu0 %v2725
        %v3069 = vpop.f32.mrf.mxu0
        %v3070 = vadd.f32 %v2941, %v3069
        %v3071 = vpop.f32.mrf.mxu0
        %v3072 = vadd.f32 %v2943, %v3071
        %3073 = vmatmul.bf16.gmra.mxu0 %v2729
        %v3074 = vpop.f32.mrf.mxu0
        %v3075 = vadd.f32 %v2946, %v3074
        %v3076 = vpop.f32.mrf.mxu0
        %v3077 = vadd.f32 %v2948, %v3076
        %3078 = vmatmul.bf16.gmra.mxu0 %v2733
        %v3079 = vpop.f32.mrf.mxu0
        %v3080 = vadd.f32 %v2951, %v3079
        %v3081 = vpop.f32.mrf.mxu0
        %v3082 = vadd.f32 %v2953, %v3081
        %3083 = vmatmul.bf16.gmra.mxu0 %v2737
        %v3084 = vpop.f32.mrf.mxu0
        %v3085 = vadd.f32 %v2956, %v3084
        %v3086 = vpop.f32.mrf.mxu0
        %v3087 = vadd.f32 %v2958, %v3086
        %3088 = vmatmul.bf16.gmra.mxu0 %v2741
        %v3089 = vpop.f32.mrf.mxu0
        %v3090 = vadd.f32 %v2961, %v3089
        %v3091 = vpop.f32.mrf.mxu0
        %v3092 = vadd.f32 %v2963, %v3091
        %3093 = vmatmul.bf16.gmra.mxu0 %v2745
        %v3094 = vpop.f32.mrf.mxu0
        %v3095 = vadd.f32 %v2966, %v3094
        %v3096 = vpop.f32.mrf.mxu0
        %v3097 = vadd.f32 %v2968, %v3096
        %3098 = vmatmul.bf16.gmra.mxu0 %v2749
        %v3099 = vpop.f32.mrf.mxu0
        %v3100 = vadd.f32 %v2971, %v3099
        %v3101 = vpop.f32.mrf.mxu0
        %v3102 = vadd.f32 %v2973, %v3101
        %3103 = vmatmul.bf16.gmra.mxu0 %v2753
        %v3104 = vpop.f32.mrf.mxu0
        %v3105 = vadd.f32 %v2976, %v3104
        %v3106 = vpop.f32.mrf.mxu0
        %v3107 = vadd.f32 %v2978, %v3106
        %3108 = vmatmul.bf16.gmra.mxu0 %v2757
        %v3109 = vpop.f32.mrf.mxu0
        %v3110 = vadd.f32 %v2981, %v3109
        %v3111 = vpop.f32.mrf.mxu0
        %v3112 = vadd.f32 %v2983, %v3111
        %3113 = vdwg.mxu0
        %3114 = vmatpush.bf16.msra.mxu0 %v1166
        %3115 = vmatpush.bf16.msra.mxu0 %v1164
        %3116 = vmatpush.bf16.msra.mxu0 %v1162
        %3117 = vmatpush.bf16.msra.mxu0 %v1160
        %3118 = vmatpush.bf16.msra.mxu0 %v1158
        %3119 = vmatpush.bf16.msra.mxu0 %v1156
        %3120 = vmatpush.bf16.msra.mxu0 %v1154
        %3121 = vmatpush.bf16.msra.mxu0 %v1152
        %3122 = vmatmul.bf16.gmra.mxu0 %v2666
        %v3123 = vpop.f32.mrf.mxu0
        %v3124 = vadd.f32 %v2995, %v3123
        %v3125 = vpop.f32.mrf.mxu0
        %v3126 = vadd.f32 %v2997, %v3125
        %3127 = vmatmul.bf16.gmra.mxu0 %v2670
        %v3128 = vpop.f32.mrf.mxu0
        %v3129 = vadd.f32 %v3000, %v3128
        %v3130 = vpop.f32.mrf.mxu0
        %v3131 = vadd.f32 %v3002, %v3130
        %3132 = vmatmul.bf16.gmra.mxu0 %v2674
        %v3133 = vpop.f32.mrf.mxu0
        %v3134 = vadd.f32 %v3005, %v3133
        %v3135 = vpop.f32.mrf.mxu0
        %v3136 = vadd.f32 %v3007, %v3135
        %3137 = vmatmul.bf16.gmra.mxu0 %v2678
        %v3138 = vpop.f32.mrf.mxu0
        %v3139 = vadd.f32 %v3010, %v3138
        %v3140 = vpop.f32.mrf.mxu0
        %v3141 = vadd.f32 %v3012, %v3140
        %3142 = vmatmul.bf16.gmra.mxu0 %v2682
        %v3143 = vpop.f32.mrf.mxu0
        %v3144 = vadd.f32 %v3015, %v3143
        %v3145 = vpop.f32.mrf.mxu0
        %v3146 = vadd.f32 %v3017, %v3145
        %3147 = vmatmul.bf16.gmra.mxu0 %v2686
        %v3148 = vpop.f32.mrf.mxu0
        %v3149 = vadd.f32 %v3020, %v3148
        %v3150 = vpop.f32.mrf.mxu0
        %v3151 = vadd.f32 %v3022, %v3150
        %3152 = vmatmul.bf16.gmra.mxu0 %v2690
        %v3153 = vpop.f32.mrf.mxu0
        %v3154 = vadd.f32 %v3025, %v3153
        %v3155 = vpop.f32.mrf.mxu0
        %v3156 = vadd.f32 %v3027, %v3155
        %3157 = vmatmul.bf16.gmra.mxu0 %v2694
        %v3158 = vpop.f32.mrf.mxu0
        %v3159 = vadd.f32 %v3030, %v3158
        %v3160 = vpop.f32.mrf.mxu0
        %v3161 = vadd.f32 %v3032, %v3160
        %3162 = vmatmul.bf16.gmra.mxu0 %v2698
        %v3163 = vpop.f32.mrf.mxu0
        %v3164 = vadd.f32 %v3035, %v3163
        %v3165 = vpop.f32.mrf.mxu0
        %v3166 = vadd.f32 %v3037, %v3165
        %3167 = vmatmul.bf16.gmra.mxu0 %v2702
        %v3168 = vpop.f32.mrf.mxu0
        %v3169 = vadd.f32 %v3040, %v3168
        %v3170 = vpop.f32.mrf.mxu0
        %v3171 = vadd.f32 %v3042, %v3170
        %3172 = vmatmul.bf16.gmra.mxu0 %v2706
        %v3173 = vpop.f32.mrf.mxu0
        %v3174 = vadd.f32 %v3045, %v3173
        %v3175 = vpop.f32.mrf.mxu0
        %v3176 = vadd.f32 %v3047, %v3175
        %3177 = vmatmul.bf16.gmra.mxu0 %v2710
        %v3178 = vpop.f32.mrf.mxu0
        %v3179 = vadd.f32 %v3050, %v3178
        %v3180 = vpop.f32.mrf.mxu0
        %v3181 = vadd.f32 %v3052, %v3180
        %3182 = vmatmul.bf16.gmra.mxu0 %v2714
        %v3183 = vpop.f32.mrf.mxu0
        %v3184 = vadd.f32 %v3055, %v3183
        %v3185 = vpop.f32.mrf.mxu0
        %v3186 = vadd.f32 %v3057, %v3185
        %3187 = vmatmul.bf16.gmra.mxu0 %v2718
        %v3188 = vpop.f32.mrf.mxu0
        %v3189 = vadd.f32 %v3060, %v3188
        %v3190 = vpop.f32.mrf.mxu0
        %v3191 = vadd.f32 %v3062, %v3190
        %3192 = vmatmul.bf16.gmra.mxu0 %v2722
        %v3193 = vpop.f32.mrf.mxu0
        %v3194 = vadd.f32 %v3065, %v3193
        %v3195 = vpop.f32.mrf.mxu0
        %v3196 = vadd.f32 %v3067, %v3195
        %3197 = vmatmul.bf16.gmra.mxu0 %v2726
        %v3198 = vpop.f32.mrf.mxu0
        %v3199 = vadd.f32 %v3070, %v3198
        %v3200 = vpop.f32.mrf.mxu0
        %v3201 = vadd.f32 %v3072, %v3200
        %3202 = vmatmul.bf16.gmra.mxu0 %v2730
        %v3203 = vpop.f32.mrf.mxu0
        %v3204 = vadd.f32 %v3075, %v3203
        %v3205 = vpop.f32.mrf.mxu0
        %v3206 = vadd.f32 %v3077, %v3205
        %3207 = vmatmul.bf16.gmra.mxu0 %v2734
        %v3208 = vpop.f32.mrf.mxu0
        %v3209 = vadd.f32 %v3080, %v3208
        %v3210 = vpop.f32.mrf.mxu0
        %v3211 = vadd.f32 %v3082, %v3210
        %3212 = vmatmul.bf16.gmra.mxu0 %v2738
        %v3213 = vpop.f32.mrf.mxu0
        %v3214 = vadd.f32 %v3085, %v3213
        %v3215 = vpop.f32.mrf.mxu0
        %v3216 = vadd.f32 %v3087, %v3215
        %3217 = vmatmul.bf16.gmra.mxu0 %v2742
        %v3218 = vpop.f32.mrf.mxu0
        %v3219 = vadd.f32 %v3090, %v3218
        %v3220 = vpop.f32.mrf.mxu0
        %v3221 = vadd.f32 %v3092, %v3220
        %3222 = vmatmul.bf16.gmra.mxu0 %v2746
        %v3223 = vpop.f32.mrf.mxu0
        %v3224 = vadd.f32 %v3095, %v3223
        %v3225 = vpop.f32.mrf.mxu0
        %v3226 = vadd.f32 %v3097, %v3225
        %3227 = vmatmul.bf16.gmra.mxu0 %v2750
        %v3228 = vpop.f32.mrf.mxu0
        %v3229 = vadd.f32 %v3100, %v3228
        %v3230 = vpop.f32.mrf.mxu0
        %v3231 = vadd.f32 %v3102, %v3230
        %3232 = vmatmul.bf16.gmra.mxu0 %v2754
        %v3233 = vpop.f32.mrf.mxu0
        %v3234 = vadd.f32 %v3105, %v3233
        %v3235 = vpop.f32.mrf.mxu0
        %v3236 = vadd.f32 %v3107, %v3235
        %3237 = vmatmul.bf16.gmra.mxu0 %v2758
        %v3238 = vpop.f32.mrf.mxu0
        %v3239 = vadd.f32 %v3110, %v3238
        %v3240 = vpop.f32.mrf.mxu0
        %v3241 = vadd.f32 %v3112, %v3240
        %3242 = vdwg.mxu0
        %3243 = vmatpush.bf16.msra.mxu0 %v1182
        %3244 = vmatpush.bf16.msra.mxu0 %v1180
        %3245 = vmatpush.bf16.msra.mxu0 %v1178
        %3246 = vmatpush.bf16.msra.mxu0 %v1176
        %3247 = vmatpush.bf16.msra.mxu0 %v1174
        %3248 = vmatpush.bf16.msra.mxu0 %v1172
        %3249 = vmatpush.bf16.msra.mxu0 %v1170
        %3250 = vmatpush.bf16.msra.mxu0 %v1168
        %3251 = vmatmul.bf16.gmra.mxu0 %v2667
        %v3252 = vpop.f32.mrf.mxu0
        %v3253 = vadd.f32 %v3124, %v3252
        %v3254 = vpop.f32.mrf.mxu0
        %v3255 = vadd.f32 %v3126, %v3254
        %3256 = vmatmul.bf16.gmra.mxu0 %v2671
        %v3257 = vpop.f32.mrf.mxu0
        %v3258 = vadd.f32 %v3129, %v3257
        %v3259 = vpop.f32.mrf.mxu0
        %v3260 = vadd.f32 %v3131, %v3259
        %3261 = vmatmul.bf16.gmra.mxu0 %v2675
        %v3262 = vpop.f32.mrf.mxu0
        %v3263 = vadd.f32 %v3134, %v3262
        %v3264 = vpop.f32.mrf.mxu0
        %v3265 = vadd.f32 %v3136, %v3264
        %3266 = vmatmul.bf16.gmra.mxu0 %v2679
        %v3267 = vpop.f32.mrf.mxu0
        %v3268 = vadd.f32 %v3139, %v3267
        %v3269 = vpop.f32.mrf.mxu0
        %v3270 = vadd.f32 %v3141, %v3269
        %3271 = vmatmul.bf16.gmra.mxu0 %v2683
        %v3272 = vpop.f32.mrf.mxu0
        %v3273 = vadd.f32 %v3144, %v3272
        %v3274 = vpop.f32.mrf.mxu0
        %v3275 = vadd.f32 %v3146, %v3274
        %3276 = vmatmul.bf16.gmra.mxu0 %v2687
        %v3277 = vpop.f32.mrf.mxu0
        %v3278 = vadd.f32 %v3149, %v3277
        %v3279 = vpop.f32.mrf.mxu0
        %v3280 = vadd.f32 %v3151, %v3279
        %3281 = vmatmul.bf16.gmra.mxu0 %v2691
        %v3282 = vpop.f32.mrf.mxu0
        %v3283 = vadd.f32 %v3154, %v3282
        %v3284 = vpop.f32.mrf.mxu0
        %v3285 = vadd.f32 %v3156, %v3284
        %3286 = vmatmul.bf16.gmra.mxu0 %v2695
        %v3287 = vpop.f32.mrf.mxu0
        %v3288 = vadd.f32 %v3159, %v3287
        %v3289 = vpop.f32.mrf.mxu0
        %v3290 = vadd.f32 %v3161, %v3289
        %3291 = vmatmul.bf16.gmra.mxu0 %v2699
        %v3292 = vpop.f32.mrf.mxu0
        %v3293 = vadd.f32 %v3164, %v3292
        %v3294 = vpop.f32.mrf.mxu0
        %v3295 = vadd.f32 %v3166, %v3294
        %3296 = vmatmul.bf16.gmra.mxu0 %v2703
        %v3297 = vpop.f32.mrf.mxu0
        %v3298 = vadd.f32 %v3169, %v3297
        %v3299 = vpop.f32.mrf.mxu0
        %v3300 = vadd.f32 %v3171, %v3299
        %3301 = vmatmul.bf16.gmra.mxu0 %v2707
        %v3302 = vpop.f32.mrf.mxu0
        %v3303 = vadd.f32 %v3174, %v3302
        %v3304 = vpop.f32.mrf.mxu0
        %v3305 = vadd.f32 %v3176, %v3304
        %3306 = vmatmul.bf16.gmra.mxu0 %v2711
        %v3307 = vpop.f32.mrf.mxu0
        %v3308 = vadd.f32 %v3179, %v3307
        %v3309 = vpop.f32.mrf.mxu0
        %v3310 = vadd.f32 %v3181, %v3309
        %3311 = vmatmul.bf16.gmra.mxu0 %v2715
        %v3312 = vpop.f32.mrf.mxu0
        %v3313 = vadd.f32 %v3184, %v3312
        %v3314 = vpop.f32.mrf.mxu0
        %v3315 = vadd.f32 %v3186, %v3314
        %3316 = vmatmul.bf16.gmra.mxu0 %v2719
        %v3317 = vpop.f32.mrf.mxu0
        %v3318 = vadd.f32 %v3189, %v3317
        %v3319 = vpop.f32.mrf.mxu0
        %v3320 = vadd.f32 %v3191, %v3319
        %3321 = vmatmul.bf16.gmra.mxu0 %v2723
        %v3322 = vpop.f32.mrf.mxu0
        %v3323 = vadd.f32 %v3194, %v3322
        %v3324 = vpop.f32.mrf.mxu0
        %v3325 = vadd.f32 %v3196, %v3324
        %3326 = vmatmul.bf16.gmra.mxu0 %v2727
        %v3327 = vpop.f32.mrf.mxu0
        %v3328 = vadd.f32 %v3199, %v3327
        %v3329 = vpop.f32.mrf.mxu0
        %v3330 = vadd.f32 %v3201, %v3329
        %3331 = vmatmul.bf16.gmra.mxu0 %v2731
        %v3332 = vpop.f32.mrf.mxu0
        %v3333 = vadd.f32 %v3204, %v3332
        %v3334 = vpop.f32.mrf.mxu0
        %v3335 = vadd.f32 %v3206, %v3334
        %3336 = vmatmul.bf16.gmra.mxu0 %v2735
        %v3337 = vpop.f32.mrf.mxu0
        %v3338 = vadd.f32 %v3209, %v3337
        %v3339 = vpop.f32.mrf.mxu0
        %v3340 = vadd.f32 %v3211, %v3339
        %3341 = vmatmul.bf16.gmra.mxu0 %v2739
        %v3342 = vpop.f32.mrf.mxu0
        %v3343 = vadd.f32 %v3214, %v3342
        %v3344 = vpop.f32.mrf.mxu0
        %v3345 = vadd.f32 %v3216, %v3344
        %3346 = vmatmul.bf16.gmra.mxu0 %v2743
        %v3347 = vpop.f32.mrf.mxu0
        %v3348 = vadd.f32 %v3219, %v3347
        %v3349 = vpop.f32.mrf.mxu0
        %v3350 = vadd.f32 %v3221, %v3349
        %3351 = vmatmul.bf16.gmra.mxu0 %v2747
        %v3352 = vpop.f32.mrf.mxu0
        %v3353 = vadd.f32 %v3224, %v3352
        %v3354 = vpop.f32.mrf.mxu0
        %v3355 = vadd.f32 %v3226, %v3354
        %3356 = vmatmul.bf16.gmra.mxu0 %v2751
        %v3357 = vpop.f32.mrf.mxu0
        %v3358 = vadd.f32 %v3229, %v3357
        %v3359 = vpop.f32.mrf.mxu0
        %v3360 = vadd.f32 %v3231, %v3359
        %3361 = vmatmul.bf16.gmra.mxu0 %v2755
        %v3362 = vpop.f32.mrf.mxu0
        %v3363 = vadd.f32 %v3234, %v3362
        %v3364 = vpop.f32.mrf.mxu0
        %v3365 = vadd.f32 %v3236, %v3364
        %3366 = vmatmul.bf16.gmra.mxu0 %v2759
        %v3367 = vpop.f32.mrf.mxu0
        %v3368 = vadd.f32 %v3239, %v3367
        %v3369 = vpop.f32.mrf.mxu0
        %v3370 = vadd.f32 %v3241, %v3369
        %3371 = vdwg.mxu0
        %3372 = vmatpush.bf16.msra.mxu0 %v1135
        %3373 = vmatpush.bf16.msra.mxu0 %v1133
        %3374 = vmatpush.bf16.msra.mxu0 %v1131
        %3375 = vmatpush.bf16.msra.mxu0 %v1129
        %3376 = vmatpush.bf16.msra.mxu0 %v1127
        %3377 = vmatpush.bf16.msra.mxu0 %v1125
        %3378 = vmatpush.bf16.msra.mxu0 %v1123
        %3379 = vmatpush.bf16.msra.mxu0 %v1121
        %3380 = vmatmul.bf16.gmra.mxu0 %v2664
        %v3381 = vpop.f32.mrf.mxu0
        %v3382 = vadd.f32 0.0, %v3381
        %v3383 = vpop.f32.mrf.mxu0
        %v3384 = vadd.f32 0.0, %v3383
        %3385 = vmatmul.bf16.gmra.mxu0 %v2668
        %v3386 = vpop.f32.mrf.mxu0
        %v3387 = vadd.f32 0.0, %v3386
        %v3388 = vpop.f32.mrf.mxu0
        %v3389 = vadd.f32 0.0, %v3388
        %3390 = vmatmul.bf16.gmra.mxu0 %v2672
        %v3391 = vpop.f32.mrf.mxu0
        %v3392 = vadd.f32 0.0, %v3391
        %v3393 = vpop.f32.mrf.mxu0
        %v3394 = vadd.f32 0.0, %v3393
        %3395 = vmatmul.bf16.gmra.mxu0 %v2676
        %v3396 = vpop.f32.mrf.mxu0
        %v3397 = vadd.f32 0.0, %v3396
        %v3398 = vpop.f32.mrf.mxu0
        %v3399 = vadd.f32 0.0, %v3398
        %3400 = vmatmul.bf16.gmra.mxu0 %v2680
        %v3401 = vpop.f32.mrf.mxu0
        %v3402 = vadd.f32 0.0, %v3401
        %v3403 = vpop.f32.mrf.mxu0
        %v3404 = vadd.f32 0.0, %v3403
        %3405 = vmatmul.bf16.gmra.mxu0 %v2684
        %v3406 = vpop.f32.mrf.mxu0
        %v3407 = vadd.f32 0.0, %v3406
        %v3408 = vpop.f32.mrf.mxu0
        %v3409 = vadd.f32 0.0, %v3408
        %3410 = vmatmul.bf16.gmra.mxu0 %v2688
        %v3411 = vpop.f32.mrf.mxu0
        %v3412 = vadd.f32 0.0, %v3411
        %v3413 = vpop.f32.mrf.mxu0
        %v3414 = vadd.f32 0.0, %v3413
        %3415 = vmatmul.bf16.gmra.mxu0 %v2692
        %v3416 = vpop.f32.mrf.mxu0
        %v3417 = vadd.f32 0.0, %v3416
        %v3418 = vpop.f32.mrf.mxu0
        %v3419 = vadd.f32 0.0, %v3418
        %3420 = vmatmul.bf16.gmra.mxu0 %v2696
        %v3421 = vpop.f32.mrf.mxu0
        %v3422 = vadd.f32 0.0, %v3421
        %v3423 = vpop.f32.mrf.mxu0
        %v3424 = vadd.f32 0.0, %v3423
        %3425 = vmatmul.bf16.gmra.mxu0 %v2700
        %v3426 = vpop.f32.mrf.mxu0
        %v3427 = vadd.f32 0.0, %v3426
        %v3428 = vpop.f32.mrf.mxu0
        %v3429 = vadd.f32 0.0, %v3428
        %3430 = vmatmul.bf16.gmra.mxu0 %v2704
        %v3431 = vpop.f32.mrf.mxu0
        %v3432 = vadd.f32 0.0, %v3431
        %v3433 = vpop.f32.mrf.mxu0
        %v3434 = vadd.f32 0.0, %v3433
        %3435 = vmatmul.bf16.gmra.mxu0 %v2708
        %v3436 = vpop.f32.mrf.mxu0
        %v3437 = vadd.f32 0.0, %v3436
        %v3438 = vpop.f32.mrf.mxu0
        %v3439 = vadd.f32 0.0, %v3438
        %3440 = vmatmul.bf16.gmra.mxu0 %v2712
        %v3441 = vpop.f32.mrf.mxu0
        %v3442 = vadd.f32 0.0, %v3441
        %v3443 = vpop.f32.mrf.mxu0
        %v3444 = vadd.f32 0.0, %v3443
        %3445 = vmatmul.bf16.gmra.mxu0 %v2716
        %v3446 = vpop.f32.mrf.mxu0
        %v3447 = vadd.f32 0.0, %v3446
        %v3448 = vpop.f32.mrf.mxu0
        %v3449 = vadd.f32 0.0, %v3448
        %3450 = vmatmul.bf16.gmra.mxu0 %v2720
        %v3451 = vpop.f32.mrf.mxu0
        %v3452 = vadd.f32 0.0, %v3451
        %v3453 = vpop.f32.mrf.mxu0
        %v3454 = vadd.f32 0.0, %v3453
        %3455 = vmatmul.bf16.gmra.mxu0 %v2724
        %v3456 = vpop.f32.mrf.mxu0
        %v3457 = vadd.f32 0.0, %v3456
        %v3458 = vpop.f32.mrf.mxu0
        %v3459 = vadd.f32 0.0, %v3458
        %3460 = vmatmul.bf16.gmra.mxu0 %v2728
        %v3461 = vpop.f32.mrf.mxu0
        %v3462 = vadd.f32 0.0, %v3461
        %v3463 = vpop.f32.mrf.mxu0
        %v3464 = vadd.f32 0.0, %v3463
        %3465 = vmatmul.bf16.gmra.mxu0 %v2732
        %v3466 = vpop.f32.mrf.mxu0
        %v3467 = vadd.f32 0.0, %v3466
        %v3468 = vpop.f32.mrf.mxu0
        %v3469 = vadd.f32 0.0, %v3468
        %3470 = vmatmul.bf16.gmra.mxu0 %v2736
        %v3471 = vpop.f32.mrf.mxu0
        %v3472 = vadd.f32 0.0, %v3471
        %v3473 = vpop.f32.mrf.mxu0
        %v3474 = vadd.f32 0.0, %v3473
        %3475 = vmatmul.bf16.gmra.mxu0 %v2740
        %v3476 = vpop.f32.mrf.mxu0
        %v3477 = vadd.f32 0.0, %v3476
        %v3478 = vpop.f32.mrf.mxu0
        %v3479 = vadd.f32 0.0, %v3478
        %3480 = vmatmul.bf16.gmra.mxu0 %v2744
        %v3481 = vpop.f32.mrf.mxu0
        %v3482 = vadd.f32 0.0, %v3481
        %v3483 = vpop.f32.mrf.mxu0
        %v3484 = vadd.f32 0.0, %v3483
        %3485 = vmatmul.bf16.gmra.mxu0 %v2748
        %v3486 = vpop.f32.mrf.mxu0
        %v3487 = vadd.f32 0.0, %v3486
        %v3488 = vpop.f32.mrf.mxu0
        %v3489 = vadd.f32 0.0, %v3488
        %3490 = vmatmul.bf16.gmra.mxu0 %v2752
        %v3491 = vpop.f32.mrf.mxu0
        %v3492 = vadd.f32 0.0, %v3491
        %v3493 = vpop.f32.mrf.mxu0
        %v3494 = vadd.f32 0.0, %v3493
        %3495 = vmatmul.bf16.gmra.mxu0 %v2756
        %v3496 = vpop.f32.mrf.mxu0
        %v3497 = vadd.f32 0.0, %v3496
        %v3498 = vpop.f32.mrf.mxu0
        %v3499 = vadd.f32 0.0, %v3498
        %3500 = vdwg.mxu0
        %3501 = vmatpush.bf16.msra.mxu0 %v1151
        %3502 = vmatpush.bf16.msra.mxu0 %v1149
        %3503 = vmatpush.bf16.msra.mxu0 %v1147
        %3504 = vmatpush.bf16.msra.mxu0 %v1145
        %3505 = vmatpush.bf16.msra.mxu0 %v1143
        %3506 = vmatpush.bf16.msra.mxu0 %v1141
        %3507 = vmatpush.bf16.msra.mxu0 %v1139
        %3508 = vmatpush.bf16.msra.mxu0 %v1137
        %3509 = vmatmul.bf16.gmra.mxu0 %v2665
        %v3510 = vpop.f32.mrf.mxu0
        %v3511 = vadd.f32 %v3382, %v3510
        %v3512 = vpop.f32.mrf.mxu0
        %v3513 = vadd.f32 %v3384, %v3512
        %3514 = vmatmul.bf16.gmra.mxu0 %v2669
        %v3515 = vpop.f32.mrf.mxu0
        %v3516 = vadd.f32 %v3387, %v3515
        %v3517 = vpop.f32.mrf.mxu0
        %v3518 = vadd.f32 %v3389, %v3517
        %3519 = vmatmul.bf16.gmra.mxu0 %v2673
        %v3520 = vpop.f32.mrf.mxu0
        %v3521 = vadd.f32 %v3392, %v3520
        %v3522 = vpop.f32.mrf.mxu0
        %v3523 = vadd.f32 %v3394, %v3522
        %3524 = vmatmul.bf16.gmra.mxu0 %v2677
        %v3525 = vpop.f32.mrf.mxu0
        %v3526 = vadd.f32 %v3397, %v3525
        %v3527 = vpop.f32.mrf.mxu0
        %v3528 = vadd.f32 %v3399, %v3527
        %3529 = vmatmul.bf16.gmra.mxu0 %v2681
        %v3530 = vpop.f32.mrf.mxu0
        %v3531 = vadd.f32 %v3402, %v3530
        %v3532 = vpop.f32.mrf.mxu0
        %v3533 = vadd.f32 %v3404, %v3532
        %3534 = vmatmul.bf16.gmra.mxu0 %v2685
        %v3535 = vpop.f32.mrf.mxu0
        %v3536 = vadd.f32 %v3407, %v3535
        %v3537 = vpop.f32.mrf.mxu0
        %v3538 = vadd.f32 %v3409, %v3537
        %3539 = vmatmul.bf16.gmra.mxu0 %v2689
        %v3540 = vpop.f32.mrf.mxu0
        %v3541 = vadd.f32 %v3412, %v3540
        %v3542 = vpop.f32.mrf.mxu0
        %v3543 = vadd.f32 %v3414, %v3542
        %3544 = vmatmul.bf16.gmra.mxu0 %v2693
        %v3545 = vpop.f32.mrf.mxu0
        %v3546 = vadd.f32 %v3417, %v3545
        %v3547 = vpop.f32.mrf.mxu0
        %v3548 = vadd.f32 %v3419, %v3547
        %3549 = vmatmul.bf16.gmra.mxu0 %v2697
        %v3550 = vpop.f32.mrf.mxu0
        %v3551 = vadd.f32 %v3422, %v3550
        %v3552 = vpop.f32.mrf.mxu0
        %v3553 = vadd.f32 %v3424, %v3552
        %3554 = vmatmul.bf16.gmra.mxu0 %v2701
        %v3555 = vpop.f32.mrf.mxu0
        %v3556 = vadd.f32 %v3427, %v3555
        %v3557 = vpop.f32.mrf.mxu0
        %v3558 = vadd.f32 %v3429, %v3557
        %3559 = vmatmul.bf16.gmra.mxu0 %v2705
        %v3560 = vpop.f32.mrf.mxu0
        %v3561 = vadd.f32 %v3432, %v3560
        %v3562 = vpop.f32.mrf.mxu0
        %v3563 = vadd.f32 %v3434, %v3562
        %3564 = vmatmul.bf16.gmra.mxu0 %v2709
        %v3565 = vpop.f32.mrf.mxu0
        %v3566 = vadd.f32 %v3437, %v3565
        %v3567 = vpop.f32.mrf.mxu0
        %v3568 = vadd.f32 %v3439, %v3567
        %3569 = vmatmul.bf16.gmra.mxu0 %v2713
        %v3570 = vpop.f32.mrf.mxu0
        %v3571 = vadd.f32 %v3442, %v3570
        %v3572 = vpop.f32.mrf.mxu0
        %v3573 = vadd.f32 %v3444, %v3572
        %3574 = vmatmul.bf16.gmra.mxu0 %v2717
        %v3575 = vpop.f32.mrf.mxu0
        %v3576 = vadd.f32 %v3447, %v3575
        %v3577 = vpop.f32.mrf.mxu0
        %v3578 = vadd.f32 %v3449, %v3577
        %3579 = vmatmul.bf16.gmra.mxu0 %v2721
        %v3580 = vpop.f32.mrf.mxu0
        %v3581 = vadd.f32 %v3452, %v3580
        %v3582 = vpop.f32.mrf.mxu0
        %v3583 = vadd.f32 %v3454, %v3582
        %3584 = vmatmul.bf16.gmra.mxu0 %v2725
        %v3585 = vpop.f32.mrf.mxu0
        %v3586 = vadd.f32 %v3457, %v3585
        %v3587 = vpop.f32.mrf.mxu0
        %v3588 = vadd.f32 %v3459, %v3587
        %3589 = vmatmul.bf16.gmra.mxu0 %v2729
        %v3590 = vpop.f32.mrf.mxu0
        %v3591 = vadd.f32 %v3462, %v3590
        %v3592 = vpop.f32.mrf.mxu0
        %v3593 = vadd.f32 %v3464, %v3592
        %3594 = vmatmul.bf16.gmra.mxu0 %v2733
        %v3595 = vpop.f32.mrf.mxu0
        %v3596 = vadd.f32 %v3467, %v3595
        %v3597 = vpop.f32.mrf.mxu0
        %v3598 = vadd.f32 %v3469, %v3597
        %3599 = vmatmul.bf16.gmra.mxu0 %v2737
        %v3600 = vpop.f32.mrf.mxu0
        %v3601 = vadd.f32 %v3472, %v3600
        %v3602 = vpop.f32.mrf.mxu0
        %v3603 = vadd.f32 %v3474, %v3602
        %3604 = vmatmul.bf16.gmra.mxu0 %v2741
        %v3605 = vpop.f32.mrf.mxu0
        %v3606 = vadd.f32 %v3477, %v3605
        %v3607 = vpop.f32.mrf.mxu0
        %v3608 = vadd.f32 %v3479, %v3607
        %3609 = vmatmul.bf16.gmra.mxu0 %v2745
        %v3610 = vpop.f32.mrf.mxu0
        %v3611 = vadd.f32 %v3482, %v3610
        %v3612 = vpop.f32.mrf.mxu0
        %v3613 = vadd.f32 %v3484, %v3612
        %3614 = vmatmul.bf16.gmra.mxu0 %v2749
        %v3615 = vpop.f32.mrf.mxu0
        %v3616 = vadd.f32 %v3487, %v3615
        %v3617 = vpop.f32.mrf.mxu0
        %v3618 = vadd.f32 %v3489, %v3617
        %3619 = vmatmul.bf16.gmra.mxu0 %v2753
        %v3620 = vpop.f32.mrf.mxu0
        %v3621 = vadd.f32 %v3492, %v3620
        %v3622 = vpop.f32.mrf.mxu0
        %v3623 = vadd.f32 %v3494, %v3622
        %3624 = vmatmul.bf16.gmra.mxu0 %v2757
        %v3625 = vpop.f32.mrf.mxu0
        %v3626 = vadd.f32 %v3497, %v3625
        %v3627 = vpop.f32.mrf.mxu0
        %v3628 = vadd.f32 %v3499, %v3627
        %3629 = vdwg.mxu0
        %3630 = vmatpush.bf16.msra.mxu0 %v1167
        %3631 = vmatpush.bf16.msra.mxu0 %v1165
        %3632 = vmatpush.bf16.msra.mxu0 %v1163
        %3633 = vmatpush.bf16.msra.mxu0 %v1161
        %3634 = vmatpush.bf16.msra.mxu0 %v1159
        %3635 = vmatpush.bf16.msra.mxu0 %v1157
        %3636 = vmatpush.bf16.msra.mxu0 %v1155
        %3637 = vmatpush.bf16.msra.mxu0 %v1153
        %3638 = vmatmul.bf16.gmra.mxu0 %v2666
        %v3639 = vpop.f32.mrf.mxu0
        %v3640 = vadd.f32 %v3511, %v3639
        %v3641 = vpop.f32.mrf.mxu0
        %v3642 = vadd.f32 %v3513, %v3641
        %3643 = vmatmul.bf16.gmra.mxu0 %v2670
        %v3644 = vpop.f32.mrf.mxu0
        %v3645 = vadd.f32 %v3516, %v3644
        %v3646 = vpop.f32.mrf.mxu0
        %v3647 = vadd.f32 %v3518, %v3646
        %3648 = vmatmul.bf16.gmra.mxu0 %v2674
        %v3649 = vpop.f32.mrf.mxu0
        %v3650 = vadd.f32 %v3521, %v3649
        %v3651 = vpop.f32.mrf.mxu0
        %v3652 = vadd.f32 %v3523, %v3651
        %3653 = vmatmul.bf16.gmra.mxu0 %v2678
        %v3654 = vpop.f32.mrf.mxu0
        %v3655 = vadd.f32 %v3526, %v3654
        %v3656 = vpop.f32.mrf.mxu0
        %v3657 = vadd.f32 %v3528, %v3656
        %3658 = vmatmul.bf16.gmra.mxu0 %v2682
        %v3659 = vpop.f32.mrf.mxu0
        %v3660 = vadd.f32 %v3531, %v3659
        %v3661 = vpop.f32.mrf.mxu0
        %v3662 = vadd.f32 %v3533, %v3661
        %3663 = vmatmul.bf16.gmra.mxu0 %v2686
        %v3664 = vpop.f32.mrf.mxu0
        %v3665 = vadd.f32 %v3536, %v3664
        %v3666 = vpop.f32.mrf.mxu0
        %v3667 = vadd.f32 %v3538, %v3666
        %3668 = vmatmul.bf16.gmra.mxu0 %v2690
        %v3669 = vpop.f32.mrf.mxu0
        %v3670 = vadd.f32 %v3541, %v3669
        %v3671 = vpop.f32.mrf.mxu0
        %v3672 = vadd.f32 %v3543, %v3671
        %3673 = vmatmul.bf16.gmra.mxu0 %v2694
        %v3674 = vpop.f32.mrf.mxu0
        %v3675 = vadd.f32 %v3546, %v3674
        %v3676 = vpop.f32.mrf.mxu0
        %v3677 = vadd.f32 %v3548, %v3676
        %3678 = vmatmul.bf16.gmra.mxu0 %v2698
        %v3679 = vpop.f32.mrf.mxu0
        %v3680 = vadd.f32 %v3551, %v3679
        %v3681 = vpop.f32.mrf.mxu0
        %v3682 = vadd.f32 %v3553, %v3681
        %3683 = vmatmul.bf16.gmra.mxu0 %v2702
        %v3684 = vpop.f32.mrf.mxu0
        %v3685 = vadd.f32 %v3556, %v3684
        %v3686 = vpop.f32.mrf.mxu0
        %v3687 = vadd.f32 %v3558, %v3686
        %3688 = vmatmul.bf16.gmra.mxu0 %v2706
        %v3689 = vpop.f32.mrf.mxu0
        %v3690 = vadd.f32 %v3561, %v3689
        %v3691 = vpop.f32.mrf.mxu0
        %v3692 = vadd.f32 %v3563, %v3691
        %3693 = vmatmul.bf16.gmra.mxu0 %v2710
        %v3694 = vpop.f32.mrf.mxu0
        %v3695 = vadd.f32 %v3566, %v3694
        %v3696 = vpop.f32.mrf.mxu0
        %v3697 = vadd.f32 %v3568, %v3696
        %3698 = vmatmul.bf16.gmra.mxu0 %v2714
        %v3699 = vpop.f32.mrf.mxu0
        %v3700 = vadd.f32 %v3571, %v3699
        %v3701 = vpop.f32.mrf.mxu0
        %v3702 = vadd.f32 %v3573, %v3701
        %3703 = vmatmul.bf16.gmra.mxu0 %v2718
        %v3704 = vpop.f32.mrf.mxu0
        %v3705 = vadd.f32 %v3576, %v3704
        %v3706 = vpop.f32.mrf.mxu0
        %v3707 = vadd.f32 %v3578, %v3706
        %3708 = vmatmul.bf16.gmra.mxu0 %v2722
        %v3709 = vpop.f32.mrf.mxu0
        %v3710 = vadd.f32 %v3581, %v3709
        %v3711 = vpop.f32.mrf.mxu0
        %v3712 = vadd.f32 %v3583, %v3711
        %3713 = vmatmul.bf16.gmra.mxu0 %v2726
        %v3714 = vpop.f32.mrf.mxu0
        %v3715 = vadd.f32 %v3586, %v3714
        %v3716 = vpop.f32.mrf.mxu0
        %v3717 = vadd.f32 %v3588, %v3716
        %3718 = vmatmul.bf16.gmra.mxu0 %v2730
        %v3719 = vpop.f32.mrf.mxu0
        %v3720 = vadd.f32 %v3591, %v3719
        %v3721 = vpop.f32.mrf.mxu0
        %v3722 = vadd.f32 %v3593, %v3721
        %3723 = vmatmul.bf16.gmra.mxu0 %v2734
        %v3724 = vpop.f32.mrf.mxu0
        %v3725 = vadd.f32 %v3596, %v3724
        %v3726 = vpop.f32.mrf.mxu0
        %v3727 = vadd.f32 %v3598, %v3726
        %3728 = vmatmul.bf16.gmra.mxu0 %v2738
        %v3729 = vpop.f32.mrf.mxu0
        %v3730 = vadd.f32 %v3601, %v3729
        %v3731 = vpop.f32.mrf.mxu0
        %v3732 = vadd.f32 %v3603, %v3731
        %3733 = vmatmul.bf16.gmra.mxu0 %v2742
        %v3734 = vpop.f32.mrf.mxu0
        %v3735 = vadd.f32 %v3606, %v3734
        %v3736 = vpop.f32.mrf.mxu0
        %v3737 = vadd.f32 %v3608, %v3736
        %3738 = vmatmul.bf16.gmra.mxu0 %v2746
        %v3739 = vpop.f32.mrf.mxu0
        %v3740 = vadd.f32 %v3611, %v3739
        %v3741 = vpop.f32.mrf.mxu0
        %v3742 = vadd.f32 %v3613, %v3741
        %3743 = vmatmul.bf16.gmra.mxu0 %v2750
        %v3744 = vpop.f32.mrf.mxu0
        %v3745 = vadd.f32 %v3616, %v3744
        %v3746 = vpop.f32.mrf.mxu0
        %v3747 = vadd.f32 %v3618, %v3746
        %3748 = vmatmul.bf16.gmra.mxu0 %v2754
        %v3749 = vpop.f32.mrf.mxu0
        %v3750 = vadd.f32 %v3621, %v3749
        %v3751 = vpop.f32.mrf.mxu0
        %v3752 = vadd.f32 %v3623, %v3751
        %3753 = vmatmul.bf16.gmra.mxu0 %v2758
        %v3754 = vpop.f32.mrf.mxu0
        %v3755 = vadd.f32 %v3626, %v3754
        %v3756 = vpop.f32.mrf.mxu0
        %v3757 = vadd.f32 %v3628, %v3756
        %3758 = vdwg.mxu0
        %3759 = vmatpush.bf16.msra.mxu0 %v1183
        %3760 = vmatpush.bf16.msra.mxu0 %v1181
        %3761 = vmatpush.bf16.msra.mxu0 %v1179
        %3762 = vmatpush.bf16.msra.mxu0 %v1177
        %3763 = vmatpush.bf16.msra.mxu0 %v1175
        %3764 = vmatpush.bf16.msra.mxu0 %v1173
        %3765 = vmatpush.bf16.msra.mxu0 %v1171
        %3766 = vmatpush.bf16.msra.mxu0 %v1169
        %3767 = vmatmul.bf16.gmra.mxu0 %v2667
        %v3768 = vpop.f32.mrf.mxu0
        %v3769 = vadd.f32 %v3640, %v3768
        %v3770 = vpop.f32.mrf.mxu0
        %v3771 = vadd.f32 %v3642, %v3770
        %3772 = vmatmul.bf16.gmra.mxu0 %v2671
        %v3773 = vpop.f32.mrf.mxu0
        %v3774 = vadd.f32 %v3645, %v3773
        %v3775 = vpop.f32.mrf.mxu0
        %v3776 = vadd.f32 %v3647, %v3775
        %3777 = vmatmul.bf16.gmra.mxu0 %v2675
        %v3778 = vpop.f32.mrf.mxu0
        %v3779 = vadd.f32 %v3650, %v3778
        %v3780 = vpop.f32.mrf.mxu0
        %v3781 = vadd.f32 %v3652, %v3780
        %3782 = vmatmul.bf16.gmra.mxu0 %v2679
        %v3783 = vpop.f32.mrf.mxu0
        %v3784 = vadd.f32 %v3655, %v3783
        %v3785 = vpop.f32.mrf.mxu0
        %v3786 = vadd.f32 %v3657, %v3785
        %3787 = vmatmul.bf16.gmra.mxu0 %v2683
        %v3788 = vpop.f32.mrf.mxu0
        %v3789 = vadd.f32 %v3660, %v3788
        %v3790 = vpop.f32.mrf.mxu0
        %v3791 = vadd.f32 %v3662, %v3790
        %3792 = vmatmul.bf16.gmra.mxu0 %v2687
        %v3793 = vpop.f32.mrf.mxu0
        %v3794 = vadd.f32 %v3665, %v3793
        %v3795 = vpop.f32.mrf.mxu0
        %v3796 = vadd.f32 %v3667, %v3795
        %3797 = vmatmul.bf16.gmra.mxu0 %v2691
        %v3798 = vpop.f32.mrf.mxu0
        %v3799 = vadd.f32 %v3670, %v3798
        %v3800 = vpop.f32.mrf.mxu0
        %v3801 = vadd.f32 %v3672, %v3800
        %3802 = vmatmul.bf16.gmra.mxu0 %v2695
        %v3803 = vpop.f32.mrf.mxu0
        %v3804 = vadd.f32 %v3675, %v3803
        %v3805 = vpop.f32.mrf.mxu0
        %v3806 = vadd.f32 %v3677, %v3805
        %3807 = vmatmul.bf16.gmra.mxu0 %v2699
        %v3808 = vpop.f32.mrf.mxu0
        %v3809 = vadd.f32 %v3680, %v3808
        %v3810 = vpop.f32.mrf.mxu0
        %v3811 = vadd.f32 %v3682, %v3810
        %3812 = vmatmul.bf16.gmra.mxu0 %v2703
        %v3813 = vpop.f32.mrf.mxu0
        %v3814 = vadd.f32 %v3685, %v3813
        %v3815 = vpop.f32.mrf.mxu0
        %v3816 = vadd.f32 %v3687, %v3815
        %3817 = vmatmul.bf16.gmra.mxu0 %v2707
        %v3818 = vpop.f32.mrf.mxu0
        %v3819 = vadd.f32 %v3690, %v3818
        %v3820 = vpop.f32.mrf.mxu0
        %v3821 = vadd.f32 %v3692, %v3820
        %3822 = vmatmul.bf16.gmra.mxu0 %v2711
        %v3823 = vpop.f32.mrf.mxu0
        %v3824 = vadd.f32 %v3695, %v3823
        %v3825 = vpop.f32.mrf.mxu0
        %v3826 = vadd.f32 %v3697, %v3825
        %3827 = vmatmul.bf16.gmra.mxu0 %v2715
        %v3828 = vpop.f32.mrf.mxu0
        %v3829 = vadd.f32 %v3700, %v3828
        %v3830 = vpop.f32.mrf.mxu0
        %v3831 = vadd.f32 %v3702, %v3830
        %3832 = vmatmul.bf16.gmra.mxu0 %v2719
        %v3833 = vpop.f32.mrf.mxu0
        %v3834 = vadd.f32 %v3705, %v3833
        %v3835 = vpop.f32.mrf.mxu0
        %v3836 = vadd.f32 %v3707, %v3835
        %3837 = vmatmul.bf16.gmra.mxu0 %v2723
        %v3838 = vpop.f32.mrf.mxu0
        %v3839 = vadd.f32 %v3710, %v3838
        %v3840 = vpop.f32.mrf.mxu0
        %v3841 = vadd.f32 %v3712, %v3840
        %3842 = vmatmul.bf16.gmra.mxu0 %v2727
        %v3843 = vpop.f32.mrf.mxu0
        %v3844 = vadd.f32 %v3715, %v3843
        %v3845 = vpop.f32.mrf.mxu0
        %v3846 = vadd.f32 %v3717, %v3845
        %3847 = vmatmul.bf16.gmra.mxu0 %v2731
        %v3848 = vpop.f32.mrf.mxu0
        %v3849 = vadd.f32 %v3720, %v3848
        %v3850 = vpop.f32.mrf.mxu0
        %v3851 = vadd.f32 %v3722, %v3850
        %3852 = vmatmul.bf16.gmra.mxu0 %v2735
        %v3853 = vpop.f32.mrf.mxu0
        %v3854 = vadd.f32 %v3725, %v3853
        %v3855 = vpop.f32.mrf.mxu0
        %v3856 = vadd.f32 %v3727, %v3855
        %3857 = vmatmul.bf16.gmra.mxu0 %v2739
        %v3858 = vpop.f32.mrf.mxu0
        %v3859 = vadd.f32 %v3730, %v3858
        %v3860 = vpop.f32.mrf.mxu0
        %v3861 = vadd.f32 %v3732, %v3860
        %3862 = vmatmul.bf16.gmra.mxu0 %v2743
        %v3863 = vpop.f32.mrf.mxu0
        %v3864 = vadd.f32 %v3735, %v3863
        %v3865 = vpop.f32.mrf.mxu0
        %v3866 = vadd.f32 %v3737, %v3865
        %3867 = vmatmul.bf16.gmra.mxu0 %v2747
        %v3868 = vpop.f32.mrf.mxu0
        %v3869 = vadd.f32 %v3740, %v3868
        %v3870 = vpop.f32.mrf.mxu0
        %v3871 = vadd.f32 %v3742, %v3870
        %3872 = vmatmul.bf16.gmra.mxu0 %v2751
        %v3873 = vpop.f32.mrf.mxu0
        %v3874 = vadd.f32 %v3745, %v3873
        %v3875 = vpop.f32.mrf.mxu0
        %v3876 = vadd.f32 %v3747, %v3875
        %3877 = vmatmul.bf16.gmra.mxu0 %v2755
        %v3878 = vpop.f32.mrf.mxu0
        %v3879 = vadd.f32 %v3750, %v3878
        %v3880 = vpop.f32.mrf.mxu0
        %v3881 = vadd.f32 %v3752, %v3880
        %3882 = vmatmul.bf16.gmra.mxu0 %v2759
        %v3883 = vpop.f32.mrf.mxu0
        %v3884 = vadd.f32 %v3755, %v3883
        %v3885 = vpop.f32.mrf.mxu0
        %v3886 = vadd.f32 %v3757, %v3885
        %3887 = vdwg.mxu0
        %v3888 = vmul.f32 %v1645, %v1645
        %v3889 = vmul.f32 %v2161, %v2161
        %v3890 = vmul.f32 %v1647, %v1647
        %v3891 = vmul.f32 %v2163, %v2163
        %v3892 = vmul.f32 %v1650, %v1650
        %v3893 = vmul.f32 %v2166, %v2166
        %v3894 = vmul.f32 %v1652, %v1652
        %v3895 = vmul.f32 %v2168, %v2168
        %v3896 = vmul.f32 %v1655, %v1655
        %v3897 = vmul.f32 %v2171, %v2171
        %v3898 = vmul.f32 %v1657, %v1657
        %v3899 = vmul.f32 %v2173, %v2173
        %v3900 = vmul.f32 %v1660, %v1660
        %v3901 = vmul.f32 %v2176, %v2176
        %v3902 = vmul.f32 %v1662, %v1662
        %v3903 = vmul.f32 %v2178, %v2178
        %v3904 = vmul.f32 %v1665, %v1665
        %v3905 = vmul.f32 %v2181, %v2181
        %v3906 = vmul.f32 %v1667, %v1667
        %v3907 = vmul.f32 %v2183, %v2183
        %v3908 = vmul.f32 %v1670, %v1670
        %v3909 = vmul.f32 %v2186, %v2186
        %v3910 = vmul.f32 %v1672, %v1672
        %v3911 = vmul.f32 %v2188, %v2188
        %v3912 = vmul.f32 %v1675, %v1675
        %v3913 = vmul.f32 %v2191, %v2191
        %v3914 = vmul.f32 %v1677, %v1677
        %v3915 = vmul.f32 %v2193, %v2193
        %v3916 = vmul.f32 %v1680, %v1680
        %v3917 = vmul.f32 %v2196, %v2196
        %v3918 = vmul.f32 %v1682, %v1682
        %v3919 = vmul.f32 %v2198, %v2198
        %v3920 = vmul.f32 %v1685, %v1685
        %v3921 = vmul.f32 %v2201, %v2201
        %v3922 = vmul.f32 %v1687, %v1687
        %v3923 = vmul.f32 %v2203, %v2203
        %v3924 = vmul.f32 %v1690, %v1690
        %v3925 = vmul.f32 %v2206, %v2206
        %v3926 = vmul.f32 %v1692, %v1692
        %v3927 = vmul.f32 %v2208, %v2208
        %v3928 = vmul.f32 %v1695, %v1695
        %v3929 = vmul.f32 %v2211, %v2211
        %v3930 = vmul.f32 %v1697, %v1697
        %v3931 = vmul.f32 %v2213, %v2213
        %v3932 = vmul.f32 %v1700, %v1700
        %v3933 = vmul.f32 %v2216, %v2216
        %v3934 = vmul.f32 %v1702, %v1702
        %v3935 = vmul.f32 %v2218, %v2218
        %v3936 = vmul.f32 %v1705, %v1705
        %v3937 = vmul.f32 %v2221, %v2221
        %v3938 = vmul.f32 %v1707, %v1707
        %v3939 = vmul.f32 %v2223, %v2223
        %v3940 = vmul.f32 %v1710, %v1710
        %v3941 = vmul.f32 %v2226, %v2226
        %v3942 = vmul.f32 %v1712, %v1712
        %v3943 = vmul.f32 %v2228, %v2228
        %v3944 = vmul.f32 %v1715, %v1715
        %v3945 = vmul.f32 %v2231, %v2231
        %v3946 = vmul.f32 %v1717, %v1717
        %v3947 = vmul.f32 %v2233, %v2233
        %v3948 = vmul.f32 %v1720, %v1720
        %v3949 = vmul.f32 %v2236, %v2236
        %v3950 = vmul.f32 %v1722, %v1722
        %v3951 = vmul.f32 %v2238, %v2238
        %v3952 = vmul.f32 %v1725, %v1725
        %v3953 = vmul.f32 %v2241, %v2241
        %v3954 = vmul.f32 %v1727, %v1727
        %v3955 = vmul.f32 %v2243, %v2243
        %v3956 = vmul.f32 %v1730, %v1730
        %v3957 = vmul.f32 %v2246, %v2246
        %v3958 = vmul.f32 %v1732, %v1732
        %v3959 = vmul.f32 %v2248, %v2248
        %v3960 = vmul.f32 %v1735, %v1735
        %v3961 = vmul.f32 %v2251, %v2251
        %v3962 = vmul.f32 %v1737, %v1737
        %v3963 = vmul.f32 %v2253, %v2253
        %v3964 = vmul.f32 %v1740, %v1740
        %v3965 = vmul.f32 %v2256, %v2256
        %v3966 = vmul.f32 %v1742, %v1742
        %v3967 = vmul.f32 %v2258, %v2258
        %v3968 = vmul.f32 %v1745, %v1745
        %v3969 = vmul.f32 %v2261, %v2261
        %v3970 = vmul.f32 %v1747, %v1747
        %v3971 = vmul.f32 %v2263, %v2263
        %v3972 = vmul.f32 %v1750, %v1750
        %v3973 = vmul.f32 %v2266, %v2266
        %v3974 = vmul.f32 %v1752, %v1752
        %v3975 = vmul.f32 %v2268, %v2268
        %v3976 = vmul.f32 %v1755, %v1755
        %v3977 = vmul.f32 %v2271, %v2271
        %v3978 = vmul.f32 %v1757, %v1757
        %v3979 = vmul.f32 %v2273, %v2273
        %v3980 = vmul.f32 %v1760, %v1760
        %v3981 = vmul.f32 %v2276, %v2276
        %v3982 = vmul.f32 %v1762, %v1762
        %v3983 = vmul.f32 %v2278, %v2278
        %v3984 = vmul.f32 %v3253, %v3253
        %v3985 = vmul.f32 %v3769, %v3769
        %v3986 = vmul.f32 %v3255, %v3255
        %v3987 = vmul.f32 %v3771, %v3771
        %v3988 = vmul.f32 %v3258, %v3258
        %v3989 = vmul.f32 %v3774, %v3774
        %v3990 = vmul.f32 %v3260, %v3260
        %v3991 = vmul.f32 %v3776, %v3776
        %v3992 = vmul.f32 %v3263, %v3263
        %v3993 = vmul.f32 %v3779, %v3779
        %v3994 = vmul.f32 %v3265, %v3265
        %v3995 = vmul.f32 %v3781, %v3781
        %v3996 = vmul.f32 %v3268, %v3268
        %v3997 = vmul.f32 %v3784, %v3784
        %v3998 = vmul.f32 %v3270, %v3270
        %v3999 = vmul.f32 %v3786, %v3786
        %v4000 = vmul.f32 %v3273, %v3273
        %v4001 = vmul.f32 %v3789, %v3789
        %v4002 = vmul.f32 %v3275, %v3275
        %v4003 = vmul.f32 %v3791, %v3791
        %v4004 = vmul.f32 %v3278, %v3278
        %v4005 = vmul.f32 %v3794, %v3794
        %v4006 = vmul.f32 %v3280, %v3280
        %v4007 = vmul.f32 %v3796, %v3796
        %v4008 = vmul.f32 %v3283, %v3283
        %v4009 = vmul.f32 %v3799, %v3799
        %v4010 = vmul.f32 %v3285, %v3285
        %v4011 = vmul.f32 %v3801, %v3801
        %v4012 = vmul.f32 %v3288, %v3288
        %v4013 = vmul.f32 %v3804, %v3804
        %v4014 = vmul.f32 %v3290, %v3290
        %v4015 = vmul.f32 %v3806, %v3806
        %v4016 = vmul.f32 %v3293, %v3293
        %v4017 = vmul.f32 %v3809, %v3809
        %v4018 = vmul.f32 %v3295, %v3295
        %v4019 = vmul.f32 %v3811, %v3811
        %v4020 = vmul.f32 %v3298, %v3298
        %v4021 = vmul.f32 %v3814, %v3814
        %v4022 = vmul.f32 %v3300, %v3300
        %v4023 = vmul.f32 %v3816, %v3816
        %v4024 = vmul.f32 %v3303, %v3303
        %v4025 = vmul.f32 %v3819, %v3819
        %v4026 = vmul.f32 %v3305, %v3305
        %v4027 = vmul.f32 %v3821, %v3821
        %v4028 = vmul.f32 %v3308, %v3308
        %v4029 = vmul.f32 %v3824, %v3824
        %v4030 = vmul.f32 %v3310, %v3310
        %v4031 = vmul.f32 %v3826, %v3826
        %v4032 = vmul.f32 %v3313, %v3313
        %v4033 = vmul.f32 %v3829, %v3829
        %v4034 = vmul.f32 %v3315, %v3315
        %v4035 = vmul.f32 %v3831, %v3831
        %v4036 = vmul.f32 %v3318, %v3318
        %v4037 = vmul.f32 %v3834, %v3834
        %v4038 = vmul.f32 %v3320, %v3320
        %v4039 = vmul.f32 %v3836, %v3836
        %v4040 = vmul.f32 %v3323, %v3323
        %v4041 = vmul.f32 %v3839, %v3839
        %v4042 = vmul.f32 %v3325, %v3325
        %v4043 = vmul.f32 %v3841, %v3841
        %v4044 = vmul.f32 %v3328, %v3328
        %v4045 = vmul.f32 %v3844, %v3844
        %v4046 = vmul.f32 %v3330, %v3330
        %v4047 = vmul.f32 %v3846, %v3846
        %v4048 = vmul.f32 %v3333, %v3333
        %v4049 = vmul.f32 %v3849, %v3849
        %v4050 = vmul.f32 %v3335, %v3335
        %v4051 = vmul.f32 %v3851, %v3851
        %v4052 = vmul.f32 %v3338, %v3338
        %v4053 = vmul.f32 %v3854, %v3854
        %v4054 = vmul.f32 %v3340, %v3340
        %v4055 = vmul.f32 %v3856, %v3856
        %v4056 = vmul.f32 %v3343, %v3343
        %v4057 = vmul.f32 %v3859, %v3859
        %v4058 = vmul.f32 %v3345, %v3345
        %v4059 = vmul.f32 %v3861, %v3861
        %v4060 = vmul.f32 %v3348, %v3348
        %v4061 = vmul.f32 %v3864, %v3864
        %v4062 = vmul.f32 %v3350, %v3350
        %v4063 = vmul.f32 %v3866, %v3866
        %v4064 = vmul.f32 %v3353, %v3353
        %v4065 = vmul.f32 %v3869, %v3869
        %v4066 = vmul.f32 %v3355, %v3355
        %v4067 = vmul.f32 %v3871, %v3871
        %v4068 = vmul.f32 %v3358, %v3358
        %v4069 = vmul.f32 %v3874, %v3874
        %v4070 = vmul.f32 %v3360, %v3360
        %v4071 = vmul.f32 %v3876, %v3876
        %v4072 = vmul.f32 %v3363, %v3363
        %v4073 = vmul.f32 %v3879, %v3879
        %v4074 = vmul.f32 %v3365, %v3365
        %v4075 = vmul.f32 %v3881, %v3881
        %v4076 = vmul.f32 %v3368, %v3368
        %v4077 = vmul.f32 %v3884, %v3884
        %v4078 = vmul.f32 %v3370, %v3370
        %v4079 = vmul.f32 %v3886, %v3886
        %v4080 = vadd.f32 %v3888, %v3984
        %v4081 = vadd.f32 %v3889, %v3985
        %v4082 = vadd.f32 %v3890, %v3986
        %v4083 = vadd.f32 %v3891, %v3987
        %v4084 = vadd.f32 %v3892, %v3988
        %v4085 = vadd.f32 %v3893, %v3989
        %v4086 = vadd.f32 %v3894, %v3990
        %v4087 = vadd.f32 %v3895, %v3991
        %v4088 = vadd.f32 %v3896, %v3992
        %v4089 = vadd.f32 %v3897, %v3993
        %v4090 = vadd.f32 %v3898, %v3994
        %v4091 = vadd.f32 %v3899, %v3995
        %v4092 = vadd.f32 %v3900, %v3996
        %v4093 = vadd.f32 %v3901, %v3997
        %v4094 = vadd.f32 %v3902, %v3998
        %v4095 = vadd.f32 %v3903, %v3999
        %v4096 = vadd.f32 %v3904, %v4000
        %v4097 = vadd.f32 %v3905, %v4001
        %v4098 = vadd.f32 %v3906, %v4002
        %v4099 = vadd.f32 %v3907, %v4003
        %v4100 = vadd.f32 %v3908, %v4004
        %v4101 = vadd.f32 %v3909, %v4005
        %v4102 = vadd.f32 %v3910, %v4006
        %v4103 = vadd.f32 %v3911, %v4007
        %v4104 = vadd.f32 %v3912, %v4008
        %v4105 = vadd.f32 %v3913, %v4009
        %v4106 = vadd.f32 %v3914, %v4010
        %v4107 = vadd.f32 %v3915, %v4011
        %v4108 = vadd.f32 %v3916, %v4012
        %v4109 = vadd.f32 %v3917, %v4013
        %v4110 = vadd.f32 %v3918, %v4014
        %v4111 = vadd.f32 %v3919, %v4015
        %v4112 = vadd.f32 %v3920, %v4016
        %v4113 = vadd.f32 %v3921, %v4017
        %v4114 = vadd.f32 %v3922, %v4018
        %v4115 = vadd.f32 %v3923, %v4019
        %v4116 = vadd.f32 %v3924, %v4020
        %v4117 = vadd.f32 %v3925, %v4021
        %v4118 = vadd.f32 %v3926, %v4022
        %v4119 = vadd.f32 %v3927, %v4023
        %v4120 = vadd.f32 %v3928, %v4024
        %v4121 = vadd.f32 %v3929, %v4025
        %v4122 = vadd.f32 %v3930, %v4026
        %v4123 = vadd.f32 %v3931, %v4027
        %v4124 = vadd.f32 %v3932, %v4028
        %v4125 = vadd.f32 %v3933, %v4029
        %v4126 = vadd.f32 %v3934, %v4030
        %v4127 = vadd.f32 %v3935, %v4031
        %v4128 = vadd.f32 %v3936, %v4032
        %v4129 = vadd.f32 %v3937, %v4033
        %v4130 = vadd.f32 %v3938, %v4034
        %v4131 = vadd.f32 %v3939, %v4035
        %v4132 = vadd.f32 %v3940, %v4036
        %v4133 = vadd.f32 %v3941, %v4037
        %v4134 = vadd.f32 %v3942, %v4038
        %v4135 = vadd.f32 %v3943, %v4039
        %v4136 = vadd.f32 %v3944, %v4040
        %v4137 = vadd.f32 %v3945, %v4041
        %v4138 = vadd.f32 %v3946, %v4042
        %v4139 = vadd.f32 %v3947, %v4043
        %v4140 = vadd.f32 %v3948, %v4044
        %v4141 = vadd.f32 %v3949, %v4045
        %v4142 = vadd.f32 %v3950, %v4046
        %v4143 = vadd.f32 %v3951, %v4047
        %v4144 = vadd.f32 %v3952, %v4048
        %v4145 = vadd.f32 %v3953, %v4049
        %v4146 = vadd.f32 %v3954, %v4050
        %v4147 = vadd.f32 %v3955, %v4051
        %v4148 = vadd.f32 %v3956, %v4052
        %v4149 = vadd.f32 %v3957, %v4053
        %v4150 = vadd.f32 %v3958, %v4054
        %v4151 = vadd.f32 %v3959, %v4055
        %v4152 = vadd.f32 %v3960, %v4056
        %v4153 = vadd.f32 %v3961, %v4057
        %v4154 = vadd.f32 %v3962, %v4058
        %v4155 = vadd.f32 %v3963, %v4059
        %v4156 = vadd.f32 %v3964, %v4060
        %v4157 = vadd.f32 %v3965, %v4061
        %v4158 = vadd.f32 %v3966, %v4062
        %v4159 = vadd.f32 %v3967, %v4063
        %v4160 = vadd.f32 %v3968, %v4064
        %v4161 = vadd.f32 %v3969, %v4065
        %v4162 = vadd.f32 %v3970, %v4066
        %v4163 = vadd.f32 %v3971, %v4067
        %v4164 = vadd.f32 %v3972, %v4068
        %v4165 = vadd.f32 %v3973, %v4069
        %v4166 = vadd.f32 %v3974, %v4070
        %v4167 = vadd.f32 %v3975, %v4071
        %v4168 = vadd.f32 %v3976, %v4072
        %v4169 = vadd.f32 %v3977, %v4073
        %v4170 = vadd.f32 %v3978, %v4074
        %v4171 = vadd.f32 %v3979, %v4075
        %v4172 = vadd.f32 %v3980, %v4076
        %v4173 = vadd.f32 %v3981, %v4077
        %v4174 = vadd.f32 %v3982, %v4078
        %v4175 = vadd.f32 %v3983, %v4079
        %v4176 = vrsqrt.pop %v4080
        %v4177 = vmul.f32 %v4176, %v4080
        %v4178 = vmul.f32 %v4177, %v4176
        %v4179 = vmul.f32 0.5, %v4178
        %v4180 = vsub.f32 1.5, %v4179
        %v4181 = vmul.f32 %v4176, %v4180
        %v4182 = vmul.f32 %v4080, %v4181
        %vm4183 = vcmp.eq.f32.partialorder %v4080, inf
        %v4184 = vsel %vm4183, %v4080, %v4182
        %vm4185 = vcmp.eq.f32.partialorder %v4080, 0.0
        %v4186 = vand.u32 %v4080, 2147483648
        %v4187 = vsel %vm4185, %v4186, %v4184
        %v4188 = vrsqrt.pop %v4081
        %v4189 = vmul.f32 %v4188, %v4081
        %v4190 = vmul.f32 %v4189, %v4188
        %v4191 = vmul.f32 0.5, %v4190
        %v4192 = vsub.f32 1.5, %v4191
        %v4193 = vmul.f32 %v4188, %v4192
        %v4194 = vmul.f32 %v4081, %v4193
        %vm4195 = vcmp.eq.f32.partialorder %v4081, inf
        %v4196 = vsel %vm4195, %v4081, %v4194
        %vm4197 = vcmp.eq.f32.partialorder %v4081, 0.0
        %v4198 = vand.u32 %v4081, 2147483648
        %v4199 = vsel %vm4197, %v4198, %v4196
        %v4200 = vrsqrt.pop %v4082
        %v4201 = vmul.f32 %v4200, %v4082
        %v4202 = vmul.f32 %v4201, %v4200
        %v4203 = vmul.f32 0.5, %v4202
        %v4204 = vsub.f32 1.5, %v4203
        %v4205 = vmul.f32 %v4200, %v4204
        %v4206 = vmul.f32 %v4082, %v4205
        %vm4207 = vcmp.eq.f32.partialorder %v4082, inf
        %v4208 = vsel %vm4207, %v4082, %v4206
        %vm4209 = vcmp.eq.f32.partialorder %v4082, 0.0
        %v4210 = vand.u32 %v4082, 2147483648
        %v4211 = vsel %vm4209, %v4210, %v4208
        %v4212 = vrsqrt.pop %v4083
        %v4213 = vmul.f32 %v4212, %v4083
        %v4214 = vmul.f32 %v4213, %v4212
        %v4215 = vmul.f32 0.5, %v4214
        %v4216 = vsub.f32 1.5, %v4215
        %v4217 = vmul.f32 %v4212, %v4216
        %v4218 = vmul.f32 %v4083, %v4217
        %vm4219 = vcmp.eq.f32.partialorder %v4083, inf
        %v4220 = vsel %vm4219, %v4083, %v4218
        %vm4221 = vcmp.eq.f32.partialorder %v4083, 0.0
        %v4222 = vand.u32 %v4083, 2147483648
        %v4223 = vsel %vm4221, %v4222, %v4220
        %v4224 = vrsqrt.pop %v4084
        %v4225 = vmul.f32 %v4224, %v4084
        %v4226 = vmul.f32 %v4225, %v4224
        %v4227 = vmul.f32 0.5, %v4226
        %v4228 = vsub.f32 1.5, %v4227
        %v4229 = vmul.f32 %v4224, %v4228
        %v4230 = vmul.f32 %v4084, %v4229
        %vm4231 = vcmp.eq.f32.partialorder %v4084, inf
        %v4232 = vsel %vm4231, %v4084, %v4230
        %vm4233 = vcmp.eq.f32.partialorder %v4084, 0.0
        %v4234 = vand.u32 %v4084, 2147483648
        %v4235 = vsel %vm4233, %v4234, %v4232
        %v4236 = vrsqrt.pop %v4085
        %v4237 = vmul.f32 %v4236, %v4085
        %v4238 = vmul.f32 %v4237, %v4236
        %v4239 = vmul.f32 0.5, %v4238
        %v4240 = vsub.f32 1.5, %v4239
        %v4241 = vmul.f32 %v4236, %v4240
        %v4242 = vmul.f32 %v4085, %v4241
        %vm4243 = vcmp.eq.f32.partialorder %v4085, inf
        %v4244 = vsel %vm4243, %v4085, %v4242
        %vm4245 = vcmp.eq.f32.partialorder %v4085, 0.0
        %v4246 = vand.u32 %v4085, 2147483648
        %v4247 = vsel %vm4245, %v4246, %v4244
        %v4248 = vrsqrt.pop %v4086
        %v4249 = vmul.f32 %v4248, %v4086
        %v4250 = vmul.f32 %v4249, %v4248
        %v4251 = vmul.f32 0.5, %v4250
        %v4252 = vsub.f32 1.5, %v4251
        %v4253 = vmul.f32 %v4248, %v4252
        %v4254 = vmul.f32 %v4086, %v4253
        %vm4255 = vcmp.eq.f32.partialorder %v4086, inf
        %v4256 = vsel %vm4255, %v4086, %v4254
        %vm4257 = vcmp.eq.f32.partialorder %v4086, 0.0
        %v4258 = vand.u32 %v4086, 2147483648
        %v4259 = vsel %vm4257, %v4258, %v4256
        %v4260 = vrsqrt.pop %v4087
        %v4261 = vmul.f32 %v4260, %v4087
        %v4262 = vmul.f32 %v4261, %v4260
        %v4263 = vmul.f32 0.5, %v4262
        %v4264 = vsub.f32 1.5, %v4263
        %v4265 = vmul.f32 %v4260, %v4264
        %v4266 = vmul.f32 %v4087, %v4265
        %vm4267 = vcmp.eq.f32.partialorder %v4087, inf
        %v4268 = vsel %vm4267, %v4087, %v4266
        %vm4269 = vcmp.eq.f32.partialorder %v4087, 0.0
        %v4270 = vand.u32 %v4087, 2147483648
        %v4271 = vsel %vm4269, %v4270, %v4268
        %v4272 = vrsqrt.pop %v4088
        %v4273 = vmul.f32 %v4272, %v4088
        %v4274 = vmul.f32 %v4273, %v4272
        %v4275 = vmul.f32 0.5, %v4274
        %v4276 = vsub.f32 1.5, %v4275
        %v4277 = vmul.f32 %v4272, %v4276
        %v4278 = vmul.f32 %v4088, %v4277
        %vm4279 = vcmp.eq.f32.partialorder %v4088, inf
        %v4280 = vsel %vm4279, %v4088, %v4278
        %vm4281 = vcmp.eq.f32.partialorder %v4088, 0.0
        %v4282 = vand.u32 %v4088, 2147483648
        %v4283 = vsel %vm4281, %v4282, %v4280
        %v4284 = vrsqrt.pop %v4089
        %v4285 = vmul.f32 %v4284, %v4089
        %v4286 = vmul.f32 %v4285, %v4284
        %v4287 = vmul.f32 0.5, %v4286
        %v4288 = vsub.f32 1.5, %v4287
        %v4289 = vmul.f32 %v4284, %v4288
        %v4290 = vmul.f32 %v4089, %v4289
        %vm4291 = vcmp.eq.f32.partialorder %v4089, inf
        %v4292 = vsel %vm4291, %v4089, %v4290
        %vm4293 = vcmp.eq.f32.partialorder %v4089, 0.0
        %v4294 = vand.u32 %v4089, 2147483648
        %v4295 = vsel %vm4293, %v4294, %v4292
        %v4296 = vrsqrt.pop %v4090
        %v4297 = vmul.f32 %v4296, %v4090
        %v4298 = vmul.f32 %v4297, %v4296
        %v4299 = vmul.f32 0.5, %v4298
        %v4300 = vsub.f32 1.5, %v4299
        %v4301 = vmul.f32 %v4296, %v4300
        %v4302 = vmul.f32 %v4090, %v4301
        %vm4303 = vcmp.eq.f32.partialorder %v4090, inf
        %v4304 = vsel %vm4303, %v4090, %v4302
        %vm4305 = vcmp.eq.f32.partialorder %v4090, 0.0
        %v4306 = vand.u32 %v4090, 2147483648
        %v4307 = vsel %vm4305, %v4306, %v4304
        %v4308 = vrsqrt.pop %v4091
        %v4309 = vmul.f32 %v4308, %v4091
        %v4310 = vmul.f32 %v4309, %v4308
        %v4311 = vmul.f32 0.5, %v4310
        %v4312 = vsub.f32 1.5, %v4311
        %v4313 = vmul.f32 %v4308, %v4312
        %v4314 = vmul.f32 %v4091, %v4313
        %vm4315 = vcmp.eq.f32.partialorder %v4091, inf
        %v4316 = vsel %vm4315, %v4091, %v4314
        %vm4317 = vcmp.eq.f32.partialorder %v4091, 0.0
        %v4318 = vand.u32 %v4091, 2147483648
        %v4319 = vsel %vm4317, %v4318, %v4316
        %v4320 = vrsqrt.pop %v4092
        %v4321 = vmul.f32 %v4320, %v4092
        %v4322 = vmul.f32 %v4321, %v4320
        %v4323 = vmul.f32 0.5, %v4322
        %v4324 = vsub.f32 1.5, %v4323
        %v4325 = vmul.f32 %v4320, %v4324
        %v4326 = vmul.f32 %v4092, %v4325
        %vm4327 = vcmp.eq.f32.partialorder %v4092, inf
        %v4328 = vsel %vm4327, %v4092, %v4326
        %vm4329 = vcmp.eq.f32.partialorder %v4092, 0.0
        %v4330 = vand.u32 %v4092, 2147483648
        %v4331 = vsel %vm4329, %v4330, %v4328
        %v4332 = vrsqrt.pop %v4093
        %v4333 = vmul.f32 %v4332, %v4093
        %v4334 = vmul.f32 %v4333, %v4332
        %v4335 = vmul.f32 0.5, %v4334
        %v4336 = vsub.f32 1.5, %v4335
        %v4337 = vmul.f32 %v4332, %v4336
        %v4338 = vmul.f32 %v4093, %v4337
        %vm4339 = vcmp.eq.f32.partialorder %v4093, inf
        %v4340 = vsel %vm4339, %v4093, %v4338
        %vm4341 = vcmp.eq.f32.partialorder %v4093, 0.0
        %v4342 = vand.u32 %v4093, 2147483648
        %v4343 = vsel %vm4341, %v4342, %v4340
        %v4344 = vrsqrt.pop %v4094
        %v4345 = vmul.f32 %v4344, %v4094
        %v4346 = vmul.f32 %v4345, %v4344
        %v4347 = vmul.f32 0.5, %v4346
        %v4348 = vsub.f32 1.5, %v4347
        %v4349 = vmul.f32 %v4344, %v4348
        %v4350 = vmul.f32 %v4094, %v4349
        %vm4351 = vcmp.eq.f32.partialorder %v4094, inf
        %v4352 = vsel %vm4351, %v4094, %v4350
        %vm4353 = vcmp.eq.f32.partialorder %v4094, 0.0
        %v4354 = vand.u32 %v4094, 2147483648
        %v4355 = vsel %vm4353, %v4354, %v4352
        %v4356 = vrsqrt.pop %v4095
        %v4357 = vmul.f32 %v4356, %v4095
        %v4358 = vmul.f32 %v4357, %v4356
        %v4359 = vmul.f32 0.5, %v4358
        %v4360 = vsub.f32 1.5, %v4359
        %v4361 = vmul.f32 %v4356, %v4360
        %v4362 = vmul.f32 %v4095, %v4361
        %vm4363 = vcmp.eq.f32.partialorder %v4095, inf
        %v4364 = vsel %vm4363, %v4095, %v4362
        %vm4365 = vcmp.eq.f32.partialorder %v4095, 0.0
        %v4366 = vand.u32 %v4095, 2147483648
        %v4367 = vsel %vm4365, %v4366, %v4364
        %v4368 = vrsqrt.pop %v4096
        %v4369 = vmul.f32 %v4368, %v4096
        %v4370 = vmul.f32 %v4369, %v4368
        %v4371 = vmul.f32 0.5, %v4370
        %v4372 = vsub.f32 1.5, %v4371
        %v4373 = vmul.f32 %v4368, %v4372
        %v4374 = vmul.f32 %v4096, %v4373
        %vm4375 = vcmp.eq.f32.partialorder %v4096, inf
        %v4376 = vsel %vm4375, %v4096, %v4374
        %vm4377 = vcmp.eq.f32.partialorder %v4096, 0.0
        %v4378 = vand.u32 %v4096, 2147483648
        %v4379 = vsel %vm4377, %v4378, %v4376
        %v4380 = vrsqrt.pop %v4097
        %v4381 = vmul.f32 %v4380, %v4097
        %v4382 = vmul.f32 %v4381, %v4380
        %v4383 = vmul.f32 0.5, %v4382
        %v4384 = vsub.f32 1.5, %v4383
        %v4385 = vmul.f32 %v4380, %v4384
        %v4386 = vmul.f32 %v4097, %v4385
        %vm4387 = vcmp.eq.f32.partialorder %v4097, inf
        %v4388 = vsel %vm4387, %v4097, %v4386
        %vm4389 = vcmp.eq.f32.partialorder %v4097, 0.0
        %v4390 = vand.u32 %v4097, 2147483648
        %v4391 = vsel %vm4389, %v4390, %v4388
        %v4392 = vrsqrt.pop %v4098
        %v4393 = vmul.f32 %v4392, %v4098
        %v4394 = vmul.f32 %v4393, %v4392
        %v4395 = vmul.f32 0.5, %v4394
        %v4396 = vsub.f32 1.5, %v4395
        %v4397 = vmul.f32 %v4392, %v4396
        %v4398 = vmul.f32 %v4098, %v4397
        %vm4399 = vcmp.eq.f32.partialorder %v4098, inf
        %v4400 = vsel %vm4399, %v4098, %v4398
        %vm4401 = vcmp.eq.f32.partialorder %v4098, 0.0
        %v4402 = vand.u32 %v4098, 2147483648
        %v4403 = vsel %vm4401, %v4402, %v4400
        %v4404 = vrsqrt.pop %v4099
        %v4405 = vmul.f32 %v4404, %v4099
        %v4406 = vmul.f32 %v4405, %v4404
        %v4407 = vmul.f32 0.5, %v4406
        %v4408 = vsub.f32 1.5, %v4407
        %v4409 = vmul.f32 %v4404, %v4408
        %v4410 = vmul.f32 %v4099, %v4409
        %vm4411 = vcmp.eq.f32.partialorder %v4099, inf
        %v4412 = vsel %vm4411, %v4099, %v4410
        %vm4413 = vcmp.eq.f32.partialorder %v4099, 0.0
        %v4414 = vand.u32 %v4099, 2147483648
        %v4415 = vsel %vm4413, %v4414, %v4412
        %v4416 = vrsqrt.pop %v4100
        %v4417 = vmul.f32 %v4416, %v4100
        %v4418 = vmul.f32 %v4417, %v4416
        %v4419 = vmul.f32 0.5, %v4418
        %v4420 = vsub.f32 1.5, %v4419
        %v4421 = vmul.f32 %v4416, %v4420
        %v4422 = vmul.f32 %v4100, %v4421
        %vm4423 = vcmp.eq.f32.partialorder %v4100, inf
        %v4424 = vsel %vm4423, %v4100, %v4422
        %vm4425 = vcmp.eq.f32.partialorder %v4100, 0.0
        %v4426 = vand.u32 %v4100, 2147483648
        %v4427 = vsel %vm4425, %v4426, %v4424
        %v4428 = vrsqrt.pop %v4101
        %v4429 = vmul.f32 %v4428, %v4101
        %v4430 = vmul.f32 %v4429, %v4428
        %v4431 = vmul.f32 0.5, %v4430
        %v4432 = vsub.f32 1.5, %v4431
        %v4433 = vmul.f32 %v4428, %v4432
        %v4434 = vmul.f32 %v4101, %v4433
        %vm4435 = vcmp.eq.f32.partialorder %v4101, inf
        %v4436 = vsel %vm4435, %v4101, %v4434
        %vm4437 = vcmp.eq.f32.partialorder %v4101, 0.0
        %v4438 = vand.u32 %v4101, 2147483648
        %v4439 = vsel %vm4437, %v4438, %v4436
        %v4440 = vrsqrt.pop %v4102
        %v4441 = vmul.f32 %v4440, %v4102
        %v4442 = vmul.f32 %v4441, %v4440
        %v4443 = vmul.f32 0.5, %v4442
        %v4444 = vsub.f32 1.5, %v4443
        %v4445 = vmul.f32 %v4440, %v4444
        %v4446 = vmul.f32 %v4102, %v4445
        %vm4447 = vcmp.eq.f32.partialorder %v4102, inf
        %v4448 = vsel %vm4447, %v4102, %v4446
        %vm4449 = vcmp.eq.f32.partialorder %v4102, 0.0
        %v4450 = vand.u32 %v4102, 2147483648
        %v4451 = vsel %vm4449, %v4450, %v4448
        %v4452 = vrsqrt.pop %v4103
        %v4453 = vmul.f32 %v4452, %v4103
        %v4454 = vmul.f32 %v4453, %v4452
        %v4455 = vmul.f32 0.5, %v4454
        %v4456 = vsub.f32 1.5, %v4455
        %v4457 = vmul.f32 %v4452, %v4456
        %v4458 = vmul.f32 %v4103, %v4457
        %vm4459 = vcmp.eq.f32.partialorder %v4103, inf
        %v4460 = vsel %vm4459, %v4103, %v4458
        %vm4461 = vcmp.eq.f32.partialorder %v4103, 0.0
        %v4462 = vand.u32 %v4103, 2147483648
        %v4463 = vsel %vm4461, %v4462, %v4460
        %v4464 = vrsqrt.pop %v4104
        %v4465 = vmul.f32 %v4464, %v4104
        %v4466 = vmul.f32 %v4465, %v4464
        %v4467 = vmul.f32 0.5, %v4466
        %v4468 = vsub.f32 1.5, %v4467
        %v4469 = vmul.f32 %v4464, %v4468
        %v4470 = vmul.f32 %v4104, %v4469
        %vm4471 = vcmp.eq.f32.partialorder %v4104, inf
        %v4472 = vsel %vm4471, %v4104, %v4470
        %vm4473 = vcmp.eq.f32.partialorder %v4104, 0.0
        %v4474 = vand.u32 %v4104, 2147483648
        %v4475 = vsel %vm4473, %v4474, %v4472
        %v4476 = vrsqrt.pop %v4105
        %v4477 = vmul.f32 %v4476, %v4105
        %v4478 = vmul.f32 %v4477, %v4476
        %v4479 = vmul.f32 0.5, %v4478
        %v4480 = vsub.f32 1.5, %v4479
        %v4481 = vmul.f32 %v4476, %v4480
        %v4482 = vmul.f32 %v4105, %v4481
        %vm4483 = vcmp.eq.f32.partialorder %v4105, inf
        %v4484 = vsel %vm4483, %v4105, %v4482
        %vm4485 = vcmp.eq.f32.partialorder %v4105, 0.0
        %v4486 = vand.u32 %v4105, 2147483648
        %v4487 = vsel %vm4485, %v4486, %v4484
        %v4488 = vrsqrt.pop %v4106
        %v4489 = vmul.f32 %v4488, %v4106
        %v4490 = vmul.f32 %v4489, %v4488
        %v4491 = vmul.f32 0.5, %v4490
        %v4492 = vsub.f32 1.5, %v4491
        %v4493 = vmul.f32 %v4488, %v4492
        %v4494 = vmul.f32 %v4106, %v4493
        %vm4495 = vcmp.eq.f32.partialorder %v4106, inf
        %v4496 = vsel %vm4495, %v4106, %v4494
        %vm4497 = vcmp.eq.f32.partialorder %v4106, 0.0
        %v4498 = vand.u32 %v4106, 2147483648
        %v4499 = vsel %vm4497, %v4498, %v4496
        %v4500 = vrsqrt.pop %v4107
        %v4501 = vmul.f32 %v4500, %v4107
        %v4502 = vmul.f32 %v4501, %v4500
        %v4503 = vmul.f32 0.5, %v4502
        %v4504 = vsub.f32 1.5, %v4503
        %v4505 = vmul.f32 %v4500, %v4504
        %v4506 = vmul.f32 %v4107, %v4505
        %vm4507 = vcmp.eq.f32.partialorder %v4107, inf
        %v4508 = vsel %vm4507, %v4107, %v4506
        %vm4509 = vcmp.eq.f32.partialorder %v4107, 0.0
        %v4510 = vand.u32 %v4107, 2147483648
        %v4511 = vsel %vm4509, %v4510, %v4508
        %v4512 = vrsqrt.pop %v4108
        %v4513 = vmul.f32 %v4512, %v4108
        %v4514 = vmul.f32 %v4513, %v4512
        %v4515 = vmul.f32 0.5, %v4514
        %v4516 = vsub.f32 1.5, %v4515
        %v4517 = vmul.f32 %v4512, %v4516
        %v4518 = vmul.f32 %v4108, %v4517
        %vm4519 = vcmp.eq.f32.partialorder %v4108, inf
        %v4520 = vsel %vm4519, %v4108, %v4518
        %vm4521 = vcmp.eq.f32.partialorder %v4108, 0.0
        %v4522 = vand.u32 %v4108, 2147483648
        %v4523 = vsel %vm4521, %v4522, %v4520
        %v4524 = vrsqrt.pop %v4109
        %v4525 = vmul.f32 %v4524, %v4109
        %v4526 = vmul.f32 %v4525, %v4524
        %v4527 = vmul.f32 0.5, %v4526
        %v4528 = vsub.f32 1.5, %v4527
        %v4529 = vmul.f32 %v4524, %v4528
        %v4530 = vmul.f32 %v4109, %v4529
        %vm4531 = vcmp.eq.f32.partialorder %v4109, inf
        %v4532 = vsel %vm4531, %v4109, %v4530
        %vm4533 = vcmp.eq.f32.partialorder %v4109, 0.0
        %v4534 = vand.u32 %v4109, 2147483648
        %v4535 = vsel %vm4533, %v4534, %v4532
        %v4536 = vrsqrt.pop %v4110
        %v4537 = vmul.f32 %v4536, %v4110
        %v4538 = vmul.f32 %v4537, %v4536
        %v4539 = vmul.f32 0.5, %v4538
        %v4540 = vsub.f32 1.5, %v4539
        %v4541 = vmul.f32 %v4536, %v4540
        %v4542 = vmul.f32 %v4110, %v4541
        %vm4543 = vcmp.eq.f32.partialorder %v4110, inf
        %v4544 = vsel %vm4543, %v4110, %v4542
        %vm4545 = vcmp.eq.f32.partialorder %v4110, 0.0
        %v4546 = vand.u32 %v4110, 2147483648
        %v4547 = vsel %vm4545, %v4546, %v4544
        %v4548 = vrsqrt.pop %v4111
        %v4549 = vmul.f32 %v4548, %v4111
        %v4550 = vmul.f32 %v4549, %v4548
        %v4551 = vmul.f32 0.5, %v4550
        %v4552 = vsub.f32 1.5, %v4551
        %v4553 = vmul.f32 %v4548, %v4552
        %v4554 = vmul.f32 %v4111, %v4553
        %vm4555 = vcmp.eq.f32.partialorder %v4111, inf
        %v4556 = vsel %vm4555, %v4111, %v4554
        %vm4557 = vcmp.eq.f32.partialorder %v4111, 0.0
        %v4558 = vand.u32 %v4111, 2147483648
        %v4559 = vsel %vm4557, %v4558, %v4556
        %v4560 = vrsqrt.pop %v4112
        %v4561 = vmul.f32 %v4560, %v4112
        %v4562 = vmul.f32 %v4561, %v4560
        %v4563 = vmul.f32 0.5, %v4562
        %v4564 = vsub.f32 1.5, %v4563
        %v4565 = vmul.f32 %v4560, %v4564
        %v4566 = vmul.f32 %v4112, %v4565
        %vm4567 = vcmp.eq.f32.partialorder %v4112, inf
        %v4568 = vsel %vm4567, %v4112, %v4566
        %vm4569 = vcmp.eq.f32.partialorder %v4112, 0.0
        %v4570 = vand.u32 %v4112, 2147483648
        %v4571 = vsel %vm4569, %v4570, %v4568
        %v4572 = vrsqrt.pop %v4113
        %v4573 = vmul.f32 %v4572, %v4113
        %v4574 = vmul.f32 %v4573, %v4572
        %v4575 = vmul.f32 0.5, %v4574
        %v4576 = vsub.f32 1.5, %v4575
        %v4577 = vmul.f32 %v4572, %v4576
        %v4578 = vmul.f32 %v4113, %v4577
        %vm4579 = vcmp.eq.f32.partialorder %v4113, inf
        %v4580 = vsel %vm4579, %v4113, %v4578
        %vm4581 = vcmp.eq.f32.partialorder %v4113, 0.0
        %v4582 = vand.u32 %v4113, 2147483648
        %v4583 = vsel %vm4581, %v4582, %v4580
        %v4584 = vrsqrt.pop %v4114
        %v4585 = vmul.f32 %v4584, %v4114
        %v4586 = vmul.f32 %v4585, %v4584
        %v4587 = vmul.f32 0.5, %v4586
        %v4588 = vsub.f32 1.5, %v4587
        %v4589 = vmul.f32 %v4584, %v4588
        %v4590 = vmul.f32 %v4114, %v4589
        %vm4591 = vcmp.eq.f32.partialorder %v4114, inf
        %v4592 = vsel %vm4591, %v4114, %v4590
        %vm4593 = vcmp.eq.f32.partialorder %v4114, 0.0
        %v4594 = vand.u32 %v4114, 2147483648
        %v4595 = vsel %vm4593, %v4594, %v4592
        %v4596 = vrsqrt.pop %v4115
        %v4597 = vmul.f32 %v4596, %v4115
        %v4598 = vmul.f32 %v4597, %v4596
        %v4599 = vmul.f32 0.5, %v4598
        %v4600 = vsub.f32 1.5, %v4599
        %v4601 = vmul.f32 %v4596, %v4600
        %v4602 = vmul.f32 %v4115, %v4601
        %vm4603 = vcmp.eq.f32.partialorder %v4115, inf
        %v4604 = vsel %vm4603, %v4115, %v4602
        %vm4605 = vcmp.eq.f32.partialorder %v4115, 0.0
        %v4606 = vand.u32 %v4115, 2147483648
        %v4607 = vsel %vm4605, %v4606, %v4604
        %v4608 = vrsqrt.pop %v4116
        %v4609 = vmul.f32 %v4608, %v4116
        %v4610 = vmul.f32 %v4609, %v4608
        %v4611 = vmul.f32 0.5, %v4610
        %v4612 = vsub.f32 1.5, %v4611
        %v4613 = vmul.f32 %v4608, %v4612
        %v4614 = vmul.f32 %v4116, %v4613
        %vm4615 = vcmp.eq.f32.partialorder %v4116, inf
        %v4616 = vsel %vm4615, %v4116, %v4614
        %vm4617 = vcmp.eq.f32.partialorder %v4116, 0.0
        %v4618 = vand.u32 %v4116, 2147483648
        %v4619 = vsel %vm4617, %v4618, %v4616
        %v4620 = vrsqrt.pop %v4117
        %v4621 = vmul.f32 %v4620, %v4117
        %v4622 = vmul.f32 %v4621, %v4620
        %v4623 = vmul.f32 0.5, %v4622
        %v4624 = vsub.f32 1.5, %v4623
        %v4625 = vmul.f32 %v4620, %v4624
        %v4626 = vmul.f32 %v4117, %v4625
        %vm4627 = vcmp.eq.f32.partialorder %v4117, inf
        %v4628 = vsel %vm4627, %v4117, %v4626
        %vm4629 = vcmp.eq.f32.partialorder %v4117, 0.0
        %v4630 = vand.u32 %v4117, 2147483648
        %v4631 = vsel %vm4629, %v4630, %v4628
        %v4632 = vrsqrt.pop %v4118
        %v4633 = vmul.f32 %v4632, %v4118
        %v4634 = vmul.f32 %v4633, %v4632
        %v4635 = vmul.f32 0.5, %v4634
        %v4636 = vsub.f32 1.5, %v4635
        %v4637 = vmul.f32 %v4632, %v4636
        %v4638 = vmul.f32 %v4118, %v4637
        %vm4639 = vcmp.eq.f32.partialorder %v4118, inf
        %v4640 = vsel %vm4639, %v4118, %v4638
        %vm4641 = vcmp.eq.f32.partialorder %v4118, 0.0
        %v4642 = vand.u32 %v4118, 2147483648
        %v4643 = vsel %vm4641, %v4642, %v4640
        %v4644 = vrsqrt.pop %v4119
        %v4645 = vmul.f32 %v4644, %v4119
        %v4646 = vmul.f32 %v4645, %v4644
        %v4647 = vmul.f32 0.5, %v4646
        %v4648 = vsub.f32 1.5, %v4647
        %v4649 = vmul.f32 %v4644, %v4648
        %v4650 = vmul.f32 %v4119, %v4649
        %vm4651 = vcmp.eq.f32.partialorder %v4119, inf
        %v4652 = vsel %vm4651, %v4119, %v4650
        %vm4653 = vcmp.eq.f32.partialorder %v4119, 0.0
        %v4654 = vand.u32 %v4119, 2147483648
        %v4655 = vsel %vm4653, %v4654, %v4652
        %v4656 = vrsqrt.pop %v4120
        %v4657 = vmul.f32 %v4656, %v4120
        %v4658 = vmul.f32 %v4657, %v4656
        %v4659 = vmul.f32 0.5, %v4658
        %v4660 = vsub.f32 1.5, %v4659
        %v4661 = vmul.f32 %v4656, %v4660
        %v4662 = vmul.f32 %v4120, %v4661
        %vm4663 = vcmp.eq.f32.partialorder %v4120, inf
        %v4664 = vsel %vm4663, %v4120, %v4662
        %vm4665 = vcmp.eq.f32.partialorder %v4120, 0.0
        %v4666 = vand.u32 %v4120, 2147483648
        %v4667 = vsel %vm4665, %v4666, %v4664
        %v4668 = vrsqrt.pop %v4121
        %v4669 = vmul.f32 %v4668, %v4121
        %v4670 = vmul.f32 %v4669, %v4668
        %v4671 = vmul.f32 0.5, %v4670
        %v4672 = vsub.f32 1.5, %v4671
        %v4673 = vmul.f32 %v4668, %v4672
        %v4674 = vmul.f32 %v4121, %v4673
        %vm4675 = vcmp.eq.f32.partialorder %v4121, inf
        %v4676 = vsel %vm4675, %v4121, %v4674
        %vm4677 = vcmp.eq.f32.partialorder %v4121, 0.0
        %v4678 = vand.u32 %v4121, 2147483648
        %v4679 = vsel %vm4677, %v4678, %v4676
        %v4680 = vrsqrt.pop %v4122
        %v4681 = vmul.f32 %v4680, %v4122
        %v4682 = vmul.f32 %v4681, %v4680
        %v4683 = vmul.f32 0.5, %v4682
        %v4684 = vsub.f32 1.5, %v4683
        %v4685 = vmul.f32 %v4680, %v4684
        %v4686 = vmul.f32 %v4122, %v4685
        %vm4687 = vcmp.eq.f32.partialorder %v4122, inf
        %v4688 = vsel %vm4687, %v4122, %v4686
        %vm4689 = vcmp.eq.f32.partialorder %v4122, 0.0
        %v4690 = vand.u32 %v4122, 2147483648
        %v4691 = vsel %vm4689, %v4690, %v4688
        %v4692 = vrsqrt.pop %v4123
        %v4693 = vmul.f32 %v4692, %v4123
        %v4694 = vmul.f32 %v4693, %v4692
        %v4695 = vmul.f32 0.5, %v4694
        %v4696 = vsub.f32 1.5, %v4695
        %v4697 = vmul.f32 %v4692, %v4696
        %v4698 = vmul.f32 %v4123, %v4697
        %vm4699 = vcmp.eq.f32.partialorder %v4123, inf
        %v4700 = vsel %vm4699, %v4123, %v4698
        %vm4701 = vcmp.eq.f32.partialorder %v4123, 0.0
        %v4702 = vand.u32 %v4123, 2147483648
        %v4703 = vsel %vm4701, %v4702, %v4700
        %v4704 = vrsqrt.pop %v4124
        %v4705 = vmul.f32 %v4704, %v4124
        %v4706 = vmul.f32 %v4705, %v4704
        %v4707 = vmul.f32 0.5, %v4706
        %v4708 = vsub.f32 1.5, %v4707
        %v4709 = vmul.f32 %v4704, %v4708
        %v4710 = vmul.f32 %v4124, %v4709
        %vm4711 = vcmp.eq.f32.partialorder %v4124, inf
        %v4712 = vsel %vm4711, %v4124, %v4710
        %vm4713 = vcmp.eq.f32.partialorder %v4124, 0.0
        %v4714 = vand.u32 %v4124, 2147483648
        %v4715 = vsel %vm4713, %v4714, %v4712
        %v4716 = vrsqrt.pop %v4125
        %v4717 = vmul.f32 %v4716, %v4125
        %v4718 = vmul.f32 %v4717, %v4716
        %v4719 = vmul.f32 0.5, %v4718
        %v4720 = vsub.f32 1.5, %v4719
        %v4721 = vmul.f32 %v4716, %v4720
        %v4722 = vmul.f32 %v4125, %v4721
        %vm4723 = vcmp.eq.f32.partialorder %v4125, inf
        %v4724 = vsel %vm4723, %v4125, %v4722
        %vm4725 = vcmp.eq.f32.partialorder %v4125, 0.0
        %v4726 = vand.u32 %v4125, 2147483648
        %v4727 = vsel %vm4725, %v4726, %v4724
        %v4728 = vrsqrt.pop %v4126
        %v4729 = vmul.f32 %v4728, %v4126
        %v4730 = vmul.f32 %v4729, %v4728
        %v4731 = vmul.f32 0.5, %v4730
        %v4732 = vsub.f32 1.5, %v4731
        %v4733 = vmul.f32 %v4728, %v4732
        %v4734 = vmul.f32 %v4126, %v4733
        %vm4735 = vcmp.eq.f32.partialorder %v4126, inf
        %v4736 = vsel %vm4735, %v4126, %v4734
        %vm4737 = vcmp.eq.f32.partialorder %v4126, 0.0
        %v4738 = vand.u32 %v4126, 2147483648
        %v4739 = vsel %vm4737, %v4738, %v4736
        %v4740 = vrsqrt.pop %v4127
        %v4741 = vmul.f32 %v4740, %v4127
        %v4742 = vmul.f32 %v4741, %v4740
        %v4743 = vmul.f32 0.5, %v4742
        %v4744 = vsub.f32 1.5, %v4743
        %v4745 = vmul.f32 %v4740, %v4744
        %v4746 = vmul.f32 %v4127, %v4745
        %vm4747 = vcmp.eq.f32.partialorder %v4127, inf
        %v4748 = vsel %vm4747, %v4127, %v4746
        %vm4749 = vcmp.eq.f32.partialorder %v4127, 0.0
        %v4750 = vand.u32 %v4127, 2147483648
        %v4751 = vsel %vm4749, %v4750, %v4748
        %v4752 = vrsqrt.pop %v4128
        %v4753 = vmul.f32 %v4752, %v4128
        %v4754 = vmul.f32 %v4753, %v4752
        %v4755 = vmul.f32 0.5, %v4754
        %v4756 = vsub.f32 1.5, %v4755
        %v4757 = vmul.f32 %v4752, %v4756
        %v4758 = vmul.f32 %v4128, %v4757
        %vm4759 = vcmp.eq.f32.partialorder %v4128, inf
        %v4760 = vsel %vm4759, %v4128, %v4758
        %vm4761 = vcmp.eq.f32.partialorder %v4128, 0.0
        %v4762 = vand.u32 %v4128, 2147483648
        %v4763 = vsel %vm4761, %v4762, %v4760
        %v4764 = vrsqrt.pop %v4129
        %v4765 = vmul.f32 %v4764, %v4129
        %v4766 = vmul.f32 %v4765, %v4764
        %v4767 = vmul.f32 0.5, %v4766
        %v4768 = vsub.f32 1.5, %v4767
        %v4769 = vmul.f32 %v4764, %v4768
        %v4770 = vmul.f32 %v4129, %v4769
        %vm4771 = vcmp.eq.f32.partialorder %v4129, inf
        %v4772 = vsel %vm4771, %v4129, %v4770
        %vm4773 = vcmp.eq.f32.partialorder %v4129, 0.0
        %v4774 = vand.u32 %v4129, 2147483648
        %v4775 = vsel %vm4773, %v4774, %v4772
        %v4776 = vrsqrt.pop %v4130
        %v4777 = vmul.f32 %v4776, %v4130
        %v4778 = vmul.f32 %v4777, %v4776
        %v4779 = vmul.f32 0.5, %v4778
        %v4780 = vsub.f32 1.5, %v4779
        %v4781 = vmul.f32 %v4776, %v4780
        %v4782 = vmul.f32 %v4130, %v4781
        %vm4783 = vcmp.eq.f32.partialorder %v4130, inf
        %v4784 = vsel %vm4783, %v4130, %v4782
        %vm4785 = vcmp.eq.f32.partialorder %v4130, 0.0
        %v4786 = vand.u32 %v4130, 2147483648
        %v4787 = vsel %vm4785, %v4786, %v4784
        %v4788 = vrsqrt.pop %v4131
        %v4789 = vmul.f32 %v4788, %v4131
        %v4790 = vmul.f32 %v4789, %v4788
        %v4791 = vmul.f32 0.5, %v4790
        %v4792 = vsub.f32 1.5, %v4791
        %v4793 = vmul.f32 %v4788, %v4792
        %v4794 = vmul.f32 %v4131, %v4793
        %vm4795 = vcmp.eq.f32.partialorder %v4131, inf
        %v4796 = vsel %vm4795, %v4131, %v4794
        %vm4797 = vcmp.eq.f32.partialorder %v4131, 0.0
        %v4798 = vand.u32 %v4131, 2147483648
        %v4799 = vsel %vm4797, %v4798, %v4796
        %v4800 = vrsqrt.pop %v4132
        %v4801 = vmul.f32 %v4800, %v4132
        %v4802 = vmul.f32 %v4801, %v4800
        %v4803 = vmul.f32 0.5, %v4802
        %v4804 = vsub.f32 1.5, %v4803
        %v4805 = vmul.f32 %v4800, %v4804
        %v4806 = vmul.f32 %v4132, %v4805
        %vm4807 = vcmp.eq.f32.partialorder %v4132, inf
        %v4808 = vsel %vm4807, %v4132, %v4806
        %vm4809 = vcmp.eq.f32.partialorder %v4132, 0.0
        %v4810 = vand.u32 %v4132, 2147483648
        %v4811 = vsel %vm4809, %v4810, %v4808
        %v4812 = vrsqrt.pop %v4133
        %v4813 = vmul.f32 %v4812, %v4133
        %v4814 = vmul.f32 %v4813, %v4812
        %v4815 = vmul.f32 0.5, %v4814
        %v4816 = vsub.f32 1.5, %v4815
        %v4817 = vmul.f32 %v4812, %v4816
        %v4818 = vmul.f32 %v4133, %v4817
        %vm4819 = vcmp.eq.f32.partialorder %v4133, inf
        %v4820 = vsel %vm4819, %v4133, %v4818
        %vm4821 = vcmp.eq.f32.partialorder %v4133, 0.0
        %v4822 = vand.u32 %v4133, 2147483648
        %v4823 = vsel %vm4821, %v4822, %v4820
        %v4824 = vrsqrt.pop %v4134
        %v4825 = vmul.f32 %v4824, %v4134
        %v4826 = vmul.f32 %v4825, %v4824
        %v4827 = vmul.f32 0.5, %v4826
        %v4828 = vsub.f32 1.5, %v4827
        %v4829 = vmul.f32 %v4824, %v4828
        %v4830 = vmul.f32 %v4134, %v4829
        %vm4831 = vcmp.eq.f32.partialorder %v4134, inf
        %v4832 = vsel %vm4831, %v4134, %v4830
        %vm4833 = vcmp.eq.f32.partialorder %v4134, 0.0
        %v4834 = vand.u32 %v4134, 2147483648
        %v4835 = vsel %vm4833, %v4834, %v4832
        %v4836 = vrsqrt.pop %v4135
        %v4837 = vmul.f32 %v4836, %v4135
        %v4838 = vmul.f32 %v4837, %v4836
        %v4839 = vmul.f32 0.5, %v4838
        %v4840 = vsub.f32 1.5, %v4839
        %v4841 = vmul.f32 %v4836, %v4840
        %v4842 = vmul.f32 %v4135, %v4841
        %vm4843 = vcmp.eq.f32.partialorder %v4135, inf
        %v4844 = vsel %vm4843, %v4135, %v4842
        %vm4845 = vcmp.eq.f32.partialorder %v4135, 0.0
        %v4846 = vand.u32 %v4135, 2147483648
        %v4847 = vsel %vm4845, %v4846, %v4844
        %v4848 = vrsqrt.pop %v4136
        %v4849 = vmul.f32 %v4848, %v4136
        %v4850 = vmul.f32 %v4849, %v4848
        %v4851 = vmul.f32 0.5, %v4850
        %v4852 = vsub.f32 1.5, %v4851
        %v4853 = vmul.f32 %v4848, %v4852
        %v4854 = vmul.f32 %v4136, %v4853
        %vm4855 = vcmp.eq.f32.partialorder %v4136, inf
        %v4856 = vsel %vm4855, %v4136, %v4854
        %vm4857 = vcmp.eq.f32.partialorder %v4136, 0.0
        %v4858 = vand.u32 %v4136, 2147483648
        %v4859 = vsel %vm4857, %v4858, %v4856
        %v4860 = vrsqrt.pop %v4137
        %v4861 = vmul.f32 %v4860, %v4137
        %v4862 = vmul.f32 %v4861, %v4860
        %v4863 = vmul.f32 0.5, %v4862
        %v4864 = vsub.f32 1.5, %v4863
        %v4865 = vmul.f32 %v4860, %v4864
        %v4866 = vmul.f32 %v4137, %v4865
        %vm4867 = vcmp.eq.f32.partialorder %v4137, inf
        %v4868 = vsel %vm4867, %v4137, %v4866
        %vm4869 = vcmp.eq.f32.partialorder %v4137, 0.0
        %v4870 = vand.u32 %v4137, 2147483648
        %v4871 = vsel %vm4869, %v4870, %v4868
        %v4872 = vrsqrt.pop %v4138
        %v4873 = vmul.f32 %v4872, %v4138
        %v4874 = vmul.f32 %v4873, %v4872
        %v4875 = vmul.f32 0.5, %v4874
        %v4876 = vsub.f32 1.5, %v4875
        %v4877 = vmul.f32 %v4872, %v4876
        %v4878 = vmul.f32 %v4138, %v4877
        %vm4879 = vcmp.eq.f32.partialorder %v4138, inf
        %v4880 = vsel %vm4879, %v4138, %v4878
        %vm4881 = vcmp.eq.f32.partialorder %v4138, 0.0
        %v4882 = vand.u32 %v4138, 2147483648
        %v4883 = vsel %vm4881, %v4882, %v4880
        %v4884 = vrsqrt.pop %v4139
        %v4885 = vmul.f32 %v4884, %v4139
        %v4886 = vmul.f32 %v4885, %v4884
        %v4887 = vmul.f32 0.5, %v4886
        %v4888 = vsub.f32 1.5, %v4887
        %v4889 = vmul.f32 %v4884, %v4888
        %v4890 = vmul.f32 %v4139, %v4889
        %vm4891 = vcmp.eq.f32.partialorder %v4139, inf
        %v4892 = vsel %vm4891, %v4139, %v4890
        %vm4893 = vcmp.eq.f32.partialorder %v4139, 0.0
        %v4894 = vand.u32 %v4139, 2147483648
        %v4895 = vsel %vm4893, %v4894, %v4892
        %v4896 = vrsqrt.pop %v4140
        %v4897 = vmul.f32 %v4896, %v4140
        %v4898 = vmul.f32 %v4897, %v4896
        %v4899 = vmul.f32 0.5, %v4898
        %v4900 = vsub.f32 1.5, %v4899
        %v4901 = vmul.f32 %v4896, %v4900
        %v4902 = vmul.f32 %v4140, %v4901
        %vm4903 = vcmp.eq.f32.partialorder %v4140, inf
        %v4904 = vsel %vm4903, %v4140, %v4902
        %vm4905 = vcmp.eq.f32.partialorder %v4140, 0.0
        %v4906 = vand.u32 %v4140, 2147483648
        %v4907 = vsel %vm4905, %v4906, %v4904
        %v4908 = vrsqrt.pop %v4141
        %v4909 = vmul.f32 %v4908, %v4141
        %v4910 = vmul.f32 %v4909, %v4908
        %v4911 = vmul.f32 0.5, %v4910
        %v4912 = vsub.f32 1.5, %v4911
        %v4913 = vmul.f32 %v4908, %v4912
        %v4914 = vmul.f32 %v4141, %v4913
        %vm4915 = vcmp.eq.f32.partialorder %v4141, inf
        %v4916 = vsel %vm4915, %v4141, %v4914
        %vm4917 = vcmp.eq.f32.partialorder %v4141, 0.0
        %v4918 = vand.u32 %v4141, 2147483648
        %v4919 = vsel %vm4917, %v4918, %v4916
        %v4920 = vrsqrt.pop %v4142
        %v4921 = vmul.f32 %v4920, %v4142
        %v4922 = vmul.f32 %v4921, %v4920
        %v4923 = vmul.f32 0.5, %v4922
        %v4924 = vsub.f32 1.5, %v4923
        %v4925 = vmul.f32 %v4920, %v4924
        %v4926 = vmul.f32 %v4142, %v4925
        %vm4927 = vcmp.eq.f32.partialorder %v4142, inf
        %v4928 = vsel %vm4927, %v4142, %v4926
        %vm4929 = vcmp.eq.f32.partialorder %v4142, 0.0
        %v4930 = vand.u32 %v4142, 2147483648
        %v4931 = vsel %vm4929, %v4930, %v4928
        %v4932 = vrsqrt.pop %v4143
        %v4933 = vmul.f32 %v4932, %v4143
        %v4934 = vmul.f32 %v4933, %v4932
        %v4935 = vmul.f32 0.5, %v4934
        %v4936 = vsub.f32 1.5, %v4935
        %v4937 = vmul.f32 %v4932, %v4936
        %v4938 = vmul.f32 %v4143, %v4937
        %vm4939 = vcmp.eq.f32.partialorder %v4143, inf
        %v4940 = vsel %vm4939, %v4143, %v4938
        %vm4941 = vcmp.eq.f32.partialorder %v4143, 0.0
        %v4942 = vand.u32 %v4143, 2147483648
        %v4943 = vsel %vm4941, %v4942, %v4940
        %v4944 = vrsqrt.pop %v4144
        %v4945 = vmul.f32 %v4944, %v4144
        %v4946 = vmul.f32 %v4945, %v4944
        %v4947 = vmul.f32 0.5, %v4946
        %v4948 = vsub.f32 1.5, %v4947
        %v4949 = vmul.f32 %v4944, %v4948
        %v4950 = vmul.f32 %v4144, %v4949
        %vm4951 = vcmp.eq.f32.partialorder %v4144, inf
        %v4952 = vsel %vm4951, %v4144, %v4950
        %vm4953 = vcmp.eq.f32.partialorder %v4144, 0.0
        %v4954 = vand.u32 %v4144, 2147483648
        %v4955 = vsel %vm4953, %v4954, %v4952
        %v4956 = vrsqrt.pop %v4145
        %v4957 = vmul.f32 %v4956, %v4145
        %v4958 = vmul.f32 %v4957, %v4956
        %v4959 = vmul.f32 0.5, %v4958
        %v4960 = vsub.f32 1.5, %v4959
        %v4961 = vmul.f32 %v4956, %v4960
        %v4962 = vmul.f32 %v4145, %v4961
        %vm4963 = vcmp.eq.f32.partialorder %v4145, inf
        %v4964 = vsel %vm4963, %v4145, %v4962
        %vm4965 = vcmp.eq.f32.partialorder %v4145, 0.0
        %v4966 = vand.u32 %v4145, 2147483648
        %v4967 = vsel %vm4965, %v4966, %v4964
        %v4968 = vrsqrt.pop %v4146
        %v4969 = vmul.f32 %v4968, %v4146
        %v4970 = vmul.f32 %v4969, %v4968
        %v4971 = vmul.f32 0.5, %v4970
        %v4972 = vsub.f32 1.5, %v4971
        %v4973 = vmul.f32 %v4968, %v4972
        %v4974 = vmul.f32 %v4146, %v4973
        %vm4975 = vcmp.eq.f32.partialorder %v4146, inf
        %v4976 = vsel %vm4975, %v4146, %v4974
        %vm4977 = vcmp.eq.f32.partialorder %v4146, 0.0
        %v4978 = vand.u32 %v4146, 2147483648
        %v4979 = vsel %vm4977, %v4978, %v4976
        %v4980 = vrsqrt.pop %v4147
        %v4981 = vmul.f32 %v4980, %v4147
        %v4982 = vmul.f32 %v4981, %v4980
        %v4983 = vmul.f32 0.5, %v4982
        %v4984 = vsub.f32 1.5, %v4983
        %v4985 = vmul.f32 %v4980, %v4984
        %v4986 = vmul.f32 %v4147, %v4985
        %vm4987 = vcmp.eq.f32.partialorder %v4147, inf
        %v4988 = vsel %vm4987, %v4147, %v4986
        %vm4989 = vcmp.eq.f32.partialorder %v4147, 0.0
        %v4990 = vand.u32 %v4147, 2147483648
        %v4991 = vsel %vm4989, %v4990, %v4988
        %v4992 = vrsqrt.pop %v4148
        %v4993 = vmul.f32 %v4992, %v4148
        %v4994 = vmul.f32 %v4993, %v4992
        %v4995 = vmul.f32 0.5, %v4994
        %v4996 = vsub.f32 1.5, %v4995
        %v4997 = vmul.f32 %v4992, %v4996
        %v4998 = vmul.f32 %v4148, %v4997
        %vm4999 = vcmp.eq.f32.partialorder %v4148, inf
        %v5000 = vsel %vm4999, %v4148, %v4998
        %vm5001 = vcmp.eq.f32.partialorder %v4148, 0.0
        %v5002 = vand.u32 %v4148, 2147483648
        %v5003 = vsel %vm5001, %v5002, %v5000
        %v5004 = vrsqrt.pop %v4149
        %v5005 = vmul.f32 %v5004, %v4149
        %v5006 = vmul.f32 %v5005, %v5004
        %v5007 = vmul.f32 0.5, %v5006
        %v5008 = vsub.f32 1.5, %v5007
        %v5009 = vmul.f32 %v5004, %v5008
        %v5010 = vmul.f32 %v4149, %v5009
        %vm5011 = vcmp.eq.f32.partialorder %v4149, inf
        %v5012 = vsel %vm5011, %v4149, %v5010
        %vm5013 = vcmp.eq.f32.partialorder %v4149, 0.0
        %v5014 = vand.u32 %v4149, 2147483648
        %v5015 = vsel %vm5013, %v5014, %v5012
        %v5016 = vrsqrt.pop %v4150
        %v5017 = vmul.f32 %v5016, %v4150
        %v5018 = vmul.f32 %v5017, %v5016
        %v5019 = vmul.f32 0.5, %v5018
        %v5020 = vsub.f32 1.5, %v5019
        %v5021 = vmul.f32 %v5016, %v5020
        %v5022 = vmul.f32 %v4150, %v5021
        %vm5023 = vcmp.eq.f32.partialorder %v4150, inf
        %v5024 = vsel %vm5023, %v4150, %v5022
        %vm5025 = vcmp.eq.f32.partialorder %v4150, 0.0
        %v5026 = vand.u32 %v4150, 2147483648
        %v5027 = vsel %vm5025, %v5026, %v5024
        %v5028 = vrsqrt.pop %v4151
        %v5029 = vmul.f32 %v5028, %v4151
        %v5030 = vmul.f32 %v5029, %v5028
        %v5031 = vmul.f32 0.5, %v5030
        %v5032 = vsub.f32 1.5, %v5031
        %v5033 = vmul.f32 %v5028, %v5032
        %v5034 = vmul.f32 %v4151, %v5033
        %vm5035 = vcmp.eq.f32.partialorder %v4151, inf
        %v5036 = vsel %vm5035, %v4151, %v5034
        %vm5037 = vcmp.eq.f32.partialorder %v4151, 0.0
        %v5038 = vand.u32 %v4151, 2147483648
        %v5039 = vsel %vm5037, %v5038, %v5036
        %v5040 = vrsqrt.pop %v4152
        %v5041 = vmul.f32 %v5040, %v4152
        %v5042 = vmul.f32 %v5041, %v5040
        %v5043 = vmul.f32 0.5, %v5042
        %v5044 = vsub.f32 1.5, %v5043
        %v5045 = vmul.f32 %v5040, %v5044
        %v5046 = vmul.f32 %v4152, %v5045
        %vm5047 = vcmp.eq.f32.partialorder %v4152, inf
        %v5048 = vsel %vm5047, %v4152, %v5046
        %vm5049 = vcmp.eq.f32.partialorder %v4152, 0.0
        %v5050 = vand.u32 %v4152, 2147483648
        %v5051 = vsel %vm5049, %v5050, %v5048
        %v5052 = vrsqrt.pop %v4153
        %v5053 = vmul.f32 %v5052, %v4153
        %v5054 = vmul.f32 %v5053, %v5052
        %v5055 = vmul.f32 0.5, %v5054
        %v5056 = vsub.f32 1.5, %v5055
        %v5057 = vmul.f32 %v5052, %v5056
        %v5058 = vmul.f32 %v4153, %v5057
        %vm5059 = vcmp.eq.f32.partialorder %v4153, inf
        %v5060 = vsel %vm5059, %v4153, %v5058
        %vm5061 = vcmp.eq.f32.partialorder %v4153, 0.0
        %v5062 = vand.u32 %v4153, 2147483648
        %v5063 = vsel %vm5061, %v5062, %v5060
        %v5064 = vrsqrt.pop %v4154
        %v5065 = vmul.f32 %v5064, %v4154
        %v5066 = vmul.f32 %v5065, %v5064
        %v5067 = vmul.f32 0.5, %v5066
        %v5068 = vsub.f32 1.5, %v5067
        %v5069 = vmul.f32 %v5064, %v5068
        %v5070 = vmul.f32 %v4154, %v5069
        %vm5071 = vcmp.eq.f32.partialorder %v4154, inf
        %v5072 = vsel %vm5071, %v4154, %v5070
        %vm5073 = vcmp.eq.f32.partialorder %v4154, 0.0
        %v5074 = vand.u32 %v4154, 2147483648
        %v5075 = vsel %vm5073, %v5074, %v5072
        %v5076 = vrsqrt.pop %v4155
        %v5077 = vmul.f32 %v5076, %v4155
        %v5078 = vmul.f32 %v5077, %v5076
        %v5079 = vmul.f32 0.5, %v5078
        %v5080 = vsub.f32 1.5, %v5079
        %v5081 = vmul.f32 %v5076, %v5080
        %v5082 = vmul.f32 %v4155, %v5081
        %vm5083 = vcmp.eq.f32.partialorder %v4155, inf
        %v5084 = vsel %vm5083, %v4155, %v5082
        %vm5085 = vcmp.eq.f32.partialorder %v4155, 0.0
        %v5086 = vand.u32 %v4155, 2147483648
        %v5087 = vsel %vm5085, %v5086, %v5084
        %v5088 = vrsqrt.pop %v4156
        %v5089 = vmul.f32 %v5088, %v4156
        %v5090 = vmul.f32 %v5089, %v5088
        %v5091 = vmul.f32 0.5, %v5090
        %v5092 = vsub.f32 1.5, %v5091
        %v5093 = vmul.f32 %v5088, %v5092
        %v5094 = vmul.f32 %v4156, %v5093
        %vm5095 = vcmp.eq.f32.partialorder %v4156, inf
        %v5096 = vsel %vm5095, %v4156, %v5094
        %vm5097 = vcmp.eq.f32.partialorder %v4156, 0.0
        %v5098 = vand.u32 %v4156, 2147483648
        %v5099 = vsel %vm5097, %v5098, %v5096
        %v5100 = vrsqrt.pop %v4157
        %v5101 = vmul.f32 %v5100, %v4157
        %v5102 = vmul.f32 %v5101, %v5100
        %v5103 = vmul.f32 0.5, %v5102
        %v5104 = vsub.f32 1.5, %v5103
        %v5105 = vmul.f32 %v5100, %v5104
        %v5106 = vmul.f32 %v4157, %v5105
        %vm5107 = vcmp.eq.f32.partialorder %v4157, inf
        %v5108 = vsel %vm5107, %v4157, %v5106
        %vm5109 = vcmp.eq.f32.partialorder %v4157, 0.0
        %v5110 = vand.u32 %v4157, 2147483648
        %v5111 = vsel %vm5109, %v5110, %v5108
        %v5112 = vrsqrt.pop %v4158
        %v5113 = vmul.f32 %v5112, %v4158
        %v5114 = vmul.f32 %v5113, %v5112
        %v5115 = vmul.f32 0.5, %v5114
        %v5116 = vsub.f32 1.5, %v5115
        %v5117 = vmul.f32 %v5112, %v5116
        %v5118 = vmul.f32 %v4158, %v5117
        %vm5119 = vcmp.eq.f32.partialorder %v4158, inf
        %v5120 = vsel %vm5119, %v4158, %v5118
        %vm5121 = vcmp.eq.f32.partialorder %v4158, 0.0
        %v5122 = vand.u32 %v4158, 2147483648
        %v5123 = vsel %vm5121, %v5122, %v5120
        %v5124 = vrsqrt.pop %v4159
        %v5125 = vmul.f32 %v5124, %v4159
        %v5126 = vmul.f32 %v5125, %v5124
        %v5127 = vmul.f32 0.5, %v5126
        %v5128 = vsub.f32 1.5, %v5127
        %v5129 = vmul.f32 %v5124, %v5128
        %v5130 = vmul.f32 %v4159, %v5129
        %vm5131 = vcmp.eq.f32.partialorder %v4159, inf
        %v5132 = vsel %vm5131, %v4159, %v5130
        %vm5133 = vcmp.eq.f32.partialorder %v4159, 0.0
        %v5134 = vand.u32 %v4159, 2147483648
        %v5135 = vsel %vm5133, %v5134, %v5132
        %v5136 = vrsqrt.pop %v4160
        %v5137 = vmul.f32 %v5136, %v4160
        %v5138 = vmul.f32 %v5137, %v5136
        %v5139 = vmul.f32 0.5, %v5138
        %v5140 = vsub.f32 1.5, %v5139
        %v5141 = vmul.f32 %v5136, %v5140
        %v5142 = vmul.f32 %v4160, %v5141
        %vm5143 = vcmp.eq.f32.partialorder %v4160, inf
        %v5144 = vsel %vm5143, %v4160, %v5142
        %vm5145 = vcmp.eq.f32.partialorder %v4160, 0.0
        %v5146 = vand.u32 %v4160, 2147483648
        %v5147 = vsel %vm5145, %v5146, %v5144
        %v5148 = vrsqrt.pop %v4161
        %v5149 = vmul.f32 %v5148, %v4161
        %v5150 = vmul.f32 %v5149, %v5148
        %v5151 = vmul.f32 0.5, %v5150
        %v5152 = vsub.f32 1.5, %v5151
        %v5153 = vmul.f32 %v5148, %v5152
        %v5154 = vmul.f32 %v4161, %v5153
        %vm5155 = vcmp.eq.f32.partialorder %v4161, inf
        %v5156 = vsel %vm5155, %v4161, %v5154
        %vm5157 = vcmp.eq.f32.partialorder %v4161, 0.0
        %v5158 = vand.u32 %v4161, 2147483648
        %v5159 = vsel %vm5157, %v5158, %v5156
        %v5160 = vrsqrt.pop %v4162
        %v5161 = vmul.f32 %v5160, %v4162
        %v5162 = vmul.f32 %v5161, %v5160
        %v5163 = vmul.f32 0.5, %v5162
        %v5164 = vsub.f32 1.5, %v5163
        %v5165 = vmul.f32 %v5160, %v5164
        %v5166 = vmul.f32 %v4162, %v5165
        %vm5167 = vcmp.eq.f32.partialorder %v4162, inf
        %v5168 = vsel %vm5167, %v4162, %v5166
        %vm5169 = vcmp.eq.f32.partialorder %v4162, 0.0
        %v5170 = vand.u32 %v4162, 2147483648
        %v5171 = vsel %vm5169, %v5170, %v5168
        %v5172 = vrsqrt.pop %v4163
        %v5173 = vmul.f32 %v5172, %v4163
        %v5174 = vmul.f32 %v5173, %v5172
        %v5175 = vmul.f32 0.5, %v5174
        %v5176 = vsub.f32 1.5, %v5175
        %v5177 = vmul.f32 %v5172, %v5176
        %v5178 = vmul.f32 %v4163, %v5177
        %vm5179 = vcmp.eq.f32.partialorder %v4163, inf
        %v5180 = vsel %vm5179, %v4163, %v5178
        %vm5181 = vcmp.eq.f32.partialorder %v4163, 0.0
        %v5182 = vand.u32 %v4163, 2147483648
        %v5183 = vsel %vm5181, %v5182, %v5180
        %v5184 = vrsqrt.pop %v4164
        %v5185 = vmul.f32 %v5184, %v4164
        %v5186 = vmul.f32 %v5185, %v5184
        %v5187 = vmul.f32 0.5, %v5186
        %v5188 = vsub.f32 1.5, %v5187
        %v5189 = vmul.f32 %v5184, %v5188
        %v5190 = vmul.f32 %v4164, %v5189
        %vm5191 = vcmp.eq.f32.partialorder %v4164, inf
        %v5192 = vsel %vm5191, %v4164, %v5190
        %vm5193 = vcmp.eq.f32.partialorder %v4164, 0.0
        %v5194 = vand.u32 %v4164, 2147483648
        %v5195 = vsel %vm5193, %v5194, %v5192
        %v5196 = vrsqrt.pop %v4165
        %v5197 = vmul.f32 %v5196, %v4165
        %v5198 = vmul.f32 %v5197, %v5196
        %v5199 = vmul.f32 0.5, %v5198
        %v5200 = vsub.f32 1.5, %v5199
        %v5201 = vmul.f32 %v5196, %v5200
        %v5202 = vmul.f32 %v4165, %v5201
        %vm5203 = vcmp.eq.f32.partialorder %v4165, inf
        %v5204 = vsel %vm5203, %v4165, %v5202
        %vm5205 = vcmp.eq.f32.partialorder %v4165, 0.0
        %v5206 = vand.u32 %v4165, 2147483648
        %v5207 = vsel %vm5205, %v5206, %v5204
        %v5208 = vrsqrt.pop %v4166
        %v5209 = vmul.f32 %v5208, %v4166
        %v5210 = vmul.f32 %v5209, %v5208
        %v5211 = vmul.f32 0.5, %v5210
        %v5212 = vsub.f32 1.5, %v5211
        %v5213 = vmul.f32 %v5208, %v5212
        %v5214 = vmul.f32 %v4166, %v5213
        %vm5215 = vcmp.eq.f32.partialorder %v4166, inf
        %v5216 = vsel %vm5215, %v4166, %v5214
        %vm5217 = vcmp.eq.f32.partialorder %v4166, 0.0
        %v5218 = vand.u32 %v4166, 2147483648
        %v5219 = vsel %vm5217, %v5218, %v5216
        %v5220 = vrsqrt.pop %v4167
        %v5221 = vmul.f32 %v5220, %v4167
        %v5222 = vmul.f32 %v5221, %v5220
        %v5223 = vmul.f32 0.5, %v5222
        %v5224 = vsub.f32 1.5, %v5223
        %v5225 = vmul.f32 %v5220, %v5224
        %v5226 = vmul.f32 %v4167, %v5225
        %vm5227 = vcmp.eq.f32.partialorder %v4167, inf
        %v5228 = vsel %vm5227, %v4167, %v5226
        %vm5229 = vcmp.eq.f32.partialorder %v4167, 0.0
        %v5230 = vand.u32 %v4167, 2147483648
        %v5231 = vsel %vm5229, %v5230, %v5228
        %v5232 = vrsqrt.pop %v4168
        %v5233 = vmul.f32 %v5232, %v4168
        %v5234 = vmul.f32 %v5233, %v5232
        %v5235 = vmul.f32 0.5, %v5234
        %v5236 = vsub.f32 1.5, %v5235
        %v5237 = vmul.f32 %v5232, %v5236
        %v5238 = vmul.f32 %v4168, %v5237
        %vm5239 = vcmp.eq.f32.partialorder %v4168, inf
        %v5240 = vsel %vm5239, %v4168, %v5238
        %vm5241 = vcmp.eq.f32.partialorder %v4168, 0.0
        %v5242 = vand.u32 %v4168, 2147483648
        %v5243 = vsel %vm5241, %v5242, %v5240
        %v5244 = vrsqrt.pop %v4169
        %v5245 = vmul.f32 %v5244, %v4169
        %v5246 = vmul.f32 %v5245, %v5244
        %v5247 = vmul.f32 0.5, %v5246
        %v5248 = vsub.f32 1.5, %v5247
        %v5249 = vmul.f32 %v5244, %v5248
        %v5250 = vmul.f32 %v4169, %v5249
        %vm5251 = vcmp.eq.f32.partialorder %v4169, inf
        %v5252 = vsel %vm5251, %v4169, %v5250
        %vm5253 = vcmp.eq.f32.partialorder %v4169, 0.0
        %v5254 = vand.u32 %v4169, 2147483648
        %v5255 = vsel %vm5253, %v5254, %v5252
        %v5256 = vrsqrt.pop %v4170
        %v5257 = vmul.f32 %v5256, %v4170
        %v5258 = vmul.f32 %v5257, %v5256
        %v5259 = vmul.f32 0.5, %v5258
        %v5260 = vsub.f32 1.5, %v5259
        %v5261 = vmul.f32 %v5256, %v5260
        %v5262 = vmul.f32 %v4170, %v5261
        %vm5263 = vcmp.eq.f32.partialorder %v4170, inf
        %v5264 = vsel %vm5263, %v4170, %v5262
        %vm5265 = vcmp.eq.f32.partialorder %v4170, 0.0
        %v5266 = vand.u32 %v4170, 2147483648
        %v5267 = vsel %vm5265, %v5266, %v5264
        %v5268 = vrsqrt.pop %v4171
        %v5269 = vmul.f32 %v5268, %v4171
        %v5270 = vmul.f32 %v5269, %v5268
        %v5271 = vmul.f32 0.5, %v5270
        %v5272 = vsub.f32 1.5, %v5271
        %v5273 = vmul.f32 %v5268, %v5272
        %v5274 = vmul.f32 %v4171, %v5273
        %vm5275 = vcmp.eq.f32.partialorder %v4171, inf
        %v5276 = vsel %vm5275, %v4171, %v5274
        %vm5277 = vcmp.eq.f32.partialorder %v4171, 0.0
        %v5278 = vand.u32 %v4171, 2147483648
        %v5279 = vsel %vm5277, %v5278, %v5276
        %v5280 = vrsqrt.pop %v4172
        %v5281 = vmul.f32 %v5280, %v4172
        %v5282 = vmul.f32 %v5281, %v5280
        %v5283 = vmul.f32 0.5, %v5282
        %v5284 = vsub.f32 1.5, %v5283
        %v5285 = vmul.f32 %v5280, %v5284
        %v5286 = vmul.f32 %v4172, %v5285
        %vm5287 = vcmp.eq.f32.partialorder %v4172, inf
        %v5288 = vsel %vm5287, %v4172, %v5286
        %vm5289 = vcmp.eq.f32.partialorder %v4172, 0.0
        %v5290 = vand.u32 %v4172, 2147483648
        %v5291 = vsel %vm5289, %v5290, %v5288
        %v5292 = vrsqrt.pop %v4173
        %v5293 = vmul.f32 %v5292, %v4173
        %v5294 = vmul.f32 %v5293, %v5292
        %v5295 = vmul.f32 0.5, %v5294
        %v5296 = vsub.f32 1.5, %v5295
        %v5297 = vmul.f32 %v5292, %v5296
        %v5298 = vmul.f32 %v4173, %v5297
        %vm5299 = vcmp.eq.f32.partialorder %v4173, inf
        %v5300 = vsel %vm5299, %v4173, %v5298
        %vm5301 = vcmp.eq.f32.partialorder %v4173, 0.0
        %v5302 = vand.u32 %v4173, 2147483648
        %v5303 = vsel %vm5301, %v5302, %v5300
        %v5304 = vrsqrt.pop %v4174
        %v5305 = vmul.f32 %v5304, %v4174
        %v5306 = vmul.f32 %v5305, %v5304
        %v5307 = vmul.f32 0.5, %v5306
        %v5308 = vsub.f32 1.5, %v5307
        %v5309 = vmul.f32 %v5304, %v5308
        %v5310 = vmul.f32 %v4174, %v5309
        %vm5311 = vcmp.eq.f32.partialorder %v4174, inf
        %v5312 = vsel %vm5311, %v4174, %v5310
        %vm5313 = vcmp.eq.f32.partialorder %v4174, 0.0
        %v5314 = vand.u32 %v4174, 2147483648
        %v5315 = vsel %vm5313, %v5314, %v5312
        %v5316 = vrsqrt.pop %v4175
        %v5317 = vmul.f32 %v5316, %v4175
        %v5318 = vmul.f32 %v5317, %v5316
        %v5319 = vmul.f32 0.5, %v5318
        %v5320 = vsub.f32 1.5, %v5319
        %v5321 = vmul.f32 %v5316, %v5320
        %v5322 = vmul.f32 %v4175, %v5321
        %vm5323 = vcmp.eq.f32.partialorder %v4175, inf
        %v5324 = vsel %vm5323, %v4175, %v5322
        %vm5325 = vcmp.eq.f32.partialorder %v4175, 0.0
        %v5326 = vand.u32 %v4175, 2147483648
        %v5327 = vsel %vm5325, %v5326, %v5324
        %v5328 = vld [vmem:[#allocation8] sm:$0xff]
        %v5329 = vld [vmem:[#allocation8 + $0x8] sm:$0xf]
        %v5330 = vld [vmem:[#allocation8 + $0xc] sm:$0xff]
        %v5331 = vld [vmem:[#allocation8 + $0x14] sm:$0xf]
        %v5332 = vld [vmem:[#allocation8 + $0x18] sm:$0xff]
        %v5333 = vld [vmem:[#allocation8 + $0x20] sm:$0xf]
        %v5334 = vld [vmem:[#allocation8 + $0x24] sm:$0xff]
        %v5335 = vld [vmem:[#allocation8 + $0x2c] sm:$0xf]
        %v5336 = vld [vmem:[#allocation8 + $0x30] sm:$0xff]
        %v5337 = vld [vmem:[#allocation8 + $0x38] sm:$0xf]
        %v5338 = vld [vmem:[#allocation8 + $0x3c] sm:$0xff]
        %v5339 = vld [vmem:[#allocation8 + $0x44] sm:$0xf]
        %v5340 = vld [vmem:[#allocation8 + $0x48] sm:$0xff]
        %v5341 = vld [vmem:[#allocation8 + $0x50] sm:$0xf]
        %v5342 = vld [vmem:[#allocation8 + $0x54] sm:$0xff]
        %v5343 = vld [vmem:[#allocation8 + $0x5c] sm:$0xf]
        %v5344 = vld [vmem:[#allocation8 + $0x60] sm:$0xff]
        %v5345 = vld [vmem:[#allocation8 + $0x68] sm:$0xf]
        %v5346 = vld [vmem:[#allocation8 + $0x6c] sm:$0xff]
        %v5347 = vld [vmem:[#allocation8 + $0x74] sm:$0xf]
        %v5348 = vld [vmem:[#allocation8 + $0x78] sm:$0xff]
        %v5349 = vld [vmem:[#allocation8 + $0x80] sm:$0xf]
        %v5350 = vld [vmem:[#allocation8 + $0x84] sm:$0xff]
        %v5351 = vld [vmem:[#allocation8 + $0x8c] sm:$0xf]
        %v5352 = vld [vmem:[#allocation8 + $0x90] sm:$0xff]
        %v5353 = vld [vmem:[#allocation8 + $0x98] sm:$0xf]
        %v5354 = vld [vmem:[#allocation8 + $0x9c] sm:$0xff]
        %v5355 = vld [vmem:[#allocation8 + $0xa4] sm:$0xf]
        %v5356 = vld [vmem:[#allocation8 + $0xa8] sm:$0xff]
        %v5357 = vld [vmem:[#allocation8 + $0xb0] sm:$0xf]
        %v5358 = vld [vmem:[#allocation8 + $0xb4] sm:$0xff]
        %v5359 = vld [vmem:[#allocation8 + $0xbc] sm:$0xf]
        %v5360 = vld [vmem:[#allocation8 + $0xc0] sm:$0xff]
        %v5361 = vld [vmem:[#allocation8 + $0xc8] sm:$0xf]
        %v5362 = vld [vmem:[#allocation8 + $0xcc] sm:$0xff]
        %v5363 = vld [vmem:[#allocation8 + $0xd4] sm:$0xf]
        %v5364 = vld [vmem:[#allocation8 + $0xd8] sm:$0xff]
        %v5365 = vld [vmem:[#allocation8 + $0xe0] sm:$0xf]
        %v5366 = vld [vmem:[#allocation8 + $0xe4] sm:$0xff]
        %v5367 = vld [vmem:[#allocation8 + $0xec] sm:$0xf]
        %v5368 = vld [vmem:[#allocation8 + $0xf0] sm:$0xff]
        %v5369 = vld [vmem:[#allocation8 + $0xf8] sm:$0xf]
        %v5370 = vld [vmem:[#allocation8 + $0xfc] sm:$0xff]
        %v5371 = vld [vmem:[#allocation8 + $0x104] sm:$0xf]
        %v5372 = vld [vmem:[#allocation8 + $0x108] sm:$0xff]
        %v5373 = vld [vmem:[#allocation8 + $0x110] sm:$0xf]
        %v5374 = vld [vmem:[#allocation8 + $0x114] sm:$0xff]
        %v5375 = vld [vmem:[#allocation8 + $0x11c] sm:$0xf]
        %v5376 = vld [vmem:[#allocation8 + $0x120] sm:$0xff]
        %v5377 = vld [vmem:[#allocation8 + $0x128] sm:$0xf]
        %v5378 = vld [vmem:[#allocation8 + $0x12c] sm:$0xff]
        %v5379 = vld [vmem:[#allocation8 + $0x134] sm:$0xf]
        %v5380 = vld [vmem:[#allocation8 + $0x138] sm:$0xff]
        %v5381 = vld [vmem:[#allocation8 + $0x140] sm:$0xf]
        %v5382 = vld [vmem:[#allocation8 + $0x144] sm:$0xff]
        %v5383 = vld [vmem:[#allocation8 + $0x14c] sm:$0xf]
        %v5384 = vld [vmem:[#allocation8 + $0x150] sm:$0xff]
        %v5385 = vld [vmem:[#allocation8 + $0x158] sm:$0xf]
        %v5386 = vld [vmem:[#allocation8 + $0x15c] sm:$0xff]
        %v5387 = vld [vmem:[#allocation8 + $0x164] sm:$0xf]
        %v5388 = vld [vmem:[#allocation8 + $0x168] sm:$0xff]
        %v5389 = vld [vmem:[#allocation8 + $0x170] sm:$0xf]
        %v5390 = vld [vmem:[#allocation8 + $0x174] sm:$0xff]
        %v5391 = vld [vmem:[#allocation8 + $0x17c] sm:$0xf]
        %v5392 = vld [vmem:[#allocation8 + $0x180] sm:$0xff]
        %v5393 = vld [vmem:[#allocation8 + $0x188] sm:$0xf]
        %v5394 = vld [vmem:[#allocation8 + $0x18c] sm:$0xff]
        %v5395 = vld [vmem:[#allocation8 + $0x194] sm:$0xf]
        %v5396 = vld [vmem:[#allocation8 + $0x198] sm:$0xff]
        %v5397 = vld [vmem:[#allocation8 + $0x1a0] sm:$0xf]
        %v5398 = vld [vmem:[#allocation8 + $0x1a4] sm:$0xff]
        %v5399 = vld [vmem:[#allocation8 + $0x1ac] sm:$0xf]
        %v5400 = vld [vmem:[#allocation8 + $0x1b0] sm:$0xff]
        %v5401 = vld [vmem:[#allocation8 + $0x1b8] sm:$0xf]
        %v5402 = vld [vmem:[#allocation8 + $0x1bc] sm:$0xff]
        %v5403 = vld [vmem:[#allocation8 + $0x1c4] sm:$0xf]
        %v5404 = vld [vmem:[#allocation8 + $0x1c8] sm:$0xff]
        %v5405 = vld [vmem:[#allocation8 + $0x1d0] sm:$0xf]
        %v5406 = vld [vmem:[#allocation8 + $0x1d4] sm:$0xff]
        %v5407 = vld [vmem:[#allocation8 + $0x1dc] sm:$0xf]
        %v5408 = vld [vmem:[#allocation8 + $0x1e0] sm:$0xff]
        %v5409 = vld [vmem:[#allocation8 + $0x1e8] sm:$0xf]
        %v5410 = vld [vmem:[#allocation8 + $0x1ec] sm:$0xff]
        %v5411 = vld [vmem:[#allocation8 + $0x1f4] sm:$0xf]
        %v5412 = vld [vmem:[#allocation8 + $0x1f8] sm:$0xff]
        %v5413 = vld [vmem:[#allocation8 + $0x200] sm:$0xf]
        %v5414 = vld [vmem:[#allocation8 + $0x204] sm:$0xff]
        %v5415 = vld [vmem:[#allocation8 + $0x20c] sm:$0xf]
        %v5416 = vld [vmem:[#allocation8 + $0x210] sm:$0xff]
        %v5417 = vld [vmem:[#allocation8 + $0x218] sm:$0xf]
        %v5418 = vld [vmem:[#allocation8 + $0x21c] sm:$0xff]
        %v5419 = vld [vmem:[#allocation8 + $0x224] sm:$0xf]
        %v5420 = vld [vmem:[#allocation8 + $0x228] sm:$0xff]
        %v5421 = vld [vmem:[#allocation8 + $0x230] sm:$0xf]
        %v5422 = vld [vmem:[#allocation8 + $0x234] sm:$0xff]
        %v5423 = vld [vmem:[#allocation8 + $0x23c] sm:$0xf]
        %v5424 = vld [vmem:[#allocation8 + $0x240] sm:$0xff]
        %v5425 = vld [vmem:[#allocation8 + $0x248] sm:$0xf]
        %v5426 = vld [vmem:[#allocation8 + $0x24c] sm:$0xff]
        %v5427 = vld [vmem:[#allocation8 + $0x254] sm:$0xf]
        %v5428 = vld [vmem:[#allocation8 + $0x258] sm:$0xff]
        %v5429 = vld [vmem:[#allocation8 + $0x260] sm:$0xf]
        %v5430 = vld [vmem:[#allocation8 + $0x264] sm:$0xff]
        %v5431 = vld [vmem:[#allocation8 + $0x26c] sm:$0xf]
        %v5432 = vld [vmem:[#allocation8 + $0x270] sm:$0xff]
        %v5433 = vld [vmem:[#allocation8 + $0x278] sm:$0xf]
        %v5434 = vld [vmem:[#allocation8 + $0x27c] sm:$0xff]
        %v5435 = vld [vmem:[#allocation8 + $0x284] sm:$0xf]
        %v5436 = vld [vmem:[#allocation8 + $0x288] sm:$0xff]
        %v5437 = vld [vmem:[#allocation8 + $0x290] sm:$0xf]
        %v5438 = vld [vmem:[#allocation8 + $0x294] sm:$0xff]
        %v5439 = vld [vmem:[#allocation8 + $0x29c] sm:$0xf]
        %v5440 = vld [vmem:[#allocation8 + $0x2a0] sm:$0xff]
        %v5441 = vld [vmem:[#allocation8 + $0x2a8] sm:$0xf]
        %v5442 = vld [vmem:[#allocation8 + $0x2ac] sm:$0xff]
        %v5443 = vld [vmem:[#allocation8 + $0x2b4] sm:$0xf]
        %v5444 = vld [vmem:[#allocation8 + $0x2b8] sm:$0xff]
        %v5445 = vld [vmem:[#allocation8 + $0x2c0] sm:$0xf]
        %v5446 = vld [vmem:[#allocation8 + $0x2c4] sm:$0xff]
        %v5447 = vld [vmem:[#allocation8 + $0x2cc] sm:$0xf]
        %v5448 = vld [vmem:[#allocation8 + $0x2d0] sm:$0xff]
        %v5449 = vld [vmem:[#allocation8 + $0x2d8] sm:$0xf]
        %v5450 = vld [vmem:[#allocation8 + $0x2dc] sm:$0xff]
        %v5451 = vld [vmem:[#allocation8 + $0x2e4] sm:$0xf]
        %v5452 = vld [vmem:[#allocation8 + $0x2e8] sm:$0xff]
        %v5453 = vld [vmem:[#allocation8 + $0x2f0] sm:$0xf]
        %v5454 = vld [vmem:[#allocation8 + $0x2f4] sm:$0xff]
        %v5455 = vld [vmem:[#allocation8 + $0x2fc] sm:$0xf]
        %v5456 = vld [vmem:[#allocation8 + $0x300] sm:$0xff]
        %v5457 = vld [vmem:[#allocation8 + $0x308] sm:$0xf]
        %v5458 = vld [vmem:[#allocation8 + $0x30c] sm:$0xff]
        %v5459 = vld [vmem:[#allocation8 + $0x314] sm:$0xf]
        %v5460 = vld [vmem:[#allocation8 + $0x318] sm:$0xff]
        %v5461 = vld [vmem:[#allocation8 + $0x320] sm:$0xf]
        %v5462 = vld [vmem:[#allocation8 + $0x324] sm:$0xff]
        %v5463 = vld [vmem:[#allocation8 + $0x32c] sm:$0xf]
        %v5464 = vld [vmem:[#allocation8 + $0x330] sm:$0xff]
        %v5465 = vld [vmem:[#allocation8 + $0x338] sm:$0xf]
        %v5466 = vld [vmem:[#allocation8 + $0x33c] sm:$0xff]
        %v5467 = vld [vmem:[#allocation8 + $0x344] sm:$0xf]
        %v5468 = vld [vmem:[#allocation8 + $0x348] sm:$0xff]
        %v5469 = vld [vmem:[#allocation8 + $0x350] sm:$0xf]
        %v5470 = vld [vmem:[#allocation8 + $0x354] sm:$0xff]
        %v5471 = vld [vmem:[#allocation8 + $0x35c] sm:$0xf]
        %v5472 = vld [vmem:[#allocation8 + $0x360] sm:$0xff]
        %v5473 = vld [vmem:[#allocation8 + $0x368] sm:$0xf]
        %v5474 = vld [vmem:[#allocation8 + $0x36c] sm:$0xff]
        %v5475 = vld [vmem:[#allocation8 + $0x374] sm:$0xf]
        %v5476 = vld [vmem:[#allocation8 + $0x378] sm:$0xff]
        %v5477 = vld [vmem:[#allocation8 + $0x380] sm:$0xf]
        %v5478 = vld [vmem:[#allocation8 + $0x384] sm:$0xff]
        %v5479 = vld [vmem:[#allocation8 + $0x38c] sm:$0xf]
        %v5480 = vld [vmem:[#allocation8 + $0x390] sm:$0xff]
        %v5481 = vld [vmem:[#allocation8 + $0x398] sm:$0xf]
        %v5482 = vld [vmem:[#allocation8 + $0x39c] sm:$0xff]
        %v5483 = vld [vmem:[#allocation8 + $0x3a4] sm:$0xf]
        %v5484 = vld [vmem:[#allocation8 + $0x3a8] sm:$0xff]
        %v5485 = vld [vmem:[#allocation8 + $0x3b0] sm:$0xf]
        %v5486 = vld [vmem:[#allocation8 + $0x3b4] sm:$0xff]
        %v5487 = vld [vmem:[#allocation8 + $0x3bc] sm:$0xf]
        %v5488 = vld [vmem:[#allocation8 + $0x3c0] sm:$0xff]
        %v5489 = vld [vmem:[#allocation8 + $0x3c8] sm:$0xf]
        %v5490 = vld [vmem:[#allocation8 + $0x3cc] sm:$0xff]
        %v5491 = vld [vmem:[#allocation8 + $0x3d4] sm:$0xf]
        %v5492 = vld [vmem:[#allocation8 + $0x3d8] sm:$0xff]
        %v5493 = vld [vmem:[#allocation8 + $0x3e0] sm:$0xf]
        %v5494 = vld [vmem:[#allocation8 + $0x3e4] sm:$0xff]
        %v5495 = vld [vmem:[#allocation8 + $0x3ec] sm:$0xf]
        %v5496 = vld [vmem:[#allocation8 + $0x3f0] sm:$0xff]
        %v5497 = vld [vmem:[#allocation8 + $0x3f8] sm:$0xf]
        %v5498 = vld [vmem:[#allocation8 + $0x3fc] sm:$0xff]
        %v5499 = vld [vmem:[#allocation8 + $0x404] sm:$0xf]
        %v5500 = vld [vmem:[#allocation8 + $0x408] sm:$0xff]
        %v5501 = vld [vmem:[#allocation8 + $0x410] sm:$0xf]
        %v5502 = vld [vmem:[#allocation8 + $0x414] sm:$0xff]
        %v5503 = vld [vmem:[#allocation8 + $0x41c] sm:$0xf]
        %v5504 = vld [vmem:[#allocation8 + $0x420] sm:$0xff]
        %v5505 = vld [vmem:[#allocation8 + $0x428] sm:$0xf]
        %v5506 = vld [vmem:[#allocation8 + $0x42c] sm:$0xff]
        %v5507 = vld [vmem:[#allocation8 + $0x434] sm:$0xf]
        %v5508 = vld [vmem:[#allocation8 + $0x438] sm:$0xff]
        %v5509 = vld [vmem:[#allocation8 + $0x440] sm:$0xf]
        %v5510 = vld [vmem:[#allocation8 + $0x444] sm:$0xff]
        %v5511 = vld [vmem:[#allocation8 + $0x44c] sm:$0xf]
        %v5512 = vld [vmem:[#allocation8 + $0x450] sm:$0xff]
        %v5513 = vld [vmem:[#allocation8 + $0x458] sm:$0xf]
        %v5514 = vld [vmem:[#allocation8 + $0x45c] sm:$0xff]
        %v5515 = vld [vmem:[#allocation8 + $0x464] sm:$0xf]
        %v5516 = vld [vmem:[#allocation8 + $0x468] sm:$0xff]
        %v5517 = vld [vmem:[#allocation8 + $0x470] sm:$0xf]
        %v5518 = vld [vmem:[#allocation8 + $0x474] sm:$0xff]
        %v5519 = vld [vmem:[#allocation8 + $0x47c] sm:$0xf]
        %v5520 = vld [vmem:[#allocation8 + $0x480] sm:$0xff]
        %v5521 = vld [vmem:[#allocation8 + $0x488] sm:$0xf]
        %v5522 = vld [vmem:[#allocation8 + $0x48c] sm:$0xff]
        %v5523 = vld [vmem:[#allocation8 + $0x494] sm:$0xf]
        %v5524 = vld [vmem:[#allocation8 + $0x498] sm:$0xff]
        %v5525 = vld [vmem:[#allocation8 + $0x4a0] sm:$0xf]
        %v5526 = vld [vmem:[#allocation8 + $0x4a4] sm:$0xff]
        %v5527 = vld [vmem:[#allocation8 + $0x4ac] sm:$0xf]
        %v5528 = vld [vmem:[#allocation8 + $0x4b0] sm:$0xff]
        %v5529 = vld [vmem:[#allocation8 + $0x4b8] sm:$0xf]
        %v5530 = vld [vmem:[#allocation8 + $0x4bc] sm:$0xff]
        %v5531 = vld [vmem:[#allocation8 + $0x4c4] sm:$0xf]
        %v5532 = vld [vmem:[#allocation8 + $0x4c8] sm:$0xff]
        %v5533 = vld [vmem:[#allocation8 + $0x4d0] sm:$0xf]
        %v5534 = vld [vmem:[#allocation8 + $0x4d4] sm:$0xff]
        %v5535 = vld [vmem:[#allocation8 + $0x4dc] sm:$0xf]
        %v5536 = vld [vmem:[#allocation8 + $0x4e0] sm:$0xff]
        %v5537 = vld [vmem:[#allocation8 + $0x4e8] sm:$0xf]
        %v5538 = vpack.c.bf16 %v4211, %v4187
        %v5539 = vpack.c.bf16 %v4223, %v4199
        %v5540 = vpack.c.bf16 %v4259, %v4235
        %v5541 = vpack.c.bf16 %v4271, %v4247
        %v5542 = vpack.c.bf16 %v4307, %v4283
        %v5543 = vpack.c.bf16 %v4319, %v4295
        %v5544 = vpack.c.bf16 %v4355, %v4331
        %v5545 = vpack.c.bf16 %v4367, %v4343
        %v5546 = vpack.c.bf16 %v4403, %v4379
        %v5547 = vpack.c.bf16 %v4415, %v4391
        %v5548 = vpack.c.bf16 %v4451, %v4427
        %v5549 = vpack.c.bf16 %v4463, %v4439
        %v5550 = vpack.c.bf16 %v4499, %v4475
        %v5551 = vpack.c.bf16 %v4511, %v4487
        %v5552 = vpack.c.bf16 %v4547, %v4523
        %v5553 = vpack.c.bf16 %v4559, %v4535
        %v5554 = vpack.c.bf16 %v4595, %v4571
        %v5555 = vpack.c.bf16 %v4607, %v4583
        %v5556 = vpack.c.bf16 %v4643, %v4619
        %v5557 = vpack.c.bf16 %v4655, %v4631
        %v5558 = vpack.c.bf16 %v4691, %v4667
        %v5559 = vpack.c.bf16 %v4703, %v4679
        %v5560 = vpack.c.bf16 %v4739, %v4715
        %v5561 = vpack.c.bf16 %v4751, %v4727
        %v5562 = vpack.c.bf16 %v4787, %v4763
        %v5563 = vpack.c.bf16 %v4799, %v4775
        %v5564 = vpack.c.bf16 %v4835, %v4811
        %v5565 = vpack.c.bf16 %v4847, %v4823
        %v5566 = vpack.c.bf16 %v4883, %v4859
        %v5567 = vpack.c.bf16 %v4895, %v4871
        %v5568 = vpack.c.bf16 %v4931, %v4907
        %v5569 = vpack.c.bf16 %v4943, %v4919
        %v5570 = vpack.c.bf16 %v4979, %v4955
        %v5571 = vpack.c.bf16 %v4991, %v4967
        %v5572 = vpack.c.bf16 %v5027, %v5003
        %v5573 = vpack.c.bf16 %v5039, %v5015
        %v5574 = vpack.c.bf16 %v5075, %v5051
        %v5575 = vpack.c.bf16 %v5087, %v5063
        %v5576 = vpack.c.bf16 %v5123, %v5099
        %v5577 = vpack.c.bf16 %v5135, %v5111
        %v5578 = vpack.c.bf16 %v5171, %v5147
        %v5579 = vpack.c.bf16 %v5183, %v5159
        %v5580 = vpack.c.bf16 %v5219, %v5195
        %v5581 = vpack.c.bf16 %v5231, %v5207
        %v5582 = vpack.c.bf16 %v5267, %v5243
        %v5583 = vpack.c.bf16 %v5279, %v5255
        %v5584 = vpack.c.bf16 %v5315, %v5291
        %v5585 = vpack.c.bf16 %v5327, %v5303
        %v5796 = vunpack.c.l.b16 %v5328
        %v5797 = vunpack.c.h.b16 %v5328
        %v5798 = vunpack.c.l.b16 %v5329
        %v5799 = vunpack.c.l.b16 %v5330
        %v5800 = vunpack.c.h.b16 %v5330
        %v5801 = vunpack.c.l.b16 %v5331
        %v5802 = vunpack.c.l.b16 %v5332
        %v5803 = vunpack.c.h.b16 %v5332
        %v5804 = vunpack.c.l.b16 %v5333
        %v5805 = vunpack.c.l.b16 %v5334
        %v5806 = vunpack.c.h.b16 %v5334
        %v5807 = vunpack.c.l.b16 %v5335
        %v5808 = vunpack.c.l.b16 %v5336
        %v5809 = vunpack.c.h.b16 %v5336
        %v5810 = vunpack.c.l.b16 %v5337
        %v5811 = vunpack.c.l.b16 %v5338
        %v5812 = vunpack.c.h.b16 %v5338
        %v5813 = vunpack.c.l.b16 %v5339
        %v5814 = vunpack.c.l.b16 %v5340
        %v5815 = vunpack.c.h.b16 %v5340
        %v5816 = vunpack.c.l.b16 %v5341
        %v5817 = vunpack.c.l.b16 %v5342
        %v5818 = vunpack.c.h.b16 %v5342
        %v5819 = vunpack.c.l.b16 %v5343
        %v5820 = vunpack.c.l.b16 %v5344
        %v5821 = vunpack.c.h.b16 %v5344
        %v5822 = vunpack.c.l.b16 %v5345
        %v5823 = vunpack.c.l.b16 %v5346
        %v5824 = vunpack.c.h.b16 %v5346
        %v5825 = vunpack.c.l.b16 %v5347
        %v5826 = vunpack.c.l.b16 %v5348
        %v5827 = vunpack.c.h.b16 %v5348
        %v5828 = vunpack.c.l.b16 %v5349
        %v5829 = vunpack.c.l.b16 %v5350
        %v5830 = vunpack.c.h.b16 %v5350
        %v5831 = vunpack.c.l.b16 %v5351
        %v5832 = vunpack.c.l.b16 %v5352
        %v5833 = vunpack.c.h.b16 %v5352
        %v5834 = vunpack.c.l.b16 %v5353
        %v5835 = vunpack.c.l.b16 %v5354
        %v5836 = vunpack.c.h.b16 %v5354
        %v5837 = vunpack.c.l.b16 %v5355
        %v5838 = vunpack.c.l.b16 %v5356
        %v5839 = vunpack.c.h.b16 %v5356
        %v5840 = vunpack.c.l.b16 %v5357
        %v5841 = vunpack.c.l.b16 %v5358
        %v5842 = vunpack.c.h.b16 %v5358
        %v5843 = vunpack.c.l.b16 %v5359
        %v5844 = vunpack.c.l.b16 %v5360
        %v5845 = vunpack.c.h.b16 %v5360
        %v5846 = vunpack.c.l.b16 %v5361
        %v5847 = vunpack.c.l.b16 %v5362
        %v5848 = vunpack.c.h.b16 %v5362
        %v5849 = vunpack.c.l.b16 %v5363
        %v5850 = vunpack.c.l.b16 %v5364
        %v5851 = vunpack.c.h.b16 %v5364
        %v5852 = vunpack.c.l.b16 %v5365
        %v5853 = vunpack.c.l.b16 %v5366
        %v5854 = vunpack.c.h.b16 %v5366
        %v5855 = vunpack.c.l.b16 %v5367
        %v5856 = vunpack.c.l.b16 %v5368
        %v5857 = vunpack.c.h.b16 %v5368
        %v5858 = vunpack.c.l.b16 %v5369
        %v5859 = vunpack.c.l.b16 %v5370
        %v5860 = vunpack.c.h.b16 %v5370
        %v5861 = vunpack.c.l.b16 %v5371
        %v5862 = vunpack.c.l.b16 %v5372
        %v5863 = vunpack.c.h.b16 %v5372
        %v5864 = vunpack.c.l.b16 %v5373
        %v5865 = vunpack.c.l.b16 %v5374
        %v5866 = vunpack.c.h.b16 %v5374
        %v5867 = vunpack.c.l.b16 %v5375
        %v5868 = vunpack.c.l.b16 %v5376
        %v5869 = vunpack.c.h.b16 %v5376
        %v5870 = vunpack.c.l.b16 %v5377
        %v5871 = vunpack.c.l.b16 %v5378
        %v5872 = vunpack.c.h.b16 %v5378
        %v5873 = vunpack.c.l.b16 %v5379
        %v5874 = vunpack.c.l.b16 %v5380
        %v5875 = vunpack.c.h.b16 %v5380
        %v5876 = vunpack.c.l.b16 %v5381
        %v5877 = vunpack.c.l.b16 %v5382
        %v5878 = vunpack.c.h.b16 %v5382
        %v5879 = vunpack.c.l.b16 %v5383
        %v5880 = vunpack.c.l.b16 %v5384
        %v5881 = vunpack.c.h.b16 %v5384
        %v5882 = vunpack.c.l.b16 %v5385
        %v5883 = vunpack.c.l.b16 %v5386
        %v5884 = vunpack.c.h.b16 %v5386
        %v5885 = vunpack.c.l.b16 %v5387
        %v5886 = vunpack.c.l.b16 %v5388
        %v5887 = vunpack.c.h.b16 %v5388
        %v5888 = vunpack.c.l.b16 %v5389
        %v5889 = vunpack.c.l.b16 %v5390
        %v5890 = vunpack.c.h.b16 %v5390
        %v5891 = vunpack.c.l.b16 %v5391
        %v5892 = vunpack.c.l.b16 %v5392
        %v5893 = vunpack.c.h.b16 %v5392
        %v5894 = vunpack.c.l.b16 %v5393
        %v5895 = vunpack.c.l.b16 %v5394
        %v5896 = vunpack.c.h.b16 %v5394
        %v5897 = vunpack.c.l.b16 %v5395
        %v5898 = vunpack.c.l.b16 %v5396
        %v5899 = vunpack.c.h.b16 %v5396
        %v5900 = vunpack.c.l.b16 %v5397
        %v5901 = vunpack.c.l.b16 %v5398
        %v5902 = vunpack.c.h.b16 %v5398
        %v5903 = vunpack.c.l.b16 %v5399
        %v5904 = vunpack.c.l.b16 %v5400
        %v5905 = vunpack.c.h.b16 %v5400
        %v5906 = vunpack.c.l.b16 %v5401
        %v5907 = vunpack.c.l.b16 %v5402
        %v5908 = vunpack.c.h.b16 %v5402
        %v5909 = vunpack.c.l.b16 %v5403
        %v5910 = vunpack.c.l.b16 %v5404
        %v5911 = vunpack.c.h.b16 %v5404
        %v5912 = vunpack.c.l.b16 %v5405
        %v5913 = vunpack.c.l.b16 %v5406
        %v5914 = vunpack.c.h.b16 %v5406
        %v5915 = vunpack.c.l.b16 %v5407
        %v5916 = vunpack.c.l.b16 %v5408
        %v5917 = vunpack.c.h.b16 %v5408
        %v5918 = vunpack.c.l.b16 %v5409
        %v5919 = vunpack.c.l.b16 %v5410
        %v5920 = vunpack.c.h.b16 %v5410
        %v5921 = vunpack.c.l.b16 %v5411
        %v5922 = vunpack.c.l.b16 %v5412
        %v5923 = vunpack.c.h.b16 %v5412
        %v5924 = vunpack.c.l.b16 %v5413
        %v5925 = vunpack.c.l.b16 %v5414
        %v5926 = vunpack.c.h.b16 %v5414
        %v5927 = vunpack.c.l.b16 %v5415
        %v5928 = vunpack.c.l.b16 %v5416
        %v5929 = vunpack.c.h.b16 %v5416
        %v5930 = vunpack.c.l.b16 %v5417
        %v5931 = vunpack.c.l.b16 %v5418
        %v5932 = vunpack.c.h.b16 %v5418
        %v5933 = vunpack.c.l.b16 %v5419
        %v5934 = vunpack.c.l.b16 %v5420
        %v5935 = vunpack.c.h.b16 %v5420
        %v5936 = vunpack.c.l.b16 %v5421
        %v5937 = vunpack.c.l.b16 %v5422
        %v5938 = vunpack.c.h.b16 %v5422
        %v5939 = vunpack.c.l.b16 %v5423
        %v5940 = vunpack.c.l.b16 %v5424
        %v5941 = vunpack.c.h.b16 %v5424
        %v5942 = vunpack.c.l.b16 %v5425
        %v5943 = vunpack.c.l.b16 %v5426
        %v5944 = vunpack.c.h.b16 %v5426
        %v5945 = vunpack.c.l.b16 %v5427
        %v5946 = vunpack.c.l.b16 %v5428
        %v5947 = vunpack.c.h.b16 %v5428
        %v5948 = vunpack.c.l.b16 %v5429
        %v5949 = vunpack.c.l.b16 %v5430
        %v5950 = vunpack.c.h.b16 %v5430
        %v5951 = vunpack.c.l.b16 %v5431
        %v5952 = vunpack.c.l.b16 %v5432
        %v5953 = vunpack.c.h.b16 %v5432
        %v5954 = vunpack.c.l.b16 %v5433
        %v5955 = vunpack.c.l.b16 %v5434
        %v5956 = vunpack.c.h.b16 %v5434
        %v5957 = vunpack.c.l.b16 %v5435
        %v5958 = vunpack.c.l.b16 %v5436
        %v5959 = vunpack.c.h.b16 %v5436
        %v5960 = vunpack.c.l.b16 %v5437
        %v5961 = vunpack.c.l.b16 %v5438
        %v5962 = vunpack.c.h.b16 %v5438
        %v5963 = vunpack.c.l.b16 %v5439
        %v5964 = vunpack.c.l.b16 %v5440
        %v5965 = vunpack.c.h.b16 %v5440
        %v5966 = vunpack.c.l.b16 %v5441
        %v5967 = vunpack.c.l.b16 %v5442
        %v5968 = vunpack.c.h.b16 %v5442
        %v5969 = vunpack.c.l.b16 %v5443
        %v5970 = vunpack.c.l.b16 %v5444
        %v5971 = vunpack.c.h.b16 %v5444
        %v5972 = vunpack.c.l.b16 %v5445
        %v5973 = vunpack.c.l.b16 %v5446
        %v5974 = vunpack.c.h.b16 %v5446
        %v5975 = vunpack.c.l.b16 %v5447
        %v5976 = vunpack.c.l.b16 %v5448
        %v5977 = vunpack.c.h.b16 %v5448
        %v5978 = vunpack.c.l.b16 %v5449
        %v5979 = vunpack.c.l.b16 %v5450
        %v5980 = vunpack.c.h.b16 %v5450
        %v5981 = vunpack.c.l.b16 %v5451
        %v5982 = vunpack.c.l.b16 %v5452
        %v5983 = vunpack.c.h.b16 %v5452
        %v5984 = vunpack.c.l.b16 %v5453
        %v5985 = vunpack.c.l.b16 %v5454
        %v5986 = vunpack.c.h.b16 %v5454
        %v5987 = vunpack.c.l.b16 %v5455
        %v5988 = vunpack.c.l.b16 %v5456
        %v5989 = vunpack.c.h.b16 %v5456
        %v5990 = vunpack.c.l.b16 %v5457
        %v5991 = vunpack.c.l.b16 %v5458
        %v5992 = vunpack.c.h.b16 %v5458
        %v5993 = vunpack.c.l.b16 %v5459
        %v5994 = vunpack.c.l.b16 %v5460
        %v5995 = vunpack.c.h.b16 %v5460
        %v5996 = vunpack.c.l.b16 %v5461
        %v5997 = vunpack.c.l.b16 %v5462
        %v5998 = vunpack.c.h.b16 %v5462
        %v5999 = vunpack.c.l.b16 %v5463
        %v6000 = vunpack.c.l.b16 %v5464
        %v6001 = vunpack.c.h.b16 %v5464
        %v6002 = vunpack.c.l.b16 %v5465
        %v6003 = vunpack.c.l.b16 %v5466
        %v6004 = vunpack.c.h.b16 %v5466
        %v6005 = vunpack.c.l.b16 %v5467
        %v6006 = vunpack.c.l.b16 %v5468
        %v6007 = vunpack.c.h.b16 %v5468
        %v6008 = vunpack.c.l.b16 %v5469
        %v6009 = vunpack.c.l.b16 %v5470
        %v6010 = vunpack.c.h.b16 %v5470
        %v6011 = vunpack.c.l.b16 %v5471
        %v6012 = vunpack.c.l.b16 %v5472
        %v6013 = vunpack.c.h.b16 %v5472
        %v6014 = vunpack.c.l.b16 %v5473
        %v6015 = vunpack.c.l.b16 %v5474
        %v6016 = vunpack.c.h.b16 %v5474
        %v6017 = vunpack.c.l.b16 %v5475
        %v6018 = vunpack.c.l.b16 %v5476
        %v6019 = vunpack.c.h.b16 %v5476
        %v6020 = vunpack.c.l.b16 %v5477
        %v6021 = vunpack.c.l.b16 %v5478
        %v6022 = vunpack.c.h.b16 %v5478
        %v6023 = vunpack.c.l.b16 %v5479
        %v6024 = vunpack.c.l.b16 %v5480
        %v6025 = vunpack.c.h.b16 %v5480
        %v6026 = vunpack.c.l.b16 %v5481
        %v6027 = vunpack.c.l.b16 %v5482
        %v6028 = vunpack.c.h.b16 %v5482
        %v6029 = vunpack.c.l.b16 %v5483
        %v6030 = vunpack.c.l.b16 %v5484
        %v6031 = vunpack.c.h.b16 %v5484
        %v6032 = vunpack.c.l.b16 %v5485
        %v6033 = vunpack.c.l.b16 %v5486
        %v6034 = vunpack.c.h.b16 %v5486
        %v6035 = vunpack.c.l.b16 %v5487
        %v6036 = vunpack.c.l.b16 %v5488
        %v6037 = vunpack.c.h.b16 %v5488
        %v6038 = vunpack.c.l.b16 %v5489
        %v6039 = vunpack.c.l.b16 %v5490
        %v6040 = vunpack.c.h.b16 %v5490
        %v6041 = vunpack.c.l.b16 %v5491
        %v6042 = vunpack.c.l.b16 %v5492
        %v6043 = vunpack.c.h.b16 %v5492
        %v6044 = vunpack.c.l.b16 %v5493
        %v6045 = vunpack.c.l.b16 %v5494
        %v6046 = vunpack.c.h.b16 %v5494
        %v6047 = vunpack.c.l.b16 %v5495
        %v6048 = vunpack.c.l.b16 %v5496
        %v6049 = vunpack.c.h.b16 %v5496
        %v6050 = vunpack.c.l.b16 %v5497
        %v6051 = vunpack.c.l.b16 %v5498
        %v6052 = vunpack.c.h.b16 %v5498
        %v6053 = vunpack.c.l.b16 %v5499
        %v6054 = vunpack.c.l.b16 %v5500
        %v6055 = vunpack.c.h.b16 %v5500
        %v6056 = vunpack.c.l.b16 %v5501
        %v6057 = vunpack.c.l.b16 %v5502
        %v6058 = vunpack.c.h.b16 %v5502
        %v6059 = vunpack.c.l.b16 %v5503
        %v6060 = vunpack.c.l.b16 %v5504
        %v6061 = vunpack.c.h.b16 %v5504
        %v6062 = vunpack.c.l.b16 %v5505
        %v6063 = vunpack.c.l.b16 %v5506
        %v6064 = vunpack.c.h.b16 %v5506
        %v6065 = vunpack.c.l.b16 %v5507
        %v6066 = vunpack.c.l.b16 %v5508
        %v6067 = vunpack.c.h.b16 %v5508
        %v6068 = vunpack.c.l.b16 %v5509
        %v6069 = vunpack.c.l.b16 %v5510
        %v6070 = vunpack.c.h.b16 %v5510
        %v6071 = vunpack.c.l.b16 %v5511
        %v6072 = vunpack.c.l.b16 %v5512
        %v6073 = vunpack.c.h.b16 %v5512
        %v6074 = vunpack.c.l.b16 %v5513
        %v6075 = vunpack.c.l.b16 %v5514
        %v6076 = vunpack.c.h.b16 %v5514
        %v6077 = vunpack.c.l.b16 %v5515
        %v6078 = vunpack.c.l.b16 %v5516
        %v6079 = vunpack.c.h.b16 %v5516
        %v6080 = vunpack.c.l.b16 %v5517
        %v6081 = vunpack.c.l.b16 %v5518
        %v6082 = vunpack.c.h.b16 %v5518
        %v6083 = vunpack.c.l.b16 %v5519
        %v6084 = vunpack.c.l.b16 %v5520
        %v6085 = vunpack.c.h.b16 %v5520
        %v6086 = vunpack.c.l.b16 %v5521
        %v6087 = vunpack.c.l.b16 %v5522
        %v6088 = vunpack.c.h.b16 %v5522
        %v6089 = vunpack.c.l.b16 %v5523
        %v6090 = vunpack.c.l.b16 %v5524
        %v6091 = vunpack.c.h.b16 %v5524
        %v6092 = vunpack.c.l.b16 %v5525
        %v6093 = vunpack.c.l.b16 %v5526
        %v6094 = vunpack.c.h.b16 %v5526
        %v6095 = vunpack.c.l.b16 %v5527
        %v6096 = vunpack.c.l.b16 %v5528
        %v6097 = vunpack.c.h.b16 %v5528
        %v6098 = vunpack.c.l.b16 %v5529
        %v6099 = vunpack.c.l.b16 %v5530
        %v6100 = vunpack.c.h.b16 %v5530
        %v6101 = vunpack.c.l.b16 %v5531
        %v6102 = vunpack.c.l.b16 %v5532
        %v6103 = vunpack.c.h.b16 %v5532
        %v6104 = vunpack.c.l.b16 %v5533
        %v6105 = vunpack.c.l.b16 %v5534
        %v6106 = vunpack.c.h.b16 %v5534
        %v6107 = vunpack.c.l.b16 %v5535
        %v6108 = vunpack.c.l.b16 %v5536
        %v6109 = vunpack.c.h.b16 %v5536
        %v6110 = vunpack.c.l.b16 %v5537
        %v6111 = vpack.c.b16 %v5799, %v5796
        %v6112 = vpack.c.b16 %v5800, %v5797
        %v6113 = vpack.c.b16 %v5801, %v5798
        %v6114 = vpack.c.b16 %v5805, %v5802
        %v6115 = vpack.c.b16 %v5806, %v5803
        %v6116 = vpack.c.b16 %v5807, %v5804
        %v6117 = vpack.c.b16 %v5811, %v5808
        %v6118 = vpack.c.b16 %v5812, %v5809
        %v6119 = vpack.c.b16 %v5813, %v5810
        %v6120 = vpack.c.b16 %v5817, %v5814
        %v6121 = vpack.c.b16 %v5818, %v5815
        %v6122 = vpack.c.b16 %v5819, %v5816
        %v6123 = vpack.c.b16 %v5823, %v5820
        %v6124 = vpack.c.b16 %v5824, %v5821
        %v6125 = vpack.c.b16 %v5825, %v5822
        %v6126 = vpack.c.b16 %v5829, %v5826
        %v6127 = vpack.c.b16 %v5830, %v5827
        %v6128 = vpack.c.b16 %v5831, %v5828
        %v6129 = vpack.c.b16 %v5835, %v5832
        %v6130 = vpack.c.b16 %v5836, %v5833
        %v6131 = vpack.c.b16 %v5837, %v5834
        %v6132 = vpack.c.b16 %v5841, %v5838
        %v6133 = vpack.c.b16 %v5842, %v5839
        %v6134 = vpack.c.b16 %v5843, %v5840
        %v6135 = vpack.c.b16 %v5847, %v5844
        %v6136 = vpack.c.b16 %v5848, %v5845
        %v6137 = vpack.c.b16 %v5849, %v5846
        %v6138 = vpack.c.b16 %v5853, %v5850
        %v6139 = vpack.c.b16 %v5854, %v5851
        %v6140 = vpack.c.b16 %v5855, %v5852
        %v6141 = vpack.c.b16 %v5859, %v5856
        %v6142 = vpack.c.b16 %v5860, %v5857
        %v6143 = vpack.c.b16 %v5861, %v5858
        %v6144 = vpack.c.b16 %v5865, %v5862
        %v6145 = vpack.c.b16 %v5866, %v5863
        %v6146 = vpack.c.b16 %v5867, %v5864
        %v6147 = vpack.c.b16 %v5871, %v5868
        %v6148 = vpack.c.b16 %v5872, %v5869
        %v6149 = vpack.c.b16 %v5873, %v5870
        %v6150 = vpack.c.b16 %v5877, %v5874
        %v6151 = vpack.c.b16 %v5878, %v5875
        %v6152 = vpack.c.b16 %v5879, %v5876
        %v6153 = vpack.c.b16 %v5883, %v5880
        %v6154 = vpack.c.b16 %v5884, %v5881
        %v6155 = vpack.c.b16 %v5885, %v5882
        %v6156 = vpack.c.b16 %v5889, %v5886
        %v6157 = vpack.c.b16 %v5890, %v5887
        %v6158 = vpack.c.b16 %v5891, %v5888
        %v6159 = vpack.c.b16 %v5895, %v5892
        %v6160 = vpack.c.b16 %v5896, %v5893
        %v6161 = vpack.c.b16 %v5897, %v5894
        %v6162 = vpack.c.b16 %v5901, %v5898
        %v6163 = vpack.c.b16 %v5902, %v5899
        %v6164 = vpack.c.b16 %v5903, %v5900
        %v6165 = vpack.c.b16 %v5907, %v5904
        %v6166 = vpack.c.b16 %v5908, %v5905
        %v6167 = vpack.c.b16 %v5909, %v5906
        %v6168 = vpack.c.b16 %v5913, %v5910
        %v6169 = vpack.c.b16 %v5914, %v5911
        %v6170 = vpack.c.b16 %v5915, %v5912
        %v6171 = vpack.c.b16 %v5919, %v5916
        %v6172 = vpack.c.b16 %v5920, %v5917
        %v6173 = vpack.c.b16 %v5921, %v5918
        %v6174 = vpack.c.b16 %v5925, %v5922
        %v6175 = vpack.c.b16 %v5926, %v5923
        %v6176 = vpack.c.b16 %v5927, %v5924
        %v6177 = vpack.c.b16 %v5931, %v5928
        %v6178 = vpack.c.b16 %v5932, %v5929
        %v6179 = vpack.c.b16 %v5933, %v5930
        %v6180 = vpack.c.b16 %v5937, %v5934
        %v6181 = vpack.c.b16 %v5938, %v5935
        %v6182 = vpack.c.b16 %v5939, %v5936
        %v6183 = vpack.c.b16 %v5943, %v5940
        %v6184 = vpack.c.b16 %v5944, %v5941
        %v6185 = vpack.c.b16 %v5945, %v5942
        %v6186 = vpack.c.b16 %v5949, %v5946
        %v6187 = vpack.c.b16 %v5950, %v5947
        %v6188 = vpack.c.b16 %v5951, %v5948
        %v6189 = vpack.c.b16 %v5955, %v5952
        %v6190 = vpack.c.b16 %v5956, %v5953
        %v6191 = vpack.c.b16 %v5957, %v5954
        %v6192 = vpack.c.b16 %v5961, %v5958
        %v6193 = vpack.c.b16 %v5962, %v5959
        %v6194 = vpack.c.b16 %v5963, %v5960
        %v6195 = vpack.c.b16 %v5967, %v5964
        %v6196 = vpack.c.b16 %v5968, %v5965
        %v6197 = vpack.c.b16 %v5969, %v5966
        %v6198 = vpack.c.b16 %v5973, %v5970
        %v6199 = vpack.c.b16 %v5974, %v5971
        %v6200 = vpack.c.b16 %v5975, %v5972
        %v6201 = vpack.c.b16 %v5979, %v5976
        %v6202 = vpack.c.b16 %v5980, %v5977
        %v6203 = vpack.c.b16 %v5981, %v5978
        %v6204 = vpack.c.b16 %v5985, %v5982
        %v6205 = vpack.c.b16 %v5986, %v5983
        %v6206 = vpack.c.b16 %v5987, %v5984
        %v6207 = vpack.c.b16 %v5991, %v5988
        %v6208 = vpack.c.b16 %v5992, %v5989
        %v6209 = vpack.c.b16 %v5993, %v5990
        %v6210 = vpack.c.b16 %v5997, %v5994
        %v6211 = vpack.c.b16 %v5998, %v5995
        %v6212 = vpack.c.b16 %v5999, %v5996
        %v6213 = vpack.c.b16 %v6003, %v6000
        %v6214 = vpack.c.b16 %v6004, %v6001
        %v6215 = vpack.c.b16 %v6005, %v6002
        %v6216 = vpack.c.b16 %v6009, %v6006
        %v6217 = vpack.c.b16 %v6010, %v6007
        %v6218 = vpack.c.b16 %v6011, %v6008
        %v6219 = vpack.c.b16 %v6015, %v6012
        %v6220 = vpack.c.b16 %v6016, %v6013
        %v6221 = vpack.c.b16 %v6017, %v6014
        %v6222 = vpack.c.b16 %v6021, %v6018
        %v6223 = vpack.c.b16 %v6022, %v6019
        %v6224 = vpack.c.b16 %v6023, %v6020
        %v6225 = vpack.c.b16 %v6027, %v6024
        %v6226 = vpack.c.b16 %v6028, %v6025
        %v6227 = vpack.c.b16 %v6029, %v6026
        %v6228 = vpack.c.b16 %v6033, %v6030
        %v6229 = vpack.c.b16 %v6034, %v6031
        %v6230 = vpack.c.b16 %v6035, %v6032
        %v6231 = vpack.c.b16 %v6039, %v6036
        %v6232 = vpack.c.b16 %v6040, %v6037
        %v6233 = vpack.c.b16 %v6041, %v6038
        %v6234 = vpack.c.b16 %v6045, %v6042
        %v6235 = vpack.c.b16 %v6046, %v6043
        %v6236 = vpack.c.b16 %v6047, %v6044
        %v6237 = vpack.c.b16 %v6051, %v6048
        %v6238 = vpack.c.b16 %v6052, %v6049
        %v6239 = vpack.c.b16 %v6053, %v6050
        %v6240 = vpack.c.b16 %v6057, %v6054
        %v6241 = vpack.c.b16 %v6058, %v6055
        %v6242 = vpack.c.b16 %v6059, %v6056
        %v6243 = vpack.c.b16 %v6063, %v6060
        %v6244 = vpack.c.b16 %v6064, %v6061
        %v6245 = vpack.c.b16 %v6065, %v6062
        %v6246 = vpack.c.b16 %v6069, %v6066
        %v6247 = vpack.c.b16 %v6070, %v6067
        %v6248 = vpack.c.b16 %v6071, %v6068
        %v6249 = vpack.c.b16 %v6075, %v6072
        %v6250 = vpack.c.b16 %v6076, %v6073
        %v6251 = vpack.c.b16 %v6077, %v6074
        %v6252 = vpack.c.b16 %v6081, %v6078
        %v6253 = vpack.c.b16 %v6082, %v6079
        %v6254 = vpack.c.b16 %v6083, %v6080
        %v6255 = vpack.c.b16 %v6087, %v6084
        %v6256 = vpack.c.b16 %v6088, %v6085
        %v6257 = vpack.c.b16 %v6089, %v6086
        %v6258 = vpack.c.b16 %v6093, %v6090
        %v6259 = vpack.c.b16 %v6094, %v6091
        %v6260 = vpack.c.b16 %v6095, %v6092
        %v6261 = vpack.c.b16 %v6099, %v6096
        %v6262 = vpack.c.b16 %v6100, %v6097
        %v6263 = vpack.c.b16 %v6101, %v6098
        %v6264 = vpack.c.b16 %v6105, %v6102
        %v6265 = vpack.c.b16 %v6106, %v6103
        %v6266 = vpack.c.b16 %v6107, %v6104
        %v6267 = vpack.c.b16 %v6108, %v6108
        %v6268 = vpack.c.b16 %v6109, %v6109
        %v6269 = vpack.c.b16 %v6110, %v6110
        %6429 = vmatpush.bf16.msra.mxu0 %v5552
        %6430 = vmatpush.bf16.msra.mxu0 %v5550
        %6431 = vmatpush.bf16.msra.mxu0 %v5548
        %6432 = vmatpush.bf16.msra.mxu0 %v5546
        %6433 = vmatpush.bf16.msra.mxu0 %v5544
        %6434 = vmatpush.bf16.msra.mxu0 %v5542
        %6435 = vmatpush.bf16.msra.mxu0 %v5540
        %6436 = vmatpush.bf16.msra.mxu0 %v5538
        %6437 = vmatmul.bf16.gmra.mxu0 %v6111
        %v6438 = vpop.f32.mrf.mxu0
        %v6439 = vadd.f32 0.0, %v6438
        %v6440 = vpop.f32.mrf.mxu0
        %v6441 = vadd.f32 0.0, %v6440
        %6442 = vmatmul.bf16.gmra.mxu0 %v6114
        %v6443 = vpop.f32.mrf.mxu0
        %v6444 = vadd.f32 0.0, %v6443
        %v6445 = vpop.f32.mrf.mxu0
        %v6446 = vadd.f32 0.0, %v6445
        %6447 = vmatmul.bf16.gmra.mxu0 %v6117
        %v6448 = vpop.f32.mrf.mxu0
        %v6449 = vadd.f32 0.0, %v6448
        %v6450 = vpop.f32.mrf.mxu0
        %v6451 = vadd.f32 0.0, %v6450
        %6452 = vmatmul.bf16.gmra.mxu0 %v6120
        %v6453 = vpop.f32.mrf.mxu0
        %v6454 = vadd.f32 0.0, %v6453
        %v6455 = vpop.f32.mrf.mxu0
        %v6456 = vadd.f32 0.0, %v6455
        %6457 = vmatmul.bf16.gmra.mxu0 %v6123
        %v6458 = vpop.f32.mrf.mxu0
        %v6459 = vadd.f32 0.0, %v6458
        %v6460 = vpop.f32.mrf.mxu0
        %v6461 = vadd.f32 0.0, %v6460
        %6462 = vmatmul.bf16.gmra.mxu0 %v6126
        %v6463 = vpop.f32.mrf.mxu0
        %v6464 = vadd.f32 0.0, %v6463
        %v6465 = vpop.f32.mrf.mxu0
        %v6466 = vadd.f32 0.0, %v6465
        %6467 = vmatmul.bf16.gmra.mxu0 %v6129
        %v6468 = vpop.f32.mrf.mxu0
        %v6469 = vadd.f32 0.0, %v6468
        %v6470 = vpop.f32.mrf.mxu0
        %v6471 = vadd.f32 0.0, %v6470
        %6472 = vmatmul.bf16.gmra.mxu0 %v6132
        %v6473 = vpop.f32.mrf.mxu0
        %v6474 = vadd.f32 0.0, %v6473
        %v6475 = vpop.f32.mrf.mxu0
        %v6476 = vadd.f32 0.0, %v6475
        %6477 = vmatmul.bf16.gmra.mxu0 %v6135
        %v6478 = vpop.f32.mrf.mxu0
        %v6479 = vadd.f32 0.0, %v6478
        %v6480 = vpop.f32.mrf.mxu0
        %v6481 = vadd.f32 0.0, %v6480
        %6482 = vmatmul.bf16.gmra.mxu0 %v6138
        %v6483 = vpop.f32.mrf.mxu0
        %v6484 = vadd.f32 0.0, %v6483
        %v6485 = vpop.f32.mrf.mxu0
        %v6486 = vadd.f32 0.0, %v6485
        %6487 = vmatmul.bf16.gmra.mxu0 %v6141
        %v6488 = vpop.f32.mrf.mxu0
        %v6489 = vadd.f32 0.0, %v6488
        %v6490 = vpop.f32.mrf.mxu0
        %v6491 = vadd.f32 0.0, %v6490
        %6492 = vmatmul.bf16.gmra.mxu0 %v6144
        %v6493 = vpop.f32.mrf.mxu0
        %v6494 = vadd.f32 0.0, %v6493
        %v6495 = vpop.f32.mrf.mxu0
        %v6496 = vadd.f32 0.0, %v6495
        %6497 = vmatmul.bf16.gmra.mxu0 %v6147
        %v6498 = vpop.f32.mrf.mxu0
        %v6499 = vadd.f32 0.0, %v6498
        %v6500 = vpop.f32.mrf.mxu0
        %v6501 = vadd.f32 0.0, %v6500
        %6502 = vmatmul.bf16.gmra.mxu0 %v6150
        %v6503 = vpop.f32.mrf.mxu0
        %v6504 = vadd.f32 0.0, %v6503
        %v6505 = vpop.f32.mrf.mxu0
        %v6506 = vadd.f32 0.0, %v6505
        %6507 = vmatmul.bf16.gmra.mxu0 %v6153
        %v6508 = vpop.f32.mrf.mxu0
        %v6509 = vadd.f32 0.0, %v6508
        %v6510 = vpop.f32.mrf.mxu0
        %v6511 = vadd.f32 0.0, %v6510
        %6512 = vmatmul.bf16.gmra.mxu0 %v6156
        %v6513 = vpop.f32.mrf.mxu0
        %v6514 = vadd.f32 0.0, %v6513
        %v6515 = vpop.f32.mrf.mxu0
        %v6516 = vadd.f32 0.0, %v6515
        %6517 = vmatmul.bf16.gmra.mxu0 %v6159
        %v6518 = vpop.f32.mrf.mxu0
        %v6519 = vadd.f32 0.0, %v6518
        %v6520 = vpop.f32.mrf.mxu0
        %v6521 = vadd.f32 0.0, %v6520
        %6522 = vmatmul.bf16.gmra.mxu0 %v6162
        %v6523 = vpop.f32.mrf.mxu0
        %v6524 = vadd.f32 0.0, %v6523
        %v6525 = vpop.f32.mrf.mxu0
        %v6526 = vadd.f32 0.0, %v6525
        %6527 = vmatmul.bf16.gmra.mxu0 %v6165
        %v6528 = vpop.f32.mrf.mxu0
        %v6529 = vadd.f32 0.0, %v6528
        %v6530 = vpop.f32.mrf.mxu0
        %v6531 = vadd.f32 0.0, %v6530
        %6532 = vmatmul.bf16.gmra.mxu0 %v6168
        %v6533 = vpop.f32.mrf.mxu0
        %v6534 = vadd.f32 0.0, %v6533
        %v6535 = vpop.f32.mrf.mxu0
        %v6536 = vadd.f32 0.0, %v6535
        %6537 = vmatmul.bf16.gmra.mxu0 %v6171
        %v6538 = vpop.f32.mrf.mxu0
        %v6539 = vadd.f32 0.0, %v6538
        %v6540 = vpop.f32.mrf.mxu0
        %v6541 = vadd.f32 0.0, %v6540
        %6542 = vmatmul.bf16.gmra.mxu0 %v6174
        %v6543 = vpop.f32.mrf.mxu0
        %v6544 = vadd.f32 0.0, %v6543
        %v6545 = vpop.f32.mrf.mxu0
        %v6546 = vadd.f32 0.0, %v6545
        %6547 = vmatmul.bf16.gmra.mxu0 %v6177
        %v6548 = vpop.f32.mrf.mxu0
        %v6549 = vadd.f32 0.0, %v6548
        %v6550 = vpop.f32.mrf.mxu0
        %v6551 = vadd.f32 0.0, %v6550
        %6552 = vmatmul.bf16.gmra.mxu0 %v6180
        %v6553 = vpop.f32.mrf.mxu0
        %v6554 = vadd.f32 0.0, %v6553
        %v6555 = vpop.f32.mrf.mxu0
        %v6556 = vadd.f32 0.0, %v6555
        %6557 = vmatmul.bf16.gmra.mxu0 %v6183
        %v6558 = vpop.f32.mrf.mxu0
        %v6559 = vadd.f32 0.0, %v6558
        %v6560 = vpop.f32.mrf.mxu0
        %v6561 = vadd.f32 0.0, %v6560
        %6562 = vmatmul.bf16.gmra.mxu0 %v6186
        %v6563 = vpop.f32.mrf.mxu0
        %v6564 = vadd.f32 0.0, %v6563
        %v6565 = vpop.f32.mrf.mxu0
        %v6566 = vadd.f32 0.0, %v6565
        %6567 = vmatmul.bf16.gmra.mxu0 %v6189
        %v6568 = vpop.f32.mrf.mxu0
        %v6569 = vadd.f32 0.0, %v6568
        %v6570 = vpop.f32.mrf.mxu0
        %v6571 = vadd.f32 0.0, %v6570
        %6572 = vmatmul.bf16.gmra.mxu0 %v6192
        %v6573 = vpop.f32.mrf.mxu0
        %v6574 = vadd.f32 0.0, %v6573
        %v6575 = vpop.f32.mrf.mxu0
        %v6576 = vadd.f32 0.0, %v6575
        %6577 = vmatmul.bf16.gmra.mxu0 %v6195
        %v6578 = vpop.f32.mrf.mxu0
        %v6579 = vadd.f32 0.0, %v6578
        %v6580 = vpop.f32.mrf.mxu0
        %v6581 = vadd.f32 0.0, %v6580
        %6582 = vmatmul.bf16.gmra.mxu0 %v6198
        %v6583 = vpop.f32.mrf.mxu0
        %v6584 = vadd.f32 0.0, %v6583
        %v6585 = vpop.f32.mrf.mxu0
        %v6586 = vadd.f32 0.0, %v6585
        %6587 = vmatmul.bf16.gmra.mxu0 %v6201
        %v6588 = vpop.f32.mrf.mxu0
        %v6589 = vadd.f32 0.0, %v6588
        %v6590 = vpop.f32.mrf.mxu0
        %v6591 = vadd.f32 0.0, %v6590
        %6592 = vmatmul.bf16.gmra.mxu0 %v6204
        %v6593 = vpop.f32.mrf.mxu0
        %v6594 = vadd.f32 0.0, %v6593
        %v6595 = vpop.f32.mrf.mxu0
        %v6596 = vadd.f32 0.0, %v6595
        %6597 = vmatmul.bf16.gmra.mxu0 %v6207
        %v6598 = vpop.f32.mrf.mxu0
        %v6599 = vadd.f32 0.0, %v6598
        %v6600 = vpop.f32.mrf.mxu0
        %v6601 = vadd.f32 0.0, %v6600
        %6602 = vmatmul.bf16.gmra.mxu0 %v6210
        %v6603 = vpop.f32.mrf.mxu0
        %v6604 = vadd.f32 0.0, %v6603
        %v6605 = vpop.f32.mrf.mxu0
        %v6606 = vadd.f32 0.0, %v6605
        %6607 = vmatmul.bf16.gmra.mxu0 %v6213
        %v6608 = vpop.f32.mrf.mxu0
        %v6609 = vadd.f32 0.0, %v6608
        %v6610 = vpop.f32.mrf.mxu0
        %v6611 = vadd.f32 0.0, %v6610
        %6612 = vmatmul.bf16.gmra.mxu0 %v6216
        %v6613 = vpop.f32.mrf.mxu0
        %v6614 = vadd.f32 0.0, %v6613
        %v6615 = vpop.f32.mrf.mxu0
        %v6616 = vadd.f32 0.0, %v6615
        %6617 = vmatmul.bf16.gmra.mxu0 %v6219
        %v6618 = vpop.f32.mrf.mxu0
        %v6619 = vadd.f32 0.0, %v6618
        %v6620 = vpop.f32.mrf.mxu0
        %v6621 = vadd.f32 0.0, %v6620
        %6622 = vmatmul.bf16.gmra.mxu0 %v6222
        %v6623 = vpop.f32.mrf.mxu0
        %v6624 = vadd.f32 0.0, %v6623
        %v6625 = vpop.f32.mrf.mxu0
        %v6626 = vadd.f32 0.0, %v6625
        %6627 = vmatmul.bf16.gmra.mxu0 %v6225
        %v6628 = vpop.f32.mrf.mxu0
        %v6629 = vadd.f32 0.0, %v6628
        %v6630 = vpop.f32.mrf.mxu0
        %v6631 = vadd.f32 0.0, %v6630
        %6632 = vmatmul.bf16.gmra.mxu0 %v6228
        %v6633 = vpop.f32.mrf.mxu0
        %v6634 = vadd.f32 0.0, %v6633
        %v6635 = vpop.f32.mrf.mxu0
        %v6636 = vadd.f32 0.0, %v6635
        %6637 = vmatmul.bf16.gmra.mxu0 %v6231
        %v6638 = vpop.f32.mrf.mxu0
        %v6639 = vadd.f32 0.0, %v6638
        %v6640 = vpop.f32.mrf.mxu0
        %v6641 = vadd.f32 0.0, %v6640
        %6642 = vmatmul.bf16.gmra.mxu0 %v6234
        %v6643 = vpop.f32.mrf.mxu0
        %v6644 = vadd.f32 0.0, %v6643
        %v6645 = vpop.f32.mrf.mxu0
        %v6646 = vadd.f32 0.0, %v6645
        %6647 = vmatmul.bf16.gmra.mxu0 %v6237
        %v6648 = vpop.f32.mrf.mxu0
        %v6649 = vadd.f32 0.0, %v6648
        %v6650 = vpop.f32.mrf.mxu0
        %v6651 = vadd.f32 0.0, %v6650
        %6652 = vmatmul.bf16.gmra.mxu0 %v6240
        %v6653 = vpop.f32.mrf.mxu0
        %v6654 = vadd.f32 0.0, %v6653
        %v6655 = vpop.f32.mrf.mxu0
        %v6656 = vadd.f32 0.0, %v6655
        %6657 = vmatmul.bf16.gmra.mxu0 %v6243
        %v6658 = vpop.f32.mrf.mxu0
        %v6659 = vadd.f32 0.0, %v6658
        %v6660 = vpop.f32.mrf.mxu0
        %v6661 = vadd.f32 0.0, %v6660
        %6662 = vmatmul.bf16.gmra.mxu0 %v6246
        %v6663 = vpop.f32.mrf.mxu0
        %v6664 = vadd.f32 0.0, %v6663
        %v6665 = vpop.f32.mrf.mxu0
        %v6666 = vadd.f32 0.0, %v6665
        %6667 = vmatmul.bf16.gmra.mxu0 %v6249
        %v6668 = vpop.f32.mrf.mxu0
        %v6669 = vadd.f32 0.0, %v6668
        %v6670 = vpop.f32.mrf.mxu0
        %v6671 = vadd.f32 0.0, %v6670
        %6672 = vmatmul.bf16.gmra.mxu0 %v6252
        %v6673 = vpop.f32.mrf.mxu0
        %v6674 = vadd.f32 0.0, %v6673
        %v6675 = vpop.f32.mrf.mxu0
        %v6676 = vadd.f32 0.0, %v6675
        %6677 = vmatmul.bf16.gmra.mxu0 %v6255
        %v6678 = vpop.f32.mrf.mxu0
        %v6679 = vadd.f32 0.0, %v6678
        %v6680 = vpop.f32.mrf.mxu0
        %v6681 = vadd.f32 0.0, %v6680
        %6682 = vmatmul.bf16.gmra.mxu0 %v6258
        %v6683 = vpop.f32.mrf.mxu0
        %v6684 = vadd.f32 0.0, %v6683
        %v6685 = vpop.f32.mrf.mxu0
        %v6686 = vadd.f32 0.0, %v6685
        %6687 = vmatmul.bf16.gmra.mxu0 %v6261
        %v6688 = vpop.f32.mrf.mxu0
        %v6689 = vadd.f32 0.0, %v6688
        %v6690 = vpop.f32.mrf.mxu0
        %v6691 = vadd.f32 0.0, %v6690
        %6692 = vmatmul.bf16.gmra.mxu0 %v6264
        %v6693 = vpop.f32.mrf.mxu0
        %v6694 = vadd.f32 0.0, %v6693
        %v6695 = vpop.f32.mrf.mxu0
        %v6696 = vadd.f32 0.0, %v6695
        %6697 = vmatmul.bf16.gmra.mxu0 %v6267
        %v6698 = vpop.f32.mrf.mxu0
        %v6699 = vadd.f32 0.0, %v6698
        %v6700 = vpop.f32.mrf.mxu0
        %6701 = vdwg.mxu0
        %6702 = vmatpush.bf16.msra.mxu0 %v5568
        %6703 = vmatpush.bf16.msra.mxu0 %v5566
        %6704 = vmatpush.bf16.msra.mxu0 %v5564
        %6705 = vmatpush.bf16.msra.mxu0 %v5562
        %6706 = vmatpush.bf16.msra.mxu0 %v5560
        %6707 = vmatpush.bf16.msra.mxu0 %v5558
        %6708 = vmatpush.bf16.msra.mxu0 %v5556
        %6709 = vmatpush.bf16.msra.mxu0 %v5554
        %6710 = vmatmul.bf16.gmra.mxu0 %v6112
        %v6711 = vpop.f32.mrf.mxu0
        %v6712 = vadd.f32 %v6439, %v6711
        %v6713 = vpop.f32.mrf.mxu0
        %v6714 = vadd.f32 %v6441, %v6713
        %6715 = vmatmul.bf16.gmra.mxu0 %v6115
        %v6716 = vpop.f32.mrf.mxu0
        %v6717 = vadd.f32 %v6444, %v6716
        %v6718 = vpop.f32.mrf.mxu0
        %v6719 = vadd.f32 %v6446, %v6718
        %6720 = vmatmul.bf16.gmra.mxu0 %v6118
        %v6721 = vpop.f32.mrf.mxu0
        %v6722 = vadd.f32 %v6449, %v6721
        %v6723 = vpop.f32.mrf.mxu0
        %v6724 = vadd.f32 %v6451, %v6723
        %6725 = vmatmul.bf16.gmra.mxu0 %v6121
        %v6726 = vpop.f32.mrf.mxu0
        %v6727 = vadd.f32 %v6454, %v6726
        %v6728 = vpop.f32.mrf.mxu0
        %v6729 = vadd.f32 %v6456, %v6728
        %6730 = vmatmul.bf16.gmra.mxu0 %v6124
        %v6731 = vpop.f32.mrf.mxu0
        %v6732 = vadd.f32 %v6459, %v6731
        %v6733 = vpop.f32.mrf.mxu0
        %v6734 = vadd.f32 %v6461, %v6733
        %6735 = vmatmul.bf16.gmra.mxu0 %v6127
        %v6736 = vpop.f32.mrf.mxu0
        %v6737 = vadd.f32 %v6464, %v6736
        %v6738 = vpop.f32.mrf.mxu0
        %v6739 = vadd.f32 %v6466, %v6738
        %6740 = vmatmul.bf16.gmra.mxu0 %v6130
        %v6741 = vpop.f32.mrf.mxu0
        %v6742 = vadd.f32 %v6469, %v6741
        %v6743 = vpop.f32.mrf.mxu0
        %v6744 = vadd.f32 %v6471, %v6743
        %6745 = vmatmul.bf16.gmra.mxu0 %v6133
        %v6746 = vpop.f32.mrf.mxu0
        %v6747 = vadd.f32 %v6474, %v6746
        %v6748 = vpop.f32.mrf.mxu0
        %v6749 = vadd.f32 %v6476, %v6748
        %6750 = vmatmul.bf16.gmra.mxu0 %v6136
        %v6751 = vpop.f32.mrf.mxu0
        %v6752 = vadd.f32 %v6479, %v6751
        %v6753 = vpop.f32.mrf.mxu0
        %v6754 = vadd.f32 %v6481, %v6753
        %6755 = vmatmul.bf16.gmra.mxu0 %v6139
        %v6756 = vpop.f32.mrf.mxu0
        %v6757 = vadd.f32 %v6484, %v6756
        %v6758 = vpop.f32.mrf.mxu0
        %v6759 = vadd.f32 %v6486, %v6758
        %6760 = vmatmul.bf16.gmra.mxu0 %v6142
        %v6761 = vpop.f32.mrf.mxu0
        %v6762 = vadd.f32 %v6489, %v6761
        %v6763 = vpop.f32.mrf.mxu0
        %v6764 = vadd.f32 %v6491, %v6763
        %6765 = vmatmul.bf16.gmra.mxu0 %v6145
        %v6766 = vpop.f32.mrf.mxu0
        %v6767 = vadd.f32 %v6494, %v6766
        %v6768 = vpop.f32.mrf.mxu0
        %v6769 = vadd.f32 %v6496, %v6768
        %6770 = vmatmul.bf16.gmra.mxu0 %v6148
        %v6771 = vpop.f32.mrf.mxu0
        %v6772 = vadd.f32 %v6499, %v6771
        %v6773 = vpop.f32.mrf.mxu0
        %v6774 = vadd.f32 %v6501, %v6773
        %6775 = vmatmul.bf16.gmra.mxu0 %v6151
        %v6776 = vpop.f32.mrf.mxu0
        %v6777 = vadd.f32 %v6504, %v6776
        %v6778 = vpop.f32.mrf.mxu0
        %v6779 = vadd.f32 %v6506, %v6778
        %6780 = vmatmul.bf16.gmra.mxu0 %v6154
        %v6781 = vpop.f32.mrf.mxu0
        %v6782 = vadd.f32 %v6509, %v6781
        %v6783 = vpop.f32.mrf.mxu0
        %v6784 = vadd.f32 %v6511, %v6783
        %6785 = vmatmul.bf16.gmra.mxu0 %v6157
        %v6786 = vpop.f32.mrf.mxu0
        %v6787 = vadd.f32 %v6514, %v6786
        %v6788 = vpop.f32.mrf.mxu0
        %v6789 = vadd.f32 %v6516, %v6788
        %6790 = vmatmul.bf16.gmra.mxu0 %v6160
        %v6791 = vpop.f32.mrf.mxu0
        %v6792 = vadd.f32 %v6519, %v6791
        %v6793 = vpop.f32.mrf.mxu0
        %v6794 = vadd.f32 %v6521, %v6793
        %6795 = vmatmul.bf16.gmra.mxu0 %v6163
        %v6796 = vpop.f32.mrf.mxu0
        %v6797 = vadd.f32 %v6524, %v6796
        %v6798 = vpop.f32.mrf.mxu0
        %v6799 = vadd.f32 %v6526, %v6798
        %6800 = vmatmul.bf16.gmra.mxu0 %v6166
        %v6801 = vpop.f32.mrf.mxu0
        %v6802 = vadd.f32 %v6529, %v6801
        %v6803 = vpop.f32.mrf.mxu0
        %v6804 = vadd.f32 %v6531, %v6803
        %6805 = vmatmul.bf16.gmra.mxu0 %v6169
        %v6806 = vpop.f32.mrf.mxu0
        %v6807 = vadd.f32 %v6534, %v6806
        %v6808 = vpop.f32.mrf.mxu0
        %v6809 = vadd.f32 %v6536, %v6808
        %6810 = vmatmul.bf16.gmra.mxu0 %v6172
        %v6811 = vpop.f32.mrf.mxu0
        %v6812 = vadd.f32 %v6539, %v6811
        %v6813 = vpop.f32.mrf.mxu0
        %v6814 = vadd.f32 %v6541, %v6813
        %6815 = vmatmul.bf16.gmra.mxu0 %v6175
        %v6816 = vpop.f32.mrf.mxu0
        %v6817 = vadd.f32 %v6544, %v6816
        %v6818 = vpop.f32.mrf.mxu0
        %v6819 = vadd.f32 %v6546, %v6818
        %6820 = vmatmul.bf16.gmra.mxu0 %v6178
        %v6821 = vpop.f32.mrf.mxu0
        %v6822 = vadd.f32 %v6549, %v6821
        %v6823 = vpop.f32.mrf.mxu0
        %v6824 = vadd.f32 %v6551, %v6823
        %6825 = vmatmul.bf16.gmra.mxu0 %v6181
        %v6826 = vpop.f32.mrf.mxu0
        %v6827 = vadd.f32 %v6554, %v6826
        %v6828 = vpop.f32.mrf.mxu0
        %v6829 = vadd.f32 %v6556, %v6828
        %6830 = vmatmul.bf16.gmra.mxu0 %v6184
        %v6831 = vpop.f32.mrf.mxu0
        %v6832 = vadd.f32 %v6559, %v6831
        %v6833 = vpop.f32.mrf.mxu0
        %v6834 = vadd.f32 %v6561, %v6833
        %6835 = vmatmul.bf16.gmra.mxu0 %v6187
        %v6836 = vpop.f32.mrf.mxu0
        %v6837 = vadd.f32 %v6564, %v6836
        %v6838 = vpop.f32.mrf.mxu0
        %v6839 = vadd.f32 %v6566, %v6838
        %6840 = vmatmul.bf16.gmra.mxu0 %v6190
        %v6841 = vpop.f32.mrf.mxu0
        %v6842 = vadd.f32 %v6569, %v6841
        %v6843 = vpop.f32.mrf.mxu0
        %v6844 = vadd.f32 %v6571, %v6843
        %6845 = vmatmul.bf16.gmra.mxu0 %v6193
        %v6846 = vpop.f32.mrf.mxu0
        %v6847 = vadd.f32 %v6574, %v6846
        %v6848 = vpop.f32.mrf.mxu0
        %v6849 = vadd.f32 %v6576, %v6848
        %6850 = vmatmul.bf16.gmra.mxu0 %v6196
        %v6851 = vpop.f32.mrf.mxu0
        %v6852 = vadd.f32 %v6579, %v6851
        %v6853 = vpop.f32.mrf.mxu0
        %v6854 = vadd.f32 %v6581, %v6853
        %6855 = vmatmul.bf16.gmra.mxu0 %v6199
        %v6856 = vpop.f32.mrf.mxu0
        %v6857 = vadd.f32 %v6584, %v6856
        %v6858 = vpop.f32.mrf.mxu0
        %v6859 = vadd.f32 %v6586, %v6858
        %6860 = vmatmul.bf16.gmra.mxu0 %v6202
        %v6861 = vpop.f32.mrf.mxu0
        %v6862 = vadd.f32 %v6589, %v6861
        %v6863 = vpop.f32.mrf.mxu0
        %v6864 = vadd.f32 %v6591, %v6863
        %6865 = vmatmul.bf16.gmra.mxu0 %v6205
        %v6866 = vpop.f32.mrf.mxu0
        %v6867 = vadd.f32 %v6594, %v6866
        %v6868 = vpop.f32.mrf.mxu0
        %v6869 = vadd.f32 %v6596, %v6868
        %6870 = vmatmul.bf16.gmra.mxu0 %v6208
        %v6871 = vpop.f32.mrf.mxu0
        %v6872 = vadd.f32 %v6599, %v6871
        %v6873 = vpop.f32.mrf.mxu0
        %v6874 = vadd.f32 %v6601, %v6873
        %6875 = vmatmul.bf16.gmra.mxu0 %v6211
        %v6876 = vpop.f32.mrf.mxu0
        %v6877 = vadd.f32 %v6604, %v6876
        %v6878 = vpop.f32.mrf.mxu0
        %v6879 = vadd.f32 %v6606, %v6878
        %6880 = vmatmul.bf16.gmra.mxu0 %v6214
        %v6881 = vpop.f32.mrf.mxu0
        %v6882 = vadd.f32 %v6609, %v6881
        %v6883 = vpop.f32.mrf.mxu0
        %v6884 = vadd.f32 %v6611, %v6883
        %6885 = vmatmul.bf16.gmra.mxu0 %v6217
        %v6886 = vpop.f32.mrf.mxu0
        %v6887 = vadd.f32 %v6614, %v6886
        %v6888 = vpop.f32.mrf.mxu0
        %v6889 = vadd.f32 %v6616, %v6888
        %6890 = vmatmul.bf16.gmra.mxu0 %v6220
        %v6891 = vpop.f32.mrf.mxu0
        %v6892 = vadd.f32 %v6619, %v6891
        %v6893 = vpop.f32.mrf.mxu0
        %v6894 = vadd.f32 %v6621, %v6893
        %6895 = vmatmul.bf16.gmra.mxu0 %v6223
        %v6896 = vpop.f32.mrf.mxu0
        %v6897 = vadd.f32 %v6624, %v6896
        %v6898 = vpop.f32.mrf.mxu0
        %v6899 = vadd.f32 %v6626, %v6898
        %6900 = vmatmul.bf16.gmra.mxu0 %v6226
        %v6901 = vpop.f32.mrf.mxu0
        %v6902 = vadd.f32 %v6629, %v6901
        %v6903 = vpop.f32.mrf.mxu0
        %v6904 = vadd.f32 %v6631, %v6903
        %6905 = vmatmul.bf16.gmra.mxu0 %v6229
        %v6906 = vpop.f32.mrf.mxu0
        %v6907 = vadd.f32 %v6634, %v6906
        %v6908 = vpop.f32.mrf.mxu0
        %v6909 = vadd.f32 %v6636, %v6908
        %6910 = vmatmul.bf16.gmra.mxu0 %v6232
        %v6911 = vpop.f32.mrf.mxu0
        %v6912 = vadd.f32 %v6639, %v6911
        %v6913 = vpop.f32.mrf.mxu0
        %v6914 = vadd.f32 %v6641, %v6913
        %6915 = vmatmul.bf16.gmra.mxu0 %v6235
        %v6916 = vpop.f32.mrf.mxu0
        %v6917 = vadd.f32 %v6644, %v6916
        %v6918 = vpop.f32.mrf.mxu0
        %v6919 = vadd.f32 %v6646, %v6918
        %6920 = vmatmul.bf16.gmra.mxu0 %v6238
        %v6921 = vpop.f32.mrf.mxu0
        %v6922 = vadd.f32 %v6649, %v6921
        %v6923 = vpop.f32.mrf.mxu0
        %v6924 = vadd.f32 %v6651, %v6923
        %6925 = vmatmul.bf16.gmra.mxu0 %v6241
        %v6926 = vpop.f32.mrf.mxu0
        %v6927 = vadd.f32 %v6654, %v6926
        %v6928 = vpop.f32.mrf.mxu0
        %v6929 = vadd.f32 %v6656, %v6928
        %6930 = vmatmul.bf16.gmra.mxu0 %v6244
        %v6931 = vpop.f32.mrf.mxu0
        %v6932 = vadd.f32 %v6659, %v6931
        %v6933 = vpop.f32.mrf.mxu0
        %v6934 = vadd.f32 %v6661, %v6933
        %6935 = vmatmul.bf16.gmra.mxu0 %v6247
        %v6936 = vpop.f32.mrf.mxu0
        %v6937 = vadd.f32 %v6664, %v6936
        %v6938 = vpop.f32.mrf.mxu0
        %v6939 = vadd.f32 %v6666, %v6938
        %6940 = vmatmul.bf16.gmra.mxu0 %v6250
        %v6941 = vpop.f32.mrf.mxu0
        %v6942 = vadd.f32 %v6669, %v6941
        %v6943 = vpop.f32.mrf.mxu0
        %v6944 = vadd.f32 %v6671, %v6943
        %6945 = vmatmul.bf16.gmra.mxu0 %v6253
        %v6946 = vpop.f32.mrf.mxu0
        %v6947 = vadd.f32 %v6674, %v6946
        %v6948 = vpop.f32.mrf.mxu0
        %v6949 = vadd.f32 %v6676, %v6948
        %6950 = vmatmul.bf16.gmra.mxu0 %v6256
        %v6951 = vpop.f32.mrf.mxu0
        %v6952 = vadd.f32 %v6679, %v6951
        %v6953 = vpop.f32.mrf.mxu0
        %v6954 = vadd.f32 %v6681, %v6953
        %6955 = vmatmul.bf16.gmra.mxu0 %v6259
        %v6956 = vpop.f32.mrf.mxu0
        %v6957 = vadd.f32 %v6684, %v6956
        %v6958 = vpop.f32.mrf.mxu0
        %v6959 = vadd.f32 %v6686, %v6958
        %6960 = vmatmul.bf16.gmra.mxu0 %v6262
        %v6961 = vpop.f32.mrf.mxu0
        %v6962 = vadd.f32 %v6689, %v6961
        %v6963 = vpop.f32.mrf.mxu0
        %v6964 = vadd.f32 %v6691, %v6963
        %6965 = vmatmul.bf16.gmra.mxu0 %v6265
        %v6966 = vpop.f32.mrf.mxu0
        %v6967 = vadd.f32 %v6694, %v6966
        %v6968 = vpop.f32.mrf.mxu0
        %v6969 = vadd.f32 %v6696, %v6968
        %6970 = vmatmul.bf16.gmra.mxu0 %v6268
        %v6971 = vpop.f32.mrf.mxu0
        %v6972 = vadd.f32 %v6699, %v6971
        %v6973 = vpop.f32.mrf.mxu0
        %6974 = vdwg.mxu0
        %6975 = vmatpush.bf16.msra.mxu0 %v5584
        %6976 = vmatpush.bf16.msra.mxu0 %v5582
        %6977 = vmatpush.bf16.msra.mxu0 %v5580
        %6978 = vmatpush.bf16.msra.mxu0 %v5578
        %6979 = vmatpush.bf16.msra.mxu0 %v5576
        %6980 = vmatpush.bf16.msra.mxu0 %v5574
        %6981 = vmatpush.bf16.msra.mxu0 %v5572
        %6982 = vmatpush.bf16.msra.mxu0 %v5570
        %6983 = vmatmul.bf16.gmra.mxu0 %v6113
        %v6984 = vpop.f32.mrf.mxu0
        %v6985 = vadd.f32 %v6712, %v6984
        %v6986 = vpop.f32.mrf.mxu0
        %v6987 = vadd.f32 %v6714, %v6986
        %6988 = vmatmul.bf16.gmra.mxu0 %v6116
        %v6989 = vpop.f32.mrf.mxu0
        %v6990 = vadd.f32 %v6717, %v6989
        %v6991 = vpop.f32.mrf.mxu0
        %v6992 = vadd.f32 %v6719, %v6991
        %6993 = vmatmul.bf16.gmra.mxu0 %v6119
        %v6994 = vpop.f32.mrf.mxu0
        %v6995 = vadd.f32 %v6722, %v6994
        %v6996 = vpop.f32.mrf.mxu0
        %v6997 = vadd.f32 %v6724, %v6996
        %6998 = vmatmul.bf16.gmra.mxu0 %v6122
        %v6999 = vpop.f32.mrf.mxu0
        %v7000 = vadd.f32 %v6727, %v6999
        %v7001 = vpop.f32.mrf.mxu0
        %v7002 = vadd.f32 %v6729, %v7001
        %7003 = vmatmul.bf16.gmra.mxu0 %v6125
        %v7004 = vpop.f32.mrf.mxu0
        %v7005 = vadd.f32 %v6732, %v7004
        %v7006 = vpop.f32.mrf.mxu0
        %v7007 = vadd.f32 %v6734, %v7006
        %7008 = vmatmul.bf16.gmra.mxu0 %v6128
        %v7009 = vpop.f32.mrf.mxu0
        %v7010 = vadd.f32 %v6737, %v7009
        %v7011 = vpop.f32.mrf.mxu0
        %v7012 = vadd.f32 %v6739, %v7011
        %7013 = vmatmul.bf16.gmra.mxu0 %v6131
        %v7014 = vpop.f32.mrf.mxu0
        %v7015 = vadd.f32 %v6742, %v7014
        %v7016 = vpop.f32.mrf.mxu0
        %v7017 = vadd.f32 %v6744, %v7016
        %7018 = vmatmul.bf16.gmra.mxu0 %v6134
        %v7019 = vpop.f32.mrf.mxu0
        %v7020 = vadd.f32 %v6747, %v7019
        %v7021 = vpop.f32.mrf.mxu0
        %v7022 = vadd.f32 %v6749, %v7021
        %7023 = vmatmul.bf16.gmra.mxu0 %v6137
        %v7024 = vpop.f32.mrf.mxu0
        %v7025 = vadd.f32 %v6752, %v7024
        %v7026 = vpop.f32.mrf.mxu0
        %v7027 = vadd.f32 %v6754, %v7026
        %7028 = vmatmul.bf16.gmra.mxu0 %v6140
        %v7029 = vpop.f32.mrf.mxu0
        %v7030 = vadd.f32 %v6757, %v7029
        %v7031 = vpop.f32.mrf.mxu0
        %v7032 = vadd.f32 %v6759, %v7031
        %7033 = vmatmul.bf16.gmra.mxu0 %v6143
        %v7034 = vpop.f32.mrf.mxu0
        %v7035 = vadd.f32 %v6762, %v7034
        %v7036 = vpop.f32.mrf.mxu0
        %v7037 = vadd.f32 %v6764, %v7036
        %7038 = vmatmul.bf16.gmra.mxu0 %v6146
        %v7039 = vpop.f32.mrf.mxu0
        %v7040 = vadd.f32 %v6767, %v7039
        %v7041 = vpop.f32.mrf.mxu0
        %v7042 = vadd.f32 %v6769, %v7041
        %7043 = vmatmul.bf16.gmra.mxu0 %v6149
        %v7044 = vpop.f32.mrf.mxu0
        %v7045 = vadd.f32 %v6772, %v7044
        %v7046 = vpop.f32.mrf.mxu0
        %v7047 = vadd.f32 %v6774, %v7046
        %7048 = vmatmul.bf16.gmra.mxu0 %v6152
        %v7049 = vpop.f32.mrf.mxu0
        %v7050 = vadd.f32 %v6777, %v7049
        %v7051 = vpop.f32.mrf.mxu0
        %v7052 = vadd.f32 %v6779, %v7051
        %7053 = vmatmul.bf16.gmra.mxu0 %v6155
        %v7054 = vpop.f32.mrf.mxu0
        %v7055 = vadd.f32 %v6782, %v7054
        %v7056 = vpop.f32.mrf.mxu0
        %v7057 = vadd.f32 %v6784, %v7056
        %7058 = vmatmul.bf16.gmra.mxu0 %v6158
        %v7059 = vpop.f32.mrf.mxu0
        %v7060 = vadd.f32 %v6787, %v7059
        %v7061 = vpop.f32.mrf.mxu0
        %v7062 = vadd.f32 %v6789, %v7061
        %7063 = vmatmul.bf16.gmra.mxu0 %v6161
        %v7064 = vpop.f32.mrf.mxu0
        %v7065 = vadd.f32 %v6792, %v7064
        %v7066 = vpop.f32.mrf.mxu0
        %v7067 = vadd.f32 %v6794, %v7066
        %7068 = vmatmul.bf16.gmra.mxu0 %v6164
        %v7069 = vpop.f32.mrf.mxu0
        %v7070 = vadd.f32 %v6797, %v7069
        %v7071 = vpop.f32.mrf.mxu0
        %v7072 = vadd.f32 %v6799, %v7071
        %7073 = vmatmul.bf16.gmra.mxu0 %v6167
        %v7074 = vpop.f32.mrf.mxu0
        %v7075 = vadd.f32 %v6802, %v7074
        %v7076 = vpop.f32.mrf.mxu0
        %v7077 = vadd.f32 %v6804, %v7076
        %7078 = vmatmul.bf16.gmra.mxu0 %v6170
        %v7079 = vpop.f32.mrf.mxu0
        %v7080 = vadd.f32 %v6807, %v7079
        %v7081 = vpop.f32.mrf.mxu0
        %v7082 = vadd.f32 %v6809, %v7081
        %7083 = vmatmul.bf16.gmra.mxu0 %v6173
        %v7084 = vpop.f32.mrf.mxu0
        %v7085 = vadd.f32 %v6812, %v7084
        %v7086 = vpop.f32.mrf.mxu0
        %v7087 = vadd.f32 %v6814, %v7086
        %7088 = vmatmul.bf16.gmra.mxu0 %v6176
        %v7089 = vpop.f32.mrf.mxu0
        %v7090 = vadd.f32 %v6817, %v7089
        %v7091 = vpop.f32.mrf.mxu0
        %v7092 = vadd.f32 %v6819, %v7091
        %7093 = vmatmul.bf16.gmra.mxu0 %v6179
        %v7094 = vpop.f32.mrf.mxu0
        %v7095 = vadd.f32 %v6822, %v7094
        %v7096 = vpop.f32.mrf.mxu0
        %v7097 = vadd.f32 %v6824, %v7096
        %7098 = vmatmul.bf16.gmra.mxu0 %v6182
        %v7099 = vpop.f32.mrf.mxu0
        %v7100 = vadd.f32 %v6827, %v7099
        %v7101 = vpop.f32.mrf.mxu0
        %v7102 = vadd.f32 %v6829, %v7101
        %7103 = vmatmul.bf16.gmra.mxu0 %v6185
        %v7104 = vpop.f32.mrf.mxu0
        %v7105 = vadd.f32 %v6832, %v7104
        %v7106 = vpop.f32.mrf.mxu0
        %v7107 = vadd.f32 %v6834, %v7106
        %7108 = vmatmul.bf16.gmra.mxu0 %v6188
        %v7109 = vpop.f32.mrf.mxu0
        %v7110 = vadd.f32 %v6837, %v7109
        %v7111 = vpop.f32.mrf.mxu0
        %v7112 = vadd.f32 %v6839, %v7111
        %7113 = vmatmul.bf16.gmra.mxu0 %v6191
        %v7114 = vpop.f32.mrf.mxu0
        %v7115 = vadd.f32 %v6842, %v7114
        %v7116 = vpop.f32.mrf.mxu0
        %v7117 = vadd.f32 %v6844, %v7116
        %7118 = vmatmul.bf16.gmra.mxu0 %v6194
        %v7119 = vpop.f32.mrf.mxu0
        %v7120 = vadd.f32 %v6847, %v7119
        %v7121 = vpop.f32.mrf.mxu0
        %v7122 = vadd.f32 %v6849, %v7121
        %7123 = vmatmul.bf16.gmra.mxu0 %v6197
        %v7124 = vpop.f32.mrf.mxu0
        %v7125 = vadd.f32 %v6852, %v7124
        %v7126 = vpop.f32.mrf.mxu0
        %v7127 = vadd.f32 %v6854, %v7126
        %7128 = vmatmul.bf16.gmra.mxu0 %v6200
        %v7129 = vpop.f32.mrf.mxu0
        %v7130 = vadd.f32 %v6857, %v7129
        %v7131 = vpop.f32.mrf.mxu0
        %v7132 = vadd.f32 %v6859, %v7131
        %7133 = vmatmul.bf16.gmra.mxu0 %v6203
        %v7134 = vpop.f32.mrf.mxu0
        %v7135 = vadd.f32 %v6862, %v7134
        %v7136 = vpop.f32.mrf.mxu0
        %v7137 = vadd.f32 %v6864, %v7136
        %7138 = vmatmul.bf16.gmra.mxu0 %v6206
        %v7139 = vpop.f32.mrf.mxu0
        %v7140 = vadd.f32 %v6867, %v7139
        %v7141 = vpop.f32.mrf.mxu0
        %v7142 = vadd.f32 %v6869, %v7141
        %7143 = vmatmul.bf16.gmra.mxu0 %v6209
        %v7144 = vpop.f32.mrf.mxu0
        %v7145 = vadd.f32 %v6872, %v7144
        %v7146 = vpop.f32.mrf.mxu0
        %v7147 = vadd.f32 %v6874, %v7146
        %7148 = vmatmul.bf16.gmra.mxu0 %v6212
        %v7149 = vpop.f32.mrf.mxu0
        %v7150 = vadd.f32 %v6877, %v7149
        %v7151 = vpop.f32.mrf.mxu0
        %v7152 = vadd.f32 %v6879, %v7151
        %7153 = vmatmul.bf16.gmra.mxu0 %v6215
        %v7154 = vpop.f32.mrf.mxu0
        %v7155 = vadd.f32 %v6882, %v7154
        %v7156 = vpop.f32.mrf.mxu0
        %v7157 = vadd.f32 %v6884, %v7156
        %7158 = vmatmul.bf16.gmra.mxu0 %v6218
        %v7159 = vpop.f32.mrf.mxu0
        %v7160 = vadd.f32 %v6887, %v7159
        %v7161 = vpop.f32.mrf.mxu0
        %v7162 = vadd.f32 %v6889, %v7161
        %7163 = vmatmul.bf16.gmra.mxu0 %v6221
        %v7164 = vpop.f32.mrf.mxu0
        %v7165 = vadd.f32 %v6892, %v7164
        %v7166 = vpop.f32.mrf.mxu0
        %v7167 = vadd.f32 %v6894, %v7166
        %7168 = vmatmul.bf16.gmra.mxu0 %v6224
        %v7169 = vpop.f32.mrf.mxu0
        %v7170 = vadd.f32 %v6897, %v7169
        %v7171 = vpop.f32.mrf.mxu0
        %v7172 = vadd.f32 %v6899, %v7171
        %7173 = vmatmul.bf16.gmra.mxu0 %v6227
        %v7174 = vpop.f32.mrf.mxu0
        %v7175 = vadd.f32 %v6902, %v7174
        %v7176 = vpop.f32.mrf.mxu0
        %v7177 = vadd.f32 %v6904, %v7176
        %7178 = vmatmul.bf16.gmra.mxu0 %v6230
        %v7179 = vpop.f32.mrf.mxu0
        %v7180 = vadd.f32 %v6907, %v7179
        %v7181 = vpop.f32.mrf.mxu0
        %v7182 = vadd.f32 %v6909, %v7181
        %7183 = vmatmul.bf16.gmra.mxu0 %v6233
        %v7184 = vpop.f32.mrf.mxu0
        %v7185 = vadd.f32 %v6912, %v7184
        %v7186 = vpop.f32.mrf.mxu0
        %v7187 = vadd.f32 %v6914, %v7186
        %7188 = vmatmul.bf16.gmra.mxu0 %v6236
        %v7189 = vpop.f32.mrf.mxu0
        %v7190 = vadd.f32 %v6917, %v7189
        %v7191 = vpop.f32.mrf.mxu0
        %v7192 = vadd.f32 %v6919, %v7191
        %7193 = vmatmul.bf16.gmra.mxu0 %v6239
        %v7194 = vpop.f32.mrf.mxu0
        %v7195 = vadd.f32 %v6922, %v7194
        %v7196 = vpop.f32.mrf.mxu0
        %v7197 = vadd.f32 %v6924, %v7196
        %7198 = vmatmul.bf16.gmra.mxu0 %v6242
        %v7199 = vpop.f32.mrf.mxu0
        %v7200 = vadd.f32 %v6927, %v7199
        %v7201 = vpop.f32.mrf.mxu0
        %v7202 = vadd.f32 %v6929, %v7201
        %7203 = vmatmul.bf16.gmra.mxu0 %v6245
        %v7204 = vpop.f32.mrf.mxu0
        %v7205 = vadd.f32 %v6932, %v7204
        %v7206 = vpop.f32.mrf.mxu0
        %v7207 = vadd.f32 %v6934, %v7206
        %7208 = vmatmul.bf16.gmra.mxu0 %v6248
        %v7209 = vpop.f32.mrf.mxu0
        %v7210 = vadd.f32 %v6937, %v7209
        %v7211 = vpop.f32.mrf.mxu0
        %v7212 = vadd.f32 %v6939, %v7211
        %7213 = vmatmul.bf16.gmra.mxu0 %v6251
        %v7214 = vpop.f32.mrf.mxu0
        %v7215 = vadd.f32 %v6942, %v7214
        %v7216 = vpop.f32.mrf.mxu0
        %v7217 = vadd.f32 %v6944, %v7216
        %7218 = vmatmul.bf16.gmra.mxu0 %v6254
        %v7219 = vpop.f32.mrf.mxu0
        %v7220 = vadd.f32 %v6947, %v7219
        %v7221 = vpop.f32.mrf.mxu0
        %v7222 = vadd.f32 %v6949, %v7221
        %7223 = vmatmul.bf16.gmra.mxu0 %v6257
        %v7224 = vpop.f32.mrf.mxu0
        %v7225 = vadd.f32 %v6952, %v7224
        %v7226 = vpop.f32.mrf.mxu0
        %v7227 = vadd.f32 %v6954, %v7226
        %7228 = vmatmul.bf16.gmra.mxu0 %v6260
        %v7229 = vpop.f32.mrf.mxu0
        %v7230 = vadd.f32 %v6957, %v7229
        %v7231 = vpop.f32.mrf.mxu0
        %v7232 = vadd.f32 %v6959, %v7231
        %7233 = vmatmul.bf16.gmra.mxu0 %v6263
        %v7234 = vpop.f32.mrf.mxu0
        %v7235 = vadd.f32 %v6962, %v7234
        %v7236 = vpop.f32.mrf.mxu0
        %v7237 = vadd.f32 %v6964, %v7236
        %7238 = vmatmul.bf16.gmra.mxu0 %v6266
        %v7239 = vpop.f32.mrf.mxu0
        %v7240 = vadd.f32 %v6967, %v7239
        %v7241 = vpop.f32.mrf.mxu0
        %v7242 = vadd.f32 %v6969, %v7241
        %7243 = vmatmul.bf16.gmra.mxu0 %v6269
        %v7244 = vpop.f32.mrf.mxu0
        %v7245 = vadd.f32 %v6972, %v7244
        %v7246 = vpop.f32.mrf.mxu0
        %7247 = vdwg.mxu0
        %7248 = vmatpush.bf16.msra.mxu0 %v5553
        %7249 = vmatpush.bf16.msra.mxu0 %v5551
        %7250 = vmatpush.bf16.msra.mxu0 %v5549
        %7251 = vmatpush.bf16.msra.mxu0 %v5547
        %7252 = vmatpush.bf16.msra.mxu0 %v5545
        %7253 = vmatpush.bf16.msra.mxu0 %v5543
        %7254 = vmatpush.bf16.msra.mxu0 %v5541
        %7255 = vmatpush.bf16.msra.mxu0 %v5539
        %7256 = vmatmul.bf16.gmra.mxu0 %v6111
        %v7257 = vpop.f32.mrf.mxu0
        %v7258 = vadd.f32 0.0, %v7257
        %v7259 = vpop.f32.mrf.mxu0
        %v7260 = vadd.f32 0.0, %v7259
        %7261 = vmatmul.bf16.gmra.mxu0 %v6114
        %v7262 = vpop.f32.mrf.mxu0
        %v7263 = vadd.f32 0.0, %v7262
        %v7264 = vpop.f32.mrf.mxu0
        %v7265 = vadd.f32 0.0, %v7264
        %7266 = vmatmul.bf16.gmra.mxu0 %v6117
        %v7267 = vpop.f32.mrf.mxu0
        %v7268 = vadd.f32 0.0, %v7267
        %v7269 = vpop.f32.mrf.mxu0
        %v7270 = vadd.f32 0.0, %v7269
        %7271 = vmatmul.bf16.gmra.mxu0 %v6120
        %v7272 = vpop.f32.mrf.mxu0
        %v7273 = vadd.f32 0.0, %v7272
        %v7274 = vpop.f32.mrf.mxu0
        %v7275 = vadd.f32 0.0, %v7274
        %7276 = vmatmul.bf16.gmra.mxu0 %v6123
        %v7277 = vpop.f32.mrf.mxu0
        %v7278 = vadd.f32 0.0, %v7277
        %v7279 = vpop.f32.mrf.mxu0
        %v7280 = vadd.f32 0.0, %v7279
        %7281 = vmatmul.bf16.gmra.mxu0 %v6126
        %v7282 = vpop.f32.mrf.mxu0
        %v7283 = vadd.f32 0.0, %v7282
        %v7284 = vpop.f32.mrf.mxu0
        %v7285 = vadd.f32 0.0, %v7284
        %7286 = vmatmul.bf16.gmra.mxu0 %v6129
        %v7287 = vpop.f32.mrf.mxu0
        %v7288 = vadd.f32 0.0, %v7287
        %v7289 = vpop.f32.mrf.mxu0
        %v7290 = vadd.f32 0.0, %v7289
        %7291 = vmatmul.bf16.gmra.mxu0 %v6132
        %v7292 = vpop.f32.mrf.mxu0
        %v7293 = vadd.f32 0.0, %v7292
        %v7294 = vpop.f32.mrf.mxu0
        %v7295 = vadd.f32 0.0, %v7294
        %7296 = vmatmul.bf16.gmra.mxu0 %v6135
        %v7297 = vpop.f32.mrf.mxu0
        %v7298 = vadd.f32 0.0, %v7297
        %v7299 = vpop.f32.mrf.mxu0
        %v7300 = vadd.f32 0.0, %v7299
        %7301 = vmatmul.bf16.gmra.mxu0 %v6138
        %v7302 = vpop.f32.mrf.mxu0
        %v7303 = vadd.f32 0.0, %v7302
        %v7304 = vpop.f32.mrf.mxu0
        %v7305 = vadd.f32 0.0, %v7304
        %7306 = vmatmul.bf16.gmra.mxu0 %v6141
        %v7307 = vpop.f32.mrf.mxu0
        %v7308 = vadd.f32 0.0, %v7307
        %v7309 = vpop.f32.mrf.mxu0
        %v7310 = vadd.f32 0.0, %v7309
        %7311 = vmatmul.bf16.gmra.mxu0 %v6144
        %v7312 = vpop.f32.mrf.mxu0
        %v7313 = vadd.f32 0.0, %v7312
        %v7314 = vpop.f32.mrf.mxu0
        %v7315 = vadd.f32 0.0, %v7314
        %7316 = vmatmul.bf16.gmra.mxu0 %v6147
        %v7317 = vpop.f32.mrf.mxu0
        %v7318 = vadd.f32 0.0, %v7317
        %v7319 = vpop.f32.mrf.mxu0
        %v7320 = vadd.f32 0.0, %v7319
        %7321 = vmatmul.bf16.gmra.mxu0 %v6150
        %v7322 = vpop.f32.mrf.mxu0
        %v7323 = vadd.f32 0.0, %v7322
        %v7324 = vpop.f32.mrf.mxu0
        %v7325 = vadd.f32 0.0, %v7324
        %7326 = vmatmul.bf16.gmra.mxu0 %v6153
        %v7327 = vpop.f32.mrf.mxu0
        %v7328 = vadd.f32 0.0, %v7327
        %v7329 = vpop.f32.mrf.mxu0
        %v7330 = vadd.f32 0.0, %v7329
        %7331 = vmatmul.bf16.gmra.mxu0 %v6156
        %v7332 = vpop.f32.mrf.mxu0
        %v7333 = vadd.f32 0.0, %v7332
        %v7334 = vpop.f32.mrf.mxu0
        %v7335 = vadd.f32 0.0, %v7334
        %7336 = vmatmul.bf16.gmra.mxu0 %v6159
        %v7337 = vpop.f32.mrf.mxu0
        %v7338 = vadd.f32 0.0, %v7337
        %v7339 = vpop.f32.mrf.mxu0
        %v7340 = vadd.f32 0.0, %v7339
        %7341 = vmatmul.bf16.gmra.mxu0 %v6162
        %v7342 = vpop.f32.mrf.mxu0
        %v7343 = vadd.f32 0.0, %v7342
        %v7344 = vpop.f32.mrf.mxu0
        %v7345 = vadd.f32 0.0, %v7344
        %7346 = vmatmul.bf16.gmra.mxu0 %v6165
        %v7347 = vpop.f32.mrf.mxu0
        %v7348 = vadd.f32 0.0, %v7347
        %v7349 = vpop.f32.mrf.mxu0
        %v7350 = vadd.f32 0.0, %v7349
        %7351 = vmatmul.bf16.gmra.mxu0 %v6168
        %v7352 = vpop.f32.mrf.mxu0
        %v7353 = vadd.f32 0.0, %v7352
        %v7354 = vpop.f32.mrf.mxu0
        %v7355 = vadd.f32 0.0, %v7354
        %7356 = vmatmul.bf16.gmra.mxu0 %v6171
        %v7357 = vpop.f32.mrf.mxu0
        %v7358 = vadd.f32 0.0, %v7357
        %v7359 = vpop.f32.mrf.mxu0
        %v7360 = vadd.f32 0.0, %v7359
        %7361 = vmatmul.bf16.gmra.mxu0 %v6174
        %v7362 = vpop.f32.mrf.mxu0
        %v7363 = vadd.f32 0.0, %v7362
        %v7364 = vpop.f32.mrf.mxu0
        %v7365 = vadd.f32 0.0, %v7364
        %7366 = vmatmul.bf16.gmra.mxu0 %v6177
        %v7367 = vpop.f32.mrf.mxu0
        %v7368 = vadd.f32 0.0, %v7367
        %v7369 = vpop.f32.mrf.mxu0
        %v7370 = vadd.f32 0.0, %v7369
        %7371 = vmatmul.bf16.gmra.mxu0 %v6180
        %v7372 = vpop.f32.mrf.mxu0
        %v7373 = vadd.f32 0.0, %v7372
        %v7374 = vpop.f32.mrf.mxu0
        %v7375 = vadd.f32 0.0, %v7374
        %7376 = vmatmul.bf16.gmra.mxu0 %v6183
        %v7377 = vpop.f32.mrf.mxu0
        %v7378 = vadd.f32 0.0, %v7377
        %v7379 = vpop.f32.mrf.mxu0
        %v7380 = vadd.f32 0.0, %v7379
        %7381 = vmatmul.bf16.gmra.mxu0 %v6186
        %v7382 = vpop.f32.mrf.mxu0
        %v7383 = vadd.f32 0.0, %v7382
        %v7384 = vpop.f32.mrf.mxu0
        %v7385 = vadd.f32 0.0, %v7384
        %7386 = vmatmul.bf16.gmra.mxu0 %v6189
        %v7387 = vpop.f32.mrf.mxu0
        %v7388 = vadd.f32 0.0, %v7387
        %v7389 = vpop.f32.mrf.mxu0
        %v7390 = vadd.f32 0.0, %v7389
        %7391 = vmatmul.bf16.gmra.mxu0 %v6192
        %v7392 = vpop.f32.mrf.mxu0
        %v7393 = vadd.f32 0.0, %v7392
        %v7394 = vpop.f32.mrf.mxu0
        %v7395 = vadd.f32 0.0, %v7394
        %7396 = vmatmul.bf16.gmra.mxu0 %v6195
        %v7397 = vpop.f32.mrf.mxu0
        %v7398 = vadd.f32 0.0, %v7397
        %v7399 = vpop.f32.mrf.mxu0
        %v7400 = vadd.f32 0.0, %v7399
        %7401 = vmatmul.bf16.gmra.mxu0 %v6198
        %v7402 = vpop.f32.mrf.mxu0
        %v7403 = vadd.f32 0.0, %v7402
        %v7404 = vpop.f32.mrf.mxu0
        %v7405 = vadd.f32 0.0, %v7404
        %7406 = vmatmul.bf16.gmra.mxu0 %v6201
        %v7407 = vpop.f32.mrf.mxu0
        %v7408 = vadd.f32 0.0, %v7407
        %v7409 = vpop.f32.mrf.mxu0
        %v7410 = vadd.f32 0.0, %v7409
        %7411 = vmatmul.bf16.gmra.mxu0 %v6204
        %v7412 = vpop.f32.mrf.mxu0
        %v7413 = vadd.f32 0.0, %v7412
        %v7414 = vpop.f32.mrf.mxu0
        %v7415 = vadd.f32 0.0, %v7414
        %7416 = vmatmul.bf16.gmra.mxu0 %v6207
        %v7417 = vpop.f32.mrf.mxu0
        %v7418 = vadd.f32 0.0, %v7417
        %v7419 = vpop.f32.mrf.mxu0
        %v7420 = vadd.f32 0.0, %v7419
        %7421 = vmatmul.bf16.gmra.mxu0 %v6210
        %v7422 = vpop.f32.mrf.mxu0
        %v7423 = vadd.f32 0.0, %v7422
        %v7424 = vpop.f32.mrf.mxu0
        %v7425 = vadd.f32 0.0, %v7424
        %7426 = vmatmul.bf16.gmra.mxu0 %v6213
        %v7427 = vpop.f32.mrf.mxu0
        %v7428 = vadd.f32 0.0, %v7427
        %v7429 = vpop.f32.mrf.mxu0
        %v7430 = vadd.f32 0.0, %v7429
        %7431 = vmatmul.bf16.gmra.mxu0 %v6216
        %v7432 = vpop.f32.mrf.mxu0
        %v7433 = vadd.f32 0.0, %v7432
        %v7434 = vpop.f32.mrf.mxu0
        %v7435 = vadd.f32 0.0, %v7434
        %7436 = vmatmul.bf16.gmra.mxu0 %v6219
        %v7437 = vpop.f32.mrf.mxu0
        %v7438 = vadd.f32 0.0, %v7437
        %v7439 = vpop.f32.mrf.mxu0
        %v7440 = vadd.f32 0.0, %v7439
        %7441 = vmatmul.bf16.gmra.mxu0 %v6222
        %v7442 = vpop.f32.mrf.mxu0
        %v7443 = vadd.f32 0.0, %v7442
        %v7444 = vpop.f32.mrf.mxu0
        %v7445 = vadd.f32 0.0, %v7444
        %7446 = vmatmul.bf16.gmra.mxu0 %v6225
        %v7447 = vpop.f32.mrf.mxu0
        %v7448 = vadd.f32 0.0, %v7447
        %v7449 = vpop.f32.mrf.mxu0
        %v7450 = vadd.f32 0.0, %v7449
        %7451 = vmatmul.bf16.gmra.mxu0 %v6228
        %v7452 = vpop.f32.mrf.mxu0
        %v7453 = vadd.f32 0.0, %v7452
        %v7454 = vpop.f32.mrf.mxu0
        %v7455 = vadd.f32 0.0, %v7454
        %7456 = vmatmul.bf16.gmra.mxu0 %v6231
        %v7457 = vpop.f32.mrf.mxu0
        %v7458 = vadd.f32 0.0, %v7457
        %v7459 = vpop.f32.mrf.mxu0
        %v7460 = vadd.f32 0.0, %v7459
        %7461 = vmatmul.bf16.gmra.mxu0 %v6234
        %v7462 = vpop.f32.mrf.mxu0
        %v7463 = vadd.f32 0.0, %v7462
        %v7464 = vpop.f32.mrf.mxu0
        %v7465 = vadd.f32 0.0, %v7464
        %7466 = vmatmul.bf16.gmra.mxu0 %v6237
        %v7467 = vpop.f32.mrf.mxu0
        %v7468 = vadd.f32 0.0, %v7467
        %v7469 = vpop.f32.mrf.mxu0
        %v7470 = vadd.f32 0.0, %v7469
        %7471 = vmatmul.bf16.gmra.mxu0 %v6240
        %v7472 = vpop.f32.mrf.mxu0
        %v7473 = vadd.f32 0.0, %v7472
        %v7474 = vpop.f32.mrf.mxu0
        %v7475 = vadd.f32 0.0, %v7474
        %7476 = vmatmul.bf16.gmra.mxu0 %v6243
        %v7477 = vpop.f32.mrf.mxu0
        %v7478 = vadd.f32 0.0, %v7477
        %v7479 = vpop.f32.mrf.mxu0
        %v7480 = vadd.f32 0.0, %v7479
        %7481 = vmatmul.bf16.gmra.mxu0 %v6246
        %v7482 = vpop.f32.mrf.mxu0
        %v7483 = vadd.f32 0.0, %v7482
        %v7484 = vpop.f32.mrf.mxu0
        %v7485 = vadd.f32 0.0, %v7484
        %7486 = vmatmul.bf16.gmra.mxu0 %v6249
        %v7487 = vpop.f32.mrf.mxu0
        %v7488 = vadd.f32 0.0, %v7487
        %v7489 = vpop.f32.mrf.mxu0
        %v7490 = vadd.f32 0.0, %v7489
        %7491 = vmatmul.bf16.gmra.mxu0 %v6252
        %v7492 = vpop.f32.mrf.mxu0
        %v7493 = vadd.f32 0.0, %v7492
        %v7494 = vpop.f32.mrf.mxu0
        %v7495 = vadd.f32 0.0, %v7494
        %7496 = vmatmul.bf16.gmra.mxu0 %v6255
        %v7497 = vpop.f32.mrf.mxu0
        %v7498 = vadd.f32 0.0, %v7497
        %v7499 = vpop.f32.mrf.mxu0
        %v7500 = vadd.f32 0.0, %v7499
        %7501 = vmatmul.bf16.gmra.mxu0 %v6258
        %v7502 = vpop.f32.mrf.mxu0
        %v7503 = vadd.f32 0.0, %v7502
        %v7504 = vpop.f32.mrf.mxu0
        %v7505 = vadd.f32 0.0, %v7504
        %7506 = vmatmul.bf16.gmra.mxu0 %v6261
        %v7507 = vpop.f32.mrf.mxu0
        %v7508 = vadd.f32 0.0, %v7507
        %v7509 = vpop.f32.mrf.mxu0
        %v7510 = vadd.f32 0.0, %v7509
        %7511 = vmatmul.bf16.gmra.mxu0 %v6264
        %v7512 = vpop.f32.mrf.mxu0
        %v7513 = vadd.f32 0.0, %v7512
        %v7514 = vpop.f32.mrf.mxu0
        %v7515 = vadd.f32 0.0, %v7514
        %7516 = vmatmul.bf16.gmra.mxu0 %v6267
        %v7517 = vpop.f32.mrf.mxu0
        %v7518 = vadd.f32 0.0, %v7517
        %v7519 = vpop.f32.mrf.mxu0
        %7520 = vdwg.mxu0
        %7521 = vmatpush.bf16.msra.mxu0 %v5569
        %7522 = vmatpush.bf16.msra.mxu0 %v5567
        %7523 = vmatpush.bf16.msra.mxu0 %v5565
        %7524 = vmatpush.bf16.msra.mxu0 %v5563
        %7525 = vmatpush.bf16.msra.mxu0 %v5561
        %7526 = vmatpush.bf16.msra.mxu0 %v5559
        %7527 = vmatpush.bf16.msra.mxu0 %v5557
        %7528 = vmatpush.bf16.msra.mxu0 %v5555
        %7529 = vmatmul.bf16.gmra.mxu0 %v6112
        %v7530 = vpop.f32.mrf.mxu0
        %v7531 = vadd.f32 %v7258, %v7530
        %v7532 = vpop.f32.mrf.mxu0
        %v7533 = vadd.f32 %v7260, %v7532
        %7534 = vmatmul.bf16.gmra.mxu0 %v6115
        %v7535 = vpop.f32.mrf.mxu0
        %v7536 = vadd.f32 %v7263, %v7535
        %v7537 = vpop.f32.mrf.mxu0
        %v7538 = vadd.f32 %v7265, %v7537
        %7539 = vmatmul.bf16.gmra.mxu0 %v6118
        %v7540 = vpop.f32.mrf.mxu0
        %v7541 = vadd.f32 %v7268, %v7540
        %v7542 = vpop.f32.mrf.mxu0
        %v7543 = vadd.f32 %v7270, %v7542
        %7544 = vmatmul.bf16.gmra.mxu0 %v6121
        %v7545 = vpop.f32.mrf.mxu0
        %v7546 = vadd.f32 %v7273, %v7545
        %v7547 = vpop.f32.mrf.mxu0
        %v7548 = vadd.f32 %v7275, %v7547
        %7549 = vmatmul.bf16.gmra.mxu0 %v6124
        %v7550 = vpop.f32.mrf.mxu0
        %v7551 = vadd.f32 %v7278, %v7550
        %v7552 = vpop.f32.mrf.mxu0
        %v7553 = vadd.f32 %v7280, %v7552
        %7554 = vmatmul.bf16.gmra.mxu0 %v6127
        %v7555 = vpop.f32.mrf.mxu0
        %v7556 = vadd.f32 %v7283, %v7555
        %v7557 = vpop.f32.mrf.mxu0
        %v7558 = vadd.f32 %v7285, %v7557
        %7559 = vmatmul.bf16.gmra.mxu0 %v6130
        %v7560 = vpop.f32.mrf.mxu0
        %v7561 = vadd.f32 %v7288, %v7560
        %v7562 = vpop.f32.mrf.mxu0
        %v7563 = vadd.f32 %v7290, %v7562
        %7564 = vmatmul.bf16.gmra.mxu0 %v6133
        %v7565 = vpop.f32.mrf.mxu0
        %v7566 = vadd.f32 %v7293, %v7565
        %v7567 = vpop.f32.mrf.mxu0
        %v7568 = vadd.f32 %v7295, %v7567
        %7569 = vmatmul.bf16.gmra.mxu0 %v6136
        %v7570 = vpop.f32.mrf.mxu0
        %v7571 = vadd.f32 %v7298, %v7570
        %v7572 = vpop.f32.mrf.mxu0
        %v7573 = vadd.f32 %v7300, %v7572
        %7574 = vmatmul.bf16.gmra.mxu0 %v6139
        %v7575 = vpop.f32.mrf.mxu0
        %v7576 = vadd.f32 %v7303, %v7575
        %v7577 = vpop.f32.mrf.mxu0
        %v7578 = vadd.f32 %v7305, %v7577
        %7579 = vmatmul.bf16.gmra.mxu0 %v6142
        %v7580 = vpop.f32.mrf.mxu0
        %v7581 = vadd.f32 %v7308, %v7580
        %v7582 = vpop.f32.mrf.mxu0
        %v7583 = vadd.f32 %v7310, %v7582
        %7584 = vmatmul.bf16.gmra.mxu0 %v6145
        %v7585 = vpop.f32.mrf.mxu0
        %v7586 = vadd.f32 %v7313, %v7585
        %v7587 = vpop.f32.mrf.mxu0
        %v7588 = vadd.f32 %v7315, %v7587
        %7589 = vmatmul.bf16.gmra.mxu0 %v6148
        %v7590 = vpop.f32.mrf.mxu0
        %v7591 = vadd.f32 %v7318, %v7590
        %v7592 = vpop.f32.mrf.mxu0
        %v7593 = vadd.f32 %v7320, %v7592
        %7594 = vmatmul.bf16.gmra.mxu0 %v6151
        %v7595 = vpop.f32.mrf.mxu0
        %v7596 = vadd.f32 %v7323, %v7595
        %v7597 = vpop.f32.mrf.mxu0
        %v7598 = vadd.f32 %v7325, %v7597
        %7599 = vmatmul.bf16.gmra.mxu0 %v6154
        %v7600 = vpop.f32.mrf.mxu0
        %v7601 = vadd.f32 %v7328, %v7600
        %v7602 = vpop.f32.mrf.mxu0
        %v7603 = vadd.f32 %v7330, %v7602
        %7604 = vmatmul.bf16.gmra.mxu0 %v6157
        %v7605 = vpop.f32.mrf.mxu0
        %v7606 = vadd.f32 %v7333, %v7605
        %v7607 = vpop.f32.mrf.mxu0
        %v7608 = vadd.f32 %v7335, %v7607
        %7609 = vmatmul.bf16.gmra.mxu0 %v6160
        %v7610 = vpop.f32.mrf.mxu0
        %v7611 = vadd.f32 %v7338, %v7610
        %v7612 = vpop.f32.mrf.mxu0
        %v7613 = vadd.f32 %v7340, %v7612
        %7614 = vmatmul.bf16.gmra.mxu0 %v6163
        %v7615 = vpop.f32.mrf.mxu0
        %v7616 = vadd.f32 %v7343, %v7615
        %v7617 = vpop.f32.mrf.mxu0
        %v7618 = vadd.f32 %v7345, %v7617
        %7619 = vmatmul.bf16.gmra.mxu0 %v6166
        %v7620 = vpop.f32.mrf.mxu0
        %v7621 = vadd.f32 %v7348, %v7620
        %v7622 = vpop.f32.mrf.mxu0
        %v7623 = vadd.f32 %v7350, %v7622
        %7624 = vmatmul.bf16.gmra.mxu0 %v6169
        %v7625 = vpop.f32.mrf.mxu0
        %v7626 = vadd.f32 %v7353, %v7625
        %v7627 = vpop.f32.mrf.mxu0
        %v7628 = vadd.f32 %v7355, %v7627
        %7629 = vmatmul.bf16.gmra.mxu0 %v6172
        %v7630 = vpop.f32.mrf.mxu0
        %v7631 = vadd.f32 %v7358, %v7630
        %v7632 = vpop.f32.mrf.mxu0
        %v7633 = vadd.f32 %v7360, %v7632
        %7634 = vmatmul.bf16.gmra.mxu0 %v6175
        %v7635 = vpop.f32.mrf.mxu0
        %v7636 = vadd.f32 %v7363, %v7635
        %v7637 = vpop.f32.mrf.mxu0
        %v7638 = vadd.f32 %v7365, %v7637
        %7639 = vmatmul.bf16.gmra.mxu0 %v6178
        %v7640 = vpop.f32.mrf.mxu0
        %v7641 = vadd.f32 %v7368, %v7640
        %v7642 = vpop.f32.mrf.mxu0
        %v7643 = vadd.f32 %v7370, %v7642
        %7644 = vmatmul.bf16.gmra.mxu0 %v6181
        %v7645 = vpop.f32.mrf.mxu0
        %v7646 = vadd.f32 %v7373, %v7645
        %v7647 = vpop.f32.mrf.mxu0
        %v7648 = vadd.f32 %v7375, %v7647
        %7649 = vmatmul.bf16.gmra.mxu0 %v6184
        %v7650 = vpop.f32.mrf.mxu0
        %v7651 = vadd.f32 %v7378, %v7650
        %v7652 = vpop.f32.mrf.mxu0
        %v7653 = vadd.f32 %v7380, %v7652
        %7654 = vmatmul.bf16.gmra.mxu0 %v6187
        %v7655 = vpop.f32.mrf.mxu0
        %v7656 = vadd.f32 %v7383, %v7655
        %v7657 = vpop.f32.mrf.mxu0
        %v7658 = vadd.f32 %v7385, %v7657
        %7659 = vmatmul.bf16.gmra.mxu0 %v6190
        %v7660 = vpop.f32.mrf.mxu0
        %v7661 = vadd.f32 %v7388, %v7660
        %v7662 = vpop.f32.mrf.mxu0
        %v7663 = vadd.f32 %v7390, %v7662
        %7664 = vmatmul.bf16.gmra.mxu0 %v6193
        %v7665 = vpop.f32.mrf.mxu0
        %v7666 = vadd.f32 %v7393, %v7665
        %v7667 = vpop.f32.mrf.mxu0
        %v7668 = vadd.f32 %v7395, %v7667
        %7669 = vmatmul.bf16.gmra.mxu0 %v6196
        %v7670 = vpop.f32.mrf.mxu0
        %v7671 = vadd.f32 %v7398, %v7670
        %v7672 = vpop.f32.mrf.mxu0
        %v7673 = vadd.f32 %v7400, %v7672
        %7674 = vmatmul.bf16.gmra.mxu0 %v6199
        %v7675 = vpop.f32.mrf.mxu0
        %v7676 = vadd.f32 %v7403, %v7675
        %v7677 = vpop.f32.mrf.mxu0
        %v7678 = vadd.f32 %v7405, %v7677
        %7679 = vmatmul.bf16.gmra.mxu0 %v6202
        %v7680 = vpop.f32.mrf.mxu0
        %v7681 = vadd.f32 %v7408, %v7680
        %v7682 = vpop.f32.mrf.mxu0
        %v7683 = vadd.f32 %v7410, %v7682
        %7684 = vmatmul.bf16.gmra.mxu0 %v6205
        %v7685 = vpop.f32.mrf.mxu0
        %v7686 = vadd.f32 %v7413, %v7685
        %v7687 = vpop.f32.mrf.mxu0
        %v7688 = vadd.f32 %v7415, %v7687
        %7689 = vmatmul.bf16.gmra.mxu0 %v6208
        %v7690 = vpop.f32.mrf.mxu0
        %v7691 = vadd.f32 %v7418, %v7690
        %v7692 = vpop.f32.mrf.mxu0
        %v7693 = vadd.f32 %v7420, %v7692
        %7694 = vmatmul.bf16.gmra.mxu0 %v6211
        %v7695 = vpop.f32.mrf.mxu0
        %v7696 = vadd.f32 %v7423, %v7695
        %v7697 = vpop.f32.mrf.mxu0
        %v7698 = vadd.f32 %v7425, %v7697
        %7699 = vmatmul.bf16.gmra.mxu0 %v6214
        %v7700 = vpop.f32.mrf.mxu0
        %v7701 = vadd.f32 %v7428, %v7700
        %v7702 = vpop.f32.mrf.mxu0
        %v7703 = vadd.f32 %v7430, %v7702
        %7704 = vmatmul.bf16.gmra.mxu0 %v6217
        %v7705 = vpop.f32.mrf.mxu0
        %v7706 = vadd.f32 %v7433, %v7705
        %v7707 = vpop.f32.mrf.mxu0
        %v7708 = vadd.f32 %v7435, %v7707
        %7709 = vmatmul.bf16.gmra.mxu0 %v6220
        %v7710 = vpop.f32.mrf.mxu0
        %v7711 = vadd.f32 %v7438, %v7710
        %v7712 = vpop.f32.mrf.mxu0
        %v7713 = vadd.f32 %v7440, %v7712
        %7714 = vmatmul.bf16.gmra.mxu0 %v6223
        %v7715 = vpop.f32.mrf.mxu0
        %v7716 = vadd.f32 %v7443, %v7715
        %v7717 = vpop.f32.mrf.mxu0
        %v7718 = vadd.f32 %v7445, %v7717
        %7719 = vmatmul.bf16.gmra.mxu0 %v6226
        %v7720 = vpop.f32.mrf.mxu0
        %v7721 = vadd.f32 %v7448, %v7720
        %v7722 = vpop.f32.mrf.mxu0
        %v7723 = vadd.f32 %v7450, %v7722
        %7724 = vmatmul.bf16.gmra.mxu0 %v6229
        %v7725 = vpop.f32.mrf.mxu0
        %v7726 = vadd.f32 %v7453, %v7725
        %v7727 = vpop.f32.mrf.mxu0
        %v7728 = vadd.f32 %v7455, %v7727
        %7729 = vmatmul.bf16.gmra.mxu0 %v6232
        %v7730 = vpop.f32.mrf.mxu0
        %v7731 = vadd.f32 %v7458, %v7730
        %v7732 = vpop.f32.mrf.mxu0
        %v7733 = vadd.f32 %v7460, %v7732
        %7734 = vmatmul.bf16.gmra.mxu0 %v6235
        %v7735 = vpop.f32.mrf.mxu0
        %v7736 = vadd.f32 %v7463, %v7735
        %v7737 = vpop.f32.mrf.mxu0
        %v7738 = vadd.f32 %v7465, %v7737
        %7739 = vmatmul.bf16.gmra.mxu0 %v6238
        %v7740 = vpop.f32.mrf.mxu0
        %v7741 = vadd.f32 %v7468, %v7740
        %v7742 = vpop.f32.mrf.mxu0
        %v7743 = vadd.f32 %v7470, %v7742
        %7744 = vmatmul.bf16.gmra.mxu0 %v6241
        %v7745 = vpop.f32.mrf.mxu0
        %v7746 = vadd.f32 %v7473, %v7745
        %v7747 = vpop.f32.mrf.mxu0
        %v7748 = vadd.f32 %v7475, %v7747
        %7749 = vmatmul.bf16.gmra.mxu0 %v6244
        %v7750 = vpop.f32.mrf.mxu0
        %v7751 = vadd.f32 %v7478, %v7750
        %v7752 = vpop.f32.mrf.mxu0
        %v7753 = vadd.f32 %v7480, %v7752
        %7754 = vmatmul.bf16.gmra.mxu0 %v6247
        %v7755 = vpop.f32.mrf.mxu0
        %v7756 = vadd.f32 %v7483, %v7755
        %v7757 = vpop.f32.mrf.mxu0
        %v7758 = vadd.f32 %v7485, %v7757
        %7759 = vmatmul.bf16.gmra.mxu0 %v6250
        %v7760 = vpop.f32.mrf.mxu0
        %v7761 = vadd.f32 %v7488, %v7760
        %v7762 = vpop.f32.mrf.mxu0
        %v7763 = vadd.f32 %v7490, %v7762
        %7764 = vmatmul.bf16.gmra.mxu0 %v6253
        %v7765 = vpop.f32.mrf.mxu0
        %v7766 = vadd.f32 %v7493, %v7765
        %v7767 = vpop.f32.mrf.mxu0
        %v7768 = vadd.f32 %v7495, %v7767
        %7769 = vmatmul.bf16.gmra.mxu0 %v6256
        %v7770 = vpop.f32.mrf.mxu0
        %v7771 = vadd.f32 %v7498, %v7770
        %v7772 = vpop.f32.mrf.mxu0
        %v7773 = vadd.f32 %v7500, %v7772
        %7774 = vmatmul.bf16.gmra.mxu0 %v6259
        %v7775 = vpop.f32.mrf.mxu0
        %v7776 = vadd.f32 %v7503, %v7775
        %v7777 = vpop.f32.mrf.mxu0
        %v7778 = vadd.f32 %v7505, %v7777
        %7779 = vmatmul.bf16.gmra.mxu0 %v6262
        %v7780 = vpop.f32.mrf.mxu0
        %v7781 = vadd.f32 %v7508, %v7780
        %v7782 = vpop.f32.mrf.mxu0
        %v7783 = vadd.f32 %v7510, %v7782
        %7784 = vmatmul.bf16.gmra.mxu0 %v6265
        %v7785 = vpop.f32.mrf.mxu0
        %v7786 = vadd.f32 %v7513, %v7785
        %v7787 = vpop.f32.mrf.mxu0
        %v7788 = vadd.f32 %v7515, %v7787
        %7789 = vmatmul.bf16.gmra.mxu0 %v6268
        %v7790 = vpop.f32.mrf.mxu0
        %v7791 = vadd.f32 %v7518, %v7790
        %v7792 = vpop.f32.mrf.mxu0
        %7793 = vdwg.mxu0
        %7794 = vmatpush.bf16.msra.mxu0 %v5585
        %7795 = vmatpush.bf16.msra.mxu0 %v5583
        %7796 = vmatpush.bf16.msra.mxu0 %v5581
        %7797 = vmatpush.bf16.msra.mxu0 %v5579
        %7798 = vmatpush.bf16.msra.mxu0 %v5577
        %7799 = vmatpush.bf16.msra.mxu0 %v5575
        %7800 = vmatpush.bf16.msra.mxu0 %v5573
        %7801 = vmatpush.bf16.msra.mxu0 %v5571
        %7802 = vmatmul.bf16.gmra.mxu0 %v6113
        %v7803 = vpop.f32.mrf.mxu0
        %v7804 = vadd.f32 %v7531, %v7803
        %v7805 = vpop.f32.mrf.mxu0
        %v7806 = vadd.f32 %v7533, %v7805
        %7807 = vmatmul.bf16.gmra.mxu0 %v6116
        %v7808 = vpop.f32.mrf.mxu0
        %v7809 = vadd.f32 %v7536, %v7808
        %v7810 = vpop.f32.mrf.mxu0
        %v7811 = vadd.f32 %v7538, %v7810
        %7812 = vmatmul.bf16.gmra.mxu0 %v6119
        %v7813 = vpop.f32.mrf.mxu0
        %v7814 = vadd.f32 %v7541, %v7813
        %v7815 = vpop.f32.mrf.mxu0
        %v7816 = vadd.f32 %v7543, %v7815
        %7817 = vmatmul.bf16.gmra.mxu0 %v6122
        %v7818 = vpop.f32.mrf.mxu0
        %v7819 = vadd.f32 %v7546, %v7818
        %v7820 = vpop.f32.mrf.mxu0
        %v7821 = vadd.f32 %v7548, %v7820
        %7822 = vmatmul.bf16.gmra.mxu0 %v6125
        %v7823 = vpop.f32.mrf.mxu0
        %v7824 = vadd.f32 %v7551, %v7823
        %v7825 = vpop.f32.mrf.mxu0
        %v7826 = vadd.f32 %v7553, %v7825
        %7827 = vmatmul.bf16.gmra.mxu0 %v6128
        %v7828 = vpop.f32.mrf.mxu0
        %v7829 = vadd.f32 %v7556, %v7828
        %v7830 = vpop.f32.mrf.mxu0
        %v7831 = vadd.f32 %v7558, %v7830
        %7832 = vmatmul.bf16.gmra.mxu0 %v6131
        %v7833 = vpop.f32.mrf.mxu0
        %v7834 = vadd.f32 %v7561, %v7833
        %v7835 = vpop.f32.mrf.mxu0
        %v7836 = vadd.f32 %v7563, %v7835
        %7837 = vmatmul.bf16.gmra.mxu0 %v6134
        %v7838 = vpop.f32.mrf.mxu0
        %v7839 = vadd.f32 %v7566, %v7838
        %v7840 = vpop.f32.mrf.mxu0
        %v7841 = vadd.f32 %v7568, %v7840
        %7842 = vmatmul.bf16.gmra.mxu0 %v6137
        %v7843 = vpop.f32.mrf.mxu0
        %v7844 = vadd.f32 %v7571, %v7843
        %v7845 = vpop.f32.mrf.mxu0
        %v7846 = vadd.f32 %v7573, %v7845
        %7847 = vmatmul.bf16.gmra.mxu0 %v6140
        %v7848 = vpop.f32.mrf.mxu0
        %v7849 = vadd.f32 %v7576, %v7848
        %v7850 = vpop.f32.mrf.mxu0
        %v7851 = vadd.f32 %v7578, %v7850
        %7852 = vmatmul.bf16.gmra.mxu0 %v6143
        %v7853 = vpop.f32.mrf.mxu0
        %v7854 = vadd.f32 %v7581, %v7853
        %v7855 = vpop.f32.mrf.mxu0
        %v7856 = vadd.f32 %v7583, %v7855
        %7857 = vmatmul.bf16.gmra.mxu0 %v6146
        %v7858 = vpop.f32.mrf.mxu0
        %v7859 = vadd.f32 %v7586, %v7858
        %v7860 = vpop.f32.mrf.mxu0
        %v7861 = vadd.f32 %v7588, %v7860
        %7862 = vmatmul.bf16.gmra.mxu0 %v6149
        %v7863 = vpop.f32.mrf.mxu0
        %v7864 = vadd.f32 %v7591, %v7863
        %v7865 = vpop.f32.mrf.mxu0
        %v7866 = vadd.f32 %v7593, %v7865
        %7867 = vmatmul.bf16.gmra.mxu0 %v6152
        %v7868 = vpop.f32.mrf.mxu0
        %v7869 = vadd.f32 %v7596, %v7868
        %v7870 = vpop.f32.mrf.mxu0
        %v7871 = vadd.f32 %v7598, %v7870
        %7872 = vmatmul.bf16.gmra.mxu0 %v6155
        %v7873 = vpop.f32.mrf.mxu0
        %v7874 = vadd.f32 %v7601, %v7873
        %v7875 = vpop.f32.mrf.mxu0
        %v7876 = vadd.f32 %v7603, %v7875
        %7877 = vmatmul.bf16.gmra.mxu0 %v6158
        %v7878 = vpop.f32.mrf.mxu0
        %v7879 = vadd.f32 %v7606, %v7878
        %v7880 = vpop.f32.mrf.mxu0
        %v7881 = vadd.f32 %v7608, %v7880
        %7882 = vmatmul.bf16.gmra.mxu0 %v6161
        %v7883 = vpop.f32.mrf.mxu0
        %v7884 = vadd.f32 %v7611, %v7883
        %v7885 = vpop.f32.mrf.mxu0
        %v7886 = vadd.f32 %v7613, %v7885
        %7887 = vmatmul.bf16.gmra.mxu0 %v6164
        %v7888 = vpop.f32.mrf.mxu0
        %v7889 = vadd.f32 %v7616, %v7888
        %v7890 = vpop.f32.mrf.mxu0
        %v7891 = vadd.f32 %v7618, %v7890
        %7892 = vmatmul.bf16.gmra.mxu0 %v6167
        %v7893 = vpop.f32.mrf.mxu0
        %v7894 = vadd.f32 %v7621, %v7893
        %v7895 = vpop.f32.mrf.mxu0
        %v7896 = vadd.f32 %v7623, %v7895
        %7897 = vmatmul.bf16.gmra.mxu0 %v6170
        %v7898 = vpop.f32.mrf.mxu0
        %v7899 = vadd.f32 %v7626, %v7898
        %v7900 = vpop.f32.mrf.mxu0
        %v7901 = vadd.f32 %v7628, %v7900
        %7902 = vmatmul.bf16.gmra.mxu0 %v6173
        %v7903 = vpop.f32.mrf.mxu0
        %v7904 = vadd.f32 %v7631, %v7903
        %v7905 = vpop.f32.mrf.mxu0
        %v7906 = vadd.f32 %v7633, %v7905
        %7907 = vmatmul.bf16.gmra.mxu0 %v6176
        %v7908 = vpop.f32.mrf.mxu0
        %v7909 = vadd.f32 %v7636, %v7908
        %v7910 = vpop.f32.mrf.mxu0
        %v7911 = vadd.f32 %v7638, %v7910
        %7912 = vmatmul.bf16.gmra.mxu0 %v6179
        %v7913 = vpop.f32.mrf.mxu0
        %v7914 = vadd.f32 %v7641, %v7913
        %v7915 = vpop.f32.mrf.mxu0
        %v7916 = vadd.f32 %v7643, %v7915
        %7917 = vmatmul.bf16.gmra.mxu0 %v6182
        %v7918 = vpop.f32.mrf.mxu0
        %v7919 = vadd.f32 %v7646, %v7918
        %v7920 = vpop.f32.mrf.mxu0
        %v7921 = vadd.f32 %v7648, %v7920
        %7922 = vmatmul.bf16.gmra.mxu0 %v6185
        %v7923 = vpop.f32.mrf.mxu0
        %v7924 = vadd.f32 %v7651, %v7923
        %v7925 = vpop.f32.mrf.mxu0
        %v7926 = vadd.f32 %v7653, %v7925
        %7927 = vmatmul.bf16.gmra.mxu0 %v6188
        %v7928 = vpop.f32.mrf.mxu0
        %v7929 = vadd.f32 %v7656, %v7928
        %v7930 = vpop.f32.mrf.mxu0
        %v7931 = vadd.f32 %v7658, %v7930
        %7932 = vmatmul.bf16.gmra.mxu0 %v6191
        %v7933 = vpop.f32.mrf.mxu0
        %v7934 = vadd.f32 %v7661, %v7933
        %v7935 = vpop.f32.mrf.mxu0
        %v7936 = vadd.f32 %v7663, %v7935
        %7937 = vmatmul.bf16.gmra.mxu0 %v6194
        %v7938 = vpop.f32.mrf.mxu0
        %v7939 = vadd.f32 %v7666, %v7938
        %v7940 = vpop.f32.mrf.mxu0
        %v7941 = vadd.f32 %v7668, %v7940
        %7942 = vmatmul.bf16.gmra.mxu0 %v6197
        %v7943 = vpop.f32.mrf.mxu0
        %v7944 = vadd.f32 %v7671, %v7943
        %v7945 = vpop.f32.mrf.mxu0
        %v7946 = vadd.f32 %v7673, %v7945
        %7947 = vmatmul.bf16.gmra.mxu0 %v6200
        %v7948 = vpop.f32.mrf.mxu0
        %v7949 = vadd.f32 %v7676, %v7948
        %v7950 = vpop.f32.mrf.mxu0
        %v7951 = vadd.f32 %v7678, %v7950
        %7952 = vmatmul.bf16.gmra.mxu0 %v6203
        %v7953 = vpop.f32.mrf.mxu0
        %v7954 = vadd.f32 %v7681, %v7953
        %v7955 = vpop.f32.mrf.mxu0
        %v7956 = vadd.f32 %v7683, %v7955
        %7957 = vmatmul.bf16.gmra.mxu0 %v6206
        %v7958 = vpop.f32.mrf.mxu0
        %v7959 = vadd.f32 %v7686, %v7958
        %v7960 = vpop.f32.mrf.mxu0
        %v7961 = vadd.f32 %v7688, %v7960
        %7962 = vmatmul.bf16.gmra.mxu0 %v6209
        %v7963 = vpop.f32.mrf.mxu0
        %v7964 = vadd.f32 %v7691, %v7963
        %v7965 = vpop.f32.mrf.mxu0
        %v7966 = vadd.f32 %v7693, %v7965
        %7967 = vmatmul.bf16.gmra.mxu0 %v6212
        %v7968 = vpop.f32.mrf.mxu0
        %v7969 = vadd.f32 %v7696, %v7968
        %v7970 = vpop.f32.mrf.mxu0
        %v7971 = vadd.f32 %v7698, %v7970
        %7972 = vmatmul.bf16.gmra.mxu0 %v6215
        %v7973 = vpop.f32.mrf.mxu0
        %v7974 = vadd.f32 %v7701, %v7973
        %v7975 = vpop.f32.mrf.mxu0
        %v7976 = vadd.f32 %v7703, %v7975
        %7977 = vmatmul.bf16.gmra.mxu0 %v6218
        %v7978 = vpop.f32.mrf.mxu0
        %v7979 = vadd.f32 %v7706, %v7978
        %v7980 = vpop.f32.mrf.mxu0
        %v7981 = vadd.f32 %v7708, %v7980
        %7982 = vmatmul.bf16.gmra.mxu0 %v6221
        %v7983 = vpop.f32.mrf.mxu0
        %v7984 = vadd.f32 %v7711, %v7983
        %v7985 = vpop.f32.mrf.mxu0
        %v7986 = vadd.f32 %v7713, %v7985
        %7987 = vmatmul.bf16.gmra.mxu0 %v6224
        %v7988 = vpop.f32.mrf.mxu0
        %v7989 = vadd.f32 %v7716, %v7988
        %v7990 = vpop.f32.mrf.mxu0
        %v7991 = vadd.f32 %v7718, %v7990
        %7992 = vmatmul.bf16.gmra.mxu0 %v6227
        %v7993 = vpop.f32.mrf.mxu0
        %v7994 = vadd.f32 %v7721, %v7993
        %v7995 = vpop.f32.mrf.mxu0
        %v7996 = vadd.f32 %v7723, %v7995
        %7997 = vmatmul.bf16.gmra.mxu0 %v6230
        %v7998 = vpop.f32.mrf.mxu0
        %v7999 = vadd.f32 %v7726, %v7998
        %v8000 = vpop.f32.mrf.mxu0
        %v8001 = vadd.f32 %v7728, %v8000
        %8002 = vmatmul.bf16.gmra.mxu0 %v6233
        %v8003 = vpop.f32.mrf.mxu0
        %v8004 = vadd.f32 %v7731, %v8003
        %v8005 = vpop.f32.mrf.mxu0
        %v8006 = vadd.f32 %v7733, %v8005
        %8007 = vmatmul.bf16.gmra.mxu0 %v6236
        %v8008 = vpop.f32.mrf.mxu0
        %v8009 = vadd.f32 %v7736, %v8008
        %v8010 = vpop.f32.mrf.mxu0
        %v8011 = vadd.f32 %v7738, %v8010
        %8012 = vmatmul.bf16.gmra.mxu0 %v6239
        %v8013 = vpop.f32.mrf.mxu0
        %v8014 = vadd.f32 %v7741, %v8013
        %v8015 = vpop.f32.mrf.mxu0
        %v8016 = vadd.f32 %v7743, %v8015
        %8017 = vmatmul.bf16.gmra.mxu0 %v6242
        %v8018 = vpop.f32.mrf.mxu0
        %v8019 = vadd.f32 %v7746, %v8018
        %v8020 = vpop.f32.mrf.mxu0
        %v8021 = vadd.f32 %v7748, %v8020
        %8022 = vmatmul.bf16.gmra.mxu0 %v6245
        %v8023 = vpop.f32.mrf.mxu0
        %v8024 = vadd.f32 %v7751, %v8023
        %v8025 = vpop.f32.mrf.mxu0
        %v8026 = vadd.f32 %v7753, %v8025
        %8027 = vmatmul.bf16.gmra.mxu0 %v6248
        %v8028 = vpop.f32.mrf.mxu0
        %v8029 = vadd.f32 %v7756, %v8028
        %v8030 = vpop.f32.mrf.mxu0
        %v8031 = vadd.f32 %v7758, %v8030
        %8032 = vmatmul.bf16.gmra.mxu0 %v6251
        %v8033 = vpop.f32.mrf.mxu0
        %v8034 = vadd.f32 %v7761, %v8033
        %v8035 = vpop.f32.mrf.mxu0
        %v8036 = vadd.f32 %v7763, %v8035
        %8037 = vmatmul.bf16.gmra.mxu0 %v6254
        %v8038 = vpop.f32.mrf.mxu0
        %v8039 = vadd.f32 %v7766, %v8038
        %v8040 = vpop.f32.mrf.mxu0
        %v8041 = vadd.f32 %v7768, %v8040
        %8042 = vmatmul.bf16.gmra.mxu0 %v6257
        %v8043 = vpop.f32.mrf.mxu0
        %v8044 = vadd.f32 %v7771, %v8043
        %v8045 = vpop.f32.mrf.mxu0
        %v8046 = vadd.f32 %v7773, %v8045
        %8047 = vmatmul.bf16.gmra.mxu0 %v6260
        %v8048 = vpop.f32.mrf.mxu0
        %v8049 = vadd.f32 %v7776, %v8048
        %v8050 = vpop.f32.mrf.mxu0
        %v8051 = vadd.f32 %v7778, %v8050
        %8052 = vmatmul.bf16.gmra.mxu0 %v6263
        %v8053 = vpop.f32.mrf.mxu0
        %v8054 = vadd.f32 %v7781, %v8053
        %v8055 = vpop.f32.mrf.mxu0
        %v8056 = vadd.f32 %v7783, %v8055
        %8057 = vmatmul.bf16.gmra.mxu0 %v6266
        %v8058 = vpop.f32.mrf.mxu0
        %v8059 = vadd.f32 %v7786, %v8058
        %v8060 = vpop.f32.mrf.mxu0
        %v8061 = vadd.f32 %v7788, %v8060
        %8062 = vmatmul.bf16.gmra.mxu0 %v6269
        %v8063 = vpop.f32.mrf.mxu0
        %v8064 = vadd.f32 %v7791, %v8063
        %v8065 = vpop.f32.mrf.mxu0
        %8066 = vdwg.mxu0
        %v8067 = vmax.f32 %v6985, 1e-06
        %v8068 = vmax.f32 %v7804, 1e-06
        %v8069 = vmax.f32 %v6987, 1e-06
        %v8070 = vmax.f32 %v7806, 1e-06
        %v8071 = vmax.f32 %v6990, 1e-06
        %v8072 = vmax.f32 %v7809, 1e-06
        %v8073 = vmax.f32 %v6992, 1e-06
        %v8074 = vmax.f32 %v7811, 1e-06
        %v8075 = vmax.f32 %v6995, 1e-06
        %v8076 = vmax.f32 %v7814, 1e-06
        %v8077 = vmax.f32 %v6997, 1e-06
        %v8078 = vmax.f32 %v7816, 1e-06
        %v8079 = vmax.f32 %v7000, 1e-06
        %v8080 = vmax.f32 %v7819, 1e-06
        %v8081 = vmax.f32 %v7002, 1e-06
        %v8082 = vmax.f32 %v7821, 1e-06
        %v8083 = vmax.f32 %v7005, 1e-06
        %v8084 = vmax.f32 %v7824, 1e-06
        %v8085 = vmax.f32 %v7007, 1e-06
        %v8086 = vmax.f32 %v7826, 1e-06
        %v8087 = vmax.f32 %v7010, 1e-06
        %v8088 = vmax.f32 %v7829, 1e-06
        %v8089 = vmax.f32 %v7012, 1e-06
        %v8090 = vmax.f32 %v7831, 1e-06
        %v8091 = vmax.f32 %v7015, 1e-06
        %v8092 = vmax.f32 %v7834, 1e-06
        %v8093 = vmax.f32 %v7017, 1e-06
        %v8094 = vmax.f32 %v7836, 1e-06
        %v8095 = vmax.f32 %v7020, 1e-06
        %v8096 = vmax.f32 %v7839, 1e-06
        %v8097 = vmax.f32 %v7022, 1e-06
        %v8098 = vmax.f32 %v7841, 1e-06
        %v8099 = vmax.f32 %v7025, 1e-06
        %v8100 = vmax.f32 %v7844, 1e-06
        %v8101 = vmax.f32 %v7027, 1e-06
        %v8102 = vmax.f32 %v7846, 1e-06
        %v8103 = vmax.f32 %v7030, 1e-06
        %v8104 = vmax.f32 %v7849, 1e-06
        %v8105 = vmax.f32 %v7032, 1e-06
        %v8106 = vmax.f32 %v7851, 1e-06
        %v8107 = vmax.f32 %v7035, 1e-06
        %v8108 = vmax.f32 %v7854, 1e-06
        %v8109 = vmax.f32 %v7037, 1e-06
        %v8110 = vmax.f32 %v7856, 1e-06
        %v8111 = vmax.f32 %v7040, 1e-06
        %v8112 = vmax.f32 %v7859, 1e-06
        %v8113 = vmax.f32 %v7042, 1e-06
        %v8114 = vmax.f32 %v7861, 1e-06
        %v8115 = vmax.f32 %v7045, 1e-06
        %v8116 = vmax.f32 %v7864, 1e-06
        %v8117 = vmax.f32 %v7047, 1e-06
        %v8118 = vmax.f32 %v7866, 1e-06
        %v8119 = vmax.f32 %v7050, 1e-06
        %v8120 = vmax.f32 %v7869, 1e-06
        %v8121 = vmax.f32 %v7052, 1e-06
        %v8122 = vmax.f32 %v7871, 1e-06
        %v8123 = vmax.f32 %v7055, 1e-06
        %v8124 = vmax.f32 %v7874, 1e-06
        %v8125 = vmax.f32 %v7057, 1e-06
        %v8126 = vmax.f32 %v7876, 1e-06
        %v8127 = vmax.f32 %v7060, 1e-06
        %v8128 = vmax.f32 %v7879, 1e-06
        %v8129 = vmax.f32 %v7062, 1e-06
        %v8130 = vmax.f32 %v7881, 1e-06
        %v8131 = vmax.f32 %v7065, 1e-06
        %v8132 = vmax.f32 %v7884, 1e-06
        %v8133 = vmax.f32 %v7067, 1e-06
        %v8134 = vmax.f32 %v7886, 1e-06
        %v8135 = vmax.f32 %v7070, 1e-06
        %v8136 = vmax.f32 %v7889, 1e-06
        %v8137 = vmax.f32 %v7072, 1e-06
        %v8138 = vmax.f32 %v7891, 1e-06
        %v8139 = vmax.f32 %v7075, 1e-06
        %v8140 = vmax.f32 %v7894, 1e-06
        %v8141 = vmax.f32 %v7077, 1e-06
        %v8142 = vmax.f32 %v7896, 1e-06
        %v8143 = vmax.f32 %v7080, 1e-06
        %v8144 = vmax.f32 %v7899, 1e-06
        %v8145 = vmax.f32 %v7082, 1e-06
        %v8146 = vmax.f32 %v7901, 1e-06
        %v8147 = vmax.f32 %v7085, 1e-06
        %v8148 = vmax.f32 %v7904, 1e-06
        %v8149 = vmax.f32 %v7087, 1e-06
        %v8150 = vmax.f32 %v7906, 1e-06
        %v8151 = vmax.f32 %v7090, 1e-06
        %v8152 = vmax.f32 %v7909, 1e-06
        %v8153 = vmax.f32 %v7092, 1e-06
        %v8154 = vmax.f32 %v7911, 1e-06
        %v8155 = vmax.f32 %v7095, 1e-06
        %v8156 = vmax.f32 %v7914, 1e-06
        %v8157 = vmax.f32 %v7097, 1e-06
        %v8158 = vmax.f32 %v7916, 1e-06
        %v8159 = vmax.f32 %v7100, 1e-06
        %v8160 = vmax.f32 %v7919, 1e-06
        %v8161 = vmax.f32 %v7102, 1e-06
        %v8162 = vmax.f32 %v7921, 1e-06
        %v8163 = vmax.f32 %v7105, 1e-06
        %v8164 = vmax.f32 %v7924, 1e-06
        %v8165 = vmax.f32 %v7107, 1e-06
        %v8166 = vmax.f32 %v7926, 1e-06
        %v8167 = vmax.f32 %v7110, 1e-06
        %v8168 = vmax.f32 %v7929, 1e-06
        %v8169 = vmax.f32 %v7112, 1e-06
        %v8170 = vmax.f32 %v7931, 1e-06
        %v8171 = vmax.f32 %v7115, 1e-06
        %v8172 = vmax.f32 %v7934, 1e-06
        %v8173 = vmax.f32 %v7117, 1e-06
        %v8174 = vmax.f32 %v7936, 1e-06
        %v8175 = vmax.f32 %v7120, 1e-06
        %v8176 = vmax.f32 %v7939, 1e-06
        %v8177 = vmax.f32 %v7122, 1e-06
        %v8178 = vmax.f32 %v7941, 1e-06
        %v8179 = vmax.f32 %v7125, 1e-06
        %v8180 = vmax.f32 %v7944, 1e-06
        %v8181 = vmax.f32 %v7127, 1e-06
        %v8182 = vmax.f32 %v7946, 1e-06
        %v8183 = vmax.f32 %v7130, 1e-06
        %v8184 = vmax.f32 %v7949, 1e-06
        %v8185 = vmax.f32 %v7132, 1e-06
        %v8186 = vmax.f32 %v7951, 1e-06
        %v8187 = vmax.f32 %v7135, 1e-06
        %v8188 = vmax.f32 %v7954, 1e-06
        %v8189 = vmax.f32 %v7137, 1e-06
        %v8190 = vmax.f32 %v7956, 1e-06
        %v8191 = vmax.f32 %v7140, 1e-06
        %v8192 = vmax.f32 %v7959, 1e-06
        %v8193 = vmax.f32 %v7142, 1e-06
        %v8194 = vmax.f32 %v7961, 1e-06
        %v8195 = vmax.f32 %v7145, 1e-06
        %v8196 = vmax.f32 %v7964, 1e-06
        %v8197 = vmax.f32 %v7147, 1e-06
        %v8198 = vmax.f32 %v7966, 1e-06
        %v8199 = vmax.f32 %v7150, 1e-06
        %v8200 = vmax.f32 %v7969, 1e-06
        %v8201 = vmax.f32 %v7152, 1e-06
        %v8202 = vmax.f32 %v7971, 1e-06
        %v8203 = vmax.f32 %v7155, 1e-06
        %v8204 = vmax.f32 %v7974, 1e-06
        %v8205 = vmax.f32 %v7157, 1e-06
        %v8206 = vmax.f32 %v7976, 1e-06
        %v8207 = vmax.f32 %v7160, 1e-06
        %v8208 = vmax.f32 %v7979, 1e-06
        %v8209 = vmax.f32 %v7162, 1e-06
        %v8210 = vmax.f32 %v7981, 1e-06
        %v8211 = vmax.f32 %v7165, 1e-06
        %v8212 = vmax.f32 %v7984, 1e-06
        %v8213 = vmax.f32 %v7167, 1e-06
        %v8214 = vmax.f32 %v7986, 1e-06
        %v8215 = vmax.f32 %v7170, 1e-06
        %v8216 = vmax.f32 %v7989, 1e-06
        %v8217 = vmax.f32 %v7172, 1e-06
        %v8218 = vmax.f32 %v7991, 1e-06
        %v8219 = vmax.f32 %v7175, 1e-06
        %v8220 = vmax.f32 %v7994, 1e-06
        %v8221 = vmax.f32 %v7177, 1e-06
        %v8222 = vmax.f32 %v7996, 1e-06
        %v8223 = vmax.f32 %v7180, 1e-06
        %v8224 = vmax.f32 %v7999, 1e-06
        %v8225 = vmax.f32 %v7182, 1e-06
        %v8226 = vmax.f32 %v8001, 1e-06
        %v8227 = vmax.f32 %v7185, 1e-06
        %v8228 = vmax.f32 %v8004, 1e-06
        %v8229 = vmax.f32 %v7187, 1e-06
        %v8230 = vmax.f32 %v8006, 1e-06
        %v8231 = vmax.f32 %v7190, 1e-06
        %v8232 = vmax.f32 %v8009, 1e-06
        %v8233 = vmax.f32 %v7192, 1e-06
        %v8234 = vmax.f32 %v8011, 1e-06
        %v8235 = vmax.f32 %v7195, 1e-06
        %v8236 = vmax.f32 %v8014, 1e-06
        %v8237 = vmax.f32 %v7197, 1e-06
        %v8238 = vmax.f32 %v8016, 1e-06
        %v8239 = vmax.f32 %v7200, 1e-06
        %v8240 = vmax.f32 %v8019, 1e-06
        %v8241 = vmax.f32 %v7202, 1e-06
        %v8242 = vmax.f32 %v8021, 1e-06
        %v8243 = vmax.f32 %v7205, 1e-06
        %v8244 = vmax.f32 %v8024, 1e-06
        %v8245 = vmax.f32 %v7207, 1e-06
        %v8246 = vmax.f32 %v8026, 1e-06
        %v8247 = vmax.f32 %v7210, 1e-06
        %v8248 = vmax.f32 %v8029, 1e-06
        %v8249 = vmax.f32 %v7212, 1e-06
        %v8250 = vmax.f32 %v8031, 1e-06
        %v8251 = vmax.f32 %v7215, 1e-06
        %v8252 = vmax.f32 %v8034, 1e-06
        %v8253 = vmax.f32 %v7217, 1e-06
        %v8254 = vmax.f32 %v8036, 1e-06
        %v8255 = vmax.f32 %v7220, 1e-06
        %v8256 = vmax.f32 %v8039, 1e-06
        %v8257 = vmax.f32 %v7222, 1e-06
        %v8258 = vmax.f32 %v8041, 1e-06
        %v8259 = vmax.f32 %v7225, 1e-06
        %v8260 = vmax.f32 %v8044, 1e-06
        %v8261 = vmax.f32 %v7227, 1e-06
        %v8262 = vmax.f32 %v8046, 1e-06
        %v8263 = vmax.f32 %v7230, 1e-06
        %v8264 = vmax.f32 %v8049, 1e-06
        %v8265 = vmax.f32 %v7232, 1e-06
        %v8266 = vmax.f32 %v8051, 1e-06
        %v8267 = vmax.f32 %v7235, 1e-06
        %v8268 = vmax.f32 %v8054, 1e-06
        %v8269 = vmax.f32 %v7237, 1e-06
        %v8270 = vmax.f32 %v8056, 1e-06
        %v8271 = vmax.f32 %v7240, 1e-06
        %v8272 = vmax.f32 %v8059, 1e-06
        %v8273 = vmax.f32 %v7242, 1e-06
        %v8274 = vmax.f32 %v8061, 1e-06
        %v8275 = vmax.f32 %v7245, 1e-06
        %v8276 = vmax.f32 %v8064, 1e-06
        %v8277 = vlog2.pop %v8067
        %v8278 = vmul.f32 %v8277, 0.6931472
        %v8279 = vlog2.pop %v8068
        %v8280 = vmul.f32 %v8279, 0.6931472
        %v8281 = vlog2.pop %v8069
        %v8282 = vmul.f32 %v8281, 0.6931472
        %v8283 = vlog2.pop %v8070
        %v8284 = vmul.f32 %v8283, 0.6931472
        %v8285 = vlog2.pop %v8071
        %v8286 = vmul.f32 %v8285, 0.6931472
        %v8287 = vlog2.pop %v8072
        %v8288 = vmul.f32 %v8287, 0.6931472
        %v8289 = vlog2.pop %v8073
        %v8290 = vmul.f32 %v8289, 0.6931472
        %v8291 = vlog2.pop %v8074
        %v8292 = vmul.f32 %v8291, 0.6931472
        %v8293 = vlog2.pop %v8075
        %v8294 = vmul.f32 %v8293, 0.6931472
        %v8295 = vlog2.pop %v8076
        %v8296 = vmul.f32 %v8295, 0.6931472
        %v8297 = vlog2.pop %v8077
        %v8298 = vmul.f32 %v8297, 0.6931472
        %v8299 = vlog2.pop %v8078
        %v8300 = vmul.f32 %v8299, 0.6931472
        %v8301 = vlog2.pop %v8079
        %v8302 = vmul.f32 %v8301, 0.6931472
        %v8303 = vlog2.pop %v8080
        %v8304 = vmul.f32 %v8303, 0.6931472
        %v8305 = vlog2.pop %v8081
        %v8306 = vmul.f32 %v8305, 0.6931472
        %v8307 = vlog2.pop %v8082
        %v8308 = vmul.f32 %v8307, 0.6931472
        %v8309 = vlog2.pop %v8083
        %v8310 = vmul.f32 %v8309, 0.6931472
        %v8311 = vlog2.pop %v8084
        %v8312 = vmul.f32 %v8311, 0.6931472
        %v8313 = vlog2.pop %v8085
        %v8314 = vmul.f32 %v8313, 0.6931472
        %v8315 = vlog2.pop %v8086
        %v8316 = vmul.f32 %v8315, 0.6931472
        %v8317 = vlog2.pop %v8087
        %v8318 = vmul.f32 %v8317, 0.6931472
        %v8319 = vlog2.pop %v8088
        %v8320 = vmul.f32 %v8319, 0.6931472
        %v8321 = vlog2.pop %v8089
        %v8322 = vmul.f32 %v8321, 0.6931472
        %v8323 = vlog2.pop %v8090
        %v8324 = vmul.f32 %v8323, 0.6931472
        %v8325 = vlog2.pop %v8091
        %v8326 = vmul.f32 %v8325, 0.6931472
        %v8327 = vlog2.pop %v8092
        %v8328 = vmul.f32 %v8327, 0.6931472
        %v8329 = vlog2.pop %v8093
        %v8330 = vmul.f32 %v8329, 0.6931472
        %v8331 = vlog2.pop %v8094
        %v8332 = vmul.f32 %v8331, 0.6931472
        %v8333 = vlog2.pop %v8095
        %v8334 = vmul.f32 %v8333, 0.6931472
        %v8335 = vlog2.pop %v8096
        %v8336 = vmul.f32 %v8335, 0.6931472
        %v8337 = vlog2.pop %v8097
        %v8338 = vmul.f32 %v8337, 0.6931472
        %v8339 = vlog2.pop %v8098
        %v8340 = vmul.f32 %v8339, 0.6931472
        %v8341 = vlog2.pop %v8099
        %v8342 = vmul.f32 %v8341, 0.6931472
        %v8343 = vlog2.pop %v8100
        %v8344 = vmul.f32 %v8343, 0.6931472
        %v8345 = vlog2.pop %v8101
        %v8346 = vmul.f32 %v8345, 0.6931472
        %v8347 = vlog2.pop %v8102
        %v8348 = vmul.f32 %v8347, 0.6931472
        %v8349 = vlog2.pop %v8103
        %v8350 = vmul.f32 %v8349, 0.6931472
        %v8351 = vlog2.pop %v8104
        %v8352 = vmul.f32 %v8351, 0.6931472
        %v8353 = vlog2.pop %v8105
        %v8354 = vmul.f32 %v8353, 0.6931472
        %v8355 = vlog2.pop %v8106
        %v8356 = vmul.f32 %v8355, 0.6931472
        %v8357 = vlog2.pop %v8107
        %v8358 = vmul.f32 %v8357, 0.6931472
        %v8359 = vlog2.pop %v8108
        %v8360 = vmul.f32 %v8359, 0.6931472
        %v8361 = vlog2.pop %v8109
        %v8362 = vmul.f32 %v8361, 0.6931472
        %v8363 = vlog2.pop %v8110
        %v8364 = vmul.f32 %v8363, 0.6931472
        %v8365 = vlog2.pop %v8111
        %v8366 = vmul.f32 %v8365, 0.6931472
        %v8367 = vlog2.pop %v8112
        %v8368 = vmul.f32 %v8367, 0.6931472
        %v8369 = vlog2.pop %v8113
        %v8370 = vmul.f32 %v8369, 0.6931472
        %v8371 = vlog2.pop %v8114
        %v8372 = vmul.f32 %v8371, 0.6931472
        %v8373 = vlog2.pop %v8115
        %v8374 = vmul.f32 %v8373, 0.6931472
        %v8375 = vlog2.pop %v8116
        %v8376 = vmul.f32 %v8375, 0.6931472
        %v8377 = vlog2.pop %v8117
        %v8378 = vmul.f32 %v8377, 0.6931472
        %v8379 = vlog2.pop %v8118
        %v8380 = vmul.f32 %v8379, 0.6931472
        %v8381 = vlog2.pop %v8119
        %v8382 = vmul.f32 %v8381, 0.6931472
        %v8383 = vlog2.pop %v8120
        %v8384 = vmul.f32 %v8383, 0.6931472
        %v8385 = vlog2.pop %v8121
        %v8386 = vmul.f32 %v8385, 0.6931472
        %v8387 = vlog2.pop %v8122
        %v8388 = vmul.f32 %v8387, 0.6931472
        %v8389 = vlog2.pop %v8123
        %v8390 = vmul.f32 %v8389, 0.6931472
        %v8391 = vlog2.pop %v8124
        %v8392 = vmul.f32 %v8391, 0.6931472
        %v8393 = vlog2.pop %v8125
        %v8394 = vmul.f32 %v8393, 0.6931472
        %v8395 = vlog2.pop %v8126
        %v8396 = vmul.f32 %v8395, 0.6931472
        %v8397 = vlog2.pop %v8127
        %v8398 = vmul.f32 %v8397, 0.6931472
        %v8399 = vlog2.pop %v8128
        %v8400 = vmul.f32 %v8399, 0.6931472
        %v8401 = vlog2.pop %v8129
        %v8402 = vmul.f32 %v8401, 0.6931472
        %v8403 = vlog2.pop %v8130
        %v8404 = vmul.f32 %v8403, 0.6931472
        %v8405 = vlog2.pop %v8131
        %v8406 = vmul.f32 %v8405, 0.6931472
        %v8407 = vlog2.pop %v8132
        %v8408 = vmul.f32 %v8407, 0.6931472
        %v8409 = vlog2.pop %v8133
        %v8410 = vmul.f32 %v8409, 0.6931472
        %v8411 = vlog2.pop %v8134
        %v8412 = vmul.f32 %v8411, 0.6931472
        %v8413 = vlog2.pop %v8135
        %v8414 = vmul.f32 %v8413, 0.6931472
        %v8415 = vlog2.pop %v8136
        %v8416 = vmul.f32 %v8415, 0.6931472
        %v8417 = vlog2.pop %v8137
        %v8418 = vmul.f32 %v8417, 0.6931472
        %v8419 = vlog2.pop %v8138
        %v8420 = vmul.f32 %v8419, 0.6931472
        %v8421 = vlog2.pop %v8139
        %v8422 = vmul.f32 %v8421, 0.6931472
        %v8423 = vlog2.pop %v8140
        %v8424 = vmul.f32 %v8423, 0.6931472
        %v8425 = vlog2.pop %v8141
        %v8426 = vmul.f32 %v8425, 0.6931472
        %v8427 = vlog2.pop %v8142
        %v8428 = vmul.f32 %v8427, 0.6931472
        %v8429 = vlog2.pop %v8143
        %v8430 = vmul.f32 %v8429, 0.6931472
        %v8431 = vlog2.pop %v8144
        %v8432 = vmul.f32 %v8431, 0.6931472
        %v8433 = vlog2.pop %v8145
        %v8434 = vmul.f32 %v8433, 0.6931472
        %v8435 = vlog2.pop %v8146
        %v8436 = vmul.f32 %v8435, 0.6931472
        %v8437 = vlog2.pop %v8147
        %v8438 = vmul.f32 %v8437, 0.6931472
        %v8439 = vlog2.pop %v8148
        %v8440 = vmul.f32 %v8439, 0.6931472
        %v8441 = vlog2.pop %v8149
        %v8442 = vmul.f32 %v8441, 0.6931472
        %v8443 = vlog2.pop %v8150
        %v8444 = vmul.f32 %v8443, 0.6931472
        %v8445 = vlog2.pop %v8151
        %v8446 = vmul.f32 %v8445, 0.6931472
        %v8447 = vlog2.pop %v8152
        %v8448 = vmul.f32 %v8447, 0.6931472
        %v8449 = vlog2.pop %v8153
        %v8450 = vmul.f32 %v8449, 0.6931472
        %v8451 = vlog2.pop %v8154
        %v8452 = vmul.f32 %v8451, 0.6931472
        %v8453 = vlog2.pop %v8155
        %v8454 = vmul.f32 %v8453, 0.6931472
        %v8455 = vlog2.pop %v8156
        %v8456 = vmul.f32 %v8455, 0.6931472
        %v8457 = vlog2.pop %v8157
        %v8458 = vmul.f32 %v8457, 0.6931472
        %v8459 = vlog2.pop %v8158
        %v8460 = vmul.f32 %v8459, 0.6931472
        %v8461 = vlog2.pop %v8159
        %v8462 = vmul.f32 %v8461, 0.6931472
        %v8463 = vlog2.pop %v8160
        %v8464 = vmul.f32 %v8463, 0.6931472
        %v8465 = vlog2.pop %v8161
        %v8466 = vmul.f32 %v8465, 0.6931472
        %v8467 = vlog2.pop %v8162
        %v8468 = vmul.f32 %v8467, 0.6931472
        %v8469 = vlog2.pop %v8163
        %v8470 = vmul.f32 %v8469, 0.6931472
        %v8471 = vlog2.pop %v8164
        %v8472 = vmul.f32 %v8471, 0.6931472
        %v8473 = vlog2.pop %v8165
        %v8474 = vmul.f32 %v8473, 0.6931472
        %v8475 = vlog2.pop %v8166
        %v8476 = vmul.f32 %v8475, 0.6931472
        %v8477 = vlog2.pop %v8167
        %v8478 = vmul.f32 %v8477, 0.6931472
        %v8479 = vlog2.pop %v8168
        %v8480 = vmul.f32 %v8479, 0.6931472
        %v8481 = vlog2.pop %v8169
        %v8482 = vmul.f32 %v8481, 0.6931472
        %v8483 = vlog2.pop %v8170
        %v8484 = vmul.f32 %v8483, 0.6931472
        %v8485 = vlog2.pop %v8171
        %v8486 = vmul.f32 %v8485, 0.6931472
        %v8487 = vlog2.pop %v8172
        %v8488 = vmul.f32 %v8487, 0.6931472
        %v8489 = vlog2.pop %v8173
        %v8490 = vmul.f32 %v8489, 0.6931472
        %v8491 = vlog2.pop %v8174
        %v8492 = vmul.f32 %v8491, 0.6931472
        %v8493 = vlog2.pop %v8175
        %v8494 = vmul.f32 %v8493, 0.6931472
        %v8495 = vlog2.pop %v8176
        %v8496 = vmul.f32 %v8495, 0.6931472
        %v8497 = vlog2.pop %v8177
        %v8498 = vmul.f32 %v8497, 0.6931472
        %v8499 = vlog2.pop %v8178
        %v8500 = vmul.f32 %v8499, 0.6931472
        %v8501 = vlog2.pop %v8179
        %v8502 = vmul.f32 %v8501, 0.6931472
        %v8503 = vlog2.pop %v8180
        %v8504 = vmul.f32 %v8503, 0.6931472
        %v8505 = vlog2.pop %v8181
        %v8506 = vmul.f32 %v8505, 0.6931472
        %v8507 = vlog2.pop %v8182
        %v8508 = vmul.f32 %v8507, 0.6931472
        %v8509 = vlog2.pop %v8183
        %v8510 = vmul.f32 %v8509, 0.6931472
        %v8511 = vlog2.pop %v8184
        %v8512 = vmul.f32 %v8511, 0.6931472
        %v8513 = vlog2.pop %v8185
        %v8514 = vmul.f32 %v8513, 0.6931472
        %v8515 = vlog2.pop %v8186
        %v8516 = vmul.f32 %v8515, 0.6931472
        %v8517 = vlog2.pop %v8187
        %v8518 = vmul.f32 %v8517, 0.6931472
        %v8519 = vlog2.pop %v8188
        %v8520 = vmul.f32 %v8519, 0.6931472
        %v8521 = vlog2.pop %v8189
        %v8522 = vmul.f32 %v8521, 0.6931472
        %v8523 = vlog2.pop %v8190
        %v8524 = vmul.f32 %v8523, 0.6931472
        %v8525 = vlog2.pop %v8191
        %v8526 = vmul.f32 %v8525, 0.6931472
        %v8527 = vlog2.pop %v8192
        %v8528 = vmul.f32 %v8527, 0.6931472
        %v8529 = vlog2.pop %v8193
        %v8530 = vmul.f32 %v8529, 0.6931472
        %v8531 = vlog2.pop %v8194
        %v8532 = vmul.f32 %v8531, 0.6931472
        %v8533 = vlog2.pop %v8195
        %v8534 = vmul.f32 %v8533, 0.6931472
        %v8535 = vlog2.pop %v8196
        %v8536 = vmul.f32 %v8535, 0.6931472
        %v8537 = vlog2.pop %v8197
        %v8538 = vmul.f32 %v8537, 0.6931472
        %v8539 = vlog2.pop %v8198
        %v8540 = vmul.f32 %v8539, 0.6931472
        %v8541 = vlog2.pop %v8199
        %v8542 = vmul.f32 %v8541, 0.6931472
        %v8543 = vlog2.pop %v8200
        %v8544 = vmul.f32 %v8543, 0.6931472
        %v8545 = vlog2.pop %v8201
        %v8546 = vmul.f32 %v8545, 0.6931472
        %v8547 = vlog2.pop %v8202
        %v8548 = vmul.f32 %v8547, 0.6931472
        %v8549 = vlog2.pop %v8203
        %v8550 = vmul.f32 %v8549, 0.6931472
        %v8551 = vlog2.pop %v8204
        %v8552 = vmul.f32 %v8551, 0.6931472
        %v8553 = vlog2.pop %v8205
        %v8554 = vmul.f32 %v8553, 0.6931472
        %v8555 = vlog2.pop %v8206
        %v8556 = vmul.f32 %v8555, 0.6931472
        %v8557 = vlog2.pop %v8207
        %v8558 = vmul.f32 %v8557, 0.6931472
        %v8559 = vlog2.pop %v8208
        %v8560 = vmul.f32 %v8559, 0.6931472
        %v8561 = vlog2.pop %v8209
        %v8562 = vmul.f32 %v8561, 0.6931472
        %v8563 = vlog2.pop %v8210
        %v8564 = vmul.f32 %v8563, 0.6931472
        %v8565 = vlog2.pop %v8211
        %v8566 = vmul.f32 %v8565, 0.6931472
        %v8567 = vlog2.pop %v8212
        %v8568 = vmul.f32 %v8567, 0.6931472
        %v8569 = vlog2.pop %v8213
        %v8570 = vmul.f32 %v8569, 0.6931472
        %v8571 = vlog2.pop %v8214
        %v8572 = vmul.f32 %v8571, 0.6931472
        %v8573 = vlog2.pop %v8215
        %v8574 = vmul.f32 %v8573, 0.6931472
        %v8575 = vlog2.pop %v8216
        %v8576 = vmul.f32 %v8575, 0.6931472
        %v8577 = vlog2.pop %v8217
        %v8578 = vmul.f32 %v8577, 0.6931472
        %v8579 = vlog2.pop %v8218
        %v8580 = vmul.f32 %v8579, 0.6931472
        %v8581 = vlog2.pop %v8219
        %v8582 = vmul.f32 %v8581, 0.6931472
        %v8583 = vlog2.pop %v8220
        %v8584 = vmul.f32 %v8583, 0.6931472
        %v8585 = vlog2.pop %v8221
        %v8586 = vmul.f32 %v8585, 0.6931472
        %v8587 = vlog2.pop %v8222
        %v8588 = vmul.f32 %v8587, 0.6931472
        %v8589 = vlog2.pop %v8223
        %v8590 = vmul.f32 %v8589, 0.6931472
        %v8591 = vlog2.pop %v8224
        %v8592 = vmul.f32 %v8591, 0.6931472
        %v8593 = vlog2.pop %v8225
        %v8594 = vmul.f32 %v8593, 0.6931472
        %v8595 = vlog2.pop %v8226
        %v8596 = vmul.f32 %v8595, 0.6931472
        %v8597 = vlog2.pop %v8227
        %v8598 = vmul.f32 %v8597, 0.6931472
        %v8599 = vlog2.pop %v8228
        %v8600 = vmul.f32 %v8599, 0.6931472
        %v8601 = vlog2.pop %v8229
        %v8602 = vmul.f32 %v8601, 0.6931472
        %v8603 = vlog2.pop %v8230
        %v8604 = vmul.f32 %v8603, 0.6931472
        %v8605 = vlog2.pop %v8231
        %v8606 = vmul.f32 %v8605, 0.6931472
        %v8607 = vlog2.pop %v8232
        %v8608 = vmul.f32 %v8607, 0.6931472
        %v8609 = vlog2.pop %v8233
        %v8610 = vmul.f32 %v8609, 0.6931472
        %v8611 = vlog2.pop %v8234
        %v8612 = vmul.f32 %v8611, 0.6931472
        %v8613 = vlog2.pop %v8235
        %v8614 = vmul.f32 %v8613, 0.6931472
        %v8615 = vlog2.pop %v8236
        %v8616 = vmul.f32 %v8615, 0.6931472
        %v8617 = vlog2.pop %v8237
        %v8618 = vmul.f32 %v8617, 0.6931472
        %v8619 = vlog2.pop %v8238
        %v8620 = vmul.f32 %v8619, 0.6931472
        %v8621 = vlog2.pop %v8239
        %v8622 = vmul.f32 %v8621, 0.6931472
        %v8623 = vlog2.pop %v8240
        %v8624 = vmul.f32 %v8623, 0.6931472
        %v8625 = vlog2.pop %v8241
        %v8626 = vmul.f32 %v8625, 0.6931472
        %v8627 = vlog2.pop %v8242
        %v8628 = vmul.f32 %v8627, 0.6931472
        %v8629 = vlog2.pop %v8243
        %v8630 = vmul.f32 %v8629, 0.6931472
        %v8631 = vlog2.pop %v8244
        %v8632 = vmul.f32 %v8631, 0.6931472
        %v8633 = vlog2.pop %v8245
        %v8634 = vmul.f32 %v8633, 0.6931472
        %v8635 = vlog2.pop %v8246
        %v8636 = vmul.f32 %v8635, 0.6931472
        %v8637 = vlog2.pop %v8247
        %v8638 = vmul.f32 %v8637, 0.6931472
        %v8639 = vlog2.pop %v8248
        %v8640 = vmul.f32 %v8639, 0.6931472
        %v8641 = vlog2.pop %v8249
        %v8642 = vmul.f32 %v8641, 0.6931472
        %v8643 = vlog2.pop %v8250
        %v8644 = vmul.f32 %v8643, 0.6931472
        %v8645 = vlog2.pop %v8251
        %v8646 = vmul.f32 %v8645, 0.6931472
        %v8647 = vlog2.pop %v8252
        %v8648 = vmul.f32 %v8647, 0.6931472
        %v8649 = vlog2.pop %v8253
        %v8650 = vmul.f32 %v8649, 0.6931472
        %v8651 = vlog2.pop %v8254
        %v8652 = vmul.f32 %v8651, 0.6931472
        %v8653 = vlog2.pop %v8255
        %v8654 = vmul.f32 %v8653, 0.6931472
        %v8655 = vlog2.pop %v8256
        %v8656 = vmul.f32 %v8655, 0.6931472
        %v8657 = vlog2.pop %v8257
        %v8658 = vmul.f32 %v8657, 0.6931472
        %v8659 = vlog2.pop %v8258
        %v8660 = vmul.f32 %v8659, 0.6931472
        %v8661 = vlog2.pop %v8259
        %v8662 = vmul.f32 %v8661, 0.6931472
        %v8663 = vlog2.pop %v8260
        %v8664 = vmul.f32 %v8663, 0.6931472
        %v8665 = vlog2.pop %v8261
        %v8666 = vmul.f32 %v8665, 0.6931472
        %v8667 = vlog2.pop %v8262
        %v8668 = vmul.f32 %v8667, 0.6931472
        %v8669 = vlog2.pop %v8263
        %v8670 = vmul.f32 %v8669, 0.6931472
        %v8671 = vlog2.pop %v8264
        %v8672 = vmul.f32 %v8671, 0.6931472
        %v8673 = vlog2.pop %v8265
        %v8674 = vmul.f32 %v8673, 0.6931472
        %v8675 = vlog2.pop %v8266
        %v8676 = vmul.f32 %v8675, 0.6931472
        %v8677 = vlog2.pop %v8267
        %v8678 = vmul.f32 %v8677, 0.6931472
        %v8679 = vlog2.pop %v8268
        %v8680 = vmul.f32 %v8679, 0.6931472
        %v8681 = vlog2.pop %v8269
        %v8682 = vmul.f32 %v8681, 0.6931472
        %v8683 = vlog2.pop %v8270
        %v8684 = vmul.f32 %v8683, 0.6931472
        %v8685 = vlog2.pop %v8271
        %v8686 = vmul.f32 %v8685, 0.6931472
        %v8687 = vlog2.pop %v8272
        %v8688 = vmul.f32 %v8687, 0.6931472
        %v8689 = vlog2.pop %v8273
        %v8690 = vmul.f32 %v8689, 0.6931472
        %v8691 = vlog2.pop %v8274
        %v8692 = vmul.f32 %v8691, 0.6931472
        %v8693 = vlog2.pop %v8275
        %v8694 = vmul.f32 %v8693, 0.6931472
        %v8695 = vlog2.pop %v8276
        %v8696 = vmul.f32 %v8695, 0.6931472
        %v8697 = vmul.f32 %v8278, 0.4342945
        %v8698 = vmul.f32 %v8280, 0.4342945
        %v8699 = vmul.f32 %v8282, 0.4342945
        %v8700 = vmul.f32 %v8284, 0.4342945
        %v8701 = vmul.f32 %v8286, 0.4342945
        %v8702 = vmul.f32 %v8288, 0.4342945
        %v8703 = vmul.f32 %v8290, 0.4342945
        %v8704 = vmul.f32 %v8292, 0.4342945
        %v8705 = vmul.f32 %v8294, 0.4342945
        %v8706 = vmul.f32 %v8296, 0.4342945
        %v8707 = vmul.f32 %v8298, 0.4342945
        %v8708 = vmul.f32 %v8300, 0.4342945
        %v8709 = vmul.f32 %v8302, 0.4342945
        %v8710 = vmul.f32 %v8304, 0.4342945
        %v8711 = vmul.f32 %v8306, 0.4342945
        %v8712 = vmul.f32 %v8308, 0.4342945
        %v8713 = vmul.f32 %v8310, 0.4342945
        %v8714 = vmul.f32 %v8312, 0.4342945
        %v8715 = vmul.f32 %v8314, 0.4342945
        %v8716 = vmul.f32 %v8316, 0.4342945
        %v8717 = vmul.f32 %v8318, 0.4342945
        %v8718 = vmul.f32 %v8320, 0.4342945
        %v8719 = vmul.f32 %v8322, 0.4342945
        %v8720 = vmul.f32 %v8324, 0.4342945
        %v8721 = vmul.f32 %v8326, 0.4342945
        %v8722 = vmul.f32 %v8328, 0.4342945
        %v8723 = vmul.f32 %v8330, 0.4342945
        %v8724 = vmul.f32 %v8332, 0.4342945
        %v8725 = vmul.f32 %v8334, 0.4342945
        %v8726 = vmul.f32 %v8336, 0.4342945
        %v8727 = vmul.f32 %v8338, 0.4342945
        %v8728 = vmul.f32 %v8340, 0.4342945
        %v8729 = vmul.f32 %v8342, 0.4342945
        %v8730 = vmul.f32 %v8344, 0.4342945
        %v8731 = vmul.f32 %v8346, 0.4342945
        %v8732 = vmul.f32 %v8348, 0.4342945
        %v8733 = vmul.f32 %v8350, 0.4342945
        %v8734 = vmul.f32 %v8352, 0.4342945
        %v8735 = vmul.f32 %v8354, 0.4342945
        %v8736 = vmul.f32 %v8356, 0.4342945
        %v8737 = vmul.f32 %v8358, 0.4342945
        %v8738 = vmul.f32 %v8360, 0.4342945
        %v8739 = vmul.f32 %v8362, 0.4342945
        %v8740 = vmul.f32 %v8364, 0.4342945
        %v8741 = vmul.f32 %v8366, 0.4342945
        %v8742 = vmul.f32 %v8368, 0.4342945
        %v8743 = vmul.f32 %v8370, 0.4342945
        %v8744 = vmul.f32 %v8372, 0.4342945
        %v8745 = vmul.f32 %v8374, 0.4342945
        %v8746 = vmul.f32 %v8376, 0.4342945
        %v8747 = vmul.f32 %v8378, 0.4342945
        %v8748 = vmul.f32 %v8380, 0.4342945
        %v8749 = vmul.f32 %v8382, 0.4342945
        %v8750 = vmul.f32 %v8384, 0.4342945
        %v8751 = vmul.f32 %v8386, 0.4342945
        %v8752 = vmul.f32 %v8388, 0.4342945
        %v8753 = vmul.f32 %v8390, 0.4342945
        %v8754 = vmul.f32 %v8392, 0.4342945
        %v8755 = vmul.f32 %v8394, 0.4342945
        %v8756 = vmul.f32 %v8396, 0.4342945
        %v8757 = vmul.f32 %v8398, 0.4342945
        %v8758 = vmul.f32 %v8400, 0.4342945
        %v8759 = vmul.f32 %v8402, 0.4342945
        %v8760 = vmul.f32 %v8404, 0.4342945
        %v8761 = vmul.f32 %v8406, 0.4342945
        %v8762 = vmul.f32 %v8408, 0.4342945
        %v8763 = vmul.f32 %v8410, 0.4342945
        %v8764 = vmul.f32 %v8412, 0.4342945
        %v8765 = vmul.f32 %v8414, 0.4342945
        %v8766 = vmul.f32 %v8416, 0.4342945
        %v8767 = vmul.f32 %v8418, 0.4342945
        %v8768 = vmul.f32 %v8420, 0.4342945
        %v8769 = vmul.f32 %v8422, 0.4342945
        %v8770 = vmul.f32 %v8424, 0.4342945
        %v8771 = vmul.f32 %v8426, 0.4342945
        %v8772 = vmul.f32 %v8428, 0.4342945
        %v8773 = vmul.f32 %v8430, 0.4342945
        %v8774 = vmul.f32 %v8432, 0.4342945
        %v8775 = vmul.f32 %v8434, 0.4342945
        %v8776 = vmul.f32 %v8436, 0.4342945
        %v8777 = vmul.f32 %v8438, 0.4342945
        %v8778 = vmul.f32 %v8440, 0.4342945
        %v8779 = vmul.f32 %v8442, 0.4342945
        %v8780 = vmul.f32 %v8444, 0.4342945
        %v8781 = vmul.f32 %v8446, 0.4342945
        %v8782 = vmul.f32 %v8448, 0.4342945
        %v8783 = vmul.f32 %v8450, 0.4342945
        %v8784 = vmul.f32 %v8452, 0.4342945
        %v8785 = vmul.f32 %v8454, 0.4342945
        %v8786 = vmul.f32 %v8456, 0.4342945
        %v8787 = vmul.f32 %v8458, 0.4342945
        %v8788 = vmul.f32 %v8460, 0.4342945
        %v8789 = vmul.f32 %v8462, 0.4342945
        %v8790 = vmul.f32 %v8464, 0.4342945
        %v8791 = vmul.f32 %v8466, 0.4342945
        %v8792 = vmul.f32 %v8468, 0.4342945
        %v8793 = vmul.f32 %v8470, 0.4342945
        %v8794 = vmul.f32 %v8472, 0.4342945
        %v8795 = vmul.f32 %v8474, 0.4342945
        %v8796 = vmul.f32 %v8476, 0.4342945
        %v8797 = vmul.f32 %v8478, 0.4342945
        %v8798 = vmul.f32 %v8480, 0.4342945
        %v8799 = vmul.f32 %v8482, 0.4342945
        %v8800 = vmul.f32 %v8484, 0.4342945
        %v8801 = vmul.f32 %v8486, 0.4342945
        %v8802 = vmul.f32 %v8488, 0.4342945
        %v8803 = vmul.f32 %v8490, 0.4342945
        %v8804 = vmul.f32 %v8492, 0.4342945
        %v8805 = vmul.f32 %v8494, 0.4342945
        %v8806 = vmul.f32 %v8496, 0.4342945
        %v8807 = vmul.f32 %v8498, 0.4342945
        %v8808 = vmul.f32 %v8500, 0.4342945
        %v8809 = vmul.f32 %v8502, 0.4342945
        %v8810 = vmul.f32 %v8504, 0.4342945
        %v8811 = vmul.f32 %v8506, 0.4342945
        %v8812 = vmul.f32 %v8508, 0.4342945
        %v8813 = vmul.f32 %v8510, 0.4342945
        %v8814 = vmul.f32 %v8512, 0.4342945
        %v8815 = vmul.f32 %v8514, 0.4342945
        %v8816 = vmul.f32 %v8516, 0.4342945
        %v8817 = vmul.f32 %v8518, 0.4342945
        %v8818 = vmul.f32 %v8520, 0.4342945
        %v8819 = vmul.f32 %v8522, 0.4342945
        %v8820 = vmul.f32 %v8524, 0.4342945
        %v8821 = vmul.f32 %v8526, 0.4342945
        %v8822 = vmul.f32 %v8528, 0.4342945
        %v8823 = vmul.f32 %v8530, 0.4342945
        %v8824 = vmul.f32 %v8532, 0.4342945
        %v8825 = vmul.f32 %v8534, 0.4342945
        %v8826 = vmul.f32 %v8536, 0.4342945
        %v8827 = vmul.f32 %v8538, 0.4342945
        %v8828 = vmul.f32 %v8540, 0.4342945
        %v8829 = vmul.f32 %v8542, 0.4342945
        %v8830 = vmul.f32 %v8544, 0.4342945
        %v8831 = vmul.f32 %v8546, 0.4342945
        %v8832 = vmul.f32 %v8548, 0.4342945
        %v8833 = vmul.f32 %v8550, 0.4342945
        %v8834 = vmul.f32 %v8552, 0.4342945
        %v8835 = vmul.f32 %v8554, 0.4342945
        %v8836 = vmul.f32 %v8556, 0.4342945
        %v8837 = vmul.f32 %v8558, 0.4342945
        %v8838 = vmul.f32 %v8560, 0.4342945
        %v8839 = vmul.f32 %v8562, 0.4342945
        %v8840 = vmul.f32 %v8564, 0.4342945
        %v8841 = vmul.f32 %v8566, 0.4342945
        %v8842 = vmul.f32 %v8568, 0.4342945
        %v8843 = vmul.f32 %v8570, 0.4342945
        %v8844 = vmul.f32 %v8572, 0.4342945
        %v8845 = vmul.f32 %v8574, 0.4342945
        %v8846 = vmul.f32 %v8576, 0.4342945
        %v8847 = vmul.f32 %v8578, 0.4342945
        %v8848 = vmul.f32 %v8580, 0.4342945
        %v8849 = vmul.f32 %v8582, 0.4342945
        %v8850 = vmul.f32 %v8584, 0.4342945
        %v8851 = vmul.f32 %v8586, 0.4342945
        %v8852 = vmul.f32 %v8588, 0.4342945
        %v8853 = vmul.f32 %v8590, 0.4342945
        %v8854 = vmul.f32 %v8592, 0.4342945
        %v8855 = vmul.f32 %v8594, 0.4342945
        %v8856 = vmul.f32 %v8596, 0.4342945
        %v8857 = vmul.f32 %v8598, 0.4342945
        %v8858 = vmul.f32 %v8600, 0.4342945
        %v8859 = vmul.f32 %v8602, 0.4342945
        %v8860 = vmul.f32 %v8604, 0.4342945
        %v8861 = vmul.f32 %v8606, 0.4342945
        %v8862 = vmul.f32 %v8608, 0.4342945
        %v8863 = vmul.f32 %v8610, 0.4342945
        %v8864 = vmul.f32 %v8612, 0.4342945
        %v8865 = vmul.f32 %v8614, 0.4342945
        %v8866 = vmul.f32 %v8616, 0.4342945
        %v8867 = vmul.f32 %v8618, 0.4342945
        %v8868 = vmul.f32 %v8620, 0.4342945
        %v8869 = vmul.f32 %v8622, 0.4342945
        %v8870 = vmul.f32 %v8624, 0.4342945
        %v8871 = vmul.f32 %v8626, 0.4342945
        %v8872 = vmul.f32 %v8628, 0.4342945
        %v8873 = vmul.f32 %v8630, 0.4342945
        %v8874 = vmul.f32 %v8632, 0.4342945
        %v8875 = vmul.f32 %v8634, 0.4342945
        %v8876 = vmul.f32 %v8636, 0.4342945
        %v8877 = vmul.f32 %v8638, 0.4342945
        %v8878 = vmul.f32 %v8640, 0.4342945
        %v8879 = vmul.f32 %v8642, 0.4342945
        %v8880 = vmul.f32 %v8644, 0.4342945
        %v8881 = vmul.f32 %v8646, 0.4342945
        %v8882 = vmul.f32 %v8648, 0.4342945
        %v8883 = vmul.f32 %v8650, 0.4342945
        %v8884 = vmul.f32 %v8652, 0.4342945
        %v8885 = vmul.f32 %v8654, 0.4342945
        %v8886 = vmul.f32 %v8656, 0.4342945
        %v8887 = vmul.f32 %v8658, 0.4342945
        %v8888 = vmul.f32 %v8660, 0.4342945
        %v8889 = vmul.f32 %v8662, 0.4342945
        %v8890 = vmul.f32 %v8664, 0.4342945
        %v8891 = vmul.f32 %v8666, 0.4342945
        %v8892 = vmul.f32 %v8668, 0.4342945
        %v8893 = vmul.f32 %v8670, 0.4342945
        %v8894 = vmul.f32 %v8672, 0.4342945
        %v8895 = vmul.f32 %v8674, 0.4342945
        %v8896 = vmul.f32 %v8676, 0.4342945
        %v8897 = vmul.f32 %v8678, 0.4342945
        %v8898 = vmul.f32 %v8680, 0.4342945
        %v8899 = vmul.f32 %v8682, 0.4342945
        %v8900 = vmul.f32 %v8684, 0.4342945
        %v8901 = vmul.f32 %v8686, 0.4342945
        %v8902 = vmul.f32 %v8688, 0.4342945
        %v8903 = vmul.f32 %v8690, 0.4342945
        %v8904 = vmul.f32 %v8692, 0.4342945
        %v8905 = vmul.f32 %v8694, 0.4342945
        %v8906 = vmul.f32 %v8696, 0.4342945
        %v8907 = vmul.f32 %v8697, 10.0
        %v8908 = vmul.f32 %v8698, 10.0
        %v8909 = vmul.f32 %v8699, 10.0
        %v8910 = vmul.f32 %v8700, 10.0
        %v8911 = vmul.f32 %v8701, 10.0
        %v8912 = vmul.f32 %v8702, 10.0
        %v8913 = vmul.f32 %v8703, 10.0
        %v8914 = vmul.f32 %v8704, 10.0
        %v8915 = vmul.f32 %v8705, 10.0
        %v8916 = vmul.f32 %v8706, 10.0
        %v8917 = vmul.f32 %v8707, 10.0
        %v8918 = vmul.f32 %v8708, 10.0
        %v8919 = vmul.f32 %v8709, 10.0
        %v8920 = vmul.f32 %v8710, 10.0
        %v8921 = vmul.f32 %v8711, 10.0
        %v8922 = vmul.f32 %v8712, 10.0
        %v8923 = vmul.f32 %v8713, 10.0
        %v8924 = vmul.f32 %v8714, 10.0
        %v8925 = vmul.f32 %v8715, 10.0
        %v8926 = vmul.f32 %v8716, 10.0
        %v8927 = vmul.f32 %v8717, 10.0
        %v8928 = vmul.f32 %v8718, 10.0
        %v8929 = vmul.f32 %v8719, 10.0
        %v8930 = vmul.f32 %v8720, 10.0
        %v8931 = vmul.f32 %v8721, 10.0
        %v8932 = vmul.f32 %v8722, 10.0
        %v8933 = vmul.f32 %v8723, 10.0
        %v8934 = vmul.f32 %v8724, 10.0
        %v8935 = vmul.f32 %v8725, 10.0
        %v8936 = vmul.f32 %v8726, 10.0
        %v8937 = vmul.f32 %v8727, 10.0
        %v8938 = vmul.f32 %v8728, 10.0
        %v8939 = vmul.f32 %v8729, 10.0
        %v8940 = vmul.f32 %v8730, 10.0
        %v8941 = vmul.f32 %v8731, 10.0
        %v8942 = vmul.f32 %v8732, 10.0
        %v8943 = vmul.f32 %v8733, 10.0
        %v8944 = vmul.f32 %v8734, 10.0
        %v8945 = vmul.f32 %v8735, 10.0
        %v8946 = vmul.f32 %v8736, 10.0
        %v8947 = vmul.f32 %v8737, 10.0
        %v8948 = vmul.f32 %v8738, 10.0
        %v8949 = vmul.f32 %v8739, 10.0
        %v8950 = vmul.f32 %v8740, 10.0
        %v8951 = vmul.f32 %v8741, 10.0
        %v8952 = vmul.f32 %v8742, 10.0
        %v8953 = vmul.f32 %v8743, 10.0
        %v8954 = vmul.f32 %v8744, 10.0
        %v8955 = vmul.f32 %v8745, 10.0
        %v8956 = vmul.f32 %v8746, 10.0
        %v8957 = vmul.f32 %v8747, 10.0
        %v8958 = vmul.f32 %v8748, 10.0
        %v8959 = vmul.f32 %v8749, 10.0
        %v8960 = vmul.f32 %v8750, 10.0
        %v8961 = vmul.f32 %v8751, 10.0
        %v8962 = vmul.f32 %v8752, 10.0
        %v8963 = vmul.f32 %v8753, 10.0
        %v8964 = vmul.f32 %v8754, 10.0
        %v8965 = vmul.f32 %v8755, 10.0
        %v8966 = vmul.f32 %v8756, 10.0
        %v8967 = vmul.f32 %v8757, 10.0
        %v8968 = vmul.f32 %v8758, 10.0
        %v8969 = vmul.f32 %v8759, 10.0
        %v8970 = vmul.f32 %v8760, 10.0
        %v8971 = vmul.f32 %v8761, 10.0
        %v8972 = vmul.f32 %v8762, 10.0
        %v8973 = vmul.f32 %v8763, 10.0
        %v8974 = vmul.f32 %v8764, 10.0
        %v8975 = vmul.f32 %v8765, 10.0
        %v8976 = vmul.f32 %v8766, 10.0
        %v8977 = vmul.f32 %v8767, 10.0
        %v8978 = vmul.f32 %v8768, 10.0
        %v8979 = vmul.f32 %v8769, 10.0
        %v8980 = vmul.f32 %v8770, 10.0
        %v8981 = vmul.f32 %v8771, 10.0
        %v8982 = vmul.f32 %v8772, 10.0
        %v8983 = vmul.f32 %v8773, 10.0
        %v8984 = vmul.f32 %v8774, 10.0
        %v8985 = vmul.f32 %v8775, 10.0
        %v8986 = vmul.f32 %v8776, 10.0
        %v8987 = vmul.f32 %v8777, 10.0
        %v8988 = vmul.f32 %v8778, 10.0
        %v8989 = vmul.f32 %v8779, 10.0
        %v8990 = vmul.f32 %v8780, 10.0
        %v8991 = vmul.f32 %v8781, 10.0
        %v8992 = vmul.f32 %v8782, 10.0
        %v8993 = vmul.f32 %v8783, 10.0
        %v8994 = vmul.f32 %v8784, 10.0
        %v8995 = vmul.f32 %v8785, 10.0
        %v8996 = vmul.f32 %v8786, 10.0
        %v8997 = vmul.f32 %v8787, 10.0
        %v8998 = vmul.f32 %v8788, 10.0
        %v8999 = vmul.f32 %v8789, 10.0
        %v9000 = vmul.f32 %v8790, 10.0
        %v9001 = vmul.f32 %v8791, 10.0
        %v9002 = vmul.f32 %v8792, 10.0
        %v9003 = vmul.f32 %v8793, 10.0
        %v9004 = vmul.f32 %v8794, 10.0
        %v9005 = vmul.f32 %v8795, 10.0
        %v9006 = vmul.f32 %v8796, 10.0
        %v9007 = vmul.f32 %v8797, 10.0
        %v9008 = vmul.f32 %v8798, 10.0
        %v9009 = vmul.f32 %v8799, 10.0
        %v9010 = vmul.f32 %v8800, 10.0
        %v9011 = vmul.f32 %v8801, 10.0
        %v9012 = vmul.f32 %v8802, 10.0
        %v9013 = vmul.f32 %v8803, 10.0
        %v9014 = vmul.f32 %v8804, 10.0
        %v9015 = vmul.f32 %v8805, 10.0
        %v9016 = vmul.f32 %v8806, 10.0
        %v9017 = vmul.f32 %v8807, 10.0
        %v9018 = vmul.f32 %v8808, 10.0
        %v9019 = vmul.f32 %v8809, 10.0
        %v9020 = vmul.f32 %v8810, 10.0
        %v9021 = vmul.f32 %v8811, 10.0
        %v9022 = vmul.f32 %v8812, 10.0
        %v9023 = vmul.f32 %v8813, 10.0
        %v9024 = vmul.f32 %v8814, 10.0
        %v9025 = vmul.f32 %v8815, 10.0
        %v9026 = vmul.f32 %v8816, 10.0
        %v9027 = vmul.f32 %v8817, 10.0
        %v9028 = vmul.f32 %v8818, 10.0
        %v9029 = vmul.f32 %v8819, 10.0
        %v9030 = vmul.f32 %v8820, 10.0
        %v9031 = vmul.f32 %v8821, 10.0
        %v9032 = vmul.f32 %v8822, 10.0
        %v9033 = vmul.f32 %v8823, 10.0
        %v9034 = vmul.f32 %v8824, 10.0
        %v9035 = vmul.f32 %v8825, 10.0
        %v9036 = vmul.f32 %v8826, 10.0
        %v9037 = vmul.f32 %v8827, 10.0
        %v9038 = vmul.f32 %v8828, 10.0
        %v9039 = vmul.f32 %v8829, 10.0
        %v9040 = vmul.f32 %v8830, 10.0
        %v9041 = vmul.f32 %v8831, 10.0
        %v9042 = vmul.f32 %v8832, 10.0
        %v9043 = vmul.f32 %v8833, 10.0
        %v9044 = vmul.f32 %v8834, 10.0
        %v9045 = vmul.f32 %v8835, 10.0
        %v9046 = vmul.f32 %v8836, 10.0
        %v9047 = vmul.f32 %v8837, 10.0
        %v9048 = vmul.f32 %v8838, 10.0
        %v9049 = vmul.f32 %v8839, 10.0
        %v9050 = vmul.f32 %v8840, 10.0
        %v9051 = vmul.f32 %v8841, 10.0
        %v9052 = vmul.f32 %v8842, 10.0
        %v9053 = vmul.f32 %v8843, 10.0
        %v9054 = vmul.f32 %v8844, 10.0
        %v9055 = vmul.f32 %v8845, 10.0
        %v9056 = vmul.f32 %v8846, 10.0
        %v9057 = vmul.f32 %v8847, 10.0
        %v9058 = vmul.f32 %v8848, 10.0
        %v9059 = vmul.f32 %v8849, 10.0
        %v9060 = vmul.f32 %v8850, 10.0
        %v9061 = vmul.f32 %v8851, 10.0
        %v9062 = vmul.f32 %v8852, 10.0
        %v9063 = vmul.f32 %v8853, 10.0
        %v9064 = vmul.f32 %v8854, 10.0
        %v9065 = vmul.f32 %v8855, 10.0
        %v9066 = vmul.f32 %v8856, 10.0
        %v9067 = vmul.f32 %v8857, 10.0
        %v9068 = vmul.f32 %v8858, 10.0
        %v9069 = vmul.f32 %v8859, 10.0
        %v9070 = vmul.f32 %v8860, 10.0
        %v9071 = vmul.f32 %v8861, 10.0
        %v9072 = vmul.f32 %v8862, 10.0
        %v9073 = vmul.f32 %v8863, 10.0
        %v9074 = vmul.f32 %v8864, 10.0
        %v9075 = vmul.f32 %v8865, 10.0
        %v9076 = vmul.f32 %v8866, 10.0
        %v9077 = vmul.f32 %v8867, 10.0
        %v9078 = vmul.f32 %v8868, 10.0
        %v9079 = vmul.f32 %v8869, 10.0
        %v9080 = vmul.f32 %v8870, 10.0
        %v9081 = vmul.f32 %v8871, 10.0
        %v9082 = vmul.f32 %v8872, 10.0
        %v9083 = vmul.f32 %v8873, 10.0
        %v9084 = vmul.f32 %v8874, 10.0
        %v9085 = vmul.f32 %v8875, 10.0
        %v9086 = vmul.f32 %v8876, 10.0
        %v9087 = vmul.f32 %v8877, 10.0
        %v9088 = vmul.f32 %v8878, 10.0
        %v9089 = vmul.f32 %v8879, 10.0
        %v9090 = vmul.f32 %v8880, 10.0
        %v9091 = vmul.f32 %v8881, 10.0
        %v9092 = vmul.f32 %v8882, 10.0
        %v9093 = vmul.f32 %v8883, 10.0
        %v9094 = vmul.f32 %v8884, 10.0
        %v9095 = vmul.f32 %v8885, 10.0
        %v9096 = vmul.f32 %v8886, 10.0
        %v9097 = vmul.f32 %v8887, 10.0
        %v9098 = vmul.f32 %v8888, 10.0
        %v9099 = vmul.f32 %v8889, 10.0
        %v9100 = vmul.f32 %v8890, 10.0
        %v9101 = vmul.f32 %v8891, 10.0
        %v9102 = vmul.f32 %v8892, 10.0
        %v9103 = vmul.f32 %v8893, 10.0
        %v9104 = vmul.f32 %v8894, 10.0
        %v9105 = vmul.f32 %v8895, 10.0
        %v9106 = vmul.f32 %v8896, 10.0
        %v9107 = vmul.f32 %v8897, 10.0
        %v9108 = vmul.f32 %v8898, 10.0
        %v9109 = vmul.f32 %v8899, 10.0
        %v9110 = vmul.f32 %v8900, 10.0
        %v9111 = vmul.f32 %v8901, 10.0
        %v9112 = vmul.f32 %v8902, 10.0
        %v9113 = vmul.f32 %v8903, 10.0
        %v9114 = vmul.f32 %v8904, 10.0
        %v9115 = vmul.f32 %v8905, 10.0
        %v9116 = vmul.f32 %v8906, 10.0
        %9117 = vst [vmem:[%s285] sm:$0xff] %v8907
        %9118 = vst [vmem:[%s285 + $0x8] sm:$0xff] %v8908
        %9119 = vst [vmem:[%s285 + $0x10] sm:$0xff] %v8909
        %9120 = vst [vmem:[%s285 + $0x18] sm:$0xff] %v8910
        %9121 = vst [vmem:[%s285 + $0x20] sm:$0xff] %v8911
        %9122 = vst [vmem:[%s285 + $0x28] sm:$0xff] %v8912
        %9123 = vst [vmem:[%s285 + $0x30] sm:$0xff] %v8913
        %9124 = vst [vmem:[%s285 + $0x38] sm:$0xff] %v8914
        %9125 = vst [vmem:[%s285 + $0x40] sm:$0xff] %v8915
        %9126 = vst [vmem:[%s285 + $0x48] sm:$0xff] %v8916
        %9127 = vst [vmem:[%s285 + $0x50] sm:$0xff] %v8917
        %9128 = vst [vmem:[%s285 + $0x58] sm:$0xff] %v8918
        %9129 = vst [vmem:[%s285 + $0x60] sm:$0xff] %v8919
        %9130 = vst [vmem:[%s285 + $0x68] sm:$0xff] %v8920
        %9131 = vst [vmem:[%s285 + $0x70] sm:$0xff] %v8921
        %9132 = vst [vmem:[%s285 + $0x78] sm:$0xff] %v8922
        %9133 = vst [vmem:[%s285 + $0x80] sm:$0xff] %v8923
        %9134 = vst [vmem:[%s285 + $0x88] sm:$0xff] %v8924
        %9135 = vst [vmem:[%s285 + $0x90] sm:$0xff] %v8925
        %9136 = vst [vmem:[%s285 + $0x98] sm:$0xff] %v8926
        %9137 = vst [vmem:[%s285 + $0xa0] sm:$0xff] %v8927
        %9138 = vst [vmem:[%s285 + $0xa8] sm:$0xff] %v8928
        %9139 = vst [vmem:[%s285 + $0xb0] sm:$0xff] %v8929
        %9140 = vst [vmem:[%s285 + $0xb8] sm:$0xff] %v8930
        %9141 = vst [vmem:[%s285 + $0xc0] sm:$0xff] %v8931
        %9142 = vst [vmem:[%s285 + $0xc8] sm:$0xff] %v8932
        %9143 = vst [vmem:[%s285 + $0xd0] sm:$0xff] %v8933
        %9144 = vst [vmem:[%s285 + $0xd8] sm:$0xff] %v8934
        %9145 = vst [vmem:[%s285 + $0xe0] sm:$0xff] %v8935
        %9146 = vst [vmem:[%s285 + $0xe8] sm:$0xff] %v8936
        %9147 = vst [vmem:[%s285 + $0xf0] sm:$0xff] %v8937
        %9148 = vst [vmem:[%s285 + $0xf8] sm:$0xff] %v8938
        %9149 = vst [vmem:[%s285 + $0x100] sm:$0xff] %v8939
        %9150 = vst [vmem:[%s285 + $0x108] sm:$0xff] %v8940
        %9151 = vst [vmem:[%s285 + $0x110] sm:$0xff] %v8941
        %9152 = vst [vmem:[%s285 + $0x118] sm:$0xff] %v8942
        %9153 = vst [vmem:[%s285 + $0x120] sm:$0xff] %v8943
        %9154 = vst [vmem:[%s285 + $0x128] sm:$0xff] %v8944
        %9155 = vst [vmem:[%s285 + $0x130] sm:$0xff] %v8945
        %9156 = vst [vmem:[%s285 + $0x138] sm:$0xff] %v8946
        %9157 = vst [vmem:[%s285 + $0x140] sm:$0xff] %v8947
        %9158 = vst [vmem:[%s285 + $0x148] sm:$0xff] %v8948
        %9159 = vst [vmem:[%s285 + $0x150] sm:$0xff] %v8949
        %9160 = vst [vmem:[%s285 + $0x158] sm:$0xff] %v8950
        %9161 = vst [vmem:[%s285 + $0x160] sm:$0xff] %v8951
        %9162 = vst [vmem:[%s285 + $0x168] sm:$0xff] %v8952
        %9163 = vst [vmem:[%s285 + $0x170] sm:$0xff] %v8953
        %9164 = vst [vmem:[%s285 + $0x178] sm:$0xff] %v8954
        %9165 = vst [vmem:[%s285 + $0x180] sm:$0xff] %v8955
        %9166 = vst [vmem:[%s285 + $0x188] sm:$0xff] %v8956
        %9167 = vst [vmem:[%s285 + $0x190] sm:$0xff] %v8957
        %9168 = vst [vmem:[%s285 + $0x198] sm:$0xff] %v8958
        %9169 = vst [vmem:[%s285 + $0x1a0] sm:$0xff] %v8959
        %9170 = vst [vmem:[%s285 + $0x1a8] sm:$0xff] %v8960
        %9171 = vst [vmem:[%s285 + $0x1b0] sm:$0xff] %v8961
        %9172 = vst [vmem:[%s285 + $0x1b8] sm:$0xff] %v8962
        %9173 = vst [vmem:[%s285 + $0x1c0] sm:$0xff] %v8963
        %9174 = vst [vmem:[%s285 + $0x1c8] sm:$0xff] %v8964
        %9175 = vst [vmem:[%s285 + $0x1d0] sm:$0xff] %v8965
        %9176 = vst [vmem:[%s285 + $0x1d8] sm:$0xff] %v8966
        %9177 = vst [vmem:[%s285 + $0x1e0] sm:$0xff] %v8967
        %9178 = vst [vmem:[%s285 + $0x1e8] sm:$0xff] %v8968
        %9179 = vst [vmem:[%s285 + $0x1f0] sm:$0xff] %v8969
        %9180 = vst [vmem:[%s285 + $0x1f8] sm:$0xff] %v8970
        %9181 = vst [vmem:[%s285 + $0x200] sm:$0xff] %v8971
        %9182 = vst [vmem:[%s285 + $0x208] sm:$0xff] %v8972
        %9183 = vst [vmem:[%s285 + $0x210] sm:$0xff] %v8973
        %9184 = vst [vmem:[%s285 + $0x218] sm:$0xff] %v8974
        %9185 = vst [vmem:[%s285 + $0x220] sm:$0xff] %v8975
        %9186 = vst [vmem:[%s285 + $0x228] sm:$0xff] %v8976
        %9187 = vst [vmem:[%s285 + $0x230] sm:$0xff] %v8977
        %9188 = vst [vmem:[%s285 + $0x238] sm:$0xff] %v8978
        %9189 = vst [vmem:[%s285 + $0x240] sm:$0xff] %v8979
        %9190 = vst [vmem:[%s285 + $0x248] sm:$0xff] %v8980
        %9191 = vst [vmem:[%s285 + $0x250] sm:$0xff] %v8981
        %9192 = vst [vmem:[%s285 + $0x258] sm:$0xff] %v8982
        %9193 = vst [vmem:[%s285 + $0x260] sm:$0xff] %v8983
        %9194 = vst [vmem:[%s285 + $0x268] sm:$0xff] %v8984
        %9195 = vst [vmem:[%s285 + $0x270] sm:$0xff] %v8985
        %9196 = vst [vmem:[%s285 + $0x278] sm:$0xff] %v8986
        %9197 = vst [vmem:[%s285 + $0x280] sm:$0xff] %v8987
        %9198 = vst [vmem:[%s285 + $0x288] sm:$0xff] %v8988
        %9199 = vst [vmem:[%s285 + $0x290] sm:$0xff] %v8989
        %9200 = vst [vmem:[%s285 + $0x298] sm:$0xff] %v8990
        %9201 = vst [vmem:[%s285 + $0x2a0] sm:$0xff] %v8991
        %9202 = vst [vmem:[%s285 + $0x2a8] sm:$0xff] %v8992
        %9203 = vst [vmem:[%s285 + $0x2b0] sm:$0xff] %v8993
        %9204 = vst [vmem:[%s285 + $0x2b8] sm:$0xff] %v8994
        %9205 = vst [vmem:[%s285 + $0x2c0] sm:$0xff] %v8995
        %9206 = vst [vmem:[%s285 + $0x2c8] sm:$0xff] %v8996
        %9207 = vst [vmem:[%s285 + $0x2d0] sm:$0xff] %v8997
        %9208 = vst [vmem:[%s285 + $0x2d8] sm:$0xff] %v8998
        %9209 = vst [vmem:[%s285 + $0x2e0] sm:$0xff] %v8999
        %9210 = vst [vmem:[%s285 + $0x2e8] sm:$0xff] %v9000
        %9211 = vst [vmem:[%s285 + $0x2f0] sm:$0xff] %v9001
        %9212 = vst [vmem:[%s285 + $0x2f8] sm:$0xff] %v9002
        %9213 = vst [vmem:[%s285 + $0x300] sm:$0xff] %v9003
        %9214 = vst [vmem:[%s285 + $0x308] sm:$0xff] %v9004
        %9215 = vst [vmem:[%s285 + $0x310] sm:$0xff] %v9005
        %9216 = vst [vmem:[%s285 + $0x318] sm:$0xff] %v9006
        %9217 = vst [vmem:[%s285 + $0x320] sm:$0xff] %v9007
        %9218 = vst [vmem:[%s285 + $0x328] sm:$0xff] %v9008
        %9219 = vst [vmem:[%s285 + $0x330] sm:$0xff] %v9009
        %9220 = vst [vmem:[%s285 + $0x338] sm:$0xff] %v9010
        %9221 = vst [vmem:[%s285 + $0x340] sm:$0xff] %v9011
        %9222 = vst [vmem:[%s285 + $0x348] sm:$0xff] %v9012
        %9223 = vst [vmem:[%s285 + $0x350] sm:$0xff] %v9013
        %9224 = vst [vmem:[%s285 + $0x358] sm:$0xff] %v9014
        %9225 = vst [vmem:[%s285 + $0x360] sm:$0xff] %v9015
        %9226 = vst [vmem:[%s285 + $0x368] sm:$0xff] %v9016
        %9227 = vst [vmem:[%s285 + $0x370] sm:$0xff] %v9017
        %9228 = vst [vmem:[%s285 + $0x378] sm:$0xff] %v9018
        %9229 = vst [vmem:[%s285 + $0x380] sm:$0xff] %v9019
        %9230 = vst [vmem:[%s285 + $0x388] sm:$0xff] %v9020
        %9231 = vst [vmem:[%s285 + $0x390] sm:$0xff] %v9021
        %9232 = vst [vmem:[%s285 + $0x398] sm:$0xff] %v9022
        %9233 = vst [vmem:[%s285 + $0x3a0] sm:$0xff] %v9023
        %9234 = vst [vmem:[%s285 + $0x3a8] sm:$0xff] %v9024
        %9235 = vst [vmem:[%s285 + $0x3b0] sm:$0xff] %v9025
        %9236 = vst [vmem:[%s285 + $0x3b8] sm:$0xff] %v9026
        %9237 = vst [vmem:[%s285 + $0x3c0] sm:$0xff] %v9027
        %9238 = vst [vmem:[%s285 + $0x3c8] sm:$0xff] %v9028
        %9239 = vst [vmem:[%s285 + $0x3d0] sm:$0xff] %v9029
        %9240 = vst [vmem:[%s285 + $0x3d8] sm:$0xff] %v9030
        %9241 = vst [vmem:[%s285 + $0x3e0] sm:$0xff] %v9031
        %9242 = vst [vmem:[%s285 + $0x3e8] sm:$0xff] %v9032
        %9243 = vst [vmem:[%s285 + $0x3f0] sm:$0xff] %v9033
        %9244 = vst [vmem:[%s285 + $0x3f8] sm:$0xff] %v9034
        %9245 = vst [vmem:[%s285 + $0x400] sm:$0xff] %v9035
        %9246 = vst [vmem:[%s285 + $0x408] sm:$0xff] %v9036
        %9247 = vst [vmem:[%s285 + $0x410] sm:$0xff] %v9037
        %9248 = vst [vmem:[%s285 + $0x418] sm:$0xff] %v9038
        %9249 = vst [vmem:[%s285 + $0x420] sm:$0xff] %v9039
        %9250 = vst [vmem:[%s285 + $0x428] sm:$0xff] %v9040
        %9251 = vst [vmem:[%s285 + $0x430] sm:$0xff] %v9041
        %9252 = vst [vmem:[%s285 + $0x438] sm:$0xff] %v9042
        %9253 = vst [vmem:[%s285 + $0x440] sm:$0xff] %v9043
        %9254 = vst [vmem:[%s285 + $0x448] sm:$0xff] %v9044
        %9255 = vst [vmem:[%s285 + $0x450] sm:$0xff] %v9045
        %9256 = vst [vmem:[%s285 + $0x458] sm:$0xff] %v9046
        %9257 = vst [vmem:[%s285 + $0x460] sm:$0xff] %v9047
        %9258 = vst [vmem:[%s285 + $0x468] sm:$0xff] %v9048
        %9259 = vst [vmem:[%s285 + $0x470] sm:$0xff] %v9049
        %9260 = vst [vmem:[%s285 + $0x478] sm:$0xff] %v9050
        %9261 = vst [vmem:[%s285 + $0x480] sm:$0xff] %v9051
        %9262 = vst [vmem:[%s285 + $0x488] sm:$0xff] %v9052
        %9263 = vst [vmem:[%s285 + $0x490] sm:$0xff] %v9053
        %9264 = vst [vmem:[%s285 + $0x498] sm:$0xff] %v9054
        %9265 = vst [vmem:[%s285 + $0x4a0] sm:$0xff] %v9055
        %9266 = vst [vmem:[%s285 + $0x4a8] sm:$0xff] %v9056
        %9267 = vst [vmem:[%s285 + $0x4b0] sm:$0xff] %v9057
        %9268 = vst [vmem:[%s285 + $0x4b8] sm:$0xff] %v9058
        %9269 = vst [vmem:[%s285 + $0x4c0] sm:$0xff] %v9059
        %9270 = vst [vmem:[%s285 + $0x4c8] sm:$0xff] %v9060
        %9271 = vst [vmem:[%s285 + $0x4d0] sm:$0xff] %v9061
        %9272 = vst [vmem:[%s285 + $0x4d8] sm:$0xff] %v9062
        %9273 = vst [vmem:[%s285 + $0x4e0] sm:$0xff] %v9063
        %9274 = vst [vmem:[%s285 + $0x4e8] sm:$0xff] %v9064
        %9275 = vst [vmem:[%s285 + $0x4f0] sm:$0xff] %v9065
        %9276 = vst [vmem:[%s285 + $0x4f8] sm:$0xff] %v9066
        %9277 = vst [vmem:[%s285 + $0x500] sm:$0xff] %v9067
        %9278 = vst [vmem:[%s285 + $0x508] sm:$0xff] %v9068
        %9279 = vst [vmem:[%s285 + $0x510] sm:$0xff] %v9069
        %9280 = vst [vmem:[%s285 + $0x518] sm:$0xff] %v9070
        %9281 = vst [vmem:[%s285 + $0x520] sm:$0xff] %v9071
        %9282 = vst [vmem:[%s285 + $0x528] sm:$0xff] %v9072
        %9283 = vst [vmem:[%s285 + $0x530] sm:$0xff] %v9073
        %9284 = vst [vmem:[%s285 + $0x538] sm:$0xff] %v9074
        %9285 = vst [vmem:[%s285 + $0x540] sm:$0xff] %v9075
        %9286 = vst [vmem:[%s285 + $0x548] sm:$0xff] %v9076
        %9287 = vst [vmem:[%s285 + $0x550] sm:$0xff] %v9077
        %9288 = vst [vmem:[%s285 + $0x558] sm:$0xff] %v9078
        %9289 = vst [vmem:[%s285 + $0x560] sm:$0xff] %v9079
        %9290 = vst [vmem:[%s285 + $0x568] sm:$0xff] %v9080
        %9291 = vst [vmem:[%s285 + $0x570] sm:$0xff] %v9081
        %9292 = vst [vmem:[%s285 + $0x578] sm:$0xff] %v9082
        %9293 = vst [vmem:[%s285 + $0x580] sm:$0xff] %v9083
        %9294 = vst [vmem:[%s285 + $0x588] sm:$0xff] %v9084
        %9295 = vst [vmem:[%s285 + $0x590] sm:$0xff] %v9085
        %9296 = vst [vmem:[%s285 + $0x598] sm:$0xff] %v9086
        %9297 = vst [vmem:[%s285 + $0x5a0] sm:$0xff] %v9087
        %9298 = vst [vmem:[%s285 + $0x5a8] sm:$0xff] %v9088
        %9299 = vst [vmem:[%s285 + $0x5b0] sm:$0xff] %v9089
        %9300 = vst [vmem:[%s285 + $0x5b8] sm:$0xff] %v9090
        %9301 = vst [vmem:[%s285 + $0x5c0] sm:$0xff] %v9091
        %9302 = vst [vmem:[%s285 + $0x5c8] sm:$0xff] %v9092
        %9303 = vst [vmem:[%s285 + $0x5d0] sm:$0xff] %v9093
        %9304 = vst [vmem:[%s285 + $0x5d8] sm:$0xff] %v9094
        %9305 = vst [vmem:[%s285 + $0x5e0] sm:$0xff] %v9095
        %9306 = vst [vmem:[%s285 + $0x5e8] sm:$0xff] %v9096
        %9307 = vst [vmem:[%s285 + $0x5f0] sm:$0xff] %v9097
        %9308 = vst [vmem:[%s285 + $0x5f8] sm:$0xff] %v9098
        %9309 = vst [vmem:[%s285 + $0x600] sm:$0xff] %v9099
        %9310 = vst [vmem:[%s285 + $0x608] sm:$0xff] %v9100
        %9311 = vst [vmem:[%s285 + $0x610] sm:$0xff] %v9101
        %9312 = vst [vmem:[%s285 + $0x618] sm:$0xff] %v9102
        %9313 = vst [vmem:[%s285 + $0x620] sm:$0xff] %v9103
        %9314 = vst [vmem:[%s285 + $0x628] sm:$0xff] %v9104
        %9315 = vst [vmem:[%s285 + $0x630] sm:$0xff] %v9105
        %9316 = vst [vmem:[%s285 + $0x638] sm:$0xff] %v9106
        %9317 = vst [vmem:[%s285 + $0x640] sm:$0xff] %v9107
        %9318 = vst [vmem:[%s285 + $0x648] sm:$0xff] %v9108
        %9319 = vst [vmem:[%s285 + $0x650] sm:$0xff] %v9109
        %9320 = vst [vmem:[%s285 + $0x658] sm:$0xff] %v9110
        %9321 = vst [vmem:[%s285 + $0x660] sm:$0xff] %v9111
        %9322 = vst [vmem:[%s285 + $0x668] sm:$0xff] %v9112
        %9323 = vst [vmem:[%s285 + $0x670] sm:$0xff] %v9113
        %9324 = vst [vmem:[%s285 + $0x678] sm:$0xff] %v9114
        %9325 = vst [vmem:[%s285 + $0x680] sm:$0xff] %v9115
        %9326 = vst [vmem:[%s285 + $0x688] sm:$0xff] %v9116
        %s9327 = sand.u32 %s136, 1
        %s9328 = scalar_lea.sflag [#allocation4], %s9327
        %s9329 = sand.u32 %s136, 1
        %s9330 = smul.addr %s9329, 1680
        %s9331 = scalar_lea.vmem [#allocation10], %s9330
        // Predicated region
        $region53: #{tpu_custom_call.1} parent=35 // pred_check
          %p9332 = pneg %p146
        $region54: #{tpu_custom_call.1} parent=35 // pred_check_branch
          %9334 = sbr.rel (%p9332) target = $region56
        $region55: #{tpu_custom_call.1} parent=35 // pred_region
          %s9335 = smul.u32 2, %s28
          %9337 = vsyncadd %s9328, 0
          %s9338 = smul.addr %s27, 210
          %s9339 = sadd.s32 %s9335, %s9338
          %s9340 = smul.addr %s9339, 8
          %s9341 = scalar_lea.hbm %s4, %s9340
          %s9342 = sshll.u32 %s9331, 4
          %s9343 = int_to_ptr.vmem [resolvable:$true] %s9342
          %s9344 = sshll.u32 %s9341, 4
          %s9345 = int_to_ptr.hbm [resolvable:$true] %s9344
          %9350 = dma.vmem_to_hbm [thread:$0]  %s9343, 26880, %s9345, %s9328, 256, 256, 16
        $region56: #{tpu_custom_call.1} parent=35 // pred_fallthru
          _
      $region36: #{tpu_custom_call.1} parent=5 // pred_fallthru
        _
      %p9351 = scmp.le.s32.totalorder 2, %s18
      // Predicated region
      $region57: #{tpu_custom_call.1} parent=5 // pred_check
        %p9352 = pneg %p9351
      $region58: #{tpu_custom_call.1} parent=5 // pred_check_branch
        %9354 = sbr.rel (%p9352) target = $region60
      $region59: #{tpu_custom_call.1} parent=5 // pred_region
        %s9355 = ssub.s32 %s18, 2
        // Predicated region
        $region61: #{tpu_custom_call.1} parent=59 // pred_check
          %p9356 = pneg %p152
        $region62: #{tpu_custom_call.1} parent=59 // pred_check_branch
          %9358 = sbr.rel (%p9356) target = $region64
        $region63: #{tpu_custom_call.1} parent=59 // pred_region
          %s9359 = sand.u32 %s137, 1
          %s9360 = scalar_lea.sflag [#allocation4], %s9359
          %s9361 = sand.u32 %s137, 1
          %s9362 = smul.addr %s9361, 1680
          %s9363 = scalar_lea.vmem [#allocation10], %s9362
          %9365 = dma.done %s9360, 26880
        $region64: #{tpu_custom_call.1} parent=59 // pred_fallthru
          _
      $region60: #{tpu_custom_call.1} parent=5 // pred_fallthru
        _
    $region6: #{tpu_custom_call.1} parent=1 // loop_footer
      %s22 = sadd.s32 1, %s18
    $region7: #{tpu_custom_call.1} parent=1 // loop_footer_branch
      %17 = sbr.rel target = $region3
    $region8: #{tpu_custom_call.1} parent=1 // loop_exit
      _
    %9366 = vsyncpa [#allocation3], 1
    %s9367 = scalar_lea.sflag [#allocation3], 1
    %9368 = vsyncpa %s9367, 1
    %9369 = vsyncpa [#allocation6], 1
    %9370 = vsyncpa [#allocation9], 1
    %9371 = vsyncpa [#allocation4], 1
    %s9372 = scalar_lea.sflag [#allocation4], 1
    %9373 = vsyncpa %s9372, 1

</llo_original>
